<compile_context>
chip_gen: v6e
topology: v6e:2x2x1
jax: 0.10.0
libtpu: 0.0.40
codegen_flags: <defaults>
</compile_context>

<pallas_src>
import functools

import jax
import jax.numpy as jnp
from jax.experimental import pallas as pl
from jax.experimental.pallas import tpu as pltpu

# Keep the offline weight composition and the pure-JAX reference at true f32
# precision so the 1e-4 correctness check is meaningful.
jax.config.update("jax_default_matmul_precision", "highest")

_HIGHEST = jax.lax.Precision.HIGHEST


def _round_up(x, m):
    return ((x + m - 1) // m) * m


# ----------------------------------------------------------------------------
# Pallas kernel: tiled matmul + bias (lane-dense output, no K reduction axis)
# ----------------------------------------------------------------------------
def _matmul_bias_kernel(x_ref, w_ref, b_ref, o_ref):
    # x_ref: (tm, K)   w_ref: (K, tn)   b_ref: (1, tn)   o_ref: (tm, tn)
    acc = jnp.dot(x_ref[...], w_ref[...], preferred_element_type=jnp.float32)
    o_ref[...] = (acc + b_ref[...]).astype(o_ref.dtype)


def _pick_tiles(M, K, Ncol, in_itemsize, out_itemsize,
                vmem_budget=28 * 1024 * 1024):
    """Largest (tm, tn) whose double-buffered working set fits the VMEM budget.

    tn starts at the full Ncol (= num_class*1024, always a multiple of 128) and
    is halved (staying a multiple of 128 and an exact divisor of Ncol) only if
    the composed weight block is too large; tm shrinks last.
    """
    tm = min(512, _round_up(M, 8))
    tn = Ncol

    def vmem_bytes(tm_, tn_):
        return (2 * tm_ * K * in_itemsize          # x tiles (double buffered)
                + 2 * K * tn_ * in_itemsize        # weight tile
                + 2 * tm_ * tn_ * out_itemsize     # output tile
                + tn_ * 4)                         # f32 bias

    while vmem_bytes(tm, tn) > vmem_budget and tn > 1024 and tn % 256 == 0:
        tn //= 2
    while vmem_bytes(tm, tn) > vmem_budget and tm > 64:
        tm = max(64, _round_up(tm // 2, 8))
    return tm, tn


def matmul_bias(x, w, b, out_dtype=jnp.float32):
    """y = x @ w + b with x:(M,K), w:(K,Ncol), b:(Ncol,). Tiled over (cols, rows)."""
    M, K = x.shape
    Ncol = w.shape[1]
    tm, tn = _pick_tiles(M, K, Ncol, x.dtype.itemsize,
                         jnp.dtype(out_dtype).itemsize)
    # Column tiles on the OUTER axis -> weight block invariant along the inner
    # (row) axis, so it is DMA'd once per column tile and stays resident.
    grid = (Ncol // tn, pl.cdiv(M, tm))

    cost = pl.CostEstimate(
        flops=2 * M * K * Ncol,
        transcendentals=0,
        bytes_accessed=(M * K * x.dtype.itemsize
                        + K * Ncol * w.dtype.itemsize
                        + Ncol * 4
                        + M * Ncol * jnp.dtype(out_dtype).itemsize),
    )

    return pl.pallas_call(
        _matmul_bias_kernel,
        out_shape=jax.ShapeDtypeStruct((M, Ncol), out_dtype),
        grid=grid,
        in_specs=[
            pl.BlockSpec((tm, K), lambda j, i: (i, 0)),   # activations
            pl.BlockSpec((K, tn), lambda j, i: (0, j)),   # composed weights
            pl.BlockSpec((1, tn), lambda j, i: (0, j)),   # f32 bias
        ],
        out_specs=pl.BlockSpec((tm, tn), lambda j, i: (i, j)),
        compiler_params=pltpu.CompilerParams(
            dimension_semantics=("parallel", "parallel"),
            vmem_limit_bytes=32 * 1024 * 1024,            # fits v5e/v6e/v7x budgets
        ),
        cost_estimate=cost,
    )(x, w, b.reshape(1, Ncol).astype(jnp.float32))


# ----------------------------------------------------------------------------
# Offline composition of the 5 ConvTranspose2d(2,2) layers + final 1x1 Conv2d
# into a single per-pixel affine map.
# ----------------------------------------------------------------------------
def compose_affine(params, in_channels, num_class):
    """Returns W_comb:(Cin, num_class*S*S), b_comb:(num_class*S*S,), S (=32)."""
    cin = in_channels
    # T[a, i, j, c]: contribution of input channel a to (i, j, channel c) of the
    # per-pixel output block.  B[i, j, c]: accumulated bias.
    T = jnp.eye(cin, dtype=jnp.float32).reshape(cin, 1, 1, cin)
    B = jnp.zeros((1, 1, cin), jnp.float32)
    for i in range(1, 6):
        Wl = params[f"up_{i}_w"]          # (c, co, kh, kw) PyTorch ConvT layout
        bl = params[f"up_{i}_b"]          # (co,)
        s = T.shape[1]
        co = Wl.shape[1]
        # out[2i+kh, 2j+kw, co] = sum_c in[i, j, c] * W[c, co, kh, kw] (+ b[co])
        T = jnp.einsum("aijc,cokl->aikjlo", T, Wl,
                       precision=_HIGHEST).reshape(cin, 2 * s, 2 * s, co)
        B = (jnp.einsum("ijc,cokl->ikjlo", B, Wl,
                        precision=_HIGHEST) + bl).reshape(2 * s, 2 * s, co)
    Wf = params["final_w"].reshape(params["final_w"].shape[0], -1)  # (num_class, 16)
    bf = params["final_b"]
    # Column order (class, dy, dx) -> final reshape lands directly in NCHW.
    T = jnp.einsum("aijc,oc->aoij", T, Wf, precision=_HIGHEST)      # (cin, nc, S, S)
    B = jnp.einsum("ijc,oc->oij", B, Wf,
                   precision=_HIGHEST) + bf[:, None, None]          # (nc, S, S)
    S = T.shape[2]
    return (T.reshape(cin, num_class * S * S),
            B.reshape(num_class * S * S), S)


# ----------------------------------------------------------------------------
# SegmentationBlock forward (Dropout(0.1) -> identity at inference)
# ----------------------------------------------------------------------------
def segmentation_block_forward(x_nchw, w_comb, b_comb, num_class, scale,
                               compute_dtype=jnp.float32):
    n, cin, h, w = x_nchw.shape
    rows = jnp.transpose(x_nchw, (0, 2, 3, 1)).reshape(n * h * w, cin)
    rows = rows.astype(compute_dtype)
    y = matmul_bias(rows, w_comb.astype(compute_dtype), b_comb)
    # Single layout fix: (rows, nc*S*S) -> NCHW.
    y = y.reshape(n, h, w, num_class, scale, scale)
    y = jnp.transpose(y, (0, 3, 1, 4, 2, 5))
    return y.reshape(n, num_class, h * scale, w * scale)


# Pure-JAX per-layer reference (same math as the PyTorch module) for validation.
def _reference_forward(x_nchw, params):
    x = jnp.transpose(x_nchw, (0, 2, 3, 1))
    for i in range(1, 6):
        w, b = params[f"up_{i}_w"], params[f"up_{i}_b"]
        n, h, wd, cin = x.shape
        cout = w.shape[1]
        y = x.reshape(n * h * wd, cin) @ w.reshape(cin, cout * 4) + jnp.repeat(b, 4)
        x = y.reshape(n, h, wd, cout, 2, 2).transpose(0, 1, 4, 2, 5, 3)
        x = x.reshape(n, 2 * h, 2 * wd, cout)
    w, b = params["final_w"], params["final_b"]
    n, h, wd, cin = x.shape
    cout = w.shape[0]
    y = x.reshape(n * h * wd, cin) @ w.reshape(cout, cin).T + b
    return jnp.transpose(y.reshape(n, h, wd, cout), (0, 3, 1, 2))


# ----------------------------------------------------------------------------
# Deterministic parameter construction (PyTorch layouts)
# ----------------------------------------------------------------------------
def make_params(key, in_channels, num_class):
    chans = [in_channels, 256, 128, 64, 32, 16]
    params = {}
    keys = jax.random.split(key, 12)
    ki = 0
    for i in range(1, 6):
        cin, cout = chans[i - 1], chans[i]
        scale = 1.0 / jnp.sqrt(cin * 4.0)
        params[f"up_{i}_w"] = scale * jax.random.normal(
            keys[ki], (cin, cout, 2, 2), jnp.float32)        # ConvTranspose2d layout
        params[f"up_{i}_b"] = scale * jax.random.normal(
            keys[ki + 1], (cout,), jnp.float32)
        ki += 2
    scale = 1.0 / jnp.sqrt(16.0)
    params["final_w"] = scale * jax.random.normal(
        keys[ki], (num_class, 16, 1, 1), jnp.float32)        # Conv2d 1x1 layout
    params["final_b"] = scale * jax.random.normal(
        keys[ki + 1], (num_class,), jnp.float32)
    return params


if __name__ == "__main__":
    # Synthetic stand-in for num_channels_fc[backbone_name]
    IN_CHANNELS = 64
    NUM_CLASS = 3
    N, H, W = 2, 4, 4

    key = jax.random.PRNGKey(0)
    k_x, k_p = jax.random.split(key)
    x = jax.random.normal(k_x, (N, IN_CHANNELS, H, W), jnp.float32)
    params = make_params(k_p, IN_CHANNELS, NUM_CLASS)

    # Weight prep (done once, outside the hot path).
    w_comb, b_comb, scale = compose_affine(params, IN_CHANNELS, NUM_CLASS)

    fwd = jax.jit(functools.partial(
        segmentation_block_forward, w_comb=w_comb, b_comb=b_comb,
        num_class=NUM_CLASS, scale=scale))
    out = jax.block_until_ready(fwd(x))

    assert out.shape == (N, NUM_CLASS, H * 32, W * 32), out.shape
    ref = _reference_forward(x, params)
    assert jnp.allclose(out, ref, atol=1e-4, rtol=1e-4), "f32 mismatch vs reference"

    # bf16 fast path (halves HBM read traffic; key on v5e) -- loose tolerance check.
    out_bf16 = jax.block_until_ready(segmentation_block_forward(
        x, w_comb, b_comb, NUM_CLASS, scale, compute_dtype=jnp.bfloat16))
    assert float(jnp.max(jnp.abs(out_bf16 - ref))) < 2e-2, "bf16 mismatch vs reference"

    print("KERNEL_OK")
</pallas_src>

<mosaic_0001>
module attributes {stable_mosaic.version = 11 : i64} {
  func.func @_matmul_bias_kernel(%arg0: i32, %arg1: i32, %arg2: memref<32x64xf32, #tpu.memory_space<vmem>>, %arg3: memref<64x3072xf32, #tpu.memory_space<vmem>>, %arg4: memref<1x3072xf32, #tpu.memory_space<vmem>>, %arg5: memref<32x3072xf32, #tpu.memory_space<vmem>>) attributes {dimension_semantics = [#tpu.dimension_semantics<parallel>, #tpu.dimension_semantics<parallel>], iteration_bounds = array<i64: 1, 1>, scalar_prefetch = 0 : i64, scratch_operands = 0 : i64, tpu.core_type = #tpu.core_type<tc>, window_params = [{transform_indices = @transform_0, window_bounds = array<i64: 32, 64>}, {transform_indices = @transform_1, window_bounds = array<i64: 64, 3072>}, {transform_indices = @transform_2, window_bounds = array<i64: 1, 3072>}, {transform_indices = @transform_3, window_bounds = array<i64: 32, 3072>}]} {
    %c0 = arith.constant 0 : index
    %c0_0 = arith.constant 0 : index
    %0 = vector.load %arg2[%c0, %c0_0] : memref<32x64xf32, #tpu.memory_space<vmem>>, vector<32x64xf32>
    %c0_1 = arith.constant 0 : index
    %c0_2 = arith.constant 0 : index
    %1 = vector.load %arg3[%c0_1, %c0_2] : memref<64x3072xf32, #tpu.memory_space<vmem>>, vector<64x3072xf32>
    %cst = arith.constant dense<0.000000e+00> : vector<32x3072xf32>
    %2 = tpu.matmul %0, %1, %cst {dimension_numbers = #tpu.dot_dimension_numbers<[1], [0], [0], [1], [0, 0, 1, 1], [], []>, precision = #tpu.contract_precision<fp32>} : vector<32x64xf32>, vector<64x3072xf32>, vector<32x3072xf32> -> vector<32x3072xf32>
    %c0_3 = arith.constant 0 : index
    %c0_4 = arith.constant 0 : index
    %3 = vector.load %arg4[%c0_3, %c0_4] : memref<1x3072xf32, #tpu.memory_space<vmem>>, vector<1x3072xf32>
    %4 = vector.broadcast %3 : vector<1x3072xf32> to vector<32x3072xf32>
    %5 = arith.addf %2, %4 : vector<32x3072xf32>
    %c0_5 = arith.constant 0 : index
    %c0_6 = arith.constant 0 : index
    %6 = vector.load %arg5[%c0_5, %c0_6] : memref<32x3072xf32, #tpu.memory_space<vmem>>, vector<32x3072xf32>
    tpu.vector_store %arg5[%c0_5, %c0_6], %5 {strides = array<i32>} : memref<32x3072xf32, #tpu.memory_space<vmem>>, vector<32x3072xf32>,
    return
  }
  func.func @transform_0(%arg0: i32, %arg1: i32) -> (i32, i32) {
    %c0_i32 = arith.constant 0 : i32
    %c0_i32_0 = arith.constant 0 : i32
    return %arg1, %c0_i32 : i32, i32
  }
  func.func @transform_1(%arg0: i32, %arg1: i32) -> (i32, i32) {
    %c0_i32 = arith.constant 0 : i32
    %c0_i32_0 = arith.constant 0 : i32
    return %c0_i32, %arg0 : i32, i32
  }
  func.func @transform_2(%arg0: i32, %arg1: i32) -> (i32, i32) {
    %c0_i32 = arith.constant 0 : i32
    %c0_i32_0 = arith.constant 0 : i32
    return %c0_i32, %arg0 : i32, i32
  }
  func.func @transform_3(%arg0: i32, %arg1: i32) -> (i32, i32) {
    %c0_i32 = arith.constant 0 : i32
    return %arg1, %arg0 : i32, i32
  }
}

</mosaic_0001>

<llo_original>
// kernel: segmentation_block_forward.1
$region0: #{segmentation_block_forward.1}
  #allocation0 [shape = 'u32[]', space=smem, size = 0x4, offset = 0x4, fixed_abs, tag = 'smem constant byte address 0x4 - core index']
  #allocation1 [shape = 'u32[144,128]{1,0:T(1,128)}', space=vmem, size = 0x12000, scoped, tag = 'internal scratch']
  %s0 = inlined_call_operand.hbm [shape: f32[32,64], index: 0, kind: input, shape index: {}]
  %s1 = inlined_call_operand.hbm [shape: f32[64,3072], index: 1, kind: input, shape index: {}]
  %s2 = inlined_call_operand.hbm [shape: f32[1,3072], index: 2, kind: input, shape index: {}]
  %s3 = inlined_call_operand.vmem [shape: f32[32,3072], index: 3, kind: output, shape index: {}]
  %s4 = sld [smem:[#allocation0]]
  $region34: #{segmentation_block_forward.1} parent=0
    _
  %s6 = ssub.s32 1, %s4
  %s7 = scalar_select 0, %s6, %s4
  $region1: #{segmentation_block_forward.1} parent=0
    #allocation2 [shape = 'u8[16384]{0}', space=vmem, size = 0x4000, scoped, tag = 'input window, operand 0, single buffered']
    #allocation3 [shape = 's32[1]{0}', space=sflag, size = 0x4, scoped, tag = 'scoped memory for segmentation_block_forward.1']
    #allocation4 [shape = 'u8[786432]{0}', space=vmem, size = 0xc0000, scoped, tag = 'input window, operand 1, single buffered']
    #allocation5 [shape = 's32[1]{0}', space=sflag, size = 0x4, scoped, tag = 'scoped memory for segmentation_block_forward.1']
    #allocation6 [shape = 'u8[12288]{0}', space=vmem, size = 0x3000, scoped, tag = 'input window, operand 2, single buffered']
    %8 = vsyncpa [#allocation3], 0
    %9 = vsyncpa [#allocation5], 0
    // Predicated region
    $region2: #{segmentation_block_forward.1} parent=1 // pred_check
      _
    $region3: #{segmentation_block_forward.1} parent=1 // pred_check_branch
      %11 = sbr.rel (0) target = $region5
    $region4: #{segmentation_block_forward.1} parent=1 // pred_region
      %s13 = ssub.s32 512, 512
      %14 = vsyncadd [#allocation3], %s13
      %s15 = sshll.u32 [#allocation2], 4
      %s16 = int_to_ptr.vmem [resolvable:$true] %s15
      %21 = dma.hbm_to_vmem [thread:$0]  %s0, 512, %s16, [#allocation3], 128, 128, 8
    $region5: #{segmentation_block_forward.1} parent=1 // pred_fallthru
      _
    // Predicated region
    $region6: #{segmentation_block_forward.1} parent=1 // pred_check
      _
    $region7: #{segmentation_block_forward.1} parent=1 // pred_check_branch
      %23 = sbr.rel (0) target = $region9
    $region8: #{segmentation_block_forward.1} parent=1 // pred_region
      %s25 = ssub.s32 24576, 24576
      %26 = vsyncadd [#allocation5], %s25
      %s27 = sshll.u32 [#allocation4], 4
      %s28 = int_to_ptr.vmem [resolvable:$true] %s27
      %33 = dma.hbm_to_vmem [thread:$0]  %s1, 24576, %s28, [#allocation5], 3072, 3072, 192
    $region9: #{segmentation_block_forward.1} parent=1 // pred_fallthru
      _
    // Predicated region
    $region10: #{segmentation_block_forward.1} parent=1 // pred_check
      _
    $region11: #{segmentation_block_forward.1} parent=1 // pred_check_branch
      %35 = sbr.rel (0) target = $region13
    $region12: #{segmentation_block_forward.1} parent=1 // pred_region
      %s37 = ssub.s32 384, 384
      %38 = vsyncadd [#allocation5], %s37
      %s40 = sshll.u32 [#allocation6], 4
      %s41 = int_to_ptr.vmem [resolvable:$true] %s40
      %43 = dma.hbm_to_vmem [thread:$0]  %s2, 384, %s41, [#allocation5]
    $region13: #{segmentation_block_forward.1} parent=1 // pred_fallthru
      _
    // Predicated region
    $region14: #{segmentation_block_forward.1} parent=1 // pred_check
      _
    $region15: #{segmentation_block_forward.1} parent=1 // pred_check_branch
      %45 = sbr.rel (0) target = $region17
    $region16: #{segmentation_block_forward.1} parent=1 // pred_region
      %46 = dma.done [#allocation3], 512
    $region17: #{segmentation_block_forward.1} parent=1 // pred_fallthru
      _
    // Predicated region
    $region18: #{segmentation_block_forward.1} parent=1 // pred_check
      _
    $region19: #{segmentation_block_forward.1} parent=1 // pred_check_branch
      %48 = sbr.rel (0) target = $region21
    $region20: #{segmentation_block_forward.1} parent=1 // pred_region
      %49 = dma.done [#allocation5], 24576
    $region21: #{segmentation_block_forward.1} parent=1 // pred_fallthru
      _
    // Predicated region
    $region22: #{segmentation_block_forward.1} parent=1 // pred_check
      _
    $region23: #{segmentation_block_forward.1} parent=1 // pred_check_branch
      %51 = sbr.rel (0) target = $region25
    $region24: #{segmentation_block_forward.1} parent=1 // pred_region
      %52 = dma.done [#allocation5], 384
    $region25: #{segmentation_block_forward.1} parent=1 // pred_fallthru
      _
    %v53 = vld [vmem:[#allocation2] sm:$0xff]
    %v54 = vld [vmem:[#allocation2 + $0x8] sm:$0xff]
    %v55 = vld [vmem:[#allocation2 + $0x10] sm:$0xff]
    %v56 = vld [vmem:[#allocation2 + $0x18] sm:$0xff]
    %v57 = vld [vmem:[#allocation4] sm:$0xff]
    %v58 = vld [vmem:[#allocation4 + $0x8] sm:$0xff]
    %v59 = vld [vmem:[#allocation4 + $0x10] sm:$0xff]
    %v60 = vld [vmem:[#allocation4 + $0x18] sm:$0xff]
    %v61 = vld [vmem:[#allocation4 + $0x20] sm:$0xff]
    %v62 = vld [vmem:[#allocation4 + $0x28] sm:$0xff]
    %v63 = vld [vmem:[#allocation4 + $0x30] sm:$0xff]
    %v64 = vld [vmem:[#allocation4 + $0x38] sm:$0xff]
    %v65 = vld [vmem:[#allocation4 + $0x40] sm:$0xff]
    %v66 = vld [vmem:[#allocation4 + $0x48] sm:$0xff]
    %v67 = vld [vmem:[#allocation4 + $0x50] sm:$0xff]
    %v68 = vld [vmem:[#allocation4 + $0x58] sm:$0xff]
    %v69 = vld [vmem:[#allocation4 + $0x60] sm:$0xff]
    %v70 = vld [vmem:[#allocation4 + $0x68] sm:$0xff]
    %v71 = vld [vmem:[#allocation4 + $0x70] sm:$0xff]
    %v72 = vld [vmem:[#allocation4 + $0x78] sm:$0xff]
    %v73 = vld [vmem:[#allocation4 + $0x80] sm:$0xff]
    %v74 = vld [vmem:[#allocation4 + $0x88] sm:$0xff]
    %v75 = vld [vmem:[#allocation4 + $0x90] sm:$0xff]
    %v76 = vld [vmem:[#allocation4 + $0x98] sm:$0xff]
    %v77 = vld [vmem:[#allocation4 + $0xa0] sm:$0xff]
    %v78 = vld [vmem:[#allocation4 + $0xa8] sm:$0xff]
    %v79 = vld [vmem:[#allocation4 + $0xb0] sm:$0xff]
    %v80 = vld [vmem:[#allocation4 + $0xb8] sm:$0xff]
    %v81 = vld [vmem:[#allocation4 + $0xc0] sm:$0xff]
    %v82 = vld [vmem:[#allocation4 + $0xc8] sm:$0xff]
    %v83 = vld [vmem:[#allocation4 + $0xd0] sm:$0xff]
    %v84 = vld [vmem:[#allocation4 + $0xd8] sm:$0xff]
    %v85 = vld [vmem:[#allocation4 + $0xe0] sm:$0xff]
    %v86 = vld [vmem:[#allocation4 + $0xe8] sm:$0xff]
    %v87 = vld [vmem:[#allocation4 + $0xf0] sm:$0xff]
    %v88 = vld [vmem:[#allocation4 + $0xf8] sm:$0xff]
    %v89 = vld [vmem:[#allocation4 + $0x100] sm:$0xff]
    %v90 = vld [vmem:[#allocation4 + $0x108] sm:$0xff]
    %v91 = vld [vmem:[#allocation4 + $0x110] sm:$0xff]
    %v92 = vld [vmem:[#allocation4 + $0x118] sm:$0xff]
    %v93 = vld [vmem:[#allocation4 + $0x120] sm:$0xff]
    %v94 = vld [vmem:[#allocation4 + $0x128] sm:$0xff]
    %v95 = vld [vmem:[#allocation4 + $0x130] sm:$0xff]
    %v96 = vld [vmem:[#allocation4 + $0x138] sm:$0xff]
    %v97 = vld [vmem:[#allocation4 + $0x140] sm:$0xff]
    %v98 = vld [vmem:[#allocation4 + $0x148] sm:$0xff]
    %v99 = vld [vmem:[#allocation4 + $0x150] sm:$0xff]
    %v100 = vld [vmem:[#allocation4 + $0x158] sm:$0xff]
    %v101 = vld [vmem:[#allocation4 + $0x160] sm:$0xff]
    %v102 = vld [vmem:[#allocation4 + $0x168] sm:$0xff]
    %v103 = vld [vmem:[#allocation4 + $0x170] sm:$0xff]
    %v104 = vld [vmem:[#allocation4 + $0x178] sm:$0xff]
    %v105 = vld [vmem:[#allocation4 + $0x180] sm:$0xff]
    %v106 = vld [vmem:[#allocation4 + $0x188] sm:$0xff]
    %v107 = vld [vmem:[#allocation4 + $0x190] sm:$0xff]
    %v108 = vld [vmem:[#allocation4 + $0x198] sm:$0xff]
    %v109 = vld [vmem:[#allocation4 + $0x1a0] sm:$0xff]
    %v110 = vld [vmem:[#allocation4 + $0x1a8] sm:$0xff]
    %v111 = vld [vmem:[#allocation4 + $0x1b0] sm:$0xff]
    %v112 = vld [vmem:[#allocation4 + $0x1b8] sm:$0xff]
    %v113 = vld [vmem:[#allocation4 + $0x1c0] sm:$0xff]
    %v114 = vld [vmem:[#allocation4 + $0x1c8] sm:$0xff]
    %v115 = vld [vmem:[#allocation4 + $0x1d0] sm:$0xff]
    %v116 = vld [vmem:[#allocation4 + $0x1d8] sm:$0xff]
    %v117 = vld [vmem:[#allocation4 + $0x1e0] sm:$0xff]
    %v118 = vld [vmem:[#allocation4 + $0x1e8] sm:$0xff]
    %v119 = vld [vmem:[#allocation4 + $0x1f0] sm:$0xff]
    %v120 = vld [vmem:[#allocation4 + $0x1f8] sm:$0xff]
    %v121 = vld [vmem:[#allocation4 + $0x200] sm:$0xff]
    %v122 = vld [vmem:[#allocation4 + $0x208] sm:$0xff]
    %v123 = vld [vmem:[#allocation4 + $0x210] sm:$0xff]
    %v124 = vld [vmem:[#allocation4 + $0x218] sm:$0xff]
    %v125 = vld [vmem:[#allocation4 + $0x220] sm:$0xff]
    %v126 = vld [vmem:[#allocation4 + $0x228] sm:$0xff]
    %v127 = vld [vmem:[#allocation4 + $0x230] sm:$0xff]
    %v128 = vld [vmem:[#allocation4 + $0x238] sm:$0xff]
    %v129 = vld [vmem:[#allocation4 + $0x240] sm:$0xff]
    %v130 = vld [vmem:[#allocation4 + $0x248] sm:$0xff]
    %v131 = vld [vmem:[#allocation4 + $0x250] sm:$0xff]
    %v132 = vld [vmem:[#allocation4 + $0x258] sm:$0xff]
    %v133 = vld [vmem:[#allocation4 + $0x260] sm:$0xff]
    %v134 = vld [vmem:[#allocation4 + $0x268] sm:$0xff]
    %v135 = vld [vmem:[#allocation4 + $0x270] sm:$0xff]
    %v136 = vld [vmem:[#allocation4 + $0x278] sm:$0xff]
    %v137 = vld [vmem:[#allocation4 + $0x280] sm:$0xff]
    %v138 = vld [vmem:[#allocation4 + $0x288] sm:$0xff]
    %v139 = vld [vmem:[#allocation4 + $0x290] sm:$0xff]
    %v140 = vld [vmem:[#allocation4 + $0x298] sm:$0xff]
    %v141 = vld [vmem:[#allocation4 + $0x2a0] sm:$0xff]
    %v142 = vld [vmem:[#allocation4 + $0x2a8] sm:$0xff]
    %v143 = vld [vmem:[#allocation4 + $0x2b0] sm:$0xff]
    %v144 = vld [vmem:[#allocation4 + $0x2b8] sm:$0xff]
    %v145 = vld [vmem:[#allocation4 + $0x2c0] sm:$0xff]
    %v146 = vld [vmem:[#allocation4 + $0x2c8] sm:$0xff]
    %v147 = vld [vmem:[#allocation4 + $0x2d0] sm:$0xff]
    %v148 = vld [vmem:[#allocation4 + $0x2d8] sm:$0xff]
    %v149 = vld [vmem:[#allocation4 + $0x2e0] sm:$0xff]
    %v150 = vld [vmem:[#allocation4 + $0x2e8] sm:$0xff]
    %v151 = vld [vmem:[#allocation4 + $0x2f0] sm:$0xff]
    %v152 = vld [vmem:[#allocation4 + $0x2f8] sm:$0xff]
    %v153 = vld [vmem:[#allocation4 + $0x300] sm:$0xff]
    %v154 = vld [vmem:[#allocation4 + $0x308] sm:$0xff]
    %v155 = vld [vmem:[#allocation4 + $0x310] sm:$0xff]
    %v156 = vld [vmem:[#allocation4 + $0x318] sm:$0xff]
    %v157 = vld [vmem:[#allocation4 + $0x320] sm:$0xff]
    %v158 = vld [vmem:[#allocation4 + $0x328] sm:$0xff]
    %v159 = vld [vmem:[#allocation4 + $0x330] sm:$0xff]
    %v160 = vld [vmem:[#allocation4 + $0x338] sm:$0xff]
    %v161 = vld [vmem:[#allocation4 + $0x340] sm:$0xff]
    %v162 = vld [vmem:[#allocation4 + $0x348] sm:$0xff]
    %v163 = vld [vmem:[#allocation4 + $0x350] sm:$0xff]
    %v164 = vld [vmem:[#allocation4 + $0x358] sm:$0xff]
    %v165 = vld [vmem:[#allocation4 + $0x360] sm:$0xff]
    %v166 = vld [vmem:[#allocation4 + $0x368] sm:$0xff]
    %v167 = vld [vmem:[#allocation4 + $0x370] sm:$0xff]
    %v168 = vld [vmem:[#allocation4 + $0x378] sm:$0xff]
    %v169 = vld [vmem:[#allocation4 + $0x380] sm:$0xff]
    %v170 = vld [vmem:[#allocation4 + $0x388] sm:$0xff]
    %v171 = vld [vmem:[#allocation4 + $0x390] sm:$0xff]
    %v172 = vld [vmem:[#allocation4 + $0x398] sm:$0xff]
    %v173 = vld [vmem:[#allocation4 + $0x3a0] sm:$0xff]
    %v174 = vld [vmem:[#allocation4 + $0x3a8] sm:$0xff]
    %v175 = vld [vmem:[#allocation4 + $0x3b0] sm:$0xff]
    %v176 = vld [vmem:[#allocation4 + $0x3b8] sm:$0xff]
    %v177 = vld [vmem:[#allocation4 + $0x3c0] sm:$0xff]
    %v178 = vld [vmem:[#allocation4 + $0x3c8] sm:$0xff]
    %v179 = vld [vmem:[#allocation4 + $0x3d0] sm:$0xff]
    %v180 = vld [vmem:[#allocation4 + $0x3d8] sm:$0xff]
    %v181 = vld [vmem:[#allocation4 + $0x3e0] sm:$0xff]
    %v182 = vld [vmem:[#allocation4 + $0x3e8] sm:$0xff]
    %v183 = vld [vmem:[#allocation4 + $0x3f0] sm:$0xff]
    %v184 = vld [vmem:[#allocation4 + $0x3f8] sm:$0xff]
    %v185 = vld [vmem:[#allocation4 + $0x400] sm:$0xff]
    %v186 = vld [vmem:[#allocation4 + $0x408] sm:$0xff]
    %v187 = vld [vmem:[#allocation4 + $0x410] sm:$0xff]
    %v188 = vld [vmem:[#allocation4 + $0x418] sm:$0xff]
    %v189 = vld [vmem:[#allocation4 + $0x420] sm:$0xff]
    %v190 = vld [vmem:[#allocation4 + $0x428] sm:$0xff]
    %v191 = vld [vmem:[#allocation4 + $0x430] sm:$0xff]
    %v192 = vld [vmem:[#allocation4 + $0x438] sm:$0xff]
    %v193 = vld [vmem:[#allocation4 + $0x440] sm:$0xff]
    %v194 = vld [vmem:[#allocation4 + $0x448] sm:$0xff]
    %v195 = vld [vmem:[#allocation4 + $0x450] sm:$0xff]
    %v196 = vld [vmem:[#allocation4 + $0x458] sm:$0xff]
    %v197 = vld [vmem:[#allocation4 + $0x460] sm:$0xff]
    %v198 = vld [vmem:[#allocation4 + $0x468] sm:$0xff]
    %v199 = vld [vmem:[#allocation4 + $0x470] sm:$0xff]
    %v200 = vld [vmem:[#allocation4 + $0x478] sm:$0xff]
    %v201 = vld [vmem:[#allocation4 + $0x480] sm:$0xff]
    %v202 = vld [vmem:[#allocation4 + $0x488] sm:$0xff]
    %v203 = vld [vmem:[#allocation4 + $0x490] sm:$0xff]
    %v204 = vld [vmem:[#allocation4 + $0x498] sm:$0xff]
    %v205 = vld [vmem:[#allocation4 + $0x4a0] sm:$0xff]
    %v206 = vld [vmem:[#allocation4 + $0x4a8] sm:$0xff]
    %v207 = vld [vmem:[#allocation4 + $0x4b0] sm:$0xff]
    %v208 = vld [vmem:[#allocation4 + $0x4b8] sm:$0xff]
    %v209 = vld [vmem:[#allocation4 + $0x4c0] sm:$0xff]
    %v210 = vld [vmem:[#allocation4 + $0x4c8] sm:$0xff]
    %v211 = vld [vmem:[#allocation4 + $0x4d0] sm:$0xff]
    %v212 = vld [vmem:[#allocation4 + $0x4d8] sm:$0xff]
    %v213 = vld [vmem:[#allocation4 + $0x4e0] sm:$0xff]
    %v214 = vld [vmem:[#allocation4 + $0x4e8] sm:$0xff]
    %v215 = vld [vmem:[#allocation4 + $0x4f0] sm:$0xff]
    %v216 = vld [vmem:[#allocation4 + $0x4f8] sm:$0xff]
    %v217 = vld [vmem:[#allocation4 + $0x500] sm:$0xff]
    %v218 = vld [vmem:[#allocation4 + $0x508] sm:$0xff]
    %v219 = vld [vmem:[#allocation4 + $0x510] sm:$0xff]
    %v220 = vld [vmem:[#allocation4 + $0x518] sm:$0xff]
    %v221 = vld [vmem:[#allocation4 + $0x520] sm:$0xff]
    %v222 = vld [vmem:[#allocation4 + $0x528] sm:$0xff]
    %v223 = vld [vmem:[#allocation4 + $0x530] sm:$0xff]
    %v224 = vld [vmem:[#allocation4 + $0x538] sm:$0xff]
    %v225 = vld [vmem:[#allocation4 + $0x540] sm:$0xff]
    %v226 = vld [vmem:[#allocation4 + $0x548] sm:$0xff]
    %v227 = vld [vmem:[#allocation4 + $0x550] sm:$0xff]
    %v228 = vld [vmem:[#allocation4 + $0x558] sm:$0xff]
    %v229 = vld [vmem:[#allocation4 + $0x560] sm:$0xff]
    %v230 = vld [vmem:[#allocation4 + $0x568] sm:$0xff]
    %v231 = vld [vmem:[#allocation4 + $0x570] sm:$0xff]
    %v232 = vld [vmem:[#allocation4 + $0x578] sm:$0xff]
    %v233 = vld [vmem:[#allocation4 + $0x580] sm:$0xff]
    %v234 = vld [vmem:[#allocation4 + $0x588] sm:$0xff]
    %v235 = vld [vmem:[#allocation4 + $0x590] sm:$0xff]
    %v236 = vld [vmem:[#allocation4 + $0x598] sm:$0xff]
    %v237 = vld [vmem:[#allocation4 + $0x5a0] sm:$0xff]
    %v238 = vld [vmem:[#allocation4 + $0x5a8] sm:$0xff]
    %v239 = vld [vmem:[#allocation4 + $0x5b0] sm:$0xff]
    %v240 = vld [vmem:[#allocation4 + $0x5b8] sm:$0xff]
    %v241 = vld [vmem:[#allocation4 + $0x5c0] sm:$0xff]
    %v242 = vld [vmem:[#allocation4 + $0x5c8] sm:$0xff]
    %v243 = vld [vmem:[#allocation4 + $0x5d0] sm:$0xff]
    %v244 = vld [vmem:[#allocation4 + $0x5d8] sm:$0xff]
    %v245 = vld [vmem:[#allocation4 + $0x5e0] sm:$0xff]
    %v246 = vld [vmem:[#allocation4 + $0x5e8] sm:$0xff]
    %v247 = vld [vmem:[#allocation4 + $0x5f0] sm:$0xff]
    %v248 = vld [vmem:[#allocation4 + $0x5f8] sm:$0xff]
    %v249 = vld [vmem:[#allocation6] sm:$0xff]
    %v250 = vld [vmem:[#allocation6 + $0x8] sm:$0xff]
    %v251 = vld [vmem:[#allocation6 + $0x10] sm:$0xff]
    %v255 = vlaneseq
    %v256 = vshrl.u32 %v255, 7
    %v257 = vsub.s32 0, %v256
    %v258 = vrot.slane %v249, %v257
    %v259 = vlaneseq
    %v260 = vshrl.u32 %v259, 7
    %v261 = vsub.s32 1, %v260
    %v262 = vrot.slane %v249, %v261
    %v263 = vlaneseq
    %v264 = vshrl.u32 %v263, 7
    %v265 = vsub.s32 2, %v264
    %v266 = vrot.slane %v249, %v265
    %v267 = vlaneseq
    %v268 = vshrl.u32 %v267, 7
    %v269 = vsub.s32 3, %v268
    %v270 = vrot.slane %v249, %v269
    %v271 = vlaneseq
    %v272 = vshrl.u32 %v271, 7
    %v273 = vsub.s32 4, %v272
    %v274 = vrot.slane %v249, %v273
    %v275 = vlaneseq
    %v276 = vshrl.u32 %v275, 7
    %v277 = vsub.s32 5, %v276
    %v278 = vrot.slane %v249, %v277
    %v279 = vlaneseq
    %v280 = vshrl.u32 %v279, 7
    %v281 = vsub.s32 6, %v280
    %v282 = vrot.slane %v249, %v281
    %v283 = vlaneseq
    %v284 = vshrl.u32 %v283, 7
    %v285 = vsub.s32 7, %v284
    %v286 = vrot.slane %v249, %v285
    %v287 = vlaneseq
    %v288 = vshrl.u32 %v287, 7
    %v289 = vsub.s32 0, %v288
    %v290 = vrot.slane %v250, %v289
    %v291 = vlaneseq
    %v292 = vshrl.u32 %v291, 7
    %v293 = vsub.s32 1, %v292
    %v294 = vrot.slane %v250, %v293
    %v295 = vlaneseq
    %v296 = vshrl.u32 %v295, 7
    %v297 = vsub.s32 2, %v296
    %v298 = vrot.slane %v250, %v297
    %v299 = vlaneseq
    %v300 = vshrl.u32 %v299, 7
    %v301 = vsub.s32 3, %v300
    %v302 = vrot.slane %v250, %v301
    %v303 = vlaneseq
    %v304 = vshrl.u32 %v303, 7
    %v305 = vsub.s32 4, %v304
    %v306 = vrot.slane %v250, %v305
    %v307 = vlaneseq
    %v308 = vshrl.u32 %v307, 7
    %v309 = vsub.s32 5, %v308
    %v310 = vrot.slane %v250, %v309
    %v311 = vlaneseq
    %v312 = vshrl.u32 %v311, 7
    %v313 = vsub.s32 6, %v312
    %v314 = vrot.slane %v250, %v313
    %v315 = vlaneseq
    %v316 = vshrl.u32 %v315, 7
    %v317 = vsub.s32 7, %v316
    %v318 = vrot.slane %v250, %v317
    %v319 = vlaneseq
    %v320 = vshrl.u32 %v319, 7
    %v321 = vsub.s32 0, %v320
    %v322 = vrot.slane %v251, %v321
    %v323 = vlaneseq
    %v324 = vshrl.u32 %v323, 7
    %v325 = vsub.s32 1, %v324
    %v326 = vrot.slane %v251, %v325
    %v327 = vlaneseq
    %v328 = vshrl.u32 %v327, 7
    %v329 = vsub.s32 2, %v328
    %v330 = vrot.slane %v251, %v329
    %v331 = vlaneseq
    %v332 = vshrl.u32 %v331, 7
    %v333 = vsub.s32 3, %v332
    %v334 = vrot.slane %v251, %v333
    %v335 = vlaneseq
    %v336 = vshrl.u32 %v335, 7
    %v337 = vsub.s32 4, %v336
    %v338 = vrot.slane %v251, %v337
    %v339 = vlaneseq
    %v340 = vshrl.u32 %v339, 7
    %v341 = vsub.s32 5, %v340
    %v342 = vrot.slane %v251, %v341
    %v343 = vlaneseq
    %v344 = vshrl.u32 %v343, 7
    %v345 = vsub.s32 6, %v344
    %v346 = vrot.slane %v251, %v345
    %v347 = vlaneseq
    %v348 = vshrl.u32 %v347, 7
    %v349 = vsub.s32 7, %v348
    %v350 = vrot.slane %v251, %v349
    %vm375 = vcmask 523264
    %v377 = vsel %vm375, %v53, 0
    %v380 = vsel %vm375, %v54, 0
    %v383 = vsel %vm375, %v55, 0
    %v386 = vsel %vm375, %v56, 0
    %388 = vmatprep.subr.mxu0 0.0
    %389 = vmatpush1.msra.mxu0 0.0
    %390 = vmatprep.subr.mxu0 0.0
    %391 = vmatpush1.msra.mxu0 0.0
    %392 = vmatprep.subr.mxu0 0.0
    %393 = vmatpush1.msra.mxu0 0.0
    %394 = vmatprep.subr.mxu0 0.0
    %395 = vmatpush1.msra.mxu0 0.0
    %396 = vmatprep.subr.mxu0 0.0
    %397 = vmatpush1.msra.mxu0 0.0
    %398 = vmatprep.subr.mxu0 0.0
    %399 = vmatpush1.msra.mxu0 0.0
    %400 = vmatprep.subr.mxu0 0.0
    %401 = vmatpush1.msra.mxu0 0.0
    %402 = vmatprep.subr.mxu0 0.0
    %403 = vmatpush1.msra.mxu0 0.0
    %v404 = vand.u32 %v226, 4294901760
    %405 = vmatprep.subr.mxu0 %v404
    %v406 = vand.u32 %v225, 4294901760
    %407 = vmatpush1.msra.mxu0 %v406
    %v408 = vand.u32 %v202, 4294901760
    %409 = vmatprep.subr.mxu0 %v408
    %v410 = vand.u32 %v201, 4294901760
    %411 = vmatpush1.msra.mxu0 %v410
    %v412 = vand.u32 %v178, 4294901760
    %413 = vmatprep.subr.mxu0 %v412
    %v414 = vand.u32 %v177, 4294901760
    %415 = vmatpush1.msra.mxu0 %v414
    %v416 = vand.u32 %v154, 4294901760
    %417 = vmatprep.subr.mxu0 %v416
    %v418 = vand.u32 %v153, 4294901760
    %419 = vmatpush1.msra.mxu0 %v418
    %v420 = vand.u32 %v130, 4294901760
    %421 = vmatprep.subr.mxu0 %v420
    %v422 = vand.u32 %v129, 4294901760
    %423 = vmatpush1.msra.mxu0 %v422
    %v424 = vand.u32 %v106, 4294901760
    %425 = vmatprep.subr.mxu0 %v424
    %v426 = vand.u32 %v105, 4294901760
    %427 = vmatpush1.msra.mxu0 %v426
    %v428 = vand.u32 %v82, 4294901760
    %429 = vmatprep.subr.mxu0 %v428
    %v430 = vand.u32 %v81, 4294901760
    %431 = vmatpush1.msra.mxu0 %v430
    %v432 = vand.u32 %v58, 4294901760
    %433 = vmatprep.subr.mxu0 %v432
    %v434 = vand.u32 %v57, 4294901760
    %435 = vmatpush1.msra.mxu0 %v434
    %436 = vmatprep.subr.mxu0 0.0
    %437 = vmatpush2.msra.mxu0 0.0
    %438 = vmatprep.subr.mxu0 0.0
    %439 = vmatpush2.msra.mxu0 0.0
    %440 = vmatprep.subr.mxu0 0.0
    %441 = vmatpush2.msra.mxu0 0.0
    %442 = vmatprep.subr.mxu0 0.0
    %443 = vmatpush2.msra.mxu0 0.0
    %444 = vmatprep.subr.mxu0 0.0
    %445 = vmatpush2.msra.mxu0 0.0
    %446 = vmatprep.subr.mxu0 0.0
    %447 = vmatpush2.msra.mxu0 0.0
    %448 = vmatprep.subr.mxu0 0.0
    %449 = vmatpush2.msra.mxu0 0.0
    %450 = vmatprep.subr.mxu0 0.0
    %451 = vmatpush2.msra.mxu0 0.0
    %452 = vmatprep.subr.mxu0 0.0
    %453 = vmatpush2.msra.mxu0 0.0
    %454 = vmatprep.subr.mxu0 0.0
    %455 = vmatpush2.msra.mxu0 0.0
    %456 = vmatprep.subr.mxu0 0.0
    %457 = vmatpush2.msra.mxu0 0.0
    %458 = vmatprep.subr.mxu0 0.0
    %459 = vmatpush2.msra.mxu0 0.0
    %460 = vmatprep.subr.mxu0 0.0
    %461 = vmatpush2.msra.mxu0 0.0
    %462 = vmatprep.subr.mxu0 0.0
    %463 = vmatpush2.msra.mxu0 0.0
    %464 = vmatprep.subr.mxu0 0.0
    %465 = vmatpush2.msra.mxu0 0.0
    %466 = vmatprep.subr.mxu0 0.0
    %467 = vmatpush2.msra.mxu0 0.0
    %468 = vmatprep.mubr.f32.mxu0 0.0
    %v469 = vand.u32 %v377, 4294901760
    %v470 = vsub.f32 %v377, %v469
    %v471 = vand.u32 %v470, 4294901760
    %v472 = vsub.f32 %v470, %v471
    %v473 = vand.u32 %v472, 4294901760
    %474 = vmatmul.mubr.f32.gmra.mxu0 %v473
    %v475 = vpop.f32.mrf.mxu0
    %v476 = vadd.f32 %v258, %v475
    %v477 = vpop.f32.mrf.mxu0
    %v478 = vadd.f32 %v262, %v477
    %479 = vmatprep.mubr.f32.mxu0 0.0
    %v480 = vand.u32 %v380, 4294901760
    %v481 = vsub.f32 %v380, %v480
    %v482 = vand.u32 %v481, 4294901760
    %v483 = vsub.f32 %v481, %v482
    %v484 = vand.u32 %v483, 4294901760
    %485 = vmatmul.mubr.f32.gmra.mxu0 %v484
    %v486 = vpop.f32.mrf.mxu0
    %v487 = vadd.f32 %v258, %v486
    %v488 = vpop.f32.mrf.mxu0
    %v489 = vadd.f32 %v262, %v488
    %490 = vmatprep.mubr.f32.mxu0 0.0
    %v491 = vand.u32 %v383, 4294901760
    %v492 = vsub.f32 %v383, %v491
    %v493 = vand.u32 %v492, 4294901760
    %v494 = vsub.f32 %v492, %v493
    %v495 = vand.u32 %v494, 4294901760
    %496 = vmatmul.mubr.f32.gmra.mxu0 %v495
    %v497 = vpop.f32.mrf.mxu0
    %v498 = vadd.f32 %v258, %v497
    %v499 = vpop.f32.mrf.mxu0
    %v500 = vadd.f32 %v262, %v499
    %501 = vmatprep.mubr.f32.mxu0 0.0
    %v502 = vand.u32 %v386, 4294901760
    %v503 = vsub.f32 %v386, %v502
    %v504 = vand.u32 %v503, 4294901760
    %v505 = vsub.f32 %v503, %v504
    %v506 = vand.u32 %v505, 4294901760
    %507 = vmatmul.mubr.f32.gmra.mxu0 %v506
    %v508 = vpop.f32.mrf.mxu0
    %v509 = vadd.f32 %v258, %v508
    %v510 = vpop.f32.mrf.mxu0
    %v511 = vadd.f32 %v262, %v510
    %512 = vdwg.mxu0
    %513 = vmatprep.subr.mxu0 0.0
    %514 = vmatpush1.msra.mxu0 0.0
    %515 = vmatprep.subr.mxu0 0.0
    %516 = vmatpush1.msra.mxu0 0.0
    %517 = vmatprep.subr.mxu0 0.0
    %518 = vmatpush1.msra.mxu0 0.0
    %519 = vmatprep.subr.mxu0 0.0
    %520 = vmatpush1.msra.mxu0 0.0
    %521 = vmatprep.subr.mxu0 0.0
    %522 = vmatpush1.msra.mxu0 0.0
    %523 = vmatprep.subr.mxu0 0.0
    %524 = vmatpush1.msra.mxu0 0.0
    %525 = vmatprep.subr.mxu0 0.0
    %526 = vmatpush1.msra.mxu0 0.0
    %527 = vmatprep.subr.mxu0 0.0
    %528 = vmatpush1.msra.mxu0 0.0
    %v529 = vand.u32 %v226, 4294901760
    %v530 = vsub.f32 %v226, %v529
    %v531 = vand.u32 %v530, 4294901760
    %v532 = vsub.f32 %v530, %v531
    %v533 = vand.u32 %v532, 4294901760
    %534 = vmatprep.subr.mxu0 %v533
    %v535 = vand.u32 %v225, 4294901760
    %v536 = vsub.f32 %v225, %v535
    %v537 = vand.u32 %v536, 4294901760
    %v538 = vsub.f32 %v536, %v537
    %v539 = vand.u32 %v538, 4294901760
    %540 = vmatpush1.msra.mxu0 %v539
    %v541 = vand.u32 %v202, 4294901760
    %v542 = vsub.f32 %v202, %v541
    %v543 = vand.u32 %v542, 4294901760
    %v544 = vsub.f32 %v542, %v543
    %v545 = vand.u32 %v544, 4294901760
    %546 = vmatprep.subr.mxu0 %v545
    %v547 = vand.u32 %v201, 4294901760
    %v548 = vsub.f32 %v201, %v547
    %v549 = vand.u32 %v548, 4294901760
    %v550 = vsub.f32 %v548, %v549
    %v551 = vand.u32 %v550, 4294901760
    %552 = vmatpush1.msra.mxu0 %v551
    %v553 = vand.u32 %v178, 4294901760
    %v554 = vsub.f32 %v178, %v553
    %v555 = vand.u32 %v554, 4294901760
    %v556 = vsub.f32 %v554, %v555
    %v557 = vand.u32 %v556, 4294901760
    %558 = vmatprep.subr.mxu0 %v557
    %v559 = vand.u32 %v177, 4294901760
    %v560 = vsub.f32 %v177, %v559
    %v561 = vand.u32 %v560, 4294901760
    %v562 = vsub.f32 %v560, %v561
    %v563 = vand.u32 %v562, 4294901760
    %564 = vmatpush1.msra.mxu0 %v563
    %v565 = vand.u32 %v154, 4294901760
    %v566 = vsub.f32 %v154, %v565
    %v567 = vand.u32 %v566, 4294901760
    %v568 = vsub.f32 %v566, %v567
    %v569 = vand.u32 %v568, 4294901760
    %570 = vmatprep.subr.mxu0 %v569
    %v571 = vand.u32 %v153, 4294901760
    %v572 = vsub.f32 %v153, %v571
    %v573 = vand.u32 %v572, 4294901760
    %v574 = vsub.f32 %v572, %v573
    %v575 = vand.u32 %v574, 4294901760
    %576 = vmatpush1.msra.mxu0 %v575
    %v577 = vand.u32 %v130, 4294901760
    %v578 = vsub.f32 %v130, %v577
    %v579 = vand.u32 %v578, 4294901760
    %v580 = vsub.f32 %v578, %v579
    %v581 = vand.u32 %v580, 4294901760
    %582 = vmatprep.subr.mxu0 %v581
    %v583 = vand.u32 %v129, 4294901760
    %v584 = vsub.f32 %v129, %v583
    %v585 = vand.u32 %v584, 4294901760
    %v586 = vsub.f32 %v584, %v585
    %v587 = vand.u32 %v586, 4294901760
    %588 = vmatpush1.msra.mxu0 %v587
    %v589 = vand.u32 %v106, 4294901760
    %v590 = vsub.f32 %v106, %v589
    %v591 = vand.u32 %v590, 4294901760
    %v592 = vsub.f32 %v590, %v591
    %v593 = vand.u32 %v592, 4294901760
    %594 = vmatprep.subr.mxu0 %v593
    %v595 = vand.u32 %v105, 4294901760
    %v596 = vsub.f32 %v105, %v595
    %v597 = vand.u32 %v596, 4294901760
    %v598 = vsub.f32 %v596, %v597
    %v599 = vand.u32 %v598, 4294901760
    %600 = vmatpush1.msra.mxu0 %v599
    %v601 = vand.u32 %v82, 4294901760
    %v602 = vsub.f32 %v82, %v601
    %v603 = vand.u32 %v602, 4294901760
    %v604 = vsub.f32 %v602, %v603
    %v605 = vand.u32 %v604, 4294901760
    %606 = vmatprep.subr.mxu0 %v605
    %v607 = vand.u32 %v81, 4294901760
    %v608 = vsub.f32 %v81, %v607
    %v609 = vand.u32 %v608, 4294901760
    %v610 = vsub.f32 %v608, %v609
    %v611 = vand.u32 %v610, 4294901760
    %612 = vmatpush1.msra.mxu0 %v611
    %v613 = vand.u32 %v58, 4294901760
    %v614 = vsub.f32 %v58, %v613
    %v615 = vand.u32 %v614, 4294901760
    %v616 = vsub.f32 %v614, %v615
    %v617 = vand.u32 %v616, 4294901760
    %618 = vmatprep.subr.mxu0 %v617
    %v619 = vand.u32 %v57, 4294901760
    %v620 = vsub.f32 %v57, %v619
    %v621 = vand.u32 %v620, 4294901760
    %v622 = vsub.f32 %v620, %v621
    %v623 = vand.u32 %v622, 4294901760
    %624 = vmatpush1.msra.mxu0 %v623
    %625 = vmatprep.subr.mxu0 0.0
    %626 = vmatpush2.msra.mxu0 0.0
    %627 = vmatprep.subr.mxu0 0.0
    %628 = vmatpush2.msra.mxu0 0.0
    %629 = vmatprep.subr.mxu0 0.0
    %630 = vmatpush2.msra.mxu0 0.0
    %631 = vmatprep.subr.mxu0 0.0
    %632 = vmatpush2.msra.mxu0 0.0
    %633 = vmatprep.subr.mxu0 0.0
    %634 = vmatpush2.msra.mxu0 0.0
    %635 = vmatprep.subr.mxu0 0.0
    %636 = vmatpush2.msra.mxu0 0.0
    %637 = vmatprep.subr.mxu0 0.0
    %638 = vmatpush2.msra.mxu0 0.0
    %639 = vmatprep.subr.mxu0 0.0
    %640 = vmatpush2.msra.mxu0 0.0
    %641 = vmatprep.subr.mxu0 0.0
    %642 = vmatpush2.msra.mxu0 0.0
    %643 = vmatprep.subr.mxu0 0.0
    %644 = vmatpush2.msra.mxu0 0.0
    %645 = vmatprep.subr.mxu0 0.0
    %646 = vmatpush2.msra.mxu0 0.0
    %647 = vmatprep.subr.mxu0 0.0
    %648 = vmatpush2.msra.mxu0 0.0
    %649 = vmatprep.subr.mxu0 0.0
    %650 = vmatpush2.msra.mxu0 0.0
    %651 = vmatprep.subr.mxu0 0.0
    %652 = vmatpush2.msra.mxu0 0.0
    %653 = vmatprep.subr.mxu0 0.0
    %654 = vmatpush2.msra.mxu0 0.0
    %655 = vmatprep.subr.mxu0 0.0
    %656 = vmatpush2.msra.mxu0 0.0
    %657 = vmatprep.mubr.f32.mxu0 0.0
    %v658 = vand.u32 %v377, 4294901760
    %659 = vmatmul.mubr.f32.gmra.mxu0 %v658
    %v660 = vpop.f32.mrf.mxu0
    %v661 = vadd.f32 %v476, %v660
    %v662 = vpop.f32.mrf.mxu0
    %v663 = vadd.f32 %v478, %v662
    %664 = vmatprep.mubr.f32.mxu0 0.0
    %v665 = vand.u32 %v380, 4294901760
    %666 = vmatmul.mubr.f32.gmra.mxu0 %v665
    %v667 = vpop.f32.mrf.mxu0
    %v668 = vadd.f32 %v487, %v667
    %v669 = vpop.f32.mrf.mxu0
    %v670 = vadd.f32 %v489, %v669
    %671 = vmatprep.mubr.f32.mxu0 0.0
    %v672 = vand.u32 %v383, 4294901760
    %673 = vmatmul.mubr.f32.gmra.mxu0 %v672
    %v674 = vpop.f32.mrf.mxu0
    %v675 = vadd.f32 %v498, %v674
    %v676 = vpop.f32.mrf.mxu0
    %v677 = vadd.f32 %v500, %v676
    %678 = vmatprep.mubr.f32.mxu0 0.0
    %v679 = vand.u32 %v386, 4294901760
    %680 = vmatmul.mubr.f32.gmra.mxu0 %v679
    %v681 = vpop.f32.mrf.mxu0
    %v682 = vadd.f32 %v509, %v681
    %v683 = vpop.f32.mrf.mxu0
    %v684 = vadd.f32 %v511, %v683
    %685 = vdwg.mxu0
    %686 = vmatprep.subr.mxu0 0.0
    %687 = vmatpush1.msra.mxu0 0.0
    %688 = vmatprep.subr.mxu0 0.0
    %689 = vmatpush1.msra.mxu0 0.0
    %690 = vmatprep.subr.mxu0 0.0
    %691 = vmatpush1.msra.mxu0 0.0
    %692 = vmatprep.subr.mxu0 0.0
    %693 = vmatpush1.msra.mxu0 0.0
    %694 = vmatprep.subr.mxu0 0.0
    %695 = vmatpush1.msra.mxu0 0.0
    %696 = vmatprep.subr.mxu0 0.0
    %697 = vmatpush1.msra.mxu0 0.0
    %698 = vmatprep.subr.mxu0 0.0
    %699 = vmatpush1.msra.mxu0 0.0
    %700 = vmatprep.subr.mxu0 0.0
    %701 = vmatpush1.msra.mxu0 0.0
    %v702 = vand.u32 %v226, 4294901760
    %v703 = vsub.f32 %v226, %v702
    %704 = vmatprep.subr.mxu0 %v703
    %v705 = vand.u32 %v225, 4294901760
    %v706 = vsub.f32 %v225, %v705
    %707 = vmatpush1.msra.mxu0 %v706
    %v708 = vand.u32 %v202, 4294901760
    %v709 = vsub.f32 %v202, %v708
    %710 = vmatprep.subr.mxu0 %v709
    %v711 = vand.u32 %v201, 4294901760
    %v712 = vsub.f32 %v201, %v711
    %713 = vmatpush1.msra.mxu0 %v712
    %v714 = vand.u32 %v178, 4294901760
    %v715 = vsub.f32 %v178, %v714
    %716 = vmatprep.subr.mxu0 %v715
    %v717 = vand.u32 %v177, 4294901760
    %v718 = vsub.f32 %v177, %v717
    %719 = vmatpush1.msra.mxu0 %v718
    %v720 = vand.u32 %v154, 4294901760
    %v721 = vsub.f32 %v154, %v720
    %722 = vmatprep.subr.mxu0 %v721
    %v723 = vand.u32 %v153, 4294901760
    %v724 = vsub.f32 %v153, %v723
    %725 = vmatpush1.msra.mxu0 %v724
    %v726 = vand.u32 %v130, 4294901760
    %v727 = vsub.f32 %v130, %v726
    %728 = vmatprep.subr.mxu0 %v727
    %v729 = vand.u32 %v129, 4294901760
    %v730 = vsub.f32 %v129, %v729
    %731 = vmatpush1.msra.mxu0 %v730
    %v732 = vand.u32 %v106, 4294901760
    %v733 = vsub.f32 %v106, %v732
    %734 = vmatprep.subr.mxu0 %v733
    %v735 = vand.u32 %v105, 4294901760
    %v736 = vsub.f32 %v105, %v735
    %737 = vmatpush1.msra.mxu0 %v736
    %v738 = vand.u32 %v82, 4294901760
    %v739 = vsub.f32 %v82, %v738
    %740 = vmatprep.subr.mxu0 %v739
    %v741 = vand.u32 %v81, 4294901760
    %v742 = vsub.f32 %v81, %v741
    %743 = vmatpush1.msra.mxu0 %v742
    %v744 = vand.u32 %v58, 4294901760
    %v745 = vsub.f32 %v58, %v744
    %746 = vmatprep.subr.mxu0 %v745
    %v747 = vand.u32 %v57, 4294901760
    %v748 = vsub.f32 %v57, %v747
    %749 = vmatpush1.msra.mxu0 %v748
    %750 = vmatprep.subr.mxu0 0.0
    %751 = vmatpush2.msra.mxu0 0.0
    %752 = vmatprep.subr.mxu0 0.0
    %753 = vmatpush2.msra.mxu0 0.0
    %754 = vmatprep.subr.mxu0 0.0
    %755 = vmatpush2.msra.mxu0 0.0
    %756 = vmatprep.subr.mxu0 0.0
    %757 = vmatpush2.msra.mxu0 0.0
    %758 = vmatprep.subr.mxu0 0.0
    %759 = vmatpush2.msra.mxu0 0.0
    %760 = vmatprep.subr.mxu0 0.0
    %761 = vmatpush2.msra.mxu0 0.0
    %762 = vmatprep.subr.mxu0 0.0
    %763 = vmatpush2.msra.mxu0 0.0
    %764 = vmatprep.subr.mxu0 0.0
    %765 = vmatpush2.msra.mxu0 0.0
    %766 = vmatprep.subr.mxu0 0.0
    %767 = vmatpush2.msra.mxu0 0.0
    %768 = vmatprep.subr.mxu0 0.0
    %769 = vmatpush2.msra.mxu0 0.0
    %770 = vmatprep.subr.mxu0 0.0
    %771 = vmatpush2.msra.mxu0 0.0
    %772 = vmatprep.subr.mxu0 0.0
    %773 = vmatpush2.msra.mxu0 0.0
    %774 = vmatprep.subr.mxu0 0.0
    %775 = vmatpush2.msra.mxu0 0.0
    %776 = vmatprep.subr.mxu0 0.0
    %777 = vmatpush2.msra.mxu0 0.0
    %778 = vmatprep.subr.mxu0 0.0
    %779 = vmatpush2.msra.mxu0 0.0
    %780 = vmatprep.subr.mxu0 0.0
    %781 = vmatpush2.msra.mxu0 0.0
    %782 = vmatprep.mubr.f32.mxu0 0.0
    %v783 = vand.u32 %v377, 4294901760
    %v784 = vsub.f32 %v377, %v783
    %785 = vmatmul.mubr.f32.gmra.mxu0 %v784
    %v786 = vpop.f32.mrf.mxu0
    %v787 = vadd.f32 %v661, %v786
    %v788 = vpop.f32.mrf.mxu0
    %v789 = vadd.f32 %v663, %v788
    %790 = vmatprep.mubr.f32.mxu0 0.0
    %v791 = vand.u32 %v380, 4294901760
    %v792 = vsub.f32 %v380, %v791
    %793 = vmatmul.mubr.f32.gmra.mxu0 %v792
    %v794 = vpop.f32.mrf.mxu0
    %v795 = vadd.f32 %v668, %v794
    %v796 = vpop.f32.mrf.mxu0
    %v797 = vadd.f32 %v670, %v796
    %798 = vmatprep.mubr.f32.mxu0 0.0
    %v799 = vand.u32 %v383, 4294901760
    %v800 = vsub.f32 %v383, %v799
    %801 = vmatmul.mubr.f32.gmra.mxu0 %v800
    %v802 = vpop.f32.mrf.mxu0
    %v803 = vadd.f32 %v675, %v802
    %v804 = vpop.f32.mrf.mxu0
    %v805 = vadd.f32 %v677, %v804
    %806 = vmatprep.mubr.f32.mxu0 0.0
    %v807 = vand.u32 %v386, 4294901760
    %v808 = vsub.f32 %v386, %v807
    %809 = vmatmul.mubr.f32.gmra.mxu0 %v808
    %v810 = vpop.f32.mrf.mxu0
    %v811 = vadd.f32 %v682, %v810
    %v812 = vpop.f32.mrf.mxu0
    %v813 = vadd.f32 %v684, %v812
    %814 = vdwg.mxu0
    %815 = vmatprep.subr.mxu0 0.0
    %816 = vmatpush1.msra.mxu0 0.0
    %817 = vmatprep.subr.mxu0 0.0
    %818 = vmatpush1.msra.mxu0 0.0
    %819 = vmatprep.subr.mxu0 0.0
    %820 = vmatpush1.msra.mxu0 0.0
    %821 = vmatprep.subr.mxu0 0.0
    %822 = vmatpush1.msra.mxu0 0.0
    %823 = vmatprep.subr.mxu0 0.0
    %824 = vmatpush1.msra.mxu0 0.0
    %825 = vmatprep.subr.mxu0 0.0
    %826 = vmatpush1.msra.mxu0 0.0
    %827 = vmatprep.subr.mxu0 0.0
    %828 = vmatpush1.msra.mxu0 0.0
    %829 = vmatprep.subr.mxu0 0.0
    %830 = vmatpush1.msra.mxu0 0.0
    %v831 = vand.u32 %v226, 4294901760
    %832 = vmatprep.subr.mxu0 %v831
    %v833 = vand.u32 %v225, 4294901760
    %834 = vmatpush1.msra.mxu0 %v833
    %v835 = vand.u32 %v202, 4294901760
    %836 = vmatprep.subr.mxu0 %v835
    %v837 = vand.u32 %v201, 4294901760
    %838 = vmatpush1.msra.mxu0 %v837
    %v839 = vand.u32 %v178, 4294901760
    %840 = vmatprep.subr.mxu0 %v839
    %v841 = vand.u32 %v177, 4294901760
    %842 = vmatpush1.msra.mxu0 %v841
    %v843 = vand.u32 %v154, 4294901760
    %844 = vmatprep.subr.mxu0 %v843
    %v845 = vand.u32 %v153, 4294901760
    %846 = vmatpush1.msra.mxu0 %v845
    %v847 = vand.u32 %v130, 4294901760
    %848 = vmatprep.subr.mxu0 %v847
    %v849 = vand.u32 %v129, 4294901760
    %850 = vmatpush1.msra.mxu0 %v849
    %v851 = vand.u32 %v106, 4294901760
    %852 = vmatprep.subr.mxu0 %v851
    %v853 = vand.u32 %v105, 4294901760
    %854 = vmatpush1.msra.mxu0 %v853
    %v855 = vand.u32 %v82, 4294901760
    %856 = vmatprep.subr.mxu0 %v855
    %v857 = vand.u32 %v81, 4294901760
    %858 = vmatpush1.msra.mxu0 %v857
    %v859 = vand.u32 %v58, 4294901760
    %860 = vmatprep.subr.mxu0 %v859
    %v861 = vand.u32 %v57, 4294901760
    %862 = vmatpush1.msra.mxu0 %v861
    %863 = vmatprep.subr.mxu0 0.0
    %864 = vmatpush2.msra.mxu0 0.0
    %865 = vmatprep.subr.mxu0 0.0
    %866 = vmatpush2.msra.mxu0 0.0
    %867 = vmatprep.subr.mxu0 0.0
    %868 = vmatpush2.msra.mxu0 0.0
    %869 = vmatprep.subr.mxu0 0.0
    %870 = vmatpush2.msra.mxu0 0.0
    %871 = vmatprep.subr.mxu0 0.0
    %872 = vmatpush2.msra.mxu0 0.0
    %873 = vmatprep.subr.mxu0 0.0
    %874 = vmatpush2.msra.mxu0 0.0
    %875 = vmatprep.subr.mxu0 0.0
    %876 = vmatpush2.msra.mxu0 0.0
    %877 = vmatprep.subr.mxu0 0.0
    %878 = vmatpush2.msra.mxu0 0.0
    %879 = vmatprep.subr.mxu0 0.0
    %880 = vmatpush2.msra.mxu0 0.0
    %881 = vmatprep.subr.mxu0 0.0
    %882 = vmatpush2.msra.mxu0 0.0
    %883 = vmatprep.subr.mxu0 0.0
    %884 = vmatpush2.msra.mxu0 0.0
    %885 = vmatprep.subr.mxu0 0.0
    %886 = vmatpush2.msra.mxu0 0.0
    %887 = vmatprep.subr.mxu0 0.0
    %888 = vmatpush2.msra.mxu0 0.0
    %889 = vmatprep.subr.mxu0 0.0
    %890 = vmatpush2.msra.mxu0 0.0
    %891 = vmatprep.subr.mxu0 0.0
    %892 = vmatpush2.msra.mxu0 0.0
    %893 = vmatprep.subr.mxu0 0.0
    %894 = vmatpush2.msra.mxu0 0.0
    %895 = vmatprep.mubr.f32.mxu0 0.0
    %v896 = vand.u32 %v377, 4294901760
    %v897 = vsub.f32 %v377, %v896
    %v898 = vand.u32 %v897, 4294901760
    %899 = vmatmul.mubr.f32.gmra.mxu0 %v898
    %v900 = vpop.f32.mrf.mxu0
    %v901 = vadd.f32 %v787, %v900
    %v902 = vpop.f32.mrf.mxu0
    %v903 = vadd.f32 %v789, %v902
    %904 = vmatprep.mubr.f32.mxu0 0.0
    %v905 = vand.u32 %v380, 4294901760
    %v906 = vsub.f32 %v380, %v905
    %v907 = vand.u32 %v906, 4294901760
    %908 = vmatmul.mubr.f32.gmra.mxu0 %v907
    %v909 = vpop.f32.mrf.mxu0
    %v910 = vadd.f32 %v795, %v909
    %v911 = vpop.f32.mrf.mxu0
    %v912 = vadd.f32 %v797, %v911
    %913 = vmatprep.mubr.f32.mxu0 0.0
    %v914 = vand.u32 %v383, 4294901760
    %v915 = vsub.f32 %v383, %v914
    %v916 = vand.u32 %v915, 4294901760
    %917 = vmatmul.mubr.f32.gmra.mxu0 %v916
    %v918 = vpop.f32.mrf.mxu0
    %v919 = vadd.f32 %v803, %v918
    %v920 = vpop.f32.mrf.mxu0
    %v921 = vadd.f32 %v805, %v920
    %922 = vmatprep.mubr.f32.mxu0 0.0
    %v923 = vand.u32 %v386, 4294901760
    %v924 = vsub.f32 %v386, %v923
    %v925 = vand.u32 %v924, 4294901760
    %926 = vmatmul.mubr.f32.gmra.mxu0 %v925
    %v927 = vpop.f32.mrf.mxu0
    %v928 = vadd.f32 %v811, %v927
    %v929 = vpop.f32.mrf.mxu0
    %v930 = vadd.f32 %v813, %v929
    %931 = vdwg.mxu0
    %932 = vmatprep.subr.mxu0 0.0
    %933 = vmatpush1.msra.mxu0 0.0
    %934 = vmatprep.subr.mxu0 0.0
    %935 = vmatpush1.msra.mxu0 0.0
    %936 = vmatprep.subr.mxu0 0.0
    %937 = vmatpush1.msra.mxu0 0.0
    %938 = vmatprep.subr.mxu0 0.0
    %939 = vmatpush1.msra.mxu0 0.0
    %940 = vmatprep.subr.mxu0 0.0
    %941 = vmatpush1.msra.mxu0 0.0
    %942 = vmatprep.subr.mxu0 0.0
    %943 = vmatpush1.msra.mxu0 0.0
    %944 = vmatprep.subr.mxu0 0.0
    %945 = vmatpush1.msra.mxu0 0.0
    %946 = vmatprep.subr.mxu0 0.0
    %947 = vmatpush1.msra.mxu0 0.0
    %v948 = vand.u32 %v226, 4294901760
    %v949 = vsub.f32 %v226, %v948
    %v950 = vand.u32 %v949, 4294901760
    %951 = vmatprep.subr.mxu0 %v950
    %v952 = vand.u32 %v225, 4294901760
    %v953 = vsub.f32 %v225, %v952
    %v954 = vand.u32 %v953, 4294901760
    %955 = vmatpush1.msra.mxu0 %v954
    %v956 = vand.u32 %v202, 4294901760
    %v957 = vsub.f32 %v202, %v956
    %v958 = vand.u32 %v957, 4294901760
    %959 = vmatprep.subr.mxu0 %v958
    %v960 = vand.u32 %v201, 4294901760
    %v961 = vsub.f32 %v201, %v960
    %v962 = vand.u32 %v961, 4294901760
    %963 = vmatpush1.msra.mxu0 %v962
    %v964 = vand.u32 %v178, 4294901760
    %v965 = vsub.f32 %v178, %v964
    %v966 = vand.u32 %v965, 4294901760
    %967 = vmatprep.subr.mxu0 %v966
    %v968 = vand.u32 %v177, 4294901760
    %v969 = vsub.f32 %v177, %v968
    %v970 = vand.u32 %v969, 4294901760
    %971 = vmatpush1.msra.mxu0 %v970
    %v972 = vand.u32 %v154, 4294901760
    %v973 = vsub.f32 %v154, %v972
    %v974 = vand.u32 %v973, 4294901760
    %975 = vmatprep.subr.mxu0 %v974
    %v976 = vand.u32 %v153, 4294901760
    %v977 = vsub.f32 %v153, %v976
    %v978 = vand.u32 %v977, 4294901760
    %979 = vmatpush1.msra.mxu0 %v978
    %v980 = vand.u32 %v130, 4294901760
    %v981 = vsub.f32 %v130, %v980
    %v982 = vand.u32 %v981, 4294901760
    %983 = vmatprep.subr.mxu0 %v982
    %v984 = vand.u32 %v129, 4294901760
    %v985 = vsub.f32 %v129, %v984
    %v986 = vand.u32 %v985, 4294901760
    %987 = vmatpush1.msra.mxu0 %v986
    %v988 = vand.u32 %v106, 4294901760
    %v989 = vsub.f32 %v106, %v988
    %v990 = vand.u32 %v989, 4294901760
    %991 = vmatprep.subr.mxu0 %v990
    %v992 = vand.u32 %v105, 4294901760
    %v993 = vsub.f32 %v105, %v992
    %v994 = vand.u32 %v993, 4294901760
    %995 = vmatpush1.msra.mxu0 %v994
    %v996 = vand.u32 %v82, 4294901760
    %v997 = vsub.f32 %v82, %v996
    %v998 = vand.u32 %v997, 4294901760
    %999 = vmatprep.subr.mxu0 %v998
    %v1000 = vand.u32 %v81, 4294901760
    %v1001 = vsub.f32 %v81, %v1000
    %v1002 = vand.u32 %v1001, 4294901760
    %1003 = vmatpush1.msra.mxu0 %v1002
    %v1004 = vand.u32 %v58, 4294901760
    %v1005 = vsub.f32 %v58, %v1004
    %v1006 = vand.u32 %v1005, 4294901760
    %1007 = vmatprep.subr.mxu0 %v1006
    %v1008 = vand.u32 %v57, 4294901760
    %v1009 = vsub.f32 %v57, %v1008
    %v1010 = vand.u32 %v1009, 4294901760
    %1011 = vmatpush1.msra.mxu0 %v1010
    %1012 = vmatprep.subr.mxu0 0.0
    %1013 = vmatpush2.msra.mxu0 0.0
    %1014 = vmatprep.subr.mxu0 0.0
    %1015 = vmatpush2.msra.mxu0 0.0
    %1016 = vmatprep.subr.mxu0 0.0
    %1017 = vmatpush2.msra.mxu0 0.0
    %1018 = vmatprep.subr.mxu0 0.0
    %1019 = vmatpush2.msra.mxu0 0.0
    %1020 = vmatprep.subr.mxu0 0.0
    %1021 = vmatpush2.msra.mxu0 0.0
    %1022 = vmatprep.subr.mxu0 0.0
    %1023 = vmatpush2.msra.mxu0 0.0
    %1024 = vmatprep.subr.mxu0 0.0
    %1025 = vmatpush2.msra.mxu0 0.0
    %1026 = vmatprep.subr.mxu0 0.0
    %1027 = vmatpush2.msra.mxu0 0.0
    %1028 = vmatprep.subr.mxu0 0.0
    %1029 = vmatpush2.msra.mxu0 0.0
    %1030 = vmatprep.subr.mxu0 0.0
    %1031 = vmatpush2.msra.mxu0 0.0
    %1032 = vmatprep.subr.mxu0 0.0
    %1033 = vmatpush2.msra.mxu0 0.0
    %1034 = vmatprep.subr.mxu0 0.0
    %1035 = vmatpush2.msra.mxu0 0.0
    %1036 = vmatprep.subr.mxu0 0.0
    %1037 = vmatpush2.msra.mxu0 0.0
    %1038 = vmatprep.subr.mxu0 0.0
    %1039 = vmatpush2.msra.mxu0 0.0
    %1040 = vmatprep.subr.mxu0 0.0
    %1041 = vmatpush2.msra.mxu0 0.0
    %1042 = vmatprep.subr.mxu0 0.0
    %1043 = vmatpush2.msra.mxu0 0.0
    %1044 = vmatprep.mubr.f32.mxu0 0.0
    %v1045 = vand.u32 %v377, 4294901760
    %1046 = vmatmul.mubr.f32.gmra.mxu0 %v1045
    %v1047 = vpop.f32.mrf.mxu0
    %v1048 = vadd.f32 %v901, %v1047
    %v1049 = vpop.f32.mrf.mxu0
    %v1050 = vadd.f32 %v903, %v1049
    %1051 = vmatprep.mubr.f32.mxu0 0.0
    %v1052 = vand.u32 %v380, 4294901760
    %1053 = vmatmul.mubr.f32.gmra.mxu0 %v1052
    %v1054 = vpop.f32.mrf.mxu0
    %v1055 = vadd.f32 %v910, %v1054
    %v1056 = vpop.f32.mrf.mxu0
    %v1057 = vadd.f32 %v912, %v1056
    %1058 = vmatprep.mubr.f32.mxu0 0.0
    %v1059 = vand.u32 %v383, 4294901760
    %1060 = vmatmul.mubr.f32.gmra.mxu0 %v1059
    %v1061 = vpop.f32.mrf.mxu0
    %v1062 = vadd.f32 %v919, %v1061
    %v1063 = vpop.f32.mrf.mxu0
    %v1064 = vadd.f32 %v921, %v1063
    %1065 = vmatprep.mubr.f32.mxu0 0.0
    %v1066 = vand.u32 %v386, 4294901760
    %1067 = vmatmul.mubr.f32.gmra.mxu0 %v1066
    %v1068 = vpop.f32.mrf.mxu0
    %v1069 = vadd.f32 %v928, %v1068
    %v1070 = vpop.f32.mrf.mxu0
    %v1071 = vadd.f32 %v930, %v1070
    %1072 = vdwg.mxu0
    %1073 = vmatprep.subr.mxu0 0.0
    %1074 = vmatpush1.msra.mxu0 0.0
    %1075 = vmatprep.subr.mxu0 0.0
    %1076 = vmatpush1.msra.mxu0 0.0
    %1077 = vmatprep.subr.mxu0 0.0
    %1078 = vmatpush1.msra.mxu0 0.0
    %1079 = vmatprep.subr.mxu0 0.0
    %1080 = vmatpush1.msra.mxu0 0.0
    %1081 = vmatprep.subr.mxu0 0.0
    %1082 = vmatpush1.msra.mxu0 0.0
    %1083 = vmatprep.subr.mxu0 0.0
    %1084 = vmatpush1.msra.mxu0 0.0
    %1085 = vmatprep.subr.mxu0 0.0
    %1086 = vmatpush1.msra.mxu0 0.0
    %1087 = vmatprep.subr.mxu0 0.0
    %1088 = vmatpush1.msra.mxu0 0.0
    %v1089 = vand.u32 %v226, 4294901760
    %1090 = vmatprep.subr.mxu0 %v1089
    %v1091 = vand.u32 %v225, 4294901760
    %1092 = vmatpush1.msra.mxu0 %v1091
    %v1093 = vand.u32 %v202, 4294901760
    %1094 = vmatprep.subr.mxu0 %v1093
    %v1095 = vand.u32 %v201, 4294901760
    %1096 = vmatpush1.msra.mxu0 %v1095
    %v1097 = vand.u32 %v178, 4294901760
    %1098 = vmatprep.subr.mxu0 %v1097
    %v1099 = vand.u32 %v177, 4294901760
    %1100 = vmatpush1.msra.mxu0 %v1099
    %v1101 = vand.u32 %v154, 4294901760
    %1102 = vmatprep.subr.mxu0 %v1101
    %v1103 = vand.u32 %v153, 4294901760
    %1104 = vmatpush1.msra.mxu0 %v1103
    %v1105 = vand.u32 %v130, 4294901760
    %1106 = vmatprep.subr.mxu0 %v1105
    %v1107 = vand.u32 %v129, 4294901760
    %1108 = vmatpush1.msra.mxu0 %v1107
    %v1109 = vand.u32 %v106, 4294901760
    %1110 = vmatprep.subr.mxu0 %v1109
    %v1111 = vand.u32 %v105, 4294901760
    %1112 = vmatpush1.msra.mxu0 %v1111
    %v1113 = vand.u32 %v82, 4294901760
    %1114 = vmatprep.subr.mxu0 %v1113
    %v1115 = vand.u32 %v81, 4294901760
    %1116 = vmatpush1.msra.mxu0 %v1115
    %v1117 = vand.u32 %v58, 4294901760
    %1118 = vmatprep.subr.mxu0 %v1117
    %v1119 = vand.u32 %v57, 4294901760
    %1120 = vmatpush1.msra.mxu0 %v1119
    %1121 = vmatprep.subr.mxu0 0.0
    %1122 = vmatpush2.msra.mxu0 0.0
    %1123 = vmatprep.subr.mxu0 0.0
    %1124 = vmatpush2.msra.mxu0 0.0
    %1125 = vmatprep.subr.mxu0 0.0
    %1126 = vmatpush2.msra.mxu0 0.0
    %1127 = vmatprep.subr.mxu0 0.0
    %1128 = vmatpush2.msra.mxu0 0.0
    %1129 = vmatprep.subr.mxu0 0.0
    %1130 = vmatpush2.msra.mxu0 0.0
    %1131 = vmatprep.subr.mxu0 0.0
    %1132 = vmatpush2.msra.mxu0 0.0
    %1133 = vmatprep.subr.mxu0 0.0
    %1134 = vmatpush2.msra.mxu0 0.0
    %1135 = vmatprep.subr.mxu0 0.0
    %1136 = vmatpush2.msra.mxu0 0.0
    %1137 = vmatprep.subr.mxu0 0.0
    %1138 = vmatpush2.msra.mxu0 0.0
    %1139 = vmatprep.subr.mxu0 0.0
    %1140 = vmatpush2.msra.mxu0 0.0
    %1141 = vmatprep.subr.mxu0 0.0
    %1142 = vmatpush2.msra.mxu0 0.0
    %1143 = vmatprep.subr.mxu0 0.0
    %1144 = vmatpush2.msra.mxu0 0.0
    %1145 = vmatprep.subr.mxu0 0.0
    %1146 = vmatpush2.msra.mxu0 0.0
    %1147 = vmatprep.subr.mxu0 0.0
    %1148 = vmatpush2.msra.mxu0 0.0
    %1149 = vmatprep.subr.mxu0 0.0
    %1150 = vmatpush2.msra.mxu0 0.0
    %1151 = vmatprep.subr.mxu0 0.0
    %1152 = vmatpush2.msra.mxu0 0.0
    %1153 = vmatprep.mubr.f32.mxu0 0.0
    %v1154 = vand.u32 %v377, 4294901760
    %1155 = vmatmul.mubr.f32.gmra.mxu0 %v1154
    %v1156 = vpop.f32.mrf.mxu0
    %v1157 = vadd.f32 %v1048, %v1156
    %v1158 = vpop.f32.mrf.mxu0
    %v1159 = vadd.f32 %v1050, %v1158
    %1160 = vmatprep.mubr.f32.mxu0 0.0
    %v1161 = vand.u32 %v380, 4294901760
    %1162 = vmatmul.mubr.f32.gmra.mxu0 %v1161
    %v1163 = vpop.f32.mrf.mxu0
    %v1164 = vadd.f32 %v1055, %v1163
    %v1165 = vpop.f32.mrf.mxu0
    %v1166 = vadd.f32 %v1057, %v1165
    %1167 = vmatprep.mubr.f32.mxu0 0.0
    %v1168 = vand.u32 %v383, 4294901760
    %1169 = vmatmul.mubr.f32.gmra.mxu0 %v1168
    %v1170 = vpop.f32.mrf.mxu0
    %v1171 = vadd.f32 %v1062, %v1170
    %v1172 = vpop.f32.mrf.mxu0
    %v1173 = vadd.f32 %v1064, %v1172
    %1174 = vmatprep.mubr.f32.mxu0 0.0
    %v1175 = vand.u32 %v386, 4294901760
    %1176 = vmatmul.mubr.f32.gmra.mxu0 %v1175
    %v1177 = vpop.f32.mrf.mxu0
    %v1178 = vadd.f32 %v1069, %v1177
    %v1179 = vpop.f32.mrf.mxu0
    %v1180 = vadd.f32 %v1071, %v1179
    %1181 = vdwg.mxu0
    %1182 = vmatprep.subr.mxu0 0.0
    %1183 = vmatpush1.msra.mxu0 0.0
    %1184 = vmatprep.subr.mxu0 0.0
    %1185 = vmatpush1.msra.mxu0 0.0
    %1186 = vmatprep.subr.mxu0 0.0
    %1187 = vmatpush1.msra.mxu0 0.0
    %1188 = vmatprep.subr.mxu0 0.0
    %1189 = vmatpush1.msra.mxu0 0.0
    %1190 = vmatprep.subr.mxu0 0.0
    %1191 = vmatpush1.msra.mxu0 0.0
    %1192 = vmatprep.subr.mxu0 0.0
    %1193 = vmatpush1.msra.mxu0 0.0
    %1194 = vmatprep.subr.mxu0 0.0
    %1195 = vmatpush1.msra.mxu0 0.0
    %1196 = vmatprep.subr.mxu0 0.0
    %1197 = vmatpush1.msra.mxu0 0.0
    %v1198 = vand.u32 %v228, 4294901760
    %1199 = vmatprep.subr.mxu0 %v1198
    %v1200 = vand.u32 %v227, 4294901760
    %1201 = vmatpush1.msra.mxu0 %v1200
    %v1202 = vand.u32 %v204, 4294901760
    %1203 = vmatprep.subr.mxu0 %v1202
    %v1204 = vand.u32 %v203, 4294901760
    %1205 = vmatpush1.msra.mxu0 %v1204
    %v1206 = vand.u32 %v180, 4294901760
    %1207 = vmatprep.subr.mxu0 %v1206
    %v1208 = vand.u32 %v179, 4294901760
    %1209 = vmatpush1.msra.mxu0 %v1208
    %v1210 = vand.u32 %v156, 4294901760
    %1211 = vmatprep.subr.mxu0 %v1210
    %v1212 = vand.u32 %v155, 4294901760
    %1213 = vmatpush1.msra.mxu0 %v1212
    %v1214 = vand.u32 %v132, 4294901760
    %1215 = vmatprep.subr.mxu0 %v1214
    %v1216 = vand.u32 %v131, 4294901760
    %1217 = vmatpush1.msra.mxu0 %v1216
    %v1218 = vand.u32 %v108, 4294901760
    %1219 = vmatprep.subr.mxu0 %v1218
    %v1220 = vand.u32 %v107, 4294901760
    %1221 = vmatpush1.msra.mxu0 %v1220
    %v1222 = vand.u32 %v84, 4294901760
    %1223 = vmatprep.subr.mxu0 %v1222
    %v1224 = vand.u32 %v83, 4294901760
    %1225 = vmatpush1.msra.mxu0 %v1224
    %v1226 = vand.u32 %v60, 4294901760
    %1227 = vmatprep.subr.mxu0 %v1226
    %v1228 = vand.u32 %v59, 4294901760
    %1229 = vmatpush1.msra.mxu0 %v1228
    %1230 = vmatprep.subr.mxu0 0.0
    %1231 = vmatpush2.msra.mxu0 0.0
    %1232 = vmatprep.subr.mxu0 0.0
    %1233 = vmatpush2.msra.mxu0 0.0
    %1234 = vmatprep.subr.mxu0 0.0
    %1235 = vmatpush2.msra.mxu0 0.0
    %1236 = vmatprep.subr.mxu0 0.0
    %1237 = vmatpush2.msra.mxu0 0.0
    %1238 = vmatprep.subr.mxu0 0.0
    %1239 = vmatpush2.msra.mxu0 0.0
    %1240 = vmatprep.subr.mxu0 0.0
    %1241 = vmatpush2.msra.mxu0 0.0
    %1242 = vmatprep.subr.mxu0 0.0
    %1243 = vmatpush2.msra.mxu0 0.0
    %1244 = vmatprep.subr.mxu0 0.0
    %1245 = vmatpush2.msra.mxu0 0.0
    %1246 = vmatprep.subr.mxu0 0.0
    %1247 = vmatpush2.msra.mxu0 0.0
    %1248 = vmatprep.subr.mxu0 0.0
    %1249 = vmatpush2.msra.mxu0 0.0
    %1250 = vmatprep.subr.mxu0 0.0
    %1251 = vmatpush2.msra.mxu0 0.0
    %1252 = vmatprep.subr.mxu0 0.0
    %1253 = vmatpush2.msra.mxu0 0.0
    %1254 = vmatprep.subr.mxu0 0.0
    %1255 = vmatpush2.msra.mxu0 0.0
    %1256 = vmatprep.subr.mxu0 0.0
    %1257 = vmatpush2.msra.mxu0 0.0
    %1258 = vmatprep.subr.mxu0 0.0
    %1259 = vmatpush2.msra.mxu0 0.0
    %1260 = vmatprep.subr.mxu0 0.0
    %1261 = vmatpush2.msra.mxu0 0.0
    %1262 = vmatprep.mubr.f32.mxu0 0.0
    %v1263 = vand.u32 %v377, 4294901760
    %v1264 = vsub.f32 %v377, %v1263
    %v1265 = vand.u32 %v1264, 4294901760
    %v1266 = vsub.f32 %v1264, %v1265
    %v1267 = vand.u32 %v1266, 4294901760
    %1268 = vmatmul.mubr.f32.gmra.mxu0 %v1267
    %v1269 = vpop.f32.mrf.mxu0
    %v1270 = vadd.f32 %v266, %v1269
    %v1271 = vpop.f32.mrf.mxu0
    %v1272 = vadd.f32 %v270, %v1271
    %1273 = vmatprep.mubr.f32.mxu0 0.0
    %v1274 = vand.u32 %v380, 4294901760
    %v1275 = vsub.f32 %v380, %v1274
    %v1276 = vand.u32 %v1275, 4294901760
    %v1277 = vsub.f32 %v1275, %v1276
    %v1278 = vand.u32 %v1277, 4294901760
    %1279 = vmatmul.mubr.f32.gmra.mxu0 %v1278
    %v1280 = vpop.f32.mrf.mxu0
    %v1281 = vadd.f32 %v266, %v1280
    %v1282 = vpop.f32.mrf.mxu0
    %v1283 = vadd.f32 %v270, %v1282
    %1284 = vmatprep.mubr.f32.mxu0 0.0
    %v1285 = vand.u32 %v383, 4294901760
    %v1286 = vsub.f32 %v383, %v1285
    %v1287 = vand.u32 %v1286, 4294901760
    %v1288 = vsub.f32 %v1286, %v1287
    %v1289 = vand.u32 %v1288, 4294901760
    %1290 = vmatmul.mubr.f32.gmra.mxu0 %v1289
    %v1291 = vpop.f32.mrf.mxu0
    %v1292 = vadd.f32 %v266, %v1291
    %v1293 = vpop.f32.mrf.mxu0
    %v1294 = vadd.f32 %v270, %v1293
    %1295 = vmatprep.mubr.f32.mxu0 0.0
    %v1296 = vand.u32 %v386, 4294901760
    %v1297 = vsub.f32 %v386, %v1296
    %v1298 = vand.u32 %v1297, 4294901760
    %v1299 = vsub.f32 %v1297, %v1298
    %v1300 = vand.u32 %v1299, 4294901760
    %1301 = vmatmul.mubr.f32.gmra.mxu0 %v1300
    %v1302 = vpop.f32.mrf.mxu0
    %v1303 = vadd.f32 %v266, %v1302
    %v1304 = vpop.f32.mrf.mxu0
    %v1305 = vadd.f32 %v270, %v1304
    %1306 = vdwg.mxu0
    %1307 = vmatprep.subr.mxu0 0.0
    %1308 = vmatpush1.msra.mxu0 0.0
    %1309 = vmatprep.subr.mxu0 0.0
    %1310 = vmatpush1.msra.mxu0 0.0
    %1311 = vmatprep.subr.mxu0 0.0
    %1312 = vmatpush1.msra.mxu0 0.0
    %1313 = vmatprep.subr.mxu0 0.0
    %1314 = vmatpush1.msra.mxu0 0.0
    %1315 = vmatprep.subr.mxu0 0.0
    %1316 = vmatpush1.msra.mxu0 0.0
    %1317 = vmatprep.subr.mxu0 0.0
    %1318 = vmatpush1.msra.mxu0 0.0
    %1319 = vmatprep.subr.mxu0 0.0
    %1320 = vmatpush1.msra.mxu0 0.0
    %1321 = vmatprep.subr.mxu0 0.0
    %1322 = vmatpush1.msra.mxu0 0.0
    %v1323 = vand.u32 %v228, 4294901760
    %v1324 = vsub.f32 %v228, %v1323
    %v1325 = vand.u32 %v1324, 4294901760
    %v1326 = vsub.f32 %v1324, %v1325
    %v1327 = vand.u32 %v1326, 4294901760
    %1328 = vmatprep.subr.mxu0 %v1327
    %v1329 = vand.u32 %v227, 4294901760
    %v1330 = vsub.f32 %v227, %v1329
    %v1331 = vand.u32 %v1330, 4294901760
    %v1332 = vsub.f32 %v1330, %v1331
    %v1333 = vand.u32 %v1332, 4294901760
    %1334 = vmatpush1.msra.mxu0 %v1333
    %v1335 = vand.u32 %v204, 4294901760
    %v1336 = vsub.f32 %v204, %v1335
    %v1337 = vand.u32 %v1336, 4294901760
    %v1338 = vsub.f32 %v1336, %v1337
    %v1339 = vand.u32 %v1338, 4294901760
    %1340 = vmatprep.subr.mxu0 %v1339
    %v1341 = vand.u32 %v203, 4294901760
    %v1342 = vsub.f32 %v203, %v1341
    %v1343 = vand.u32 %v1342, 4294901760
    %v1344 = vsub.f32 %v1342, %v1343
    %v1345 = vand.u32 %v1344, 4294901760
    %1346 = vmatpush1.msra.mxu0 %v1345
    %v1347 = vand.u32 %v180, 4294901760
    %v1348 = vsub.f32 %v180, %v1347
    %v1349 = vand.u32 %v1348, 4294901760
    %v1350 = vsub.f32 %v1348, %v1349
    %v1351 = vand.u32 %v1350, 4294901760
    %1352 = vmatprep.subr.mxu0 %v1351
    %v1353 = vand.u32 %v179, 4294901760
    %v1354 = vsub.f32 %v179, %v1353
    %v1355 = vand.u32 %v1354, 4294901760
    %v1356 = vsub.f32 %v1354, %v1355
    %v1357 = vand.u32 %v1356, 4294901760
    %1358 = vmatpush1.msra.mxu0 %v1357
    %v1359 = vand.u32 %v156, 4294901760
    %v1360 = vsub.f32 %v156, %v1359
    %v1361 = vand.u32 %v1360, 4294901760
    %v1362 = vsub.f32 %v1360, %v1361
    %v1363 = vand.u32 %v1362, 4294901760
    %1364 = vmatprep.subr.mxu0 %v1363
    %v1365 = vand.u32 %v155, 4294901760
    %v1366 = vsub.f32 %v155, %v1365
    %v1367 = vand.u32 %v1366, 4294901760
    %v1368 = vsub.f32 %v1366, %v1367
    %v1369 = vand.u32 %v1368, 4294901760
    %1370 = vmatpush1.msra.mxu0 %v1369
    %v1371 = vand.u32 %v132, 4294901760
    %v1372 = vsub.f32 %v132, %v1371
    %v1373 = vand.u32 %v1372, 4294901760
    %v1374 = vsub.f32 %v1372, %v1373
    %v1375 = vand.u32 %v1374, 4294901760
    %1376 = vmatprep.subr.mxu0 %v1375
    %v1377 = vand.u32 %v131, 4294901760
    %v1378 = vsub.f32 %v131, %v1377
    %v1379 = vand.u32 %v1378, 4294901760
    %v1380 = vsub.f32 %v1378, %v1379
    %v1381 = vand.u32 %v1380, 4294901760
    %1382 = vmatpush1.msra.mxu0 %v1381
    %v1383 = vand.u32 %v108, 4294901760
    %v1384 = vsub.f32 %v108, %v1383
    %v1385 = vand.u32 %v1384, 4294901760
    %v1386 = vsub.f32 %v1384, %v1385
    %v1387 = vand.u32 %v1386, 4294901760
    %1388 = vmatprep.subr.mxu0 %v1387
    %v1389 = vand.u32 %v107, 4294901760
    %v1390 = vsub.f32 %v107, %v1389
    %v1391 = vand.u32 %v1390, 4294901760
    %v1392 = vsub.f32 %v1390, %v1391
    %v1393 = vand.u32 %v1392, 4294901760
    %1394 = vmatpush1.msra.mxu0 %v1393
    %v1395 = vand.u32 %v84, 4294901760
    %v1396 = vsub.f32 %v84, %v1395
    %v1397 = vand.u32 %v1396, 4294901760
    %v1398 = vsub.f32 %v1396, %v1397
    %v1399 = vand.u32 %v1398, 4294901760
    %1400 = vmatprep.subr.mxu0 %v1399
    %v1401 = vand.u32 %v83, 4294901760
    %v1402 = vsub.f32 %v83, %v1401
    %v1403 = vand.u32 %v1402, 4294901760
    %v1404 = vsub.f32 %v1402, %v1403
    %v1405 = vand.u32 %v1404, 4294901760
    %1406 = vmatpush1.msra.mxu0 %v1405
    %v1407 = vand.u32 %v60, 4294901760
    %v1408 = vsub.f32 %v60, %v1407
    %v1409 = vand.u32 %v1408, 4294901760
    %v1410 = vsub.f32 %v1408, %v1409
    %v1411 = vand.u32 %v1410, 4294901760
    %1412 = vmatprep.subr.mxu0 %v1411
    %v1413 = vand.u32 %v59, 4294901760
    %v1414 = vsub.f32 %v59, %v1413
    %v1415 = vand.u32 %v1414, 4294901760
    %v1416 = vsub.f32 %v1414, %v1415
    %v1417 = vand.u32 %v1416, 4294901760
    %1418 = vmatpush1.msra.mxu0 %v1417
    %1419 = vmatprep.subr.mxu0 0.0
    %1420 = vmatpush2.msra.mxu0 0.0
    %1421 = vmatprep.subr.mxu0 0.0
    %1422 = vmatpush2.msra.mxu0 0.0
    %1423 = vmatprep.subr.mxu0 0.0
    %1424 = vmatpush2.msra.mxu0 0.0
    %1425 = vmatprep.subr.mxu0 0.0
    %1426 = vmatpush2.msra.mxu0 0.0
    %1427 = vmatprep.subr.mxu0 0.0
    %1428 = vmatpush2.msra.mxu0 0.0
    %1429 = vmatprep.subr.mxu0 0.0
    %1430 = vmatpush2.msra.mxu0 0.0
    %1431 = vmatprep.subr.mxu0 0.0
    %1432 = vmatpush2.msra.mxu0 0.0
    %1433 = vmatprep.subr.mxu0 0.0
    %1434 = vmatpush2.msra.mxu0 0.0
    %1435 = vmatprep.subr.mxu0 0.0
    %1436 = vmatpush2.msra.mxu0 0.0
    %1437 = vmatprep.subr.mxu0 0.0
    %1438 = vmatpush2.msra.mxu0 0.0
    %1439 = vmatprep.subr.mxu0 0.0
    %1440 = vmatpush2.msra.mxu0 0.0
    %1441 = vmatprep.subr.mxu0 0.0
    %1442 = vmatpush2.msra.mxu0 0.0
    %1443 = vmatprep.subr.mxu0 0.0
    %1444 = vmatpush2.msra.mxu0 0.0
    %1445 = vmatprep.subr.mxu0 0.0
    %1446 = vmatpush2.msra.mxu0 0.0
    %1447 = vmatprep.subr.mxu0 0.0
    %1448 = vmatpush2.msra.mxu0 0.0
    %1449 = vmatprep.subr.mxu0 0.0
    %1450 = vmatpush2.msra.mxu0 0.0
    %1451 = vmatprep.mubr.f32.mxu0 0.0
    %v1452 = vand.u32 %v377, 4294901760
    %1453 = vmatmul.mubr.f32.gmra.mxu0 %v1452
    %v1454 = vpop.f32.mrf.mxu0
    %v1455 = vadd.f32 %v1270, %v1454
    %v1456 = vpop.f32.mrf.mxu0
    %v1457 = vadd.f32 %v1272, %v1456
    %1458 = vmatprep.mubr.f32.mxu0 0.0
    %v1459 = vand.u32 %v380, 4294901760
    %1460 = vmatmul.mubr.f32.gmra.mxu0 %v1459
    %v1461 = vpop.f32.mrf.mxu0
    %v1462 = vadd.f32 %v1281, %v1461
    %v1463 = vpop.f32.mrf.mxu0
    %v1464 = vadd.f32 %v1283, %v1463
    %1465 = vmatprep.mubr.f32.mxu0 0.0
    %v1466 = vand.u32 %v383, 4294901760
    %1467 = vmatmul.mubr.f32.gmra.mxu0 %v1466
    %v1468 = vpop.f32.mrf.mxu0
    %v1469 = vadd.f32 %v1292, %v1468
    %v1470 = vpop.f32.mrf.mxu0
    %v1471 = vadd.f32 %v1294, %v1470
    %1472 = vmatprep.mubr.f32.mxu0 0.0
    %v1473 = vand.u32 %v386, 4294901760
    %1474 = vmatmul.mubr.f32.gmra.mxu0 %v1473
    %v1475 = vpop.f32.mrf.mxu0
    %v1476 = vadd.f32 %v1303, %v1475
    %v1477 = vpop.f32.mrf.mxu0
    %v1478 = vadd.f32 %v1305, %v1477
    %1479 = vdwg.mxu0
    %1480 = vmatprep.subr.mxu0 0.0
    %1481 = vmatpush1.msra.mxu0 0.0
    %1482 = vmatprep.subr.mxu0 0.0
    %1483 = vmatpush1.msra.mxu0 0.0
    %1484 = vmatprep.subr.mxu0 0.0
    %1485 = vmatpush1.msra.mxu0 0.0
    %1486 = vmatprep.subr.mxu0 0.0
    %1487 = vmatpush1.msra.mxu0 0.0
    %1488 = vmatprep.subr.mxu0 0.0
    %1489 = vmatpush1.msra.mxu0 0.0
    %1490 = vmatprep.subr.mxu0 0.0
    %1491 = vmatpush1.msra.mxu0 0.0
    %1492 = vmatprep.subr.mxu0 0.0
    %1493 = vmatpush1.msra.mxu0 0.0
    %1494 = vmatprep.subr.mxu0 0.0
    %1495 = vmatpush1.msra.mxu0 0.0
    %v1496 = vand.u32 %v228, 4294901760
    %v1497 = vsub.f32 %v228, %v1496
    %1498 = vmatprep.subr.mxu0 %v1497
    %v1499 = vand.u32 %v227, 4294901760
    %v1500 = vsub.f32 %v227, %v1499
    %1501 = vmatpush1.msra.mxu0 %v1500
    %v1502 = vand.u32 %v204, 4294901760
    %v1503 = vsub.f32 %v204, %v1502
    %1504 = vmatprep.subr.mxu0 %v1503
    %v1505 = vand.u32 %v203, 4294901760
    %v1506 = vsub.f32 %v203, %v1505
    %1507 = vmatpush1.msra.mxu0 %v1506
    %v1508 = vand.u32 %v180, 4294901760
    %v1509 = vsub.f32 %v180, %v1508
    %1510 = vmatprep.subr.mxu0 %v1509
    %v1511 = vand.u32 %v179, 4294901760
    %v1512 = vsub.f32 %v179, %v1511
    %1513 = vmatpush1.msra.mxu0 %v1512
    %v1514 = vand.u32 %v156, 4294901760
    %v1515 = vsub.f32 %v156, %v1514
    %1516 = vmatprep.subr.mxu0 %v1515
    %v1517 = vand.u32 %v155, 4294901760
    %v1518 = vsub.f32 %v155, %v1517
    %1519 = vmatpush1.msra.mxu0 %v1518
    %v1520 = vand.u32 %v132, 4294901760
    %v1521 = vsub.f32 %v132, %v1520
    %1522 = vmatprep.subr.mxu0 %v1521
    %v1523 = vand.u32 %v131, 4294901760
    %v1524 = vsub.f32 %v131, %v1523
    %1525 = vmatpush1.msra.mxu0 %v1524
    %v1526 = vand.u32 %v108, 4294901760
    %v1527 = vsub.f32 %v108, %v1526
    %1528 = vmatprep.subr.mxu0 %v1527
    %v1529 = vand.u32 %v107, 4294901760
    %v1530 = vsub.f32 %v107, %v1529
    %1531 = vmatpush1.msra.mxu0 %v1530
    %v1532 = vand.u32 %v84, 4294901760
    %v1533 = vsub.f32 %v84, %v1532
    %1534 = vmatprep.subr.mxu0 %v1533
    %v1535 = vand.u32 %v83, 4294901760
    %v1536 = vsub.f32 %v83, %v1535
    %1537 = vmatpush1.msra.mxu0 %v1536
    %v1538 = vand.u32 %v60, 4294901760
    %v1539 = vsub.f32 %v60, %v1538
    %1540 = vmatprep.subr.mxu0 %v1539
    %v1541 = vand.u32 %v59, 4294901760
    %v1542 = vsub.f32 %v59, %v1541
    %1543 = vmatpush1.msra.mxu0 %v1542
    %1544 = vmatprep.subr.mxu0 0.0
    %1545 = vmatpush2.msra.mxu0 0.0
    %1546 = vmatprep.subr.mxu0 0.0
    %1547 = vmatpush2.msra.mxu0 0.0
    %1548 = vmatprep.subr.mxu0 0.0
    %1549 = vmatpush2.msra.mxu0 0.0
    %1550 = vmatprep.subr.mxu0 0.0
    %1551 = vmatpush2.msra.mxu0 0.0
    %1552 = vmatprep.subr.mxu0 0.0
    %1553 = vmatpush2.msra.mxu0 0.0
    %1554 = vmatprep.subr.mxu0 0.0
    %1555 = vmatpush2.msra.mxu0 0.0
    %1556 = vmatprep.subr.mxu0 0.0
    %1557 = vmatpush2.msra.mxu0 0.0
    %1558 = vmatprep.subr.mxu0 0.0
    %1559 = vmatpush2.msra.mxu0 0.0
    %1560 = vmatprep.subr.mxu0 0.0
    %1561 = vmatpush2.msra.mxu0 0.0
    %1562 = vmatprep.subr.mxu0 0.0
    %1563 = vmatpush2.msra.mxu0 0.0
    %1564 = vmatprep.subr.mxu0 0.0
    %1565 = vmatpush2.msra.mxu0 0.0
    %1566 = vmatprep.subr.mxu0 0.0
    %1567 = vmatpush2.msra.mxu0 0.0
    %1568 = vmatprep.subr.mxu0 0.0
    %1569 = vmatpush2.msra.mxu0 0.0
    %1570 = vmatprep.subr.mxu0 0.0
    %1571 = vmatpush2.msra.mxu0 0.0
    %1572 = vmatprep.subr.mxu0 0.0
    %1573 = vmatpush2.msra.mxu0 0.0
    %1574 = vmatprep.subr.mxu0 0.0
    %1575 = vmatpush2.msra.mxu0 0.0
    %1576 = vmatprep.mubr.f32.mxu0 0.0
    %v1577 = vand.u32 %v377, 4294901760
    %v1578 = vsub.f32 %v377, %v1577
    %1579 = vmatmul.mubr.f32.gmra.mxu0 %v1578
    %v1580 = vpop.f32.mrf.mxu0
    %v1581 = vadd.f32 %v1455, %v1580
    %v1582 = vpop.f32.mrf.mxu0
    %v1583 = vadd.f32 %v1457, %v1582
    %1584 = vmatprep.mubr.f32.mxu0 0.0
    %v1585 = vand.u32 %v380, 4294901760
    %v1586 = vsub.f32 %v380, %v1585
    %1587 = vmatmul.mubr.f32.gmra.mxu0 %v1586
    %v1588 = vpop.f32.mrf.mxu0
    %v1589 = vadd.f32 %v1462, %v1588
    %v1590 = vpop.f32.mrf.mxu0
    %v1591 = vadd.f32 %v1464, %v1590
    %1592 = vmatprep.mubr.f32.mxu0 0.0
    %v1593 = vand.u32 %v383, 4294901760
    %v1594 = vsub.f32 %v383, %v1593
    %1595 = vmatmul.mubr.f32.gmra.mxu0 %v1594
    %v1596 = vpop.f32.mrf.mxu0
    %v1597 = vadd.f32 %v1469, %v1596
    %v1598 = vpop.f32.mrf.mxu0
    %v1599 = vadd.f32 %v1471, %v1598
    %1600 = vmatprep.mubr.f32.mxu0 0.0
    %v1601 = vand.u32 %v386, 4294901760
    %v1602 = vsub.f32 %v386, %v1601
    %1603 = vmatmul.mubr.f32.gmra.mxu0 %v1602
    %v1604 = vpop.f32.mrf.mxu0
    %v1605 = vadd.f32 %v1476, %v1604
    %v1606 = vpop.f32.mrf.mxu0
    %v1607 = vadd.f32 %v1478, %v1606
    %1608 = vdwg.mxu0
    %1609 = vmatprep.subr.mxu0 0.0
    %1610 = vmatpush1.msra.mxu0 0.0
    %1611 = vmatprep.subr.mxu0 0.0
    %1612 = vmatpush1.msra.mxu0 0.0
    %1613 = vmatprep.subr.mxu0 0.0
    %1614 = vmatpush1.msra.mxu0 0.0
    %1615 = vmatprep.subr.mxu0 0.0
    %1616 = vmatpush1.msra.mxu0 0.0
    %1617 = vmatprep.subr.mxu0 0.0
    %1618 = vmatpush1.msra.mxu0 0.0
    %1619 = vmatprep.subr.mxu0 0.0
    %1620 = vmatpush1.msra.mxu0 0.0
    %1621 = vmatprep.subr.mxu0 0.0
    %1622 = vmatpush1.msra.mxu0 0.0
    %1623 = vmatprep.subr.mxu0 0.0
    %1624 = vmatpush1.msra.mxu0 0.0
    %v1625 = vand.u32 %v228, 4294901760
    %1626 = vmatprep.subr.mxu0 %v1625
    %v1627 = vand.u32 %v227, 4294901760
    %1628 = vmatpush1.msra.mxu0 %v1627
    %v1629 = vand.u32 %v204, 4294901760
    %1630 = vmatprep.subr.mxu0 %v1629
    %v1631 = vand.u32 %v203, 4294901760
    %1632 = vmatpush1.msra.mxu0 %v1631
    %v1633 = vand.u32 %v180, 4294901760
    %1634 = vmatprep.subr.mxu0 %v1633
    %v1635 = vand.u32 %v179, 4294901760
    %1636 = vmatpush1.msra.mxu0 %v1635
    %v1637 = vand.u32 %v156, 4294901760
    %1638 = vmatprep.subr.mxu0 %v1637
    %v1639 = vand.u32 %v155, 4294901760
    %1640 = vmatpush1.msra.mxu0 %v1639
    %v1641 = vand.u32 %v132, 4294901760
    %1642 = vmatprep.subr.mxu0 %v1641
    %v1643 = vand.u32 %v131, 4294901760
    %1644 = vmatpush1.msra.mxu0 %v1643
    %v1645 = vand.u32 %v108, 4294901760
    %1646 = vmatprep.subr.mxu0 %v1645
    %v1647 = vand.u32 %v107, 4294901760
    %1648 = vmatpush1.msra.mxu0 %v1647
    %v1649 = vand.u32 %v84, 4294901760
    %1650 = vmatprep.subr.mxu0 %v1649
    %v1651 = vand.u32 %v83, 4294901760
    %1652 = vmatpush1.msra.mxu0 %v1651
    %v1653 = vand.u32 %v60, 4294901760
    %1654 = vmatprep.subr.mxu0 %v1653
    %v1655 = vand.u32 %v59, 4294901760
    %1656 = vmatpush1.msra.mxu0 %v1655
    %1657 = vmatprep.subr.mxu0 0.0
    %1658 = vmatpush2.msra.mxu0 0.0
    %1659 = vmatprep.subr.mxu0 0.0
    %1660 = vmatpush2.msra.mxu0 0.0
    %1661 = vmatprep.subr.mxu0 0.0
    %1662 = vmatpush2.msra.mxu0 0.0
    %1663 = vmatprep.subr.mxu0 0.0
    %1664 = vmatpush2.msra.mxu0 0.0
    %1665 = vmatprep.subr.mxu0 0.0
    %1666 = vmatpush2.msra.mxu0 0.0
    %1667 = vmatprep.subr.mxu0 0.0
    %1668 = vmatpush2.msra.mxu0 0.0
    %1669 = vmatprep.subr.mxu0 0.0
    %1670 = vmatpush2.msra.mxu0 0.0
    %1671 = vmatprep.subr.mxu0 0.0
    %1672 = vmatpush2.msra.mxu0 0.0
    %1673 = vmatprep.subr.mxu0 0.0
    %1674 = vmatpush2.msra.mxu0 0.0
    %1675 = vmatprep.subr.mxu0 0.0
    %1676 = vmatpush2.msra.mxu0 0.0
    %1677 = vmatprep.subr.mxu0 0.0
    %1678 = vmatpush2.msra.mxu0 0.0
    %1679 = vmatprep.subr.mxu0 0.0
    %1680 = vmatpush2.msra.mxu0 0.0
    %1681 = vmatprep.subr.mxu0 0.0
    %1682 = vmatpush2.msra.mxu0 0.0
    %1683 = vmatprep.subr.mxu0 0.0
    %1684 = vmatpush2.msra.mxu0 0.0
    %1685 = vmatprep.subr.mxu0 0.0
    %1686 = vmatpush2.msra.mxu0 0.0
    %1687 = vmatprep.subr.mxu0 0.0
    %1688 = vmatpush2.msra.mxu0 0.0
    %1689 = vmatprep.mubr.f32.mxu0 0.0
    %v1690 = vand.u32 %v377, 4294901760
    %v1691 = vsub.f32 %v377, %v1690
    %v1692 = vand.u32 %v1691, 4294901760
    %1693 = vmatmul.mubr.f32.gmra.mxu0 %v1692
    %v1694 = vpop.f32.mrf.mxu0
    %v1695 = vadd.f32 %v1581, %v1694
    %v1696 = vpop.f32.mrf.mxu0
    %v1697 = vadd.f32 %v1583, %v1696
    %1698 = vmatprep.mubr.f32.mxu0 0.0
    %v1699 = vand.u32 %v380, 4294901760
    %v1700 = vsub.f32 %v380, %v1699
    %v1701 = vand.u32 %v1700, 4294901760
    %1702 = vmatmul.mubr.f32.gmra.mxu0 %v1701
    %v1703 = vpop.f32.mrf.mxu0
    %v1704 = vadd.f32 %v1589, %v1703
    %v1705 = vpop.f32.mrf.mxu0
    %v1706 = vadd.f32 %v1591, %v1705
    %1707 = vmatprep.mubr.f32.mxu0 0.0
    %v1708 = vand.u32 %v383, 4294901760
    %v1709 = vsub.f32 %v383, %v1708
    %v1710 = vand.u32 %v1709, 4294901760
    %1711 = vmatmul.mubr.f32.gmra.mxu0 %v1710
    %v1712 = vpop.f32.mrf.mxu0
    %v1713 = vadd.f32 %v1597, %v1712
    %v1714 = vpop.f32.mrf.mxu0
    %v1715 = vadd.f32 %v1599, %v1714
    %1716 = vmatprep.mubr.f32.mxu0 0.0
    %v1717 = vand.u32 %v386, 4294901760
    %v1718 = vsub.f32 %v386, %v1717
    %v1719 = vand.u32 %v1718, 4294901760
    %1720 = vmatmul.mubr.f32.gmra.mxu0 %v1719
    %v1721 = vpop.f32.mrf.mxu0
    %v1722 = vadd.f32 %v1605, %v1721
    %v1723 = vpop.f32.mrf.mxu0
    %v1724 = vadd.f32 %v1607, %v1723
    %1725 = vdwg.mxu0
    %1726 = vmatprep.subr.mxu0 0.0
    %1727 = vmatpush1.msra.mxu0 0.0
    %1728 = vmatprep.subr.mxu0 0.0
    %1729 = vmatpush1.msra.mxu0 0.0
    %1730 = vmatprep.subr.mxu0 0.0
    %1731 = vmatpush1.msra.mxu0 0.0
    %1732 = vmatprep.subr.mxu0 0.0
    %1733 = vmatpush1.msra.mxu0 0.0
    %1734 = vmatprep.subr.mxu0 0.0
    %1735 = vmatpush1.msra.mxu0 0.0
    %1736 = vmatprep.subr.mxu0 0.0
    %1737 = vmatpush1.msra.mxu0 0.0
    %1738 = vmatprep.subr.mxu0 0.0
    %1739 = vmatpush1.msra.mxu0 0.0
    %1740 = vmatprep.subr.mxu0 0.0
    %1741 = vmatpush1.msra.mxu0 0.0
    %v1742 = vand.u32 %v228, 4294901760
    %v1743 = vsub.f32 %v228, %v1742
    %v1744 = vand.u32 %v1743, 4294901760
    %1745 = vmatprep.subr.mxu0 %v1744
    %v1746 = vand.u32 %v227, 4294901760
    %v1747 = vsub.f32 %v227, %v1746
    %v1748 = vand.u32 %v1747, 4294901760
    %1749 = vmatpush1.msra.mxu0 %v1748
    %v1750 = vand.u32 %v204, 4294901760
    %v1751 = vsub.f32 %v204, %v1750
    %v1752 = vand.u32 %v1751, 4294901760
    %1753 = vmatprep.subr.mxu0 %v1752
    %v1754 = vand.u32 %v203, 4294901760
    %v1755 = vsub.f32 %v203, %v1754
    %v1756 = vand.u32 %v1755, 4294901760
    %1757 = vmatpush1.msra.mxu0 %v1756
    %v1758 = vand.u32 %v180, 4294901760
    %v1759 = vsub.f32 %v180, %v1758
    %v1760 = vand.u32 %v1759, 4294901760
    %1761 = vmatprep.subr.mxu0 %v1760
    %v1762 = vand.u32 %v179, 4294901760
    %v1763 = vsub.f32 %v179, %v1762
    %v1764 = vand.u32 %v1763, 4294901760
    %1765 = vmatpush1.msra.mxu0 %v1764
    %v1766 = vand.u32 %v156, 4294901760
    %v1767 = vsub.f32 %v156, %v1766
    %v1768 = vand.u32 %v1767, 4294901760
    %1769 = vmatprep.subr.mxu0 %v1768
    %v1770 = vand.u32 %v155, 4294901760
    %v1771 = vsub.f32 %v155, %v1770
    %v1772 = vand.u32 %v1771, 4294901760
    %1773 = vmatpush1.msra.mxu0 %v1772
    %v1774 = vand.u32 %v132, 4294901760
    %v1775 = vsub.f32 %v132, %v1774
    %v1776 = vand.u32 %v1775, 4294901760
    %1777 = vmatprep.subr.mxu0 %v1776
    %v1778 = vand.u32 %v131, 4294901760
    %v1779 = vsub.f32 %v131, %v1778
    %v1780 = vand.u32 %v1779, 4294901760
    %1781 = vmatpush1.msra.mxu0 %v1780
    %v1782 = vand.u32 %v108, 4294901760
    %v1783 = vsub.f32 %v108, %v1782
    %v1784 = vand.u32 %v1783, 4294901760
    %1785 = vmatprep.subr.mxu0 %v1784
    %v1786 = vand.u32 %v107, 4294901760
    %v1787 = vsub.f32 %v107, %v1786
    %v1788 = vand.u32 %v1787, 4294901760
    %1789 = vmatpush1.msra.mxu0 %v1788
    %v1790 = vand.u32 %v84, 4294901760
    %v1791 = vsub.f32 %v84, %v1790
    %v1792 = vand.u32 %v1791, 4294901760
    %1793 = vmatprep.subr.mxu0 %v1792
    %v1794 = vand.u32 %v83, 4294901760
    %v1795 = vsub.f32 %v83, %v1794
    %v1796 = vand.u32 %v1795, 4294901760
    %1797 = vmatpush1.msra.mxu0 %v1796
    %v1798 = vand.u32 %v60, 4294901760
    %v1799 = vsub.f32 %v60, %v1798
    %v1800 = vand.u32 %v1799, 4294901760
    %1801 = vmatprep.subr.mxu0 %v1800
    %v1802 = vand.u32 %v59, 4294901760
    %v1803 = vsub.f32 %v59, %v1802
    %v1804 = vand.u32 %v1803, 4294901760
    %1805 = vmatpush1.msra.mxu0 %v1804
    %1806 = vmatprep.subr.mxu0 0.0
    %1807 = vmatpush2.msra.mxu0 0.0
    %1808 = vmatprep.subr.mxu0 0.0
    %1809 = vmatpush2.msra.mxu0 0.0
    %1810 = vmatprep.subr.mxu0 0.0
    %1811 = vmatpush2.msra.mxu0 0.0
    %1812 = vmatprep.subr.mxu0 0.0
    %1813 = vmatpush2.msra.mxu0 0.0
    %1814 = vmatprep.subr.mxu0 0.0
    %1815 = vmatpush2.msra.mxu0 0.0
    %1816 = vmatprep.subr.mxu0 0.0
    %1817 = vmatpush2.msra.mxu0 0.0
    %1818 = vmatprep.subr.mxu0 0.0
    %1819 = vmatpush2.msra.mxu0 0.0
    %1820 = vmatprep.subr.mxu0 0.0
    %1821 = vmatpush2.msra.mxu0 0.0
    %1822 = vmatprep.subr.mxu0 0.0
    %1823 = vmatpush2.msra.mxu0 0.0
    %1824 = vmatprep.subr.mxu0 0.0
    %1825 = vmatpush2.msra.mxu0 0.0
    %1826 = vmatprep.subr.mxu0 0.0
    %1827 = vmatpush2.msra.mxu0 0.0
    %1828 = vmatprep.subr.mxu0 0.0
    %1829 = vmatpush2.msra.mxu0 0.0
    %1830 = vmatprep.subr.mxu0 0.0
    %1831 = vmatpush2.msra.mxu0 0.0
    %1832 = vmatprep.subr.mxu0 0.0
    %1833 = vmatpush2.msra.mxu0 0.0
    %1834 = vmatprep.subr.mxu0 0.0
    %1835 = vmatpush2.msra.mxu0 0.0
    %1836 = vmatprep.subr.mxu0 0.0
    %1837 = vmatpush2.msra.mxu0 0.0
    %1838 = vmatprep.mubr.f32.mxu0 0.0
    %v1839 = vand.u32 %v377, 4294901760
    %1840 = vmatmul.mubr.f32.gmra.mxu0 %v1839
    %v1841 = vpop.f32.mrf.mxu0
    %v1842 = vadd.f32 %v1695, %v1841
    %v1843 = vpop.f32.mrf.mxu0
    %v1844 = vadd.f32 %v1697, %v1843
    %1845 = vmatprep.mubr.f32.mxu0 0.0
    %v1846 = vand.u32 %v380, 4294901760
    %1847 = vmatmul.mubr.f32.gmra.mxu0 %v1846
    %v1848 = vpop.f32.mrf.mxu0
    %v1849 = vadd.f32 %v1704, %v1848
    %v1850 = vpop.f32.mrf.mxu0
    %v1851 = vadd.f32 %v1706, %v1850
    %1852 = vmatprep.mubr.f32.mxu0 0.0
    %v1853 = vand.u32 %v383, 4294901760
    %1854 = vmatmul.mubr.f32.gmra.mxu0 %v1853
    %v1855 = vpop.f32.mrf.mxu0
    %v1856 = vadd.f32 %v1713, %v1855
    %v1857 = vpop.f32.mrf.mxu0
    %v1858 = vadd.f32 %v1715, %v1857
    %1859 = vmatprep.mubr.f32.mxu0 0.0
    %v1860 = vand.u32 %v386, 4294901760
    %1861 = vmatmul.mubr.f32.gmra.mxu0 %v1860
    %v1862 = vpop.f32.mrf.mxu0
    %v1863 = vadd.f32 %v1722, %v1862
    %v1864 = vpop.f32.mrf.mxu0
    %v1865 = vadd.f32 %v1724, %v1864
    %1866 = vdwg.mxu0
    %1867 = vmatprep.subr.mxu0 0.0
    %1868 = vmatpush1.msra.mxu0 0.0
    %1869 = vmatprep.subr.mxu0 0.0
    %1870 = vmatpush1.msra.mxu0 0.0
    %1871 = vmatprep.subr.mxu0 0.0
    %1872 = vmatpush1.msra.mxu0 0.0
    %1873 = vmatprep.subr.mxu0 0.0
    %1874 = vmatpush1.msra.mxu0 0.0
    %1875 = vmatprep.subr.mxu0 0.0
    %1876 = vmatpush1.msra.mxu0 0.0
    %1877 = vmatprep.subr.mxu0 0.0
    %1878 = vmatpush1.msra.mxu0 0.0
    %1879 = vmatprep.subr.mxu0 0.0
    %1880 = vmatpush1.msra.mxu0 0.0
    %1881 = vmatprep.subr.mxu0 0.0
    %1882 = vmatpush1.msra.mxu0 0.0
    %v1883 = vand.u32 %v228, 4294901760
    %1884 = vmatprep.subr.mxu0 %v1883
    %v1885 = vand.u32 %v227, 4294901760
    %1886 = vmatpush1.msra.mxu0 %v1885
    %v1887 = vand.u32 %v204, 4294901760
    %1888 = vmatprep.subr.mxu0 %v1887
    %v1889 = vand.u32 %v203, 4294901760
    %1890 = vmatpush1.msra.mxu0 %v1889
    %v1891 = vand.u32 %v180, 4294901760
    %1892 = vmatprep.subr.mxu0 %v1891
    %v1893 = vand.u32 %v179, 4294901760
    %1894 = vmatpush1.msra.mxu0 %v1893
    %v1895 = vand.u32 %v156, 4294901760
    %1896 = vmatprep.subr.mxu0 %v1895
    %v1897 = vand.u32 %v155, 4294901760
    %1898 = vmatpush1.msra.mxu0 %v1897
    %v1899 = vand.u32 %v132, 4294901760
    %1900 = vmatprep.subr.mxu0 %v1899
    %v1901 = vand.u32 %v131, 4294901760
    %1902 = vmatpush1.msra.mxu0 %v1901
    %v1903 = vand.u32 %v108, 4294901760
    %1904 = vmatprep.subr.mxu0 %v1903
    %v1905 = vand.u32 %v107, 4294901760
    %1906 = vmatpush1.msra.mxu0 %v1905
    %v1907 = vand.u32 %v84, 4294901760
    %1908 = vmatprep.subr.mxu0 %v1907
    %v1909 = vand.u32 %v83, 4294901760
    %1910 = vmatpush1.msra.mxu0 %v1909
    %v1911 = vand.u32 %v60, 4294901760
    %1912 = vmatprep.subr.mxu0 %v1911
    %v1913 = vand.u32 %v59, 4294901760
    %1914 = vmatpush1.msra.mxu0 %v1913
    %1915 = vmatprep.subr.mxu0 0.0
    %1916 = vmatpush2.msra.mxu0 0.0
    %1917 = vmatprep.subr.mxu0 0.0
    %1918 = vmatpush2.msra.mxu0 0.0
    %1919 = vmatprep.subr.mxu0 0.0
    %1920 = vmatpush2.msra.mxu0 0.0
    %1921 = vmatprep.subr.mxu0 0.0
    %1922 = vmatpush2.msra.mxu0 0.0
    %1923 = vmatprep.subr.mxu0 0.0
    %1924 = vmatpush2.msra.mxu0 0.0
    %1925 = vmatprep.subr.mxu0 0.0
    %1926 = vmatpush2.msra.mxu0 0.0
    %1927 = vmatprep.subr.mxu0 0.0
    %1928 = vmatpush2.msra.mxu0 0.0
    %1929 = vmatprep.subr.mxu0 0.0
    %1930 = vmatpush2.msra.mxu0 0.0
    %1931 = vmatprep.subr.mxu0 0.0
    %1932 = vmatpush2.msra.mxu0 0.0
    %1933 = vmatprep.subr.mxu0 0.0
    %1934 = vmatpush2.msra.mxu0 0.0
    %1935 = vmatprep.subr.mxu0 0.0
    %1936 = vmatpush2.msra.mxu0 0.0
    %1937 = vmatprep.subr.mxu0 0.0
    %1938 = vmatpush2.msra.mxu0 0.0
    %1939 = vmatprep.subr.mxu0 0.0
    %1940 = vmatpush2.msra.mxu0 0.0
    %1941 = vmatprep.subr.mxu0 0.0
    %1942 = vmatpush2.msra.mxu0 0.0
    %1943 = vmatprep.subr.mxu0 0.0
    %1944 = vmatpush2.msra.mxu0 0.0
    %1945 = vmatprep.subr.mxu0 0.0
    %1946 = vmatpush2.msra.mxu0 0.0
    %1947 = vmatprep.mubr.f32.mxu0 0.0
    %v1948 = vand.u32 %v377, 4294901760
    %1949 = vmatmul.mubr.f32.gmra.mxu0 %v1948
    %v1950 = vpop.f32.mrf.mxu0
    %v1951 = vadd.f32 %v1842, %v1950
    %v1952 = vpop.f32.mrf.mxu0
    %v1953 = vadd.f32 %v1844, %v1952
    %1954 = vmatprep.mubr.f32.mxu0 0.0
    %v1955 = vand.u32 %v380, 4294901760
    %1956 = vmatmul.mubr.f32.gmra.mxu0 %v1955
    %v1957 = vpop.f32.mrf.mxu0
    %v1958 = vadd.f32 %v1849, %v1957
    %v1959 = vpop.f32.mrf.mxu0
    %v1960 = vadd.f32 %v1851, %v1959
    %1961 = vmatprep.mubr.f32.mxu0 0.0
    %v1962 = vand.u32 %v383, 4294901760
    %1963 = vmatmul.mubr.f32.gmra.mxu0 %v1962
    %v1964 = vpop.f32.mrf.mxu0
    %v1965 = vadd.f32 %v1856, %v1964
    %v1966 = vpop.f32.mrf.mxu0
    %v1967 = vadd.f32 %v1858, %v1966
    %1968 = vmatprep.mubr.f32.mxu0 0.0
    %v1969 = vand.u32 %v386, 4294901760
    %1970 = vmatmul.mubr.f32.gmra.mxu0 %v1969
    %v1971 = vpop.f32.mrf.mxu0
    %v1972 = vadd.f32 %v1863, %v1971
    %v1973 = vpop.f32.mrf.mxu0
    %v1974 = vadd.f32 %v1865, %v1973
    %1975 = vdwg.mxu0
    %1976 = vmatprep.subr.mxu0 0.0
    %1977 = vmatpush1.msra.mxu0 0.0
    %1978 = vmatprep.subr.mxu0 0.0
    %1979 = vmatpush1.msra.mxu0 0.0
    %1980 = vmatprep.subr.mxu0 0.0
    %1981 = vmatpush1.msra.mxu0 0.0
    %1982 = vmatprep.subr.mxu0 0.0
    %1983 = vmatpush1.msra.mxu0 0.0
    %1984 = vmatprep.subr.mxu0 0.0
    %1985 = vmatpush1.msra.mxu0 0.0
    %1986 = vmatprep.subr.mxu0 0.0
    %1987 = vmatpush1.msra.mxu0 0.0
    %1988 = vmatprep.subr.mxu0 0.0
    %1989 = vmatpush1.msra.mxu0 0.0
    %1990 = vmatprep.subr.mxu0 0.0
    %1991 = vmatpush1.msra.mxu0 0.0
    %v1992 = vand.u32 %v230, 4294901760
    %1993 = vmatprep.subr.mxu0 %v1992
    %v1994 = vand.u32 %v229, 4294901760
    %1995 = vmatpush1.msra.mxu0 %v1994
    %v1996 = vand.u32 %v206, 4294901760
    %1997 = vmatprep.subr.mxu0 %v1996
    %v1998 = vand.u32 %v205, 4294901760
    %1999 = vmatpush1.msra.mxu0 %v1998
    %v2000 = vand.u32 %v182, 4294901760
    %2001 = vmatprep.subr.mxu0 %v2000
    %v2002 = vand.u32 %v181, 4294901760
    %2003 = vmatpush1.msra.mxu0 %v2002
    %v2004 = vand.u32 %v158, 4294901760
    %2005 = vmatprep.subr.mxu0 %v2004
    %v2006 = vand.u32 %v157, 4294901760
    %2007 = vmatpush1.msra.mxu0 %v2006
    %v2008 = vand.u32 %v134, 4294901760
    %2009 = vmatprep.subr.mxu0 %v2008
    %v2010 = vand.u32 %v133, 4294901760
    %2011 = vmatpush1.msra.mxu0 %v2010
    %v2012 = vand.u32 %v110, 4294901760
    %2013 = vmatprep.subr.mxu0 %v2012
    %v2014 = vand.u32 %v109, 4294901760
    %2015 = vmatpush1.msra.mxu0 %v2014
    %v2016 = vand.u32 %v86, 4294901760
    %2017 = vmatprep.subr.mxu0 %v2016
    %v2018 = vand.u32 %v85, 4294901760
    %2019 = vmatpush1.msra.mxu0 %v2018
    %v2020 = vand.u32 %v62, 4294901760
    %2021 = vmatprep.subr.mxu0 %v2020
    %v2022 = vand.u32 %v61, 4294901760
    %2023 = vmatpush1.msra.mxu0 %v2022
    %2024 = vmatprep.subr.mxu0 0.0
    %2025 = vmatpush2.msra.mxu0 0.0
    %2026 = vmatprep.subr.mxu0 0.0
    %2027 = vmatpush2.msra.mxu0 0.0
    %2028 = vmatprep.subr.mxu0 0.0
    %2029 = vmatpush2.msra.mxu0 0.0
    %2030 = vmatprep.subr.mxu0 0.0
    %2031 = vmatpush2.msra.mxu0 0.0
    %2032 = vmatprep.subr.mxu0 0.0
    %2033 = vmatpush2.msra.mxu0 0.0
    %2034 = vmatprep.subr.mxu0 0.0
    %2035 = vmatpush2.msra.mxu0 0.0
    %2036 = vmatprep.subr.mxu0 0.0
    %2037 = vmatpush2.msra.mxu0 0.0
    %2038 = vmatprep.subr.mxu0 0.0
    %2039 = vmatpush2.msra.mxu0 0.0
    %2040 = vmatprep.subr.mxu0 0.0
    %2041 = vmatpush2.msra.mxu0 0.0
    %2042 = vmatprep.subr.mxu0 0.0
    %2043 = vmatpush2.msra.mxu0 0.0
    %2044 = vmatprep.subr.mxu0 0.0
    %2045 = vmatpush2.msra.mxu0 0.0
    %2046 = vmatprep.subr.mxu0 0.0
    %2047 = vmatpush2.msra.mxu0 0.0
    %2048 = vmatprep.subr.mxu0 0.0
    %2049 = vmatpush2.msra.mxu0 0.0
    %2050 = vmatprep.subr.mxu0 0.0
    %2051 = vmatpush2.msra.mxu0 0.0
    %2052 = vmatprep.subr.mxu0 0.0
    %2053 = vmatpush2.msra.mxu0 0.0
    %2054 = vmatprep.subr.mxu0 0.0
    %2055 = vmatpush2.msra.mxu0 0.0
    %2056 = vmatprep.mubr.f32.mxu0 0.0
    %v2057 = vand.u32 %v377, 4294901760
    %v2058 = vsub.f32 %v377, %v2057
    %v2059 = vand.u32 %v2058, 4294901760
    %v2060 = vsub.f32 %v2058, %v2059
    %v2061 = vand.u32 %v2060, 4294901760
    %2062 = vmatmul.mubr.f32.gmra.mxu0 %v2061
    %v2063 = vpop.f32.mrf.mxu0
    %v2064 = vadd.f32 %v274, %v2063
    %v2065 = vpop.f32.mrf.mxu0
    %v2066 = vadd.f32 %v278, %v2065
    %2067 = vmatprep.mubr.f32.mxu0 0.0
    %v2068 = vand.u32 %v380, 4294901760
    %v2069 = vsub.f32 %v380, %v2068
    %v2070 = vand.u32 %v2069, 4294901760
    %v2071 = vsub.f32 %v2069, %v2070
    %v2072 = vand.u32 %v2071, 4294901760
    %2073 = vmatmul.mubr.f32.gmra.mxu0 %v2072
    %v2074 = vpop.f32.mrf.mxu0
    %v2075 = vadd.f32 %v274, %v2074
    %v2076 = vpop.f32.mrf.mxu0
    %v2077 = vadd.f32 %v278, %v2076
    %2078 = vmatprep.mubr.f32.mxu0 0.0
    %v2079 = vand.u32 %v383, 4294901760
    %v2080 = vsub.f32 %v383, %v2079
    %v2081 = vand.u32 %v2080, 4294901760
    %v2082 = vsub.f32 %v2080, %v2081
    %v2083 = vand.u32 %v2082, 4294901760
    %2084 = vmatmul.mubr.f32.gmra.mxu0 %v2083
    %v2085 = vpop.f32.mrf.mxu0
    %v2086 = vadd.f32 %v274, %v2085
    %v2087 = vpop.f32.mrf.mxu0
    %v2088 = vadd.f32 %v278, %v2087
    %2089 = vmatprep.mubr.f32.mxu0 0.0
    %v2090 = vand.u32 %v386, 4294901760
    %v2091 = vsub.f32 %v386, %v2090
    %v2092 = vand.u32 %v2091, 4294901760
    %v2093 = vsub.f32 %v2091, %v2092
    %v2094 = vand.u32 %v2093, 4294901760
    %2095 = vmatmul.mubr.f32.gmra.mxu0 %v2094
    %v2096 = vpop.f32.mrf.mxu0
    %v2097 = vadd.f32 %v274, %v2096
    %v2098 = vpop.f32.mrf.mxu0
    %v2099 = vadd.f32 %v278, %v2098
    %2100 = vdwg.mxu0
    %2101 = vmatprep.subr.mxu0 0.0
    %2102 = vmatpush1.msra.mxu0 0.0
    %2103 = vmatprep.subr.mxu0 0.0
    %2104 = vmatpush1.msra.mxu0 0.0
    %2105 = vmatprep.subr.mxu0 0.0
    %2106 = vmatpush1.msra.mxu0 0.0
    %2107 = vmatprep.subr.mxu0 0.0
    %2108 = vmatpush1.msra.mxu0 0.0
    %2109 = vmatprep.subr.mxu0 0.0
    %2110 = vmatpush1.msra.mxu0 0.0
    %2111 = vmatprep.subr.mxu0 0.0
    %2112 = vmatpush1.msra.mxu0 0.0
    %2113 = vmatprep.subr.mxu0 0.0
    %2114 = vmatpush1.msra.mxu0 0.0
    %2115 = vmatprep.subr.mxu0 0.0
    %2116 = vmatpush1.msra.mxu0 0.0
    %v2117 = vand.u32 %v230, 4294901760
    %v2118 = vsub.f32 %v230, %v2117
    %v2119 = vand.u32 %v2118, 4294901760
    %v2120 = vsub.f32 %v2118, %v2119
    %v2121 = vand.u32 %v2120, 4294901760
    %2122 = vmatprep.subr.mxu0 %v2121
    %v2123 = vand.u32 %v229, 4294901760
    %v2124 = vsub.f32 %v229, %v2123
    %v2125 = vand.u32 %v2124, 4294901760
    %v2126 = vsub.f32 %v2124, %v2125
    %v2127 = vand.u32 %v2126, 4294901760
    %2128 = vmatpush1.msra.mxu0 %v2127
    %v2129 = vand.u32 %v206, 4294901760
    %v2130 = vsub.f32 %v206, %v2129
    %v2131 = vand.u32 %v2130, 4294901760
    %v2132 = vsub.f32 %v2130, %v2131
    %v2133 = vand.u32 %v2132, 4294901760
    %2134 = vmatprep.subr.mxu0 %v2133
    %v2135 = vand.u32 %v205, 4294901760
    %v2136 = vsub.f32 %v205, %v2135
    %v2137 = vand.u32 %v2136, 4294901760
    %v2138 = vsub.f32 %v2136, %v2137
    %v2139 = vand.u32 %v2138, 4294901760
    %2140 = vmatpush1.msra.mxu0 %v2139
    %v2141 = vand.u32 %v182, 4294901760
    %v2142 = vsub.f32 %v182, %v2141
    %v2143 = vand.u32 %v2142, 4294901760
    %v2144 = vsub.f32 %v2142, %v2143
    %v2145 = vand.u32 %v2144, 4294901760
    %2146 = vmatprep.subr.mxu0 %v2145
    %v2147 = vand.u32 %v181, 4294901760
    %v2148 = vsub.f32 %v181, %v2147
    %v2149 = vand.u32 %v2148, 4294901760
    %v2150 = vsub.f32 %v2148, %v2149
    %v2151 = vand.u32 %v2150, 4294901760
    %2152 = vmatpush1.msra.mxu0 %v2151
    %v2153 = vand.u32 %v158, 4294901760
    %v2154 = vsub.f32 %v158, %v2153
    %v2155 = vand.u32 %v2154, 4294901760
    %v2156 = vsub.f32 %v2154, %v2155
    %v2157 = vand.u32 %v2156, 4294901760
    %2158 = vmatprep.subr.mxu0 %v2157
    %v2159 = vand.u32 %v157, 4294901760
    %v2160 = vsub.f32 %v157, %v2159
    %v2161 = vand.u32 %v2160, 4294901760
    %v2162 = vsub.f32 %v2160, %v2161
    %v2163 = vand.u32 %v2162, 4294901760
    %2164 = vmatpush1.msra.mxu0 %v2163
    %v2165 = vand.u32 %v134, 4294901760
    %v2166 = vsub.f32 %v134, %v2165
    %v2167 = vand.u32 %v2166, 4294901760
    %v2168 = vsub.f32 %v2166, %v2167
    %v2169 = vand.u32 %v2168, 4294901760
    %2170 = vmatprep.subr.mxu0 %v2169
    %v2171 = vand.u32 %v133, 4294901760
    %v2172 = vsub.f32 %v133, %v2171
    %v2173 = vand.u32 %v2172, 4294901760
    %v2174 = vsub.f32 %v2172, %v2173
    %v2175 = vand.u32 %v2174, 4294901760
    %2176 = vmatpush1.msra.mxu0 %v2175
    %v2177 = vand.u32 %v110, 4294901760
    %v2178 = vsub.f32 %v110, %v2177
    %v2179 = vand.u32 %v2178, 4294901760
    %v2180 = vsub.f32 %v2178, %v2179
    %v2181 = vand.u32 %v2180, 4294901760
    %2182 = vmatprep.subr.mxu0 %v2181
    %v2183 = vand.u32 %v109, 4294901760
    %v2184 = vsub.f32 %v109, %v2183
    %v2185 = vand.u32 %v2184, 4294901760
    %v2186 = vsub.f32 %v2184, %v2185
    %v2187 = vand.u32 %v2186, 4294901760
    %2188 = vmatpush1.msra.mxu0 %v2187
    %v2189 = vand.u32 %v86, 4294901760
    %v2190 = vsub.f32 %v86, %v2189
    %v2191 = vand.u32 %v2190, 4294901760
    %v2192 = vsub.f32 %v2190, %v2191
    %v2193 = vand.u32 %v2192, 4294901760
    %2194 = vmatprep.subr.mxu0 %v2193
    %v2195 = vand.u32 %v85, 4294901760
    %v2196 = vsub.f32 %v85, %v2195
    %v2197 = vand.u32 %v2196, 4294901760
    %v2198 = vsub.f32 %v2196, %v2197
    %v2199 = vand.u32 %v2198, 4294901760
    %2200 = vmatpush1.msra.mxu0 %v2199
    %v2201 = vand.u32 %v62, 4294901760
    %v2202 = vsub.f32 %v62, %v2201
    %v2203 = vand.u32 %v2202, 4294901760
    %v2204 = vsub.f32 %v2202, %v2203
    %v2205 = vand.u32 %v2204, 4294901760
    %2206 = vmatprep.subr.mxu0 %v2205
    %v2207 = vand.u32 %v61, 4294901760
    %v2208 = vsub.f32 %v61, %v2207
    %v2209 = vand.u32 %v2208, 4294901760
    %v2210 = vsub.f32 %v2208, %v2209
    %v2211 = vand.u32 %v2210, 4294901760
    %2212 = vmatpush1.msra.mxu0 %v2211
    %2213 = vmatprep.subr.mxu0 0.0
    %2214 = vmatpush2.msra.mxu0 0.0
    %2215 = vmatprep.subr.mxu0 0.0
    %2216 = vmatpush2.msra.mxu0 0.0
    %2217 = vmatprep.subr.mxu0 0.0
    %2218 = vmatpush2.msra.mxu0 0.0
    %2219 = vmatprep.subr.mxu0 0.0
    %2220 = vmatpush2.msra.mxu0 0.0
    %2221 = vmatprep.subr.mxu0 0.0
    %2222 = vmatpush2.msra.mxu0 0.0
    %2223 = vmatprep.subr.mxu0 0.0
    %2224 = vmatpush2.msra.mxu0 0.0
    %2225 = vmatprep.subr.mxu0 0.0
    %2226 = vmatpush2.msra.mxu0 0.0
    %2227 = vmatprep.subr.mxu0 0.0
    %2228 = vmatpush2.msra.mxu0 0.0
    %2229 = vmatprep.subr.mxu0 0.0
    %2230 = vmatpush2.msra.mxu0 0.0
    %2231 = vmatprep.subr.mxu0 0.0
    %2232 = vmatpush2.msra.mxu0 0.0
    %2233 = vmatprep.subr.mxu0 0.0
    %2234 = vmatpush2.msra.mxu0 0.0
    %2235 = vmatprep.subr.mxu0 0.0
    %2236 = vmatpush2.msra.mxu0 0.0
    %2237 = vmatprep.subr.mxu0 0.0
    %2238 = vmatpush2.msra.mxu0 0.0
    %2239 = vmatprep.subr.mxu0 0.0
    %2240 = vmatpush2.msra.mxu0 0.0
    %2241 = vmatprep.subr.mxu0 0.0
    %2242 = vmatpush2.msra.mxu0 0.0
    %2243 = vmatprep.subr.mxu0 0.0
    %2244 = vmatpush2.msra.mxu0 0.0
    %2245 = vmatprep.mubr.f32.mxu0 0.0
    %v2246 = vand.u32 %v377, 4294901760
    %2247 = vmatmul.mubr.f32.gmra.mxu0 %v2246
    %v2248 = vpop.f32.mrf.mxu0
    %v2249 = vadd.f32 %v2064, %v2248
    %v2250 = vpop.f32.mrf.mxu0
    %v2251 = vadd.f32 %v2066, %v2250
    %2252 = vmatprep.mubr.f32.mxu0 0.0
    %v2253 = vand.u32 %v380, 4294901760
    %2254 = vmatmul.mubr.f32.gmra.mxu0 %v2253
    %v2255 = vpop.f32.mrf.mxu0
    %v2256 = vadd.f32 %v2075, %v2255
    %v2257 = vpop.f32.mrf.mxu0
    %v2258 = vadd.f32 %v2077, %v2257
    %2259 = vmatprep.mubr.f32.mxu0 0.0
    %v2260 = vand.u32 %v383, 4294901760
    %2261 = vmatmul.mubr.f32.gmra.mxu0 %v2260
    %v2262 = vpop.f32.mrf.mxu0
    %v2263 = vadd.f32 %v2086, %v2262
    %v2264 = vpop.f32.mrf.mxu0
    %v2265 = vadd.f32 %v2088, %v2264
    %2266 = vmatprep.mubr.f32.mxu0 0.0
    %v2267 = vand.u32 %v386, 4294901760
    %2268 = vmatmul.mubr.f32.gmra.mxu0 %v2267
    %v2269 = vpop.f32.mrf.mxu0
    %v2270 = vadd.f32 %v2097, %v2269
    %v2271 = vpop.f32.mrf.mxu0
    %v2272 = vadd.f32 %v2099, %v2271
    %2273 = vdwg.mxu0
    %2274 = vmatprep.subr.mxu0 0.0
    %2275 = vmatpush1.msra.mxu0 0.0
    %2276 = vmatprep.subr.mxu0 0.0
    %2277 = vmatpush1.msra.mxu0 0.0
    %2278 = vmatprep.subr.mxu0 0.0
    %2279 = vmatpush1.msra.mxu0 0.0
    %2280 = vmatprep.subr.mxu0 0.0
    %2281 = vmatpush1.msra.mxu0 0.0
    %2282 = vmatprep.subr.mxu0 0.0
    %2283 = vmatpush1.msra.mxu0 0.0
    %2284 = vmatprep.subr.mxu0 0.0
    %2285 = vmatpush1.msra.mxu0 0.0
    %2286 = vmatprep.subr.mxu0 0.0
    %2287 = vmatpush1.msra.mxu0 0.0
    %2288 = vmatprep.subr.mxu0 0.0
    %2289 = vmatpush1.msra.mxu0 0.0
    %v2290 = vand.u32 %v230, 4294901760
    %v2291 = vsub.f32 %v230, %v2290
    %2292 = vmatprep.subr.mxu0 %v2291
    %v2293 = vand.u32 %v229, 4294901760
    %v2294 = vsub.f32 %v229, %v2293
    %2295 = vmatpush1.msra.mxu0 %v2294
    %v2296 = vand.u32 %v206, 4294901760
    %v2297 = vsub.f32 %v206, %v2296
    %2298 = vmatprep.subr.mxu0 %v2297
    %v2299 = vand.u32 %v205, 4294901760
    %v2300 = vsub.f32 %v205, %v2299
    %2301 = vmatpush1.msra.mxu0 %v2300
    %v2302 = vand.u32 %v182, 4294901760
    %v2303 = vsub.f32 %v182, %v2302
    %2304 = vmatprep.subr.mxu0 %v2303
    %v2305 = vand.u32 %v181, 4294901760
    %v2306 = vsub.f32 %v181, %v2305
    %2307 = vmatpush1.msra.mxu0 %v2306
    %v2308 = vand.u32 %v158, 4294901760
    %v2309 = vsub.f32 %v158, %v2308
    %2310 = vmatprep.subr.mxu0 %v2309
    %v2311 = vand.u32 %v157, 4294901760
    %v2312 = vsub.f32 %v157, %v2311
    %2313 = vmatpush1.msra.mxu0 %v2312
    %v2314 = vand.u32 %v134, 4294901760
    %v2315 = vsub.f32 %v134, %v2314
    %2316 = vmatprep.subr.mxu0 %v2315
    %v2317 = vand.u32 %v133, 4294901760
    %v2318 = vsub.f32 %v133, %v2317
    %2319 = vmatpush1.msra.mxu0 %v2318
    %v2320 = vand.u32 %v110, 4294901760
    %v2321 = vsub.f32 %v110, %v2320
    %2322 = vmatprep.subr.mxu0 %v2321
    %v2323 = vand.u32 %v109, 4294901760
    %v2324 = vsub.f32 %v109, %v2323
    %2325 = vmatpush1.msra.mxu0 %v2324
    %v2326 = vand.u32 %v86, 4294901760
    %v2327 = vsub.f32 %v86, %v2326
    %2328 = vmatprep.subr.mxu0 %v2327
    %v2329 = vand.u32 %v85, 4294901760
    %v2330 = vsub.f32 %v85, %v2329
    %2331 = vmatpush1.msra.mxu0 %v2330
    %v2332 = vand.u32 %v62, 4294901760
    %v2333 = vsub.f32 %v62, %v2332
    %2334 = vmatprep.subr.mxu0 %v2333
    %v2335 = vand.u32 %v61, 4294901760
    %v2336 = vsub.f32 %v61, %v2335
    %2337 = vmatpush1.msra.mxu0 %v2336
    %2338 = vmatprep.subr.mxu0 0.0
    %2339 = vmatpush2.msra.mxu0 0.0
    %2340 = vmatprep.subr.mxu0 0.0
    %2341 = vmatpush2.msra.mxu0 0.0
    %2342 = vmatprep.subr.mxu0 0.0
    %2343 = vmatpush2.msra.mxu0 0.0
    %2344 = vmatprep.subr.mxu0 0.0
    %2345 = vmatpush2.msra.mxu0 0.0
    %2346 = vmatprep.subr.mxu0 0.0
    %2347 = vmatpush2.msra.mxu0 0.0
    %2348 = vmatprep.subr.mxu0 0.0
    %2349 = vmatpush2.msra.mxu0 0.0
    %2350 = vmatprep.subr.mxu0 0.0
    %2351 = vmatpush2.msra.mxu0 0.0
    %2352 = vmatprep.subr.mxu0 0.0
    %2353 = vmatpush2.msra.mxu0 0.0
    %2354 = vmatprep.subr.mxu0 0.0
    %2355 = vmatpush2.msra.mxu0 0.0
    %2356 = vmatprep.subr.mxu0 0.0
    %2357 = vmatpush2.msra.mxu0 0.0
    %2358 = vmatprep.subr.mxu0 0.0
    %2359 = vmatpush2.msra.mxu0 0.0
    %2360 = vmatprep.subr.mxu0 0.0
    %2361 = vmatpush2.msra.mxu0 0.0
    %2362 = vmatprep.subr.mxu0 0.0
    %2363 = vmatpush2.msra.mxu0 0.0
    %2364 = vmatprep.subr.mxu0 0.0
    %2365 = vmatpush2.msra.mxu0 0.0
    %2366 = vmatprep.subr.mxu0 0.0
    %2367 = vmatpush2.msra.mxu0 0.0
    %2368 = vmatprep.subr.mxu0 0.0
    %2369 = vmatpush2.msra.mxu0 0.0
    %2370 = vmatprep.mubr.f32.mxu0 0.0
    %v2371 = vand.u32 %v377, 4294901760
    %v2372 = vsub.f32 %v377, %v2371
    %2373 = vmatmul.mubr.f32.gmra.mxu0 %v2372
    %v2374 = vpop.f32.mrf.mxu0
    %v2375 = vadd.f32 %v2249, %v2374
    %v2376 = vpop.f32.mrf.mxu0
    %v2377 = vadd.f32 %v2251, %v2376
    %2378 = vmatprep.mubr.f32.mxu0 0.0
    %v2379 = vand.u32 %v380, 4294901760
    %v2380 = vsub.f32 %v380, %v2379
    %2381 = vmatmul.mubr.f32.gmra.mxu0 %v2380
    %v2382 = vpop.f32.mrf.mxu0
    %v2383 = vadd.f32 %v2256, %v2382
    %v2384 = vpop.f32.mrf.mxu0
    %v2385 = vadd.f32 %v2258, %v2384
    %2386 = vmatprep.mubr.f32.mxu0 0.0
    %v2387 = vand.u32 %v383, 4294901760
    %v2388 = vsub.f32 %v383, %v2387
    %2389 = vmatmul.mubr.f32.gmra.mxu0 %v2388
    %v2390 = vpop.f32.mrf.mxu0
    %v2391 = vadd.f32 %v2263, %v2390
    %v2392 = vpop.f32.mrf.mxu0
    %v2393 = vadd.f32 %v2265, %v2392
    %2394 = vmatprep.mubr.f32.mxu0 0.0
    %v2395 = vand.u32 %v386, 4294901760
    %v2396 = vsub.f32 %v386, %v2395
    %2397 = vmatmul.mubr.f32.gmra.mxu0 %v2396
    %v2398 = vpop.f32.mrf.mxu0
    %v2399 = vadd.f32 %v2270, %v2398
    %v2400 = vpop.f32.mrf.mxu0
    %v2401 = vadd.f32 %v2272, %v2400
    %2402 = vdwg.mxu0
    %2403 = vmatprep.subr.mxu0 0.0
    %2404 = vmatpush1.msra.mxu0 0.0
    %2405 = vmatprep.subr.mxu0 0.0
    %2406 = vmatpush1.msra.mxu0 0.0
    %2407 = vmatprep.subr.mxu0 0.0
    %2408 = vmatpush1.msra.mxu0 0.0
    %2409 = vmatprep.subr.mxu0 0.0
    %2410 = vmatpush1.msra.mxu0 0.0
    %2411 = vmatprep.subr.mxu0 0.0
    %2412 = vmatpush1.msra.mxu0 0.0
    %2413 = vmatprep.subr.mxu0 0.0
    %2414 = vmatpush1.msra.mxu0 0.0
    %2415 = vmatprep.subr.mxu0 0.0
    %2416 = vmatpush1.msra.mxu0 0.0
    %2417 = vmatprep.subr.mxu0 0.0
    %2418 = vmatpush1.msra.mxu0 0.0
    %v2419 = vand.u32 %v230, 4294901760
    %2420 = vmatprep.subr.mxu0 %v2419
    %v2421 = vand.u32 %v229, 4294901760
    %2422 = vmatpush1.msra.mxu0 %v2421
    %v2423 = vand.u32 %v206, 4294901760
    %2424 = vmatprep.subr.mxu0 %v2423
    %v2425 = vand.u32 %v205, 4294901760
    %2426 = vmatpush1.msra.mxu0 %v2425
    %v2427 = vand.u32 %v182, 4294901760
    %2428 = vmatprep.subr.mxu0 %v2427
    %v2429 = vand.u32 %v181, 4294901760
    %2430 = vmatpush1.msra.mxu0 %v2429
    %v2431 = vand.u32 %v158, 4294901760
    %2432 = vmatprep.subr.mxu0 %v2431
    %v2433 = vand.u32 %v157, 4294901760
    %2434 = vmatpush1.msra.mxu0 %v2433
    %v2435 = vand.u32 %v134, 4294901760
    %2436 = vmatprep.subr.mxu0 %v2435
    %v2437 = vand.u32 %v133, 4294901760
    %2438 = vmatpush1.msra.mxu0 %v2437
    %v2439 = vand.u32 %v110, 4294901760
    %2440 = vmatprep.subr.mxu0 %v2439
    %v2441 = vand.u32 %v109, 4294901760
    %2442 = vmatpush1.msra.mxu0 %v2441
    %v2443 = vand.u32 %v86, 4294901760
    %2444 = vmatprep.subr.mxu0 %v2443
    %v2445 = vand.u32 %v85, 4294901760
    %2446 = vmatpush1.msra.mxu0 %v2445
    %v2447 = vand.u32 %v62, 4294901760
    %2448 = vmatprep.subr.mxu0 %v2447
    %v2449 = vand.u32 %v61, 4294901760
    %2450 = vmatpush1.msra.mxu0 %v2449
    %2451 = vmatprep.subr.mxu0 0.0
    %2452 = vmatpush2.msra.mxu0 0.0
    %2453 = vmatprep.subr.mxu0 0.0
    %2454 = vmatpush2.msra.mxu0 0.0
    %2455 = vmatprep.subr.mxu0 0.0
    %2456 = vmatpush2.msra.mxu0 0.0
    %2457 = vmatprep.subr.mxu0 0.0
    %2458 = vmatpush2.msra.mxu0 0.0
    %2459 = vmatprep.subr.mxu0 0.0
    %2460 = vmatpush2.msra.mxu0 0.0
    %2461 = vmatprep.subr.mxu0 0.0
    %2462 = vmatpush2.msra.mxu0 0.0
    %2463 = vmatprep.subr.mxu0 0.0
    %2464 = vmatpush2.msra.mxu0 0.0
    %2465 = vmatprep.subr.mxu0 0.0
    %2466 = vmatpush2.msra.mxu0 0.0
    %2467 = vmatprep.subr.mxu0 0.0
    %2468 = vmatpush2.msra.mxu0 0.0
    %2469 = vmatprep.subr.mxu0 0.0
    %2470 = vmatpush2.msra.mxu0 0.0
    %2471 = vmatprep.subr.mxu0 0.0
    %2472 = vmatpush2.msra.mxu0 0.0
    %2473 = vmatprep.subr.mxu0 0.0
    %2474 = vmatpush2.msra.mxu0 0.0
    %2475 = vmatprep.subr.mxu0 0.0
    %2476 = vmatpush2.msra.mxu0 0.0
    %2477 = vmatprep.subr.mxu0 0.0
    %2478 = vmatpush2.msra.mxu0 0.0
    %2479 = vmatprep.subr.mxu0 0.0
    %2480 = vmatpush2.msra.mxu0 0.0
    %2481 = vmatprep.subr.mxu0 0.0
    %2482 = vmatpush2.msra.mxu0 0.0
    %2483 = vmatprep.mubr.f32.mxu0 0.0
    %v2484 = vand.u32 %v377, 4294901760
    %v2485 = vsub.f32 %v377, %v2484
    %v2486 = vand.u32 %v2485, 4294901760
    %2487 = vmatmul.mubr.f32.gmra.mxu0 %v2486
    %v2488 = vpop.f32.mrf.mxu0
    %v2489 = vadd.f32 %v2375, %v2488
    %v2490 = vpop.f32.mrf.mxu0
    %v2491 = vadd.f32 %v2377, %v2490
    %2492 = vmatprep.mubr.f32.mxu0 0.0
    %v2493 = vand.u32 %v380, 4294901760
    %v2494 = vsub.f32 %v380, %v2493
    %v2495 = vand.u32 %v2494, 4294901760
    %2496 = vmatmul.mubr.f32.gmra.mxu0 %v2495
    %v2497 = vpop.f32.mrf.mxu0
    %v2498 = vadd.f32 %v2383, %v2497
    %v2499 = vpop.f32.mrf.mxu0
    %v2500 = vadd.f32 %v2385, %v2499
    %2501 = vmatprep.mubr.f32.mxu0 0.0
    %v2502 = vand.u32 %v383, 4294901760
    %v2503 = vsub.f32 %v383, %v2502
    %v2504 = vand.u32 %v2503, 4294901760
    %2505 = vmatmul.mubr.f32.gmra.mxu0 %v2504
    %v2506 = vpop.f32.mrf.mxu0
    %v2507 = vadd.f32 %v2391, %v2506
    %v2508 = vpop.f32.mrf.mxu0
    %v2509 = vadd.f32 %v2393, %v2508
    %2510 = vmatprep.mubr.f32.mxu0 0.0
    %v2511 = vand.u32 %v386, 4294901760
    %v2512 = vsub.f32 %v386, %v2511
    %v2513 = vand.u32 %v2512, 4294901760
    %2514 = vmatmul.mubr.f32.gmra.mxu0 %v2513
    %v2515 = vpop.f32.mrf.mxu0
    %v2516 = vadd.f32 %v2399, %v2515
    %v2517 = vpop.f32.mrf.mxu0
    %v2518 = vadd.f32 %v2401, %v2517
    %2519 = vdwg.mxu0
    %2520 = vmatprep.subr.mxu0 0.0
    %2521 = vmatpush1.msra.mxu0 0.0
    %2522 = vmatprep.subr.mxu0 0.0
    %2523 = vmatpush1.msra.mxu0 0.0
    %2524 = vmatprep.subr.mxu0 0.0
    %2525 = vmatpush1.msra.mxu0 0.0
    %2526 = vmatprep.subr.mxu0 0.0
    %2527 = vmatpush1.msra.mxu0 0.0
    %2528 = vmatprep.subr.mxu0 0.0
    %2529 = vmatpush1.msra.mxu0 0.0
    %2530 = vmatprep.subr.mxu0 0.0
    %2531 = vmatpush1.msra.mxu0 0.0
    %2532 = vmatprep.subr.mxu0 0.0
    %2533 = vmatpush1.msra.mxu0 0.0
    %2534 = vmatprep.subr.mxu0 0.0
    %2535 = vmatpush1.msra.mxu0 0.0
    %v2536 = vand.u32 %v230, 4294901760
    %v2537 = vsub.f32 %v230, %v2536
    %v2538 = vand.u32 %v2537, 4294901760
    %2539 = vmatprep.subr.mxu0 %v2538
    %v2540 = vand.u32 %v229, 4294901760
    %v2541 = vsub.f32 %v229, %v2540
    %v2542 = vand.u32 %v2541, 4294901760
    %2543 = vmatpush1.msra.mxu0 %v2542
    %v2544 = vand.u32 %v206, 4294901760
    %v2545 = vsub.f32 %v206, %v2544
    %v2546 = vand.u32 %v2545, 4294901760
    %2547 = vmatprep.subr.mxu0 %v2546
    %v2548 = vand.u32 %v205, 4294901760
    %v2549 = vsub.f32 %v205, %v2548
    %v2550 = vand.u32 %v2549, 4294901760
    %2551 = vmatpush1.msra.mxu0 %v2550
    %v2552 = vand.u32 %v182, 4294901760
    %v2553 = vsub.f32 %v182, %v2552
    %v2554 = vand.u32 %v2553, 4294901760
    %2555 = vmatprep.subr.mxu0 %v2554
    %v2556 = vand.u32 %v181, 4294901760
    %v2557 = vsub.f32 %v181, %v2556
    %v2558 = vand.u32 %v2557, 4294901760
    %2559 = vmatpush1.msra.mxu0 %v2558
    %v2560 = vand.u32 %v158, 4294901760
    %v2561 = vsub.f32 %v158, %v2560
    %v2562 = vand.u32 %v2561, 4294901760
    %2563 = vmatprep.subr.mxu0 %v2562
    %v2564 = vand.u32 %v157, 4294901760
    %v2565 = vsub.f32 %v157, %v2564
    %v2566 = vand.u32 %v2565, 4294901760
    %2567 = vmatpush1.msra.mxu0 %v2566
    %v2568 = vand.u32 %v134, 4294901760
    %v2569 = vsub.f32 %v134, %v2568
    %v2570 = vand.u32 %v2569, 4294901760
    %2571 = vmatprep.subr.mxu0 %v2570
    %v2572 = vand.u32 %v133, 4294901760
    %v2573 = vsub.f32 %v133, %v2572
    %v2574 = vand.u32 %v2573, 4294901760
    %2575 = vmatpush1.msra.mxu0 %v2574
    %v2576 = vand.u32 %v110, 4294901760
    %v2577 = vsub.f32 %v110, %v2576
    %v2578 = vand.u32 %v2577, 4294901760
    %2579 = vmatprep.subr.mxu0 %v2578
    %v2580 = vand.u32 %v109, 4294901760
    %v2581 = vsub.f32 %v109, %v2580
    %v2582 = vand.u32 %v2581, 4294901760
    %2583 = vmatpush1.msra.mxu0 %v2582
    %v2584 = vand.u32 %v86, 4294901760
    %v2585 = vsub.f32 %v86, %v2584
    %v2586 = vand.u32 %v2585, 4294901760
    %2587 = vmatprep.subr.mxu0 %v2586
    %v2588 = vand.u32 %v85, 4294901760
    %v2589 = vsub.f32 %v85, %v2588
    %v2590 = vand.u32 %v2589, 4294901760
    %2591 = vmatpush1.msra.mxu0 %v2590
    %v2592 = vand.u32 %v62, 4294901760
    %v2593 = vsub.f32 %v62, %v2592
    %v2594 = vand.u32 %v2593, 4294901760
    %2595 = vmatprep.subr.mxu0 %v2594
    %v2596 = vand.u32 %v61, 4294901760
    %v2597 = vsub.f32 %v61, %v2596
    %v2598 = vand.u32 %v2597, 4294901760
    %2599 = vmatpush1.msra.mxu0 %v2598
    %2600 = vmatprep.subr.mxu0 0.0
    %2601 = vmatpush2.msra.mxu0 0.0
    %2602 = vmatprep.subr.mxu0 0.0
    %2603 = vmatpush2.msra.mxu0 0.0
    %2604 = vmatprep.subr.mxu0 0.0
    %2605 = vmatpush2.msra.mxu0 0.0
    %2606 = vmatprep.subr.mxu0 0.0
    %2607 = vmatpush2.msra.mxu0 0.0
    %2608 = vmatprep.subr.mxu0 0.0
    %2609 = vmatpush2.msra.mxu0 0.0
    %2610 = vmatprep.subr.mxu0 0.0
    %2611 = vmatpush2.msra.mxu0 0.0
    %2612 = vmatprep.subr.mxu0 0.0
    %2613 = vmatpush2.msra.mxu0 0.0
    %2614 = vmatprep.subr.mxu0 0.0
    %2615 = vmatpush2.msra.mxu0 0.0
    %2616 = vmatprep.subr.mxu0 0.0
    %2617 = vmatpush2.msra.mxu0 0.0
    %2618 = vmatprep.subr.mxu0 0.0
    %2619 = vmatpush2.msra.mxu0 0.0
    %2620 = vmatprep.subr.mxu0 0.0
    %2621 = vmatpush2.msra.mxu0 0.0
    %2622 = vmatprep.subr.mxu0 0.0
    %2623 = vmatpush2.msra.mxu0 0.0
    %2624 = vmatprep.subr.mxu0 0.0
    %2625 = vmatpush2.msra.mxu0 0.0
    %2626 = vmatprep.subr.mxu0 0.0
    %2627 = vmatpush2.msra.mxu0 0.0
    %2628 = vmatprep.subr.mxu0 0.0
    %2629 = vmatpush2.msra.mxu0 0.0
    %2630 = vmatprep.subr.mxu0 0.0
    %2631 = vmatpush2.msra.mxu0 0.0
    %2632 = vmatprep.mubr.f32.mxu0 0.0
    %v2633 = vand.u32 %v377, 4294901760
    %2634 = vmatmul.mubr.f32.gmra.mxu0 %v2633
    %v2635 = vpop.f32.mrf.mxu0
    %v2636 = vadd.f32 %v2489, %v2635
    %v2637 = vpop.f32.mrf.mxu0
    %v2638 = vadd.f32 %v2491, %v2637
    %2639 = vmatprep.mubr.f32.mxu0 0.0
    %v2640 = vand.u32 %v380, 4294901760
    %2641 = vmatmul.mubr.f32.gmra.mxu0 %v2640
    %v2642 = vpop.f32.mrf.mxu0
    %v2643 = vadd.f32 %v2498, %v2642
    %v2644 = vpop.f32.mrf.mxu0
    %v2645 = vadd.f32 %v2500, %v2644
    %2646 = vmatprep.mubr.f32.mxu0 0.0
    %v2647 = vand.u32 %v383, 4294901760
    %2648 = vmatmul.mubr.f32.gmra.mxu0 %v2647
    %v2649 = vpop.f32.mrf.mxu0
    %v2650 = vadd.f32 %v2507, %v2649
    %v2651 = vpop.f32.mrf.mxu0
    %v2652 = vadd.f32 %v2509, %v2651
    %2653 = vmatprep.mubr.f32.mxu0 0.0
    %v2654 = vand.u32 %v386, 4294901760
    %2655 = vmatmul.mubr.f32.gmra.mxu0 %v2654
    %v2656 = vpop.f32.mrf.mxu0
    %v2657 = vadd.f32 %v2516, %v2656
    %v2658 = vpop.f32.mrf.mxu0
    %v2659 = vadd.f32 %v2518, %v2658
    %2660 = vdwg.mxu0
    %2661 = vmatprep.subr.mxu0 0.0
    %2662 = vmatpush1.msra.mxu0 0.0
    %2663 = vmatprep.subr.mxu0 0.0
    %2664 = vmatpush1.msra.mxu0 0.0
    %2665 = vmatprep.subr.mxu0 0.0
    %2666 = vmatpush1.msra.mxu0 0.0
    %2667 = vmatprep.subr.mxu0 0.0
    %2668 = vmatpush1.msra.mxu0 0.0
    %2669 = vmatprep.subr.mxu0 0.0
    %2670 = vmatpush1.msra.mxu0 0.0
    %2671 = vmatprep.subr.mxu0 0.0
    %2672 = vmatpush1.msra.mxu0 0.0
    %2673 = vmatprep.subr.mxu0 0.0
    %2674 = vmatpush1.msra.mxu0 0.0
    %2675 = vmatprep.subr.mxu0 0.0
    %2676 = vmatpush1.msra.mxu0 0.0
    %v2677 = vand.u32 %v230, 4294901760
    %2678 = vmatprep.subr.mxu0 %v2677
    %v2679 = vand.u32 %v229, 4294901760
    %2680 = vmatpush1.msra.mxu0 %v2679
    %v2681 = vand.u32 %v206, 4294901760
    %2682 = vmatprep.subr.mxu0 %v2681
    %v2683 = vand.u32 %v205, 4294901760
    %2684 = vmatpush1.msra.mxu0 %v2683
    %v2685 = vand.u32 %v182, 4294901760
    %2686 = vmatprep.subr.mxu0 %v2685
    %v2687 = vand.u32 %v181, 4294901760
    %2688 = vmatpush1.msra.mxu0 %v2687
    %v2689 = vand.u32 %v158, 4294901760
    %2690 = vmatprep.subr.mxu0 %v2689
    %v2691 = vand.u32 %v157, 4294901760
    %2692 = vmatpush1.msra.mxu0 %v2691
    %v2693 = vand.u32 %v134, 4294901760
    %2694 = vmatprep.subr.mxu0 %v2693
    %v2695 = vand.u32 %v133, 4294901760
    %2696 = vmatpush1.msra.mxu0 %v2695
    %v2697 = vand.u32 %v110, 4294901760
    %2698 = vmatprep.subr.mxu0 %v2697
    %v2699 = vand.u32 %v109, 4294901760
    %2700 = vmatpush1.msra.mxu0 %v2699
    %v2701 = vand.u32 %v86, 4294901760
    %2702 = vmatprep.subr.mxu0 %v2701
    %v2703 = vand.u32 %v85, 4294901760
    %2704 = vmatpush1.msra.mxu0 %v2703
    %v2705 = vand.u32 %v62, 4294901760
    %2706 = vmatprep.subr.mxu0 %v2705
    %v2707 = vand.u32 %v61, 4294901760
    %2708 = vmatpush1.msra.mxu0 %v2707
    %2709 = vmatprep.subr.mxu0 0.0
    %2710 = vmatpush2.msra.mxu0 0.0
    %2711 = vmatprep.subr.mxu0 0.0
    %2712 = vmatpush2.msra.mxu0 0.0
    %2713 = vmatprep.subr.mxu0 0.0
    %2714 = vmatpush2.msra.mxu0 0.0
    %2715 = vmatprep.subr.mxu0 0.0
    %2716 = vmatpush2.msra.mxu0 0.0
    %2717 = vmatprep.subr.mxu0 0.0
    %2718 = vmatpush2.msra.mxu0 0.0
    %2719 = vmatprep.subr.mxu0 0.0
    %2720 = vmatpush2.msra.mxu0 0.0
    %2721 = vmatprep.subr.mxu0 0.0
    %2722 = vmatpush2.msra.mxu0 0.0
    %2723 = vmatprep.subr.mxu0 0.0
    %2724 = vmatpush2.msra.mxu0 0.0
    %2725 = vmatprep.subr.mxu0 0.0
    %2726 = vmatpush2.msra.mxu0 0.0
    %2727 = vmatprep.subr.mxu0 0.0
    %2728 = vmatpush2.msra.mxu0 0.0
    %2729 = vmatprep.subr.mxu0 0.0
    %2730 = vmatpush2.msra.mxu0 0.0
    %2731 = vmatprep.subr.mxu0 0.0
    %2732 = vmatpush2.msra.mxu0 0.0
    %2733 = vmatprep.subr.mxu0 0.0
    %2734 = vmatpush2.msra.mxu0 0.0
    %2735 = vmatprep.subr.mxu0 0.0
    %2736 = vmatpush2.msra.mxu0 0.0
    %2737 = vmatprep.subr.mxu0 0.0
    %2738 = vmatpush2.msra.mxu0 0.0
    %2739 = vmatprep.subr.mxu0 0.0
    %2740 = vmatpush2.msra.mxu0 0.0
    %2741 = vmatprep.mubr.f32.mxu0 0.0
    %v2742 = vand.u32 %v377, 4294901760
    %2743 = vmatmul.mubr.f32.gmra.mxu0 %v2742
    %v2744 = vpop.f32.mrf.mxu0
    %v2745 = vadd.f32 %v2636, %v2744
    %v2746 = vpop.f32.mrf.mxu0
    %v2747 = vadd.f32 %v2638, %v2746
    %2748 = vmatprep.mubr.f32.mxu0 0.0
    %v2749 = vand.u32 %v380, 4294901760
    %2750 = vmatmul.mubr.f32.gmra.mxu0 %v2749
    %v2751 = vpop.f32.mrf.mxu0
    %v2752 = vadd.f32 %v2643, %v2751
    %v2753 = vpop.f32.mrf.mxu0
    %v2754 = vadd.f32 %v2645, %v2753
    %2755 = vmatprep.mubr.f32.mxu0 0.0
    %v2756 = vand.u32 %v383, 4294901760
    %2757 = vmatmul.mubr.f32.gmra.mxu0 %v2756
    %v2758 = vpop.f32.mrf.mxu0
    %v2759 = vadd.f32 %v2650, %v2758
    %v2760 = vpop.f32.mrf.mxu0
    %v2761 = vadd.f32 %v2652, %v2760
    %2762 = vmatprep.mubr.f32.mxu0 0.0
    %v2763 = vand.u32 %v386, 4294901760
    %2764 = vmatmul.mubr.f32.gmra.mxu0 %v2763
    %v2765 = vpop.f32.mrf.mxu0
    %v2766 = vadd.f32 %v2657, %v2765
    %v2767 = vpop.f32.mrf.mxu0
    %v2768 = vadd.f32 %v2659, %v2767
    %2769 = vdwg.mxu0
    %2770 = vmatprep.subr.mxu0 0.0
    %2771 = vmatpush1.msra.mxu0 0.0
    %2772 = vmatprep.subr.mxu0 0.0
    %2773 = vmatpush1.msra.mxu0 0.0
    %2774 = vmatprep.subr.mxu0 0.0
    %2775 = vmatpush1.msra.mxu0 0.0
    %2776 = vmatprep.subr.mxu0 0.0
    %2777 = vmatpush1.msra.mxu0 0.0
    %2778 = vmatprep.subr.mxu0 0.0
    %2779 = vmatpush1.msra.mxu0 0.0
    %2780 = vmatprep.subr.mxu0 0.0
    %2781 = vmatpush1.msra.mxu0 0.0
    %2782 = vmatprep.subr.mxu0 0.0
    %2783 = vmatpush1.msra.mxu0 0.0
    %2784 = vmatprep.subr.mxu0 0.0
    %2785 = vmatpush1.msra.mxu0 0.0
    %v2786 = vand.u32 %v232, 4294901760
    %2787 = vmatprep.subr.mxu0 %v2786
    %v2788 = vand.u32 %v231, 4294901760
    %2789 = vmatpush1.msra.mxu0 %v2788
    %v2790 = vand.u32 %v208, 4294901760
    %2791 = vmatprep.subr.mxu0 %v2790
    %v2792 = vand.u32 %v207, 4294901760
    %2793 = vmatpush1.msra.mxu0 %v2792
    %v2794 = vand.u32 %v184, 4294901760
    %2795 = vmatprep.subr.mxu0 %v2794
    %v2796 = vand.u32 %v183, 4294901760
    %2797 = vmatpush1.msra.mxu0 %v2796
    %v2798 = vand.u32 %v160, 4294901760
    %2799 = vmatprep.subr.mxu0 %v2798
    %v2800 = vand.u32 %v159, 4294901760
    %2801 = vmatpush1.msra.mxu0 %v2800
    %v2802 = vand.u32 %v136, 4294901760
    %2803 = vmatprep.subr.mxu0 %v2802
    %v2804 = vand.u32 %v135, 4294901760
    %2805 = vmatpush1.msra.mxu0 %v2804
    %v2806 = vand.u32 %v112, 4294901760
    %2807 = vmatprep.subr.mxu0 %v2806
    %v2808 = vand.u32 %v111, 4294901760
    %2809 = vmatpush1.msra.mxu0 %v2808
    %v2810 = vand.u32 %v88, 4294901760
    %2811 = vmatprep.subr.mxu0 %v2810
    %v2812 = vand.u32 %v87, 4294901760
    %2813 = vmatpush1.msra.mxu0 %v2812
    %v2814 = vand.u32 %v64, 4294901760
    %2815 = vmatprep.subr.mxu0 %v2814
    %v2816 = vand.u32 %v63, 4294901760
    %2817 = vmatpush1.msra.mxu0 %v2816
    %2818 = vmatprep.subr.mxu0 0.0
    %2819 = vmatpush2.msra.mxu0 0.0
    %2820 = vmatprep.subr.mxu0 0.0
    %2821 = vmatpush2.msra.mxu0 0.0
    %2822 = vmatprep.subr.mxu0 0.0
    %2823 = vmatpush2.msra.mxu0 0.0
    %2824 = vmatprep.subr.mxu0 0.0
    %2825 = vmatpush2.msra.mxu0 0.0
    %2826 = vmatprep.subr.mxu0 0.0
    %2827 = vmatpush2.msra.mxu0 0.0
    %2828 = vmatprep.subr.mxu0 0.0
    %2829 = vmatpush2.msra.mxu0 0.0
    %2830 = vmatprep.subr.mxu0 0.0
    %2831 = vmatpush2.msra.mxu0 0.0
    %2832 = vmatprep.subr.mxu0 0.0
    %2833 = vmatpush2.msra.mxu0 0.0
    %2834 = vmatprep.subr.mxu0 0.0
    %2835 = vmatpush2.msra.mxu0 0.0
    %2836 = vmatprep.subr.mxu0 0.0
    %2837 = vmatpush2.msra.mxu0 0.0
    %2838 = vmatprep.subr.mxu0 0.0
    %2839 = vmatpush2.msra.mxu0 0.0
    %2840 = vmatprep.subr.mxu0 0.0
    %2841 = vmatpush2.msra.mxu0 0.0
    %2842 = vmatprep.subr.mxu0 0.0
    %2843 = vmatpush2.msra.mxu0 0.0
    %2844 = vmatprep.subr.mxu0 0.0
    %2845 = vmatpush2.msra.mxu0 0.0
    %2846 = vmatprep.subr.mxu0 0.0
    %2847 = vmatpush2.msra.mxu0 0.0
    %2848 = vmatprep.subr.mxu0 0.0
    %2849 = vmatpush2.msra.mxu0 0.0
    %2850 = vmatprep.mubr.f32.mxu0 0.0
    %v2851 = vand.u32 %v377, 4294901760
    %v2852 = vsub.f32 %v377, %v2851
    %v2853 = vand.u32 %v2852, 4294901760
    %v2854 = vsub.f32 %v2852, %v2853
    %v2855 = vand.u32 %v2854, 4294901760
    %2856 = vmatmul.mubr.f32.gmra.mxu0 %v2855
    %v2857 = vpop.f32.mrf.mxu0
    %v2858 = vadd.f32 %v282, %v2857
    %v2859 = vpop.f32.mrf.mxu0
    %v2860 = vadd.f32 %v286, %v2859
    %2861 = vmatprep.mubr.f32.mxu0 0.0
    %v2862 = vand.u32 %v380, 4294901760
    %v2863 = vsub.f32 %v380, %v2862
    %v2864 = vand.u32 %v2863, 4294901760
    %v2865 = vsub.f32 %v2863, %v2864
    %v2866 = vand.u32 %v2865, 4294901760
    %2867 = vmatmul.mubr.f32.gmra.mxu0 %v2866
    %v2868 = vpop.f32.mrf.mxu0
    %v2869 = vadd.f32 %v282, %v2868
    %v2870 = vpop.f32.mrf.mxu0
    %v2871 = vadd.f32 %v286, %v2870
    %2872 = vmatprep.mubr.f32.mxu0 0.0
    %v2873 = vand.u32 %v383, 4294901760
    %v2874 = vsub.f32 %v383, %v2873
    %v2875 = vand.u32 %v2874, 4294901760
    %v2876 = vsub.f32 %v2874, %v2875
    %v2877 = vand.u32 %v2876, 4294901760
    %2878 = vmatmul.mubr.f32.gmra.mxu0 %v2877
    %v2879 = vpop.f32.mrf.mxu0
    %v2880 = vadd.f32 %v282, %v2879
    %v2881 = vpop.f32.mrf.mxu0
    %v2882 = vadd.f32 %v286, %v2881
    %2883 = vmatprep.mubr.f32.mxu0 0.0
    %v2884 = vand.u32 %v386, 4294901760
    %v2885 = vsub.f32 %v386, %v2884
    %v2886 = vand.u32 %v2885, 4294901760
    %v2887 = vsub.f32 %v2885, %v2886
    %v2888 = vand.u32 %v2887, 4294901760
    %2889 = vmatmul.mubr.f32.gmra.mxu0 %v2888
    %v2890 = vpop.f32.mrf.mxu0
    %v2891 = vadd.f32 %v282, %v2890
    %v2892 = vpop.f32.mrf.mxu0
    %v2893 = vadd.f32 %v286, %v2892
    %2894 = vdwg.mxu0
    %2895 = vmatprep.subr.mxu0 0.0
    %2896 = vmatpush1.msra.mxu0 0.0
    %2897 = vmatprep.subr.mxu0 0.0
    %2898 = vmatpush1.msra.mxu0 0.0
    %2899 = vmatprep.subr.mxu0 0.0
    %2900 = vmatpush1.msra.mxu0 0.0
    %2901 = vmatprep.subr.mxu0 0.0
    %2902 = vmatpush1.msra.mxu0 0.0
    %2903 = vmatprep.subr.mxu0 0.0
    %2904 = vmatpush1.msra.mxu0 0.0
    %2905 = vmatprep.subr.mxu0 0.0
    %2906 = vmatpush1.msra.mxu0 0.0
    %2907 = vmatprep.subr.mxu0 0.0
    %2908 = vmatpush1.msra.mxu0 0.0
    %2909 = vmatprep.subr.mxu0 0.0
    %2910 = vmatpush1.msra.mxu0 0.0
    %v2911 = vand.u32 %v232, 4294901760
    %v2912 = vsub.f32 %v232, %v2911
    %v2913 = vand.u32 %v2912, 4294901760
    %v2914 = vsub.f32 %v2912, %v2913
    %v2915 = vand.u32 %v2914, 4294901760
    %2916 = vmatprep.subr.mxu0 %v2915
    %v2917 = vand.u32 %v231, 4294901760
    %v2918 = vsub.f32 %v231, %v2917
    %v2919 = vand.u32 %v2918, 4294901760
    %v2920 = vsub.f32 %v2918, %v2919
    %v2921 = vand.u32 %v2920, 4294901760
    %2922 = vmatpush1.msra.mxu0 %v2921
    %v2923 = vand.u32 %v208, 4294901760
    %v2924 = vsub.f32 %v208, %v2923
    %v2925 = vand.u32 %v2924, 4294901760
    %v2926 = vsub.f32 %v2924, %v2925
    %v2927 = vand.u32 %v2926, 4294901760
    %2928 = vmatprep.subr.mxu0 %v2927
    %v2929 = vand.u32 %v207, 4294901760
    %v2930 = vsub.f32 %v207, %v2929
    %v2931 = vand.u32 %v2930, 4294901760
    %v2932 = vsub.f32 %v2930, %v2931
    %v2933 = vand.u32 %v2932, 4294901760
    %2934 = vmatpush1.msra.mxu0 %v2933
    %v2935 = vand.u32 %v184, 4294901760
    %v2936 = vsub.f32 %v184, %v2935
    %v2937 = vand.u32 %v2936, 4294901760
    %v2938 = vsub.f32 %v2936, %v2937
    %v2939 = vand.u32 %v2938, 4294901760
    %2940 = vmatprep.subr.mxu0 %v2939
    %v2941 = vand.u32 %v183, 4294901760
    %v2942 = vsub.f32 %v183, %v2941
    %v2943 = vand.u32 %v2942, 4294901760
    %v2944 = vsub.f32 %v2942, %v2943
    %v2945 = vand.u32 %v2944, 4294901760
    %2946 = vmatpush1.msra.mxu0 %v2945
    %v2947 = vand.u32 %v160, 4294901760
    %v2948 = vsub.f32 %v160, %v2947
    %v2949 = vand.u32 %v2948, 4294901760
    %v2950 = vsub.f32 %v2948, %v2949
    %v2951 = vand.u32 %v2950, 4294901760
    %2952 = vmatprep.subr.mxu0 %v2951
    %v2953 = vand.u32 %v159, 4294901760
    %v2954 = vsub.f32 %v159, %v2953
    %v2955 = vand.u32 %v2954, 4294901760
    %v2956 = vsub.f32 %v2954, %v2955
    %v2957 = vand.u32 %v2956, 4294901760
    %2958 = vmatpush1.msra.mxu0 %v2957
    %v2959 = vand.u32 %v136, 4294901760
    %v2960 = vsub.f32 %v136, %v2959
    %v2961 = vand.u32 %v2960, 4294901760
    %v2962 = vsub.f32 %v2960, %v2961
    %v2963 = vand.u32 %v2962, 4294901760
    %2964 = vmatprep.subr.mxu0 %v2963
    %v2965 = vand.u32 %v135, 4294901760
    %v2966 = vsub.f32 %v135, %v2965
    %v2967 = vand.u32 %v2966, 4294901760
    %v2968 = vsub.f32 %v2966, %v2967
    %v2969 = vand.u32 %v2968, 4294901760
    %2970 = vmatpush1.msra.mxu0 %v2969
    %v2971 = vand.u32 %v112, 4294901760
    %v2972 = vsub.f32 %v112, %v2971
    %v2973 = vand.u32 %v2972, 4294901760
    %v2974 = vsub.f32 %v2972, %v2973
    %v2975 = vand.u32 %v2974, 4294901760
    %2976 = vmatprep.subr.mxu0 %v2975
    %v2977 = vand.u32 %v111, 4294901760
    %v2978 = vsub.f32 %v111, %v2977
    %v2979 = vand.u32 %v2978, 4294901760
    %v2980 = vsub.f32 %v2978, %v2979
    %v2981 = vand.u32 %v2980, 4294901760
    %2982 = vmatpush1.msra.mxu0 %v2981
    %v2983 = vand.u32 %v88, 4294901760
    %v2984 = vsub.f32 %v88, %v2983
    %v2985 = vand.u32 %v2984, 4294901760
    %v2986 = vsub.f32 %v2984, %v2985
    %v2987 = vand.u32 %v2986, 4294901760
    %2988 = vmatprep.subr.mxu0 %v2987
    %v2989 = vand.u32 %v87, 4294901760
    %v2990 = vsub.f32 %v87, %v2989
    %v2991 = vand.u32 %v2990, 4294901760
    %v2992 = vsub.f32 %v2990, %v2991
    %v2993 = vand.u32 %v2992, 4294901760
    %2994 = vmatpush1.msra.mxu0 %v2993
    %v2995 = vand.u32 %v64, 4294901760
    %v2996 = vsub.f32 %v64, %v2995
    %v2997 = vand.u32 %v2996, 4294901760
    %v2998 = vsub.f32 %v2996, %v2997
    %v2999 = vand.u32 %v2998, 4294901760
    %3000 = vmatprep.subr.mxu0 %v2999
    %v3001 = vand.u32 %v63, 4294901760
    %v3002 = vsub.f32 %v63, %v3001
    %v3003 = vand.u32 %v3002, 4294901760
    %v3004 = vsub.f32 %v3002, %v3003
    %v3005 = vand.u32 %v3004, 4294901760
    %3006 = vmatpush1.msra.mxu0 %v3005
    %3007 = vmatprep.subr.mxu0 0.0
    %3008 = vmatpush2.msra.mxu0 0.0
    %3009 = vmatprep.subr.mxu0 0.0
    %3010 = vmatpush2.msra.mxu0 0.0
    %3011 = vmatprep.subr.mxu0 0.0
    %3012 = vmatpush2.msra.mxu0 0.0
    %3013 = vmatprep.subr.mxu0 0.0
    %3014 = vmatpush2.msra.mxu0 0.0
    %3015 = vmatprep.subr.mxu0 0.0
    %3016 = vmatpush2.msra.mxu0 0.0
    %3017 = vmatprep.subr.mxu0 0.0
    %3018 = vmatpush2.msra.mxu0 0.0
    %3019 = vmatprep.subr.mxu0 0.0
    %3020 = vmatpush2.msra.mxu0 0.0
    %3021 = vmatprep.subr.mxu0 0.0
    %3022 = vmatpush2.msra.mxu0 0.0
    %3023 = vmatprep.subr.mxu0 0.0
    %3024 = vmatpush2.msra.mxu0 0.0
    %3025 = vmatprep.subr.mxu0 0.0
    %3026 = vmatpush2.msra.mxu0 0.0
    %3027 = vmatprep.subr.mxu0 0.0
    %3028 = vmatpush2.msra.mxu0 0.0
    %3029 = vmatprep.subr.mxu0 0.0
    %3030 = vmatpush2.msra.mxu0 0.0
    %3031 = vmatprep.subr.mxu0 0.0
    %3032 = vmatpush2.msra.mxu0 0.0
    %3033 = vmatprep.subr.mxu0 0.0
    %3034 = vmatpush2.msra.mxu0 0.0
    %3035 = vmatprep.subr.mxu0 0.0
    %3036 = vmatpush2.msra.mxu0 0.0
    %3037 = vmatprep.subr.mxu0 0.0
    %3038 = vmatpush2.msra.mxu0 0.0
    %3039 = vmatprep.mubr.f32.mxu0 0.0
    %v3040 = vand.u32 %v377, 4294901760
    %3041 = vmatmul.mubr.f32.gmra.mxu0 %v3040
    %v3042 = vpop.f32.mrf.mxu0
    %v3043 = vadd.f32 %v2858, %v3042
    %v3044 = vpop.f32.mrf.mxu0
    %v3045 = vadd.f32 %v2860, %v3044
    %3046 = vmatprep.mubr.f32.mxu0 0.0
    %v3047 = vand.u32 %v380, 4294901760
    %3048 = vmatmul.mubr.f32.gmra.mxu0 %v3047
    %v3049 = vpop.f32.mrf.mxu0
    %v3050 = vadd.f32 %v2869, %v3049
    %v3051 = vpop.f32.mrf.mxu0
    %v3052 = vadd.f32 %v2871, %v3051
    %3053 = vmatprep.mubr.f32.mxu0 0.0
    %v3054 = vand.u32 %v383, 4294901760
    %3055 = vmatmul.mubr.f32.gmra.mxu0 %v3054
    %v3056 = vpop.f32.mrf.mxu0
    %v3057 = vadd.f32 %v2880, %v3056
    %v3058 = vpop.f32.mrf.mxu0
    %v3059 = vadd.f32 %v2882, %v3058
    %3060 = vmatprep.mubr.f32.mxu0 0.0
    %v3061 = vand.u32 %v386, 4294901760
    %3062 = vmatmul.mubr.f32.gmra.mxu0 %v3061
    %v3063 = vpop.f32.mrf.mxu0
    %v3064 = vadd.f32 %v2891, %v3063
    %v3065 = vpop.f32.mrf.mxu0
    %v3066 = vadd.f32 %v2893, %v3065
    %3067 = vdwg.mxu0
    %3068 = vmatprep.subr.mxu0 0.0
    %3069 = vmatpush1.msra.mxu0 0.0
    %3070 = vmatprep.subr.mxu0 0.0
    %3071 = vmatpush1.msra.mxu0 0.0
    %3072 = vmatprep.subr.mxu0 0.0
    %3073 = vmatpush1.msra.mxu0 0.0
    %3074 = vmatprep.subr.mxu0 0.0
    %3075 = vmatpush1.msra.mxu0 0.0
    %3076 = vmatprep.subr.mxu0 0.0
    %3077 = vmatpush1.msra.mxu0 0.0
    %3078 = vmatprep.subr.mxu0 0.0
    %3079 = vmatpush1.msra.mxu0 0.0
    %3080 = vmatprep.subr.mxu0 0.0
    %3081 = vmatpush1.msra.mxu0 0.0
    %3082 = vmatprep.subr.mxu0 0.0
    %3083 = vmatpush1.msra.mxu0 0.0
    %v3084 = vand.u32 %v232, 4294901760
    %v3085 = vsub.f32 %v232, %v3084
    %3086 = vmatprep.subr.mxu0 %v3085
    %v3087 = vand.u32 %v231, 4294901760
    %v3088 = vsub.f32 %v231, %v3087
    %3089 = vmatpush1.msra.mxu0 %v3088
    %v3090 = vand.u32 %v208, 4294901760
    %v3091 = vsub.f32 %v208, %v3090
    %3092 = vmatprep.subr.mxu0 %v3091
    %v3093 = vand.u32 %v207, 4294901760
    %v3094 = vsub.f32 %v207, %v3093
    %3095 = vmatpush1.msra.mxu0 %v3094
    %v3096 = vand.u32 %v184, 4294901760
    %v3097 = vsub.f32 %v184, %v3096
    %3098 = vmatprep.subr.mxu0 %v3097
    %v3099 = vand.u32 %v183, 4294901760
    %v3100 = vsub.f32 %v183, %v3099
    %3101 = vmatpush1.msra.mxu0 %v3100
    %v3102 = vand.u32 %v160, 4294901760
    %v3103 = vsub.f32 %v160, %v3102
    %3104 = vmatprep.subr.mxu0 %v3103
    %v3105 = vand.u32 %v159, 4294901760
    %v3106 = vsub.f32 %v159, %v3105
    %3107 = vmatpush1.msra.mxu0 %v3106
    %v3108 = vand.u32 %v136, 4294901760
    %v3109 = vsub.f32 %v136, %v3108
    %3110 = vmatprep.subr.mxu0 %v3109
    %v3111 = vand.u32 %v135, 4294901760
    %v3112 = vsub.f32 %v135, %v3111
    %3113 = vmatpush1.msra.mxu0 %v3112
    %v3114 = vand.u32 %v112, 4294901760
    %v3115 = vsub.f32 %v112, %v3114
    %3116 = vmatprep.subr.mxu0 %v3115
    %v3117 = vand.u32 %v111, 4294901760
    %v3118 = vsub.f32 %v111, %v3117
    %3119 = vmatpush1.msra.mxu0 %v3118
    %v3120 = vand.u32 %v88, 4294901760
    %v3121 = vsub.f32 %v88, %v3120
    %3122 = vmatprep.subr.mxu0 %v3121
    %v3123 = vand.u32 %v87, 4294901760
    %v3124 = vsub.f32 %v87, %v3123
    %3125 = vmatpush1.msra.mxu0 %v3124
    %v3126 = vand.u32 %v64, 4294901760
    %v3127 = vsub.f32 %v64, %v3126
    %3128 = vmatprep.subr.mxu0 %v3127
    %v3129 = vand.u32 %v63, 4294901760
    %v3130 = vsub.f32 %v63, %v3129
    %3131 = vmatpush1.msra.mxu0 %v3130
    %3132 = vmatprep.subr.mxu0 0.0
    %3133 = vmatpush2.msra.mxu0 0.0
    %3134 = vmatprep.subr.mxu0 0.0
    %3135 = vmatpush2.msra.mxu0 0.0
    %3136 = vmatprep.subr.mxu0 0.0
    %3137 = vmatpush2.msra.mxu0 0.0
    %3138 = vmatprep.subr.mxu0 0.0
    %3139 = vmatpush2.msra.mxu0 0.0
    %3140 = vmatprep.subr.mxu0 0.0
    %3141 = vmatpush2.msra.mxu0 0.0
    %3142 = vmatprep.subr.mxu0 0.0
    %3143 = vmatpush2.msra.mxu0 0.0
    %3144 = vmatprep.subr.mxu0 0.0
    %3145 = vmatpush2.msra.mxu0 0.0
    %3146 = vmatprep.subr.mxu0 0.0
    %3147 = vmatpush2.msra.mxu0 0.0
    %3148 = vmatprep.subr.mxu0 0.0
    %3149 = vmatpush2.msra.mxu0 0.0
    %3150 = vmatprep.subr.mxu0 0.0
    %3151 = vmatpush2.msra.mxu0 0.0
    %3152 = vmatprep.subr.mxu0 0.0
    %3153 = vmatpush2.msra.mxu0 0.0
    %3154 = vmatprep.subr.mxu0 0.0
    %3155 = vmatpush2.msra.mxu0 0.0
    %3156 = vmatprep.subr.mxu0 0.0
    %3157 = vmatpush2.msra.mxu0 0.0
    %3158 = vmatprep.subr.mxu0 0.0
    %3159 = vmatpush2.msra.mxu0 0.0
    %3160 = vmatprep.subr.mxu0 0.0
    %3161 = vmatpush2.msra.mxu0 0.0
    %3162 = vmatprep.subr.mxu0 0.0
    %3163 = vmatpush2.msra.mxu0 0.0
    %3164 = vmatprep.mubr.f32.mxu0 0.0
    %v3165 = vand.u32 %v377, 4294901760
    %v3166 = vsub.f32 %v377, %v3165
    %3167 = vmatmul.mubr.f32.gmra.mxu0 %v3166
    %v3168 = vpop.f32.mrf.mxu0
    %v3169 = vadd.f32 %v3043, %v3168
    %v3170 = vpop.f32.mrf.mxu0
    %v3171 = vadd.f32 %v3045, %v3170
    %3172 = vmatprep.mubr.f32.mxu0 0.0
    %v3173 = vand.u32 %v380, 4294901760
    %v3174 = vsub.f32 %v380, %v3173
    %3175 = vmatmul.mubr.f32.gmra.mxu0 %v3174
    %v3176 = vpop.f32.mrf.mxu0
    %v3177 = vadd.f32 %v3050, %v3176
    %v3178 = vpop.f32.mrf.mxu0
    %v3179 = vadd.f32 %v3052, %v3178
    %3180 = vmatprep.mubr.f32.mxu0 0.0
    %v3181 = vand.u32 %v383, 4294901760
    %v3182 = vsub.f32 %v383, %v3181
    %3183 = vmatmul.mubr.f32.gmra.mxu0 %v3182
    %v3184 = vpop.f32.mrf.mxu0
    %v3185 = vadd.f32 %v3057, %v3184
    %v3186 = vpop.f32.mrf.mxu0
    %v3187 = vadd.f32 %v3059, %v3186
    %3188 = vmatprep.mubr.f32.mxu0 0.0
    %v3189 = vand.u32 %v386, 4294901760
    %v3190 = vsub.f32 %v386, %v3189
    %3191 = vmatmul.mubr.f32.gmra.mxu0 %v3190
    %v3192 = vpop.f32.mrf.mxu0
    %v3193 = vadd.f32 %v3064, %v3192
    %v3194 = vpop.f32.mrf.mxu0
    %v3195 = vadd.f32 %v3066, %v3194
    %3196 = vdwg.mxu0
    %3197 = vmatprep.subr.mxu0 0.0
    %3198 = vmatpush1.msra.mxu0 0.0
    %3199 = vmatprep.subr.mxu0 0.0
    %3200 = vmatpush1.msra.mxu0 0.0
    %3201 = vmatprep.subr.mxu0 0.0
    %3202 = vmatpush1.msra.mxu0 0.0
    %3203 = vmatprep.subr.mxu0 0.0
    %3204 = vmatpush1.msra.mxu0 0.0
    %3205 = vmatprep.subr.mxu0 0.0
    %3206 = vmatpush1.msra.mxu0 0.0
    %3207 = vmatprep.subr.mxu0 0.0
    %3208 = vmatpush1.msra.mxu0 0.0
    %3209 = vmatprep.subr.mxu0 0.0
    %3210 = vmatpush1.msra.mxu0 0.0
    %3211 = vmatprep.subr.mxu0 0.0
    %3212 = vmatpush1.msra.mxu0 0.0
    %v3213 = vand.u32 %v232, 4294901760
    %3214 = vmatprep.subr.mxu0 %v3213
    %v3215 = vand.u32 %v231, 4294901760
    %3216 = vmatpush1.msra.mxu0 %v3215
    %v3217 = vand.u32 %v208, 4294901760
    %3218 = vmatprep.subr.mxu0 %v3217
    %v3219 = vand.u32 %v207, 4294901760
    %3220 = vmatpush1.msra.mxu0 %v3219
    %v3221 = vand.u32 %v184, 4294901760
    %3222 = vmatprep.subr.mxu0 %v3221
    %v3223 = vand.u32 %v183, 4294901760
    %3224 = vmatpush1.msra.mxu0 %v3223
    %v3225 = vand.u32 %v160, 4294901760
    %3226 = vmatprep.subr.mxu0 %v3225
    %v3227 = vand.u32 %v159, 4294901760
    %3228 = vmatpush1.msra.mxu0 %v3227
    %v3229 = vand.u32 %v136, 4294901760
    %3230 = vmatprep.subr.mxu0 %v3229
    %v3231 = vand.u32 %v135, 4294901760
    %3232 = vmatpush1.msra.mxu0 %v3231
    %v3233 = vand.u32 %v112, 4294901760
    %3234 = vmatprep.subr.mxu0 %v3233
    %v3235 = vand.u32 %v111, 4294901760
    %3236 = vmatpush1.msra.mxu0 %v3235
    %v3237 = vand.u32 %v88, 4294901760
    %3238 = vmatprep.subr.mxu0 %v3237
    %v3239 = vand.u32 %v87, 4294901760
    %3240 = vmatpush1.msra.mxu0 %v3239
    %v3241 = vand.u32 %v64, 4294901760
    %3242 = vmatprep.subr.mxu0 %v3241
    %v3243 = vand.u32 %v63, 4294901760
    %3244 = vmatpush1.msra.mxu0 %v3243
    %3245 = vmatprep.subr.mxu0 0.0
    %3246 = vmatpush2.msra.mxu0 0.0
    %3247 = vmatprep.subr.mxu0 0.0
    %3248 = vmatpush2.msra.mxu0 0.0
    %3249 = vmatprep.subr.mxu0 0.0
    %3250 = vmatpush2.msra.mxu0 0.0
    %3251 = vmatprep.subr.mxu0 0.0
    %3252 = vmatpush2.msra.mxu0 0.0
    %3253 = vmatprep.subr.mxu0 0.0
    %3254 = vmatpush2.msra.mxu0 0.0
    %3255 = vmatprep.subr.mxu0 0.0
    %3256 = vmatpush2.msra.mxu0 0.0
    %3257 = vmatprep.subr.mxu0 0.0
    %3258 = vmatpush2.msra.mxu0 0.0
    %3259 = vmatprep.subr.mxu0 0.0
    %3260 = vmatpush2.msra.mxu0 0.0
    %3261 = vmatprep.subr.mxu0 0.0
    %3262 = vmatpush2.msra.mxu0 0.0
    %3263 = vmatprep.subr.mxu0 0.0
    %3264 = vmatpush2.msra.mxu0 0.0
    %3265 = vmatprep.subr.mxu0 0.0
    %3266 = vmatpush2.msra.mxu0 0.0
    %3267 = vmatprep.subr.mxu0 0.0
    %3268 = vmatpush2.msra.mxu0 0.0
    %3269 = vmatprep.subr.mxu0 0.0
    %3270 = vmatpush2.msra.mxu0 0.0
    %3271 = vmatprep.subr.mxu0 0.0
    %3272 = vmatpush2.msra.mxu0 0.0
    %3273 = vmatprep.subr.mxu0 0.0
    %3274 = vmatpush2.msra.mxu0 0.0
    %3275 = vmatprep.subr.mxu0 0.0
    %3276 = vmatpush2.msra.mxu0 0.0
    %3277 = vmatprep.mubr.f32.mxu0 0.0
    %v3278 = vand.u32 %v377, 4294901760
    %v3279 = vsub.f32 %v377, %v3278
    %v3280 = vand.u32 %v3279, 4294901760
    %3281 = vmatmul.mubr.f32.gmra.mxu0 %v3280
    %v3282 = vpop.f32.mrf.mxu0
    %v3283 = vadd.f32 %v3169, %v3282
    %v3284 = vpop.f32.mrf.mxu0
    %v3285 = vadd.f32 %v3171, %v3284
    %3286 = vmatprep.mubr.f32.mxu0 0.0
    %v3287 = vand.u32 %v380, 4294901760
    %v3288 = vsub.f32 %v380, %v3287
    %v3289 = vand.u32 %v3288, 4294901760
    %3290 = vmatmul.mubr.f32.gmra.mxu0 %v3289
    %v3291 = vpop.f32.mrf.mxu0
    %v3292 = vadd.f32 %v3177, %v3291
    %v3293 = vpop.f32.mrf.mxu0
    %v3294 = vadd.f32 %v3179, %v3293
    %3295 = vmatprep.mubr.f32.mxu0 0.0
    %v3296 = vand.u32 %v383, 4294901760
    %v3297 = vsub.f32 %v383, %v3296
    %v3298 = vand.u32 %v3297, 4294901760
    %3299 = vmatmul.mubr.f32.gmra.mxu0 %v3298
    %v3300 = vpop.f32.mrf.mxu0
    %v3301 = vadd.f32 %v3185, %v3300
    %v3302 = vpop.f32.mrf.mxu0
    %v3303 = vadd.f32 %v3187, %v3302
    %3304 = vmatprep.mubr.f32.mxu0 0.0
    %v3305 = vand.u32 %v386, 4294901760
    %v3306 = vsub.f32 %v386, %v3305
    %v3307 = vand.u32 %v3306, 4294901760
    %3308 = vmatmul.mubr.f32.gmra.mxu0 %v3307
    %v3309 = vpop.f32.mrf.mxu0
    %v3310 = vadd.f32 %v3193, %v3309
    %v3311 = vpop.f32.mrf.mxu0
    %v3312 = vadd.f32 %v3195, %v3311
    %3313 = vdwg.mxu0
    %3314 = vmatprep.subr.mxu0 0.0
    %3315 = vmatpush1.msra.mxu0 0.0
    %3316 = vmatprep.subr.mxu0 0.0
    %3317 = vmatpush1.msra.mxu0 0.0
    %3318 = vmatprep.subr.mxu0 0.0
    %3319 = vmatpush1.msra.mxu0 0.0
    %3320 = vmatprep.subr.mxu0 0.0
    %3321 = vmatpush1.msra.mxu0 0.0
    %3322 = vmatprep.subr.mxu0 0.0
    %3323 = vmatpush1.msra.mxu0 0.0
    %3324 = vmatprep.subr.mxu0 0.0
    %3325 = vmatpush1.msra.mxu0 0.0
    %3326 = vmatprep.subr.mxu0 0.0
    %3327 = vmatpush1.msra.mxu0 0.0
    %3328 = vmatprep.subr.mxu0 0.0
    %3329 = vmatpush1.msra.mxu0 0.0
    %v3330 = vand.u32 %v232, 4294901760
    %v3331 = vsub.f32 %v232, %v3330
    %v3332 = vand.u32 %v3331, 4294901760
    %3333 = vmatprep.subr.mxu0 %v3332
    %v3334 = vand.u32 %v231, 4294901760
    %v3335 = vsub.f32 %v231, %v3334
    %v3336 = vand.u32 %v3335, 4294901760
    %3337 = vmatpush1.msra.mxu0 %v3336
    %v3338 = vand.u32 %v208, 4294901760
    %v3339 = vsub.f32 %v208, %v3338
    %v3340 = vand.u32 %v3339, 4294901760
    %3341 = vmatprep.subr.mxu0 %v3340
    %v3342 = vand.u32 %v207, 4294901760
    %v3343 = vsub.f32 %v207, %v3342
    %v3344 = vand.u32 %v3343, 4294901760
    %3345 = vmatpush1.msra.mxu0 %v3344
    %v3346 = vand.u32 %v184, 4294901760
    %v3347 = vsub.f32 %v184, %v3346
    %v3348 = vand.u32 %v3347, 4294901760
    %3349 = vmatprep.subr.mxu0 %v3348
    %v3350 = vand.u32 %v183, 4294901760
    %v3351 = vsub.f32 %v183, %v3350
    %v3352 = vand.u32 %v3351, 4294901760
    %3353 = vmatpush1.msra.mxu0 %v3352
    %v3354 = vand.u32 %v160, 4294901760
    %v3355 = vsub.f32 %v160, %v3354
    %v3356 = vand.u32 %v3355, 4294901760
    %3357 = vmatprep.subr.mxu0 %v3356
    %v3358 = vand.u32 %v159, 4294901760
    %v3359 = vsub.f32 %v159, %v3358
    %v3360 = vand.u32 %v3359, 4294901760
    %3361 = vmatpush1.msra.mxu0 %v3360
    %v3362 = vand.u32 %v136, 4294901760
    %v3363 = vsub.f32 %v136, %v3362
    %v3364 = vand.u32 %v3363, 4294901760
    %3365 = vmatprep.subr.mxu0 %v3364
    %v3366 = vand.u32 %v135, 4294901760
    %v3367 = vsub.f32 %v135, %v3366
    %v3368 = vand.u32 %v3367, 4294901760
    %3369 = vmatpush1.msra.mxu0 %v3368
    %v3370 = vand.u32 %v112, 4294901760
    %v3371 = vsub.f32 %v112, %v3370
    %v3372 = vand.u32 %v3371, 4294901760
    %3373 = vmatprep.subr.mxu0 %v3372
    %v3374 = vand.u32 %v111, 4294901760
    %v3375 = vsub.f32 %v111, %v3374
    %v3376 = vand.u32 %v3375, 4294901760
    %3377 = vmatpush1.msra.mxu0 %v3376
    %v3378 = vand.u32 %v88, 4294901760
    %v3379 = vsub.f32 %v88, %v3378
    %v3380 = vand.u32 %v3379, 4294901760
    %3381 = vmatprep.subr.mxu0 %v3380
    %v3382 = vand.u32 %v87, 4294901760
    %v3383 = vsub.f32 %v87, %v3382
    %v3384 = vand.u32 %v3383, 4294901760
    %3385 = vmatpush1.msra.mxu0 %v3384
    %v3386 = vand.u32 %v64, 4294901760
    %v3387 = vsub.f32 %v64, %v3386
    %v3388 = vand.u32 %v3387, 4294901760
    %3389 = vmatprep.subr.mxu0 %v3388
    %v3390 = vand.u32 %v63, 4294901760
    %v3391 = vsub.f32 %v63, %v3390
    %v3392 = vand.u32 %v3391, 4294901760
    %3393 = vmatpush1.msra.mxu0 %v3392
    %3394 = vmatprep.subr.mxu0 0.0
    %3395 = vmatpush2.msra.mxu0 0.0
    %3396 = vmatprep.subr.mxu0 0.0
    %3397 = vmatpush2.msra.mxu0 0.0
    %3398 = vmatprep.subr.mxu0 0.0
    %3399 = vmatpush2.msra.mxu0 0.0
    %3400 = vmatprep.subr.mxu0 0.0
    %3401 = vmatpush2.msra.mxu0 0.0
    %3402 = vmatprep.subr.mxu0 0.0
    %3403 = vmatpush2.msra.mxu0 0.0
    %3404 = vmatprep.subr.mxu0 0.0
    %3405 = vmatpush2.msra.mxu0 0.0
    %3406 = vmatprep.subr.mxu0 0.0
    %3407 = vmatpush2.msra.mxu0 0.0
    %3408 = vmatprep.subr.mxu0 0.0
    %3409 = vmatpush2.msra.mxu0 0.0
    %3410 = vmatprep.subr.mxu0 0.0
    %3411 = vmatpush2.msra.mxu0 0.0
    %3412 = vmatprep.subr.mxu0 0.0
    %3413 = vmatpush2.msra.mxu0 0.0
    %3414 = vmatprep.subr.mxu0 0.0
    %3415 = vmatpush2.msra.mxu0 0.0
    %3416 = vmatprep.subr.mxu0 0.0
    %3417 = vmatpush2.msra.mxu0 0.0
    %3418 = vmatprep.subr.mxu0 0.0
    %3419 = vmatpush2.msra.mxu0 0.0
    %3420 = vmatprep.subr.mxu0 0.0
    %3421 = vmatpush2.msra.mxu0 0.0
    %3422 = vmatprep.subr.mxu0 0.0
    %3423 = vmatpush2.msra.mxu0 0.0
    %3424 = vmatprep.subr.mxu0 0.0
    %3425 = vmatpush2.msra.mxu0 0.0
    %3426 = vmatprep.mubr.f32.mxu0 0.0
    %v3427 = vand.u32 %v377, 4294901760
    %3428 = vmatmul.mubr.f32.gmra.mxu0 %v3427
    %v3429 = vpop.f32.mrf.mxu0
    %v3430 = vadd.f32 %v3283, %v3429
    %v3431 = vpop.f32.mrf.mxu0
    %v3432 = vadd.f32 %v3285, %v3431
    %3433 = vmatprep.mubr.f32.mxu0 0.0
    %v3434 = vand.u32 %v380, 4294901760
    %3435 = vmatmul.mubr.f32.gmra.mxu0 %v3434
    %v3436 = vpop.f32.mrf.mxu0
    %v3437 = vadd.f32 %v3292, %v3436
    %v3438 = vpop.f32.mrf.mxu0
    %v3439 = vadd.f32 %v3294, %v3438
    %3440 = vmatprep.mubr.f32.mxu0 0.0
    %v3441 = vand.u32 %v383, 4294901760
    %3442 = vmatmul.mubr.f32.gmra.mxu0 %v3441
    %v3443 = vpop.f32.mrf.mxu0
    %v3444 = vadd.f32 %v3301, %v3443
    %v3445 = vpop.f32.mrf.mxu0
    %v3446 = vadd.f32 %v3303, %v3445
    %3447 = vmatprep.mubr.f32.mxu0 0.0
    %v3448 = vand.u32 %v386, 4294901760
    %3449 = vmatmul.mubr.f32.gmra.mxu0 %v3448
    %v3450 = vpop.f32.mrf.mxu0
    %v3451 = vadd.f32 %v3310, %v3450
    %v3452 = vpop.f32.mrf.mxu0
    %v3453 = vadd.f32 %v3312, %v3452
    %3454 = vdwg.mxu0
    %3455 = vmatprep.subr.mxu0 0.0
    %3456 = vmatpush1.msra.mxu0 0.0
    %3457 = vmatprep.subr.mxu0 0.0
    %3458 = vmatpush1.msra.mxu0 0.0
    %3459 = vmatprep.subr.mxu0 0.0
    %3460 = vmatpush1.msra.mxu0 0.0
    %3461 = vmatprep.subr.mxu0 0.0
    %3462 = vmatpush1.msra.mxu0 0.0
    %3463 = vmatprep.subr.mxu0 0.0
    %3464 = vmatpush1.msra.mxu0 0.0
    %3465 = vmatprep.subr.mxu0 0.0
    %3466 = vmatpush1.msra.mxu0 0.0
    %3467 = vmatprep.subr.mxu0 0.0
    %3468 = vmatpush1.msra.mxu0 0.0
    %3469 = vmatprep.subr.mxu0 0.0
    %3470 = vmatpush1.msra.mxu0 0.0
    %v3471 = vand.u32 %v232, 4294901760
    %3472 = vmatprep.subr.mxu0 %v3471
    %v3473 = vand.u32 %v231, 4294901760
    %3474 = vmatpush1.msra.mxu0 %v3473
    %v3475 = vand.u32 %v208, 4294901760
    %3476 = vmatprep.subr.mxu0 %v3475
    %v3477 = vand.u32 %v207, 4294901760
    %3478 = vmatpush1.msra.mxu0 %v3477
    %v3479 = vand.u32 %v184, 4294901760
    %3480 = vmatprep.subr.mxu0 %v3479
    %v3481 = vand.u32 %v183, 4294901760
    %3482 = vmatpush1.msra.mxu0 %v3481
    %v3483 = vand.u32 %v160, 4294901760
    %3484 = vmatprep.subr.mxu0 %v3483
    %v3485 = vand.u32 %v159, 4294901760
    %3486 = vmatpush1.msra.mxu0 %v3485
    %v3487 = vand.u32 %v136, 4294901760
    %3488 = vmatprep.subr.mxu0 %v3487
    %v3489 = vand.u32 %v135, 4294901760
    %3490 = vmatpush1.msra.mxu0 %v3489
    %v3491 = vand.u32 %v112, 4294901760
    %3492 = vmatprep.subr.mxu0 %v3491
    %v3493 = vand.u32 %v111, 4294901760
    %3494 = vmatpush1.msra.mxu0 %v3493
    %v3495 = vand.u32 %v88, 4294901760
    %3496 = vmatprep.subr.mxu0 %v3495
    %v3497 = vand.u32 %v87, 4294901760
    %3498 = vmatpush1.msra.mxu0 %v3497
    %v3499 = vand.u32 %v64, 4294901760
    %3500 = vmatprep.subr.mxu0 %v3499
    %v3501 = vand.u32 %v63, 4294901760
    %3502 = vmatpush1.msra.mxu0 %v3501
    %3503 = vmatprep.subr.mxu0 0.0
    %3504 = vmatpush2.msra.mxu0 0.0
    %3505 = vmatprep.subr.mxu0 0.0
    %3506 = vmatpush2.msra.mxu0 0.0
    %3507 = vmatprep.subr.mxu0 0.0
    %3508 = vmatpush2.msra.mxu0 0.0
    %3509 = vmatprep.subr.mxu0 0.0
    %3510 = vmatpush2.msra.mxu0 0.0
    %3511 = vmatprep.subr.mxu0 0.0
    %3512 = vmatpush2.msra.mxu0 0.0
    %3513 = vmatprep.subr.mxu0 0.0
    %3514 = vmatpush2.msra.mxu0 0.0
    %3515 = vmatprep.subr.mxu0 0.0
    %3516 = vmatpush2.msra.mxu0 0.0
    %3517 = vmatprep.subr.mxu0 0.0
    %3518 = vmatpush2.msra.mxu0 0.0
    %3519 = vmatprep.subr.mxu0 0.0
    %3520 = vmatpush2.msra.mxu0 0.0
    %3521 = vmatprep.subr.mxu0 0.0
    %3522 = vmatpush2.msra.mxu0 0.0
    %3523 = vmatprep.subr.mxu0 0.0
    %3524 = vmatpush2.msra.mxu0 0.0
    %3525 = vmatprep.subr.mxu0 0.0
    %3526 = vmatpush2.msra.mxu0 0.0
    %3527 = vmatprep.subr.mxu0 0.0
    %3528 = vmatpush2.msra.mxu0 0.0
    %3529 = vmatprep.subr.mxu0 0.0
    %3530 = vmatpush2.msra.mxu0 0.0
    %3531 = vmatprep.subr.mxu0 0.0
    %3532 = vmatpush2.msra.mxu0 0.0
    %3533 = vmatprep.subr.mxu0 0.0
    %3534 = vmatpush2.msra.mxu0 0.0
    %3535 = vmatprep.mubr.f32.mxu0 0.0
    %v3536 = vand.u32 %v377, 4294901760
    %3537 = vmatmul.mubr.f32.gmra.mxu0 %v3536
    %v3538 = vpop.f32.mrf.mxu0
    %v3539 = vadd.f32 %v3430, %v3538
    %v3540 = vpop.f32.mrf.mxu0
    %v3541 = vadd.f32 %v3432, %v3540
    %3542 = vmatprep.mubr.f32.mxu0 0.0
    %v3543 = vand.u32 %v380, 4294901760
    %3544 = vmatmul.mubr.f32.gmra.mxu0 %v3543
    %v3545 = vpop.f32.mrf.mxu0
    %v3546 = vadd.f32 %v3437, %v3545
    %v3547 = vpop.f32.mrf.mxu0
    %v3548 = vadd.f32 %v3439, %v3547
    %3549 = vmatprep.mubr.f32.mxu0 0.0
    %v3550 = vand.u32 %v383, 4294901760
    %3551 = vmatmul.mubr.f32.gmra.mxu0 %v3550
    %v3552 = vpop.f32.mrf.mxu0
    %v3553 = vadd.f32 %v3444, %v3552
    %v3554 = vpop.f32.mrf.mxu0
    %v3555 = vadd.f32 %v3446, %v3554
    %3556 = vmatprep.mubr.f32.mxu0 0.0
    %v3557 = vand.u32 %v386, 4294901760
    %3558 = vmatmul.mubr.f32.gmra.mxu0 %v3557
    %v3559 = vpop.f32.mrf.mxu0
    %v3560 = vadd.f32 %v3451, %v3559
    %v3561 = vpop.f32.mrf.mxu0
    %v3562 = vadd.f32 %v3453, %v3561
    %3563 = vdwg.mxu0
    %3564 = vmatprep.subr.mxu0 0.0
    %3565 = vmatpush1.msra.mxu0 0.0
    %3566 = vmatprep.subr.mxu0 0.0
    %3567 = vmatpush1.msra.mxu0 0.0
    %3568 = vmatprep.subr.mxu0 0.0
    %3569 = vmatpush1.msra.mxu0 0.0
    %3570 = vmatprep.subr.mxu0 0.0
    %3571 = vmatpush1.msra.mxu0 0.0
    %3572 = vmatprep.subr.mxu0 0.0
    %3573 = vmatpush1.msra.mxu0 0.0
    %3574 = vmatprep.subr.mxu0 0.0
    %3575 = vmatpush1.msra.mxu0 0.0
    %3576 = vmatprep.subr.mxu0 0.0
    %3577 = vmatpush1.msra.mxu0 0.0
    %3578 = vmatprep.subr.mxu0 0.0
    %3579 = vmatpush1.msra.mxu0 0.0
    %v3580 = vand.u32 %v234, 4294901760
    %3581 = vmatprep.subr.mxu0 %v3580
    %v3582 = vand.u32 %v233, 4294901760
    %3583 = vmatpush1.msra.mxu0 %v3582
    %v3584 = vand.u32 %v210, 4294901760
    %3585 = vmatprep.subr.mxu0 %v3584
    %v3586 = vand.u32 %v209, 4294901760
    %3587 = vmatpush1.msra.mxu0 %v3586
    %v3588 = vand.u32 %v186, 4294901760
    %3589 = vmatprep.subr.mxu0 %v3588
    %v3590 = vand.u32 %v185, 4294901760
    %3591 = vmatpush1.msra.mxu0 %v3590
    %v3592 = vand.u32 %v162, 4294901760
    %3593 = vmatprep.subr.mxu0 %v3592
    %v3594 = vand.u32 %v161, 4294901760
    %3595 = vmatpush1.msra.mxu0 %v3594
    %v3596 = vand.u32 %v138, 4294901760
    %3597 = vmatprep.subr.mxu0 %v3596
    %v3598 = vand.u32 %v137, 4294901760
    %3599 = vmatpush1.msra.mxu0 %v3598
    %v3600 = vand.u32 %v114, 4294901760
    %3601 = vmatprep.subr.mxu0 %v3600
    %v3602 = vand.u32 %v113, 4294901760
    %3603 = vmatpush1.msra.mxu0 %v3602
    %v3604 = vand.u32 %v90, 4294901760
    %3605 = vmatprep.subr.mxu0 %v3604
    %v3606 = vand.u32 %v89, 4294901760
    %3607 = vmatpush1.msra.mxu0 %v3606
    %v3608 = vand.u32 %v66, 4294901760
    %3609 = vmatprep.subr.mxu0 %v3608
    %v3610 = vand.u32 %v65, 4294901760
    %3611 = vmatpush1.msra.mxu0 %v3610
    %3612 = vmatprep.subr.mxu0 0.0
    %3613 = vmatpush2.msra.mxu0 0.0
    %3614 = vmatprep.subr.mxu0 0.0
    %3615 = vmatpush2.msra.mxu0 0.0
    %3616 = vmatprep.subr.mxu0 0.0
    %3617 = vmatpush2.msra.mxu0 0.0
    %3618 = vmatprep.subr.mxu0 0.0
    %3619 = vmatpush2.msra.mxu0 0.0
    %3620 = vmatprep.subr.mxu0 0.0
    %3621 = vmatpush2.msra.mxu0 0.0
    %3622 = vmatprep.subr.mxu0 0.0
    %3623 = vmatpush2.msra.mxu0 0.0
    %3624 = vmatprep.subr.mxu0 0.0
    %3625 = vmatpush2.msra.mxu0 0.0
    %3626 = vmatprep.subr.mxu0 0.0
    %3627 = vmatpush2.msra.mxu0 0.0
    %3628 = vmatprep.subr.mxu0 0.0
    %3629 = vmatpush2.msra.mxu0 0.0
    %3630 = vmatprep.subr.mxu0 0.0
    %3631 = vmatpush2.msra.mxu0 0.0
    %3632 = vmatprep.subr.mxu0 0.0
    %3633 = vmatpush2.msra.mxu0 0.0
    %3634 = vmatprep.subr.mxu0 0.0
    %3635 = vmatpush2.msra.mxu0 0.0
    %3636 = vmatprep.subr.mxu0 0.0
    %3637 = vmatpush2.msra.mxu0 0.0
    %3638 = vmatprep.subr.mxu0 0.0
    %3639 = vmatpush2.msra.mxu0 0.0
    %3640 = vmatprep.subr.mxu0 0.0
    %3641 = vmatpush2.msra.mxu0 0.0
    %3642 = vmatprep.subr.mxu0 0.0
    %3643 = vmatpush2.msra.mxu0 0.0
    %3644 = vmatprep.mubr.f32.mxu0 0.0
    %v3645 = vand.u32 %v377, 4294901760
    %v3646 = vsub.f32 %v377, %v3645
    %v3647 = vand.u32 %v3646, 4294901760
    %v3648 = vsub.f32 %v3646, %v3647
    %v3649 = vand.u32 %v3648, 4294901760
    %3650 = vmatmul.mubr.f32.gmra.mxu0 %v3649
    %v3651 = vpop.f32.mrf.mxu0
    %v3652 = vadd.f32 %v290, %v3651
    %v3653 = vpop.f32.mrf.mxu0
    %v3654 = vadd.f32 %v294, %v3653
    %3655 = vmatprep.mubr.f32.mxu0 0.0
    %v3656 = vand.u32 %v380, 4294901760
    %v3657 = vsub.f32 %v380, %v3656
    %v3658 = vand.u32 %v3657, 4294901760
    %v3659 = vsub.f32 %v3657, %v3658
    %v3660 = vand.u32 %v3659, 4294901760
    %3661 = vmatmul.mubr.f32.gmra.mxu0 %v3660
    %v3662 = vpop.f32.mrf.mxu0
    %v3663 = vadd.f32 %v290, %v3662
    %v3664 = vpop.f32.mrf.mxu0
    %v3665 = vadd.f32 %v294, %v3664
    %3666 = vmatprep.mubr.f32.mxu0 0.0
    %v3667 = vand.u32 %v383, 4294901760
    %v3668 = vsub.f32 %v383, %v3667
    %v3669 = vand.u32 %v3668, 4294901760
    %v3670 = vsub.f32 %v3668, %v3669
    %v3671 = vand.u32 %v3670, 4294901760
    %3672 = vmatmul.mubr.f32.gmra.mxu0 %v3671
    %v3673 = vpop.f32.mrf.mxu0
    %v3674 = vadd.f32 %v290, %v3673
    %v3675 = vpop.f32.mrf.mxu0
    %v3676 = vadd.f32 %v294, %v3675
    %3677 = vmatprep.mubr.f32.mxu0 0.0
    %v3678 = vand.u32 %v386, 4294901760
    %v3679 = vsub.f32 %v386, %v3678
    %v3680 = vand.u32 %v3679, 4294901760
    %v3681 = vsub.f32 %v3679, %v3680
    %v3682 = vand.u32 %v3681, 4294901760
    %3683 = vmatmul.mubr.f32.gmra.mxu0 %v3682
    %v3684 = vpop.f32.mrf.mxu0
    %v3685 = vadd.f32 %v290, %v3684
    %v3686 = vpop.f32.mrf.mxu0
    %v3687 = vadd.f32 %v294, %v3686
    %3688 = vdwg.mxu0
    %3689 = vmatprep.subr.mxu0 0.0
    %3690 = vmatpush1.msra.mxu0 0.0
    %3691 = vmatprep.subr.mxu0 0.0
    %3692 = vmatpush1.msra.mxu0 0.0
    %3693 = vmatprep.subr.mxu0 0.0
    %3694 = vmatpush1.msra.mxu0 0.0
    %3695 = vmatprep.subr.mxu0 0.0
    %3696 = vmatpush1.msra.mxu0 0.0
    %3697 = vmatprep.subr.mxu0 0.0
    %3698 = vmatpush1.msra.mxu0 0.0
    %3699 = vmatprep.subr.mxu0 0.0
    %3700 = vmatpush1.msra.mxu0 0.0
    %3701 = vmatprep.subr.mxu0 0.0
    %3702 = vmatpush1.msra.mxu0 0.0
    %3703 = vmatprep.subr.mxu0 0.0
    %3704 = vmatpush1.msra.mxu0 0.0
    %v3705 = vand.u32 %v234, 4294901760
    %v3706 = vsub.f32 %v234, %v3705
    %v3707 = vand.u32 %v3706, 4294901760
    %v3708 = vsub.f32 %v3706, %v3707
    %v3709 = vand.u32 %v3708, 4294901760
    %3710 = vmatprep.subr.mxu0 %v3709
    %v3711 = vand.u32 %v233, 4294901760
    %v3712 = vsub.f32 %v233, %v3711
    %v3713 = vand.u32 %v3712, 4294901760
    %v3714 = vsub.f32 %v3712, %v3713
    %v3715 = vand.u32 %v3714, 4294901760
    %3716 = vmatpush1.msra.mxu0 %v3715
    %v3717 = vand.u32 %v210, 4294901760
    %v3718 = vsub.f32 %v210, %v3717
    %v3719 = vand.u32 %v3718, 4294901760
    %v3720 = vsub.f32 %v3718, %v3719
    %v3721 = vand.u32 %v3720, 4294901760
    %3722 = vmatprep.subr.mxu0 %v3721
    %v3723 = vand.u32 %v209, 4294901760
    %v3724 = vsub.f32 %v209, %v3723
    %v3725 = vand.u32 %v3724, 4294901760
    %v3726 = vsub.f32 %v3724, %v3725
    %v3727 = vand.u32 %v3726, 4294901760
    %3728 = vmatpush1.msra.mxu0 %v3727
    %v3729 = vand.u32 %v186, 4294901760
    %v3730 = vsub.f32 %v186, %v3729
    %v3731 = vand.u32 %v3730, 4294901760
    %v3732 = vsub.f32 %v3730, %v3731
    %v3733 = vand.u32 %v3732, 4294901760
    %3734 = vmatprep.subr.mxu0 %v3733
    %v3735 = vand.u32 %v185, 4294901760
    %v3736 = vsub.f32 %v185, %v3735
    %v3737 = vand.u32 %v3736, 4294901760
    %v3738 = vsub.f32 %v3736, %v3737
    %v3739 = vand.u32 %v3738, 4294901760
    %3740 = vmatpush1.msra.mxu0 %v3739
    %v3741 = vand.u32 %v162, 4294901760
    %v3742 = vsub.f32 %v162, %v3741
    %v3743 = vand.u32 %v3742, 4294901760
    %v3744 = vsub.f32 %v3742, %v3743
    %v3745 = vand.u32 %v3744, 4294901760
    %3746 = vmatprep.subr.mxu0 %v3745
    %v3747 = vand.u32 %v161, 4294901760
    %v3748 = vsub.f32 %v161, %v3747
    %v3749 = vand.u32 %v3748, 4294901760
    %v3750 = vsub.f32 %v3748, %v3749
    %v3751 = vand.u32 %v3750, 4294901760
    %3752 = vmatpush1.msra.mxu0 %v3751
    %v3753 = vand.u32 %v138, 4294901760
    %v3754 = vsub.f32 %v138, %v3753
    %v3755 = vand.u32 %v3754, 4294901760
    %v3756 = vsub.f32 %v3754, %v3755
    %v3757 = vand.u32 %v3756, 4294901760
    %3758 = vmatprep.subr.mxu0 %v3757
    %v3759 = vand.u32 %v137, 4294901760
    %v3760 = vsub.f32 %v137, %v3759
    %v3761 = vand.u32 %v3760, 4294901760
    %v3762 = vsub.f32 %v3760, %v3761
    %v3763 = vand.u32 %v3762, 4294901760
    %3764 = vmatpush1.msra.mxu0 %v3763
    %v3765 = vand.u32 %v114, 4294901760
    %v3766 = vsub.f32 %v114, %v3765
    %v3767 = vand.u32 %v3766, 4294901760
    %v3768 = vsub.f32 %v3766, %v3767
    %v3769 = vand.u32 %v3768, 4294901760
    %3770 = vmatprep.subr.mxu0 %v3769
    %v3771 = vand.u32 %v113, 4294901760
    %v3772 = vsub.f32 %v113, %v3771
    %v3773 = vand.u32 %v3772, 4294901760
    %v3774 = vsub.f32 %v3772, %v3773
    %v3775 = vand.u32 %v3774, 4294901760
    %3776 = vmatpush1.msra.mxu0 %v3775
    %v3777 = vand.u32 %v90, 4294901760
    %v3778 = vsub.f32 %v90, %v3777
    %v3779 = vand.u32 %v3778, 4294901760
    %v3780 = vsub.f32 %v3778, %v3779
    %v3781 = vand.u32 %v3780, 4294901760
    %3782 = vmatprep.subr.mxu0 %v3781
    %v3783 = vand.u32 %v89, 4294901760
    %v3784 = vsub.f32 %v89, %v3783
    %v3785 = vand.u32 %v3784, 4294901760
    %v3786 = vsub.f32 %v3784, %v3785
    %v3787 = vand.u32 %v3786, 4294901760
    %3788 = vmatpush1.msra.mxu0 %v3787
    %v3789 = vand.u32 %v66, 4294901760
    %v3790 = vsub.f32 %v66, %v3789
    %v3791 = vand.u32 %v3790, 4294901760
    %v3792 = vsub.f32 %v3790, %v3791
    %v3793 = vand.u32 %v3792, 4294901760
    %3794 = vmatprep.subr.mxu0 %v3793
    %v3795 = vand.u32 %v65, 4294901760
    %v3796 = vsub.f32 %v65, %v3795
    %v3797 = vand.u32 %v3796, 4294901760
    %v3798 = vsub.f32 %v3796, %v3797
    %v3799 = vand.u32 %v3798, 4294901760
    %3800 = vmatpush1.msra.mxu0 %v3799
    %3801 = vmatprep.subr.mxu0 0.0
    %3802 = vmatpush2.msra.mxu0 0.0
    %3803 = vmatprep.subr.mxu0 0.0
    %3804 = vmatpush2.msra.mxu0 0.0
    %3805 = vmatprep.subr.mxu0 0.0
    %3806 = vmatpush2.msra.mxu0 0.0
    %3807 = vmatprep.subr.mxu0 0.0
    %3808 = vmatpush2.msra.mxu0 0.0
    %3809 = vmatprep.subr.mxu0 0.0
    %3810 = vmatpush2.msra.mxu0 0.0
    %3811 = vmatprep.subr.mxu0 0.0
    %3812 = vmatpush2.msra.mxu0 0.0
    %3813 = vmatprep.subr.mxu0 0.0
    %3814 = vmatpush2.msra.mxu0 0.0
    %3815 = vmatprep.subr.mxu0 0.0
    %3816 = vmatpush2.msra.mxu0 0.0
    %3817 = vmatprep.subr.mxu0 0.0
    %3818 = vmatpush2.msra.mxu0 0.0
    %3819 = vmatprep.subr.mxu0 0.0
    %3820 = vmatpush2.msra.mxu0 0.0
    %3821 = vmatprep.subr.mxu0 0.0
    %3822 = vmatpush2.msra.mxu0 0.0
    %3823 = vmatprep.subr.mxu0 0.0
    %3824 = vmatpush2.msra.mxu0 0.0
    %3825 = vmatprep.subr.mxu0 0.0
    %3826 = vmatpush2.msra.mxu0 0.0
    %3827 = vmatprep.subr.mxu0 0.0
    %3828 = vmatpush2.msra.mxu0 0.0
    %3829 = vmatprep.subr.mxu0 0.0
    %3830 = vmatpush2.msra.mxu0 0.0
    %3831 = vmatprep.subr.mxu0 0.0
    %3832 = vmatpush2.msra.mxu0 0.0
    %3833 = vmatprep.mubr.f32.mxu0 0.0
    %v3834 = vand.u32 %v377, 4294901760
    %3835 = vmatmul.mubr.f32.gmra.mxu0 %v3834
    %v3836 = vpop.f32.mrf.mxu0
    %v3837 = vadd.f32 %v3652, %v3836
    %v3838 = vpop.f32.mrf.mxu0
    %v3839 = vadd.f32 %v3654, %v3838
    %3840 = vmatprep.mubr.f32.mxu0 0.0
    %v3841 = vand.u32 %v380, 4294901760
    %3842 = vmatmul.mubr.f32.gmra.mxu0 %v3841
    %v3843 = vpop.f32.mrf.mxu0
    %v3844 = vadd.f32 %v3663, %v3843
    %v3845 = vpop.f32.mrf.mxu0
    %v3846 = vadd.f32 %v3665, %v3845
    %3847 = vmatprep.mubr.f32.mxu0 0.0
    %v3848 = vand.u32 %v383, 4294901760
    %3849 = vmatmul.mubr.f32.gmra.mxu0 %v3848
    %v3850 = vpop.f32.mrf.mxu0
    %v3851 = vadd.f32 %v3674, %v3850
    %v3852 = vpop.f32.mrf.mxu0
    %v3853 = vadd.f32 %v3676, %v3852
    %3854 = vmatprep.mubr.f32.mxu0 0.0
    %v3855 = vand.u32 %v386, 4294901760
    %3856 = vmatmul.mubr.f32.gmra.mxu0 %v3855
    %v3857 = vpop.f32.mrf.mxu0
    %v3858 = vadd.f32 %v3685, %v3857
    %v3859 = vpop.f32.mrf.mxu0
    %v3860 = vadd.f32 %v3687, %v3859
    %3861 = vdwg.mxu0
    %3862 = vmatprep.subr.mxu0 0.0
    %3863 = vmatpush1.msra.mxu0 0.0
    %3864 = vmatprep.subr.mxu0 0.0
    %3865 = vmatpush1.msra.mxu0 0.0
    %3866 = vmatprep.subr.mxu0 0.0
    %3867 = vmatpush1.msra.mxu0 0.0
    %3868 = vmatprep.subr.mxu0 0.0
    %3869 = vmatpush1.msra.mxu0 0.0
    %3870 = vmatprep.subr.mxu0 0.0
    %3871 = vmatpush1.msra.mxu0 0.0
    %3872 = vmatprep.subr.mxu0 0.0
    %3873 = vmatpush1.msra.mxu0 0.0
    %3874 = vmatprep.subr.mxu0 0.0
    %3875 = vmatpush1.msra.mxu0 0.0
    %3876 = vmatprep.subr.mxu0 0.0
    %3877 = vmatpush1.msra.mxu0 0.0
    %v3878 = vand.u32 %v234, 4294901760
    %v3879 = vsub.f32 %v234, %v3878
    %3880 = vmatprep.subr.mxu0 %v3879
    %v3881 = vand.u32 %v233, 4294901760
    %v3882 = vsub.f32 %v233, %v3881
    %3883 = vmatpush1.msra.mxu0 %v3882
    %v3884 = vand.u32 %v210, 4294901760
    %v3885 = vsub.f32 %v210, %v3884
    %3886 = vmatprep.subr.mxu0 %v3885
    %v3887 = vand.u32 %v209, 4294901760
    %v3888 = vsub.f32 %v209, %v3887
    %3889 = vmatpush1.msra.mxu0 %v3888
    %v3890 = vand.u32 %v186, 4294901760
    %v3891 = vsub.f32 %v186, %v3890
    %3892 = vmatprep.subr.mxu0 %v3891
    %v3893 = vand.u32 %v185, 4294901760
    %v3894 = vsub.f32 %v185, %v3893
    %3895 = vmatpush1.msra.mxu0 %v3894
    %v3896 = vand.u32 %v162, 4294901760
    %v3897 = vsub.f32 %v162, %v3896
    %3898 = vmatprep.subr.mxu0 %v3897
    %v3899 = vand.u32 %v161, 4294901760
    %v3900 = vsub.f32 %v161, %v3899
    %3901 = vmatpush1.msra.mxu0 %v3900
    %v3902 = vand.u32 %v138, 4294901760
    %v3903 = vsub.f32 %v138, %v3902
    %3904 = vmatprep.subr.mxu0 %v3903
    %v3905 = vand.u32 %v137, 4294901760
    %v3906 = vsub.f32 %v137, %v3905
    %3907 = vmatpush1.msra.mxu0 %v3906
    %v3908 = vand.u32 %v114, 4294901760
    %v3909 = vsub.f32 %v114, %v3908
    %3910 = vmatprep.subr.mxu0 %v3909
    %v3911 = vand.u32 %v113, 4294901760
    %v3912 = vsub.f32 %v113, %v3911
    %3913 = vmatpush1.msra.mxu0 %v3912
    %v3914 = vand.u32 %v90, 4294901760
    %v3915 = vsub.f32 %v90, %v3914
    %3916 = vmatprep.subr.mxu0 %v3915
    %v3917 = vand.u32 %v89, 4294901760
    %v3918 = vsub.f32 %v89, %v3917
    %3919 = vmatpush1.msra.mxu0 %v3918
    %v3920 = vand.u32 %v66, 4294901760
    %v3921 = vsub.f32 %v66, %v3920
    %3922 = vmatprep.subr.mxu0 %v3921
    %v3923 = vand.u32 %v65, 4294901760
    %v3924 = vsub.f32 %v65, %v3923
    %3925 = vmatpush1.msra.mxu0 %v3924
    %3926 = vmatprep.subr.mxu0 0.0
    %3927 = vmatpush2.msra.mxu0 0.0
    %3928 = vmatprep.subr.mxu0 0.0
    %3929 = vmatpush2.msra.mxu0 0.0
    %3930 = vmatprep.subr.mxu0 0.0
    %3931 = vmatpush2.msra.mxu0 0.0
    %3932 = vmatprep.subr.mxu0 0.0
    %3933 = vmatpush2.msra.mxu0 0.0
    %3934 = vmatprep.subr.mxu0 0.0
    %3935 = vmatpush2.msra.mxu0 0.0
    %3936 = vmatprep.subr.mxu0 0.0
    %3937 = vmatpush2.msra.mxu0 0.0
    %3938 = vmatprep.subr.mxu0 0.0
    %3939 = vmatpush2.msra.mxu0 0.0
    %3940 = vmatprep.subr.mxu0 0.0
    %3941 = vmatpush2.msra.mxu0 0.0
    %3942 = vmatprep.subr.mxu0 0.0
    %3943 = vmatpush2.msra.mxu0 0.0
    %3944 = vmatprep.subr.mxu0 0.0
    %3945 = vmatpush2.msra.mxu0 0.0
    %3946 = vmatprep.subr.mxu0 0.0
    %3947 = vmatpush2.msra.mxu0 0.0
    %3948 = vmatprep.subr.mxu0 0.0
    %3949 = vmatpush2.msra.mxu0 0.0
    %3950 = vmatprep.subr.mxu0 0.0
    %3951 = vmatpush2.msra.mxu0 0.0
    %3952 = vmatprep.subr.mxu0 0.0
    %3953 = vmatpush2.msra.mxu0 0.0
    %3954 = vmatprep.subr.mxu0 0.0
    %3955 = vmatpush2.msra.mxu0 0.0
    %3956 = vmatprep.subr.mxu0 0.0
    %3957 = vmatpush2.msra.mxu0 0.0
    %3958 = vmatprep.mubr.f32.mxu0 0.0
    %v3959 = vand.u32 %v377, 4294901760
    %v3960 = vsub.f32 %v377, %v3959
    %3961 = vmatmul.mubr.f32.gmra.mxu0 %v3960
    %v3962 = vpop.f32.mrf.mxu0
    %v3963 = vadd.f32 %v3837, %v3962
    %v3964 = vpop.f32.mrf.mxu0
    %v3965 = vadd.f32 %v3839, %v3964
    %3966 = vmatprep.mubr.f32.mxu0 0.0
    %v3967 = vand.u32 %v380, 4294901760
    %v3968 = vsub.f32 %v380, %v3967
    %3969 = vmatmul.mubr.f32.gmra.mxu0 %v3968
    %v3970 = vpop.f32.mrf.mxu0
    %v3971 = vadd.f32 %v3844, %v3970
    %v3972 = vpop.f32.mrf.mxu0
    %v3973 = vadd.f32 %v3846, %v3972
    %3974 = vmatprep.mubr.f32.mxu0 0.0
    %v3975 = vand.u32 %v383, 4294901760
    %v3976 = vsub.f32 %v383, %v3975
    %3977 = vmatmul.mubr.f32.gmra.mxu0 %v3976
    %v3978 = vpop.f32.mrf.mxu0
    %v3979 = vadd.f32 %v3851, %v3978
    %v3980 = vpop.f32.mrf.mxu0
    %v3981 = vadd.f32 %v3853, %v3980
    %3982 = vmatprep.mubr.f32.mxu0 0.0
    %v3983 = vand.u32 %v386, 4294901760
    %v3984 = vsub.f32 %v386, %v3983
    %3985 = vmatmul.mubr.f32.gmra.mxu0 %v3984
    %v3986 = vpop.f32.mrf.mxu0
    %v3987 = vadd.f32 %v3858, %v3986
    %v3988 = vpop.f32.mrf.mxu0
    %v3989 = vadd.f32 %v3860, %v3988
    %3990 = vdwg.mxu0
    %3991 = vmatprep.subr.mxu0 0.0
    %3992 = vmatpush1.msra.mxu0 0.0
    %3993 = vmatprep.subr.mxu0 0.0
    %3994 = vmatpush1.msra.mxu0 0.0
    %3995 = vmatprep.subr.mxu0 0.0
    %3996 = vmatpush1.msra.mxu0 0.0
    %3997 = vmatprep.subr.mxu0 0.0
    %3998 = vmatpush1.msra.mxu0 0.0
    %3999 = vmatprep.subr.mxu0 0.0
    %4000 = vmatpush1.msra.mxu0 0.0
    %4001 = vmatprep.subr.mxu0 0.0
    %4002 = vmatpush1.msra.mxu0 0.0
    %4003 = vmatprep.subr.mxu0 0.0
    %4004 = vmatpush1.msra.mxu0 0.0
    %4005 = vmatprep.subr.mxu0 0.0
    %4006 = vmatpush1.msra.mxu0 0.0
    %v4007 = vand.u32 %v234, 4294901760
    %4008 = vmatprep.subr.mxu0 %v4007
    %v4009 = vand.u32 %v233, 4294901760
    %4010 = vmatpush1.msra.mxu0 %v4009
    %v4011 = vand.u32 %v210, 4294901760
    %4012 = vmatprep.subr.mxu0 %v4011
    %v4013 = vand.u32 %v209, 4294901760
    %4014 = vmatpush1.msra.mxu0 %v4013
    %v4015 = vand.u32 %v186, 4294901760
    %4016 = vmatprep.subr.mxu0 %v4015
    %v4017 = vand.u32 %v185, 4294901760
    %4018 = vmatpush1.msra.mxu0 %v4017
    %v4019 = vand.u32 %v162, 4294901760
    %4020 = vmatprep.subr.mxu0 %v4019
    %v4021 = vand.u32 %v161, 4294901760
    %4022 = vmatpush1.msra.mxu0 %v4021
    %v4023 = vand.u32 %v138, 4294901760
    %4024 = vmatprep.subr.mxu0 %v4023
    %v4025 = vand.u32 %v137, 4294901760
    %4026 = vmatpush1.msra.mxu0 %v4025
    %v4027 = vand.u32 %v114, 4294901760
    %4028 = vmatprep.subr.mxu0 %v4027
    %v4029 = vand.u32 %v113, 4294901760
    %4030 = vmatpush1.msra.mxu0 %v4029
    %v4031 = vand.u32 %v90, 4294901760
    %4032 = vmatprep.subr.mxu0 %v4031
    %v4033 = vand.u32 %v89, 4294901760
    %4034 = vmatpush1.msra.mxu0 %v4033
    %v4035 = vand.u32 %v66, 4294901760
    %4036 = vmatprep.subr.mxu0 %v4035
    %v4037 = vand.u32 %v65, 4294901760
    %4038 = vmatpush1.msra.mxu0 %v4037
    %4039 = vmatprep.subr.mxu0 0.0
    %4040 = vmatpush2.msra.mxu0 0.0
    %4041 = vmatprep.subr.mxu0 0.0
    %4042 = vmatpush2.msra.mxu0 0.0
    %4043 = vmatprep.subr.mxu0 0.0
    %4044 = vmatpush2.msra.mxu0 0.0
    %4045 = vmatprep.subr.mxu0 0.0
    %4046 = vmatpush2.msra.mxu0 0.0
    %4047 = vmatprep.subr.mxu0 0.0
    %4048 = vmatpush2.msra.mxu0 0.0
    %4049 = vmatprep.subr.mxu0 0.0
    %4050 = vmatpush2.msra.mxu0 0.0
    %4051 = vmatprep.subr.mxu0 0.0
    %4052 = vmatpush2.msra.mxu0 0.0
    %4053 = vmatprep.subr.mxu0 0.0
    %4054 = vmatpush2.msra.mxu0 0.0
    %4055 = vmatprep.subr.mxu0 0.0
    %4056 = vmatpush2.msra.mxu0 0.0
    %4057 = vmatprep.subr.mxu0 0.0
    %4058 = vmatpush2.msra.mxu0 0.0
    %4059 = vmatprep.subr.mxu0 0.0
    %4060 = vmatpush2.msra.mxu0 0.0
    %4061 = vmatprep.subr.mxu0 0.0
    %4062 = vmatpush2.msra.mxu0 0.0
    %4063 = vmatprep.subr.mxu0 0.0
    %4064 = vmatpush2.msra.mxu0 0.0
    %4065 = vmatprep.subr.mxu0 0.0
    %4066 = vmatpush2.msra.mxu0 0.0
    %4067 = vmatprep.subr.mxu0 0.0
    %4068 = vmatpush2.msra.mxu0 0.0
    %4069 = vmatprep.subr.mxu0 0.0
    %4070 = vmatpush2.msra.mxu0 0.0
    %4071 = vmatprep.mubr.f32.mxu0 0.0
    %v4072 = vand.u32 %v377, 4294901760
    %v4073 = vsub.f32 %v377, %v4072
    %v4074 = vand.u32 %v4073, 4294901760
    %4075 = vmatmul.mubr.f32.gmra.mxu0 %v4074
    %v4076 = vpop.f32.mrf.mxu0
    %v4077 = vadd.f32 %v3963, %v4076
    %v4078 = vpop.f32.mrf.mxu0
    %v4079 = vadd.f32 %v3965, %v4078
    %4080 = vmatprep.mubr.f32.mxu0 0.0
    %v4081 = vand.u32 %v380, 4294901760
    %v4082 = vsub.f32 %v380, %v4081
    %v4083 = vand.u32 %v4082, 4294901760
    %4084 = vmatmul.mubr.f32.gmra.mxu0 %v4083
    %v4085 = vpop.f32.mrf.mxu0
    %v4086 = vadd.f32 %v3971, %v4085
    %v4087 = vpop.f32.mrf.mxu0
    %v4088 = vadd.f32 %v3973, %v4087
    %4089 = vmatprep.mubr.f32.mxu0 0.0
    %v4090 = vand.u32 %v383, 4294901760
    %v4091 = vsub.f32 %v383, %v4090
    %v4092 = vand.u32 %v4091, 4294901760
    %4093 = vmatmul.mubr.f32.gmra.mxu0 %v4092
    %v4094 = vpop.f32.mrf.mxu0
    %v4095 = vadd.f32 %v3979, %v4094
    %v4096 = vpop.f32.mrf.mxu0
    %v4097 = vadd.f32 %v3981, %v4096
    %4098 = vmatprep.mubr.f32.mxu0 0.0
    %v4099 = vand.u32 %v386, 4294901760
    %v4100 = vsub.f32 %v386, %v4099
    %v4101 = vand.u32 %v4100, 4294901760
    %4102 = vmatmul.mubr.f32.gmra.mxu0 %v4101
    %v4103 = vpop.f32.mrf.mxu0
    %v4104 = vadd.f32 %v3987, %v4103
    %v4105 = vpop.f32.mrf.mxu0
    %v4106 = vadd.f32 %v3989, %v4105
    %4107 = vdwg.mxu0
    %4108 = vmatprep.subr.mxu0 0.0
    %4109 = vmatpush1.msra.mxu0 0.0
    %4110 = vmatprep.subr.mxu0 0.0
    %4111 = vmatpush1.msra.mxu0 0.0
    %4112 = vmatprep.subr.mxu0 0.0
    %4113 = vmatpush1.msra.mxu0 0.0
    %4114 = vmatprep.subr.mxu0 0.0
    %4115 = vmatpush1.msra.mxu0 0.0
    %4116 = vmatprep.subr.mxu0 0.0
    %4117 = vmatpush1.msra.mxu0 0.0
    %4118 = vmatprep.subr.mxu0 0.0
    %4119 = vmatpush1.msra.mxu0 0.0
    %4120 = vmatprep.subr.mxu0 0.0
    %4121 = vmatpush1.msra.mxu0 0.0
    %4122 = vmatprep.subr.mxu0 0.0
    %4123 = vmatpush1.msra.mxu0 0.0
    %v4124 = vand.u32 %v234, 4294901760
    %v4125 = vsub.f32 %v234, %v4124
    %v4126 = vand.u32 %v4125, 4294901760
    %4127 = vmatprep.subr.mxu0 %v4126
    %v4128 = vand.u32 %v233, 4294901760
    %v4129 = vsub.f32 %v233, %v4128
    %v4130 = vand.u32 %v4129, 4294901760
    %4131 = vmatpush1.msra.mxu0 %v4130
    %v4132 = vand.u32 %v210, 4294901760
    %v4133 = vsub.f32 %v210, %v4132
    %v4134 = vand.u32 %v4133, 4294901760
    %4135 = vmatprep.subr.mxu0 %v4134
    %v4136 = vand.u32 %v209, 4294901760
    %v4137 = vsub.f32 %v209, %v4136
    %v4138 = vand.u32 %v4137, 4294901760
    %4139 = vmatpush1.msra.mxu0 %v4138
    %v4140 = vand.u32 %v186, 4294901760
    %v4141 = vsub.f32 %v186, %v4140
    %v4142 = vand.u32 %v4141, 4294901760
    %4143 = vmatprep.subr.mxu0 %v4142
    %v4144 = vand.u32 %v185, 4294901760
    %v4145 = vsub.f32 %v185, %v4144
    %v4146 = vand.u32 %v4145, 4294901760
    %4147 = vmatpush1.msra.mxu0 %v4146
    %v4148 = vand.u32 %v162, 4294901760
    %v4149 = vsub.f32 %v162, %v4148
    %v4150 = vand.u32 %v4149, 4294901760
    %4151 = vmatprep.subr.mxu0 %v4150
    %v4152 = vand.u32 %v161, 4294901760
    %v4153 = vsub.f32 %v161, %v4152
    %v4154 = vand.u32 %v4153, 4294901760
    %4155 = vmatpush1.msra.mxu0 %v4154
    %v4156 = vand.u32 %v138, 4294901760
    %v4157 = vsub.f32 %v138, %v4156
    %v4158 = vand.u32 %v4157, 4294901760
    %4159 = vmatprep.subr.mxu0 %v4158
    %v4160 = vand.u32 %v137, 4294901760
    %v4161 = vsub.f32 %v137, %v4160
    %v4162 = vand.u32 %v4161, 4294901760
    %4163 = vmatpush1.msra.mxu0 %v4162
    %v4164 = vand.u32 %v114, 4294901760
    %v4165 = vsub.f32 %v114, %v4164
    %v4166 = vand.u32 %v4165, 4294901760
    %4167 = vmatprep.subr.mxu0 %v4166
    %v4168 = vand.u32 %v113, 4294901760
    %v4169 = vsub.f32 %v113, %v4168
    %v4170 = vand.u32 %v4169, 4294901760
    %4171 = vmatpush1.msra.mxu0 %v4170
    %v4172 = vand.u32 %v90, 4294901760
    %v4173 = vsub.f32 %v90, %v4172
    %v4174 = vand.u32 %v4173, 4294901760
    %4175 = vmatprep.subr.mxu0 %v4174
    %v4176 = vand.u32 %v89, 4294901760
    %v4177 = vsub.f32 %v89, %v4176
    %v4178 = vand.u32 %v4177, 4294901760
    %4179 = vmatpush1.msra.mxu0 %v4178
    %v4180 = vand.u32 %v66, 4294901760
    %v4181 = vsub.f32 %v66, %v4180
    %v4182 = vand.u32 %v4181, 4294901760
    %4183 = vmatprep.subr.mxu0 %v4182
    %v4184 = vand.u32 %v65, 4294901760
    %v4185 = vsub.f32 %v65, %v4184
    %v4186 = vand.u32 %v4185, 4294901760
    %4187 = vmatpush1.msra.mxu0 %v4186
    %4188 = vmatprep.subr.mxu0 0.0
    %4189 = vmatpush2.msra.mxu0 0.0
    %4190 = vmatprep.subr.mxu0 0.0
    %4191 = vmatpush2.msra.mxu0 0.0
    %4192 = vmatprep.subr.mxu0 0.0
    %4193 = vmatpush2.msra.mxu0 0.0
    %4194 = vmatprep.subr.mxu0 0.0
    %4195 = vmatpush2.msra.mxu0 0.0
    %4196 = vmatprep.subr.mxu0 0.0
    %4197 = vmatpush2.msra.mxu0 0.0
    %4198 = vmatprep.subr.mxu0 0.0
    %4199 = vmatpush2.msra.mxu0 0.0
    %4200 = vmatprep.subr.mxu0 0.0
    %4201 = vmatpush2.msra.mxu0 0.0
    %4202 = vmatprep.subr.mxu0 0.0
    %4203 = vmatpush2.msra.mxu0 0.0
    %4204 = vmatprep.subr.mxu0 0.0
    %4205 = vmatpush2.msra.mxu0 0.0
    %4206 = vmatprep.subr.mxu0 0.0
    %4207 = vmatpush2.msra.mxu0 0.0
    %4208 = vmatprep.subr.mxu0 0.0
    %4209 = vmatpush2.msra.mxu0 0.0
    %4210 = vmatprep.subr.mxu0 0.0
    %4211 = vmatpush2.msra.mxu0 0.0
    %4212 = vmatprep.subr.mxu0 0.0
    %4213 = vmatpush2.msra.mxu0 0.0
    %4214 = vmatprep.subr.mxu0 0.0
    %4215 = vmatpush2.msra.mxu0 0.0
    %4216 = vmatprep.subr.mxu0 0.0
    %4217 = vmatpush2.msra.mxu0 0.0
    %4218 = vmatprep.subr.mxu0 0.0
    %4219 = vmatpush2.msra.mxu0 0.0
    %4220 = vmatprep.mubr.f32.mxu0 0.0
    %v4221 = vand.u32 %v377, 4294901760
    %4222 = vmatmul.mubr.f32.gmra.mxu0 %v4221
    %v4223 = vpop.f32.mrf.mxu0
    %v4224 = vadd.f32 %v4077, %v4223
    %v4225 = vpop.f32.mrf.mxu0
    %v4226 = vadd.f32 %v4079, %v4225
    %4227 = vmatprep.mubr.f32.mxu0 0.0
    %v4228 = vand.u32 %v380, 4294901760
    %4229 = vmatmul.mubr.f32.gmra.mxu0 %v4228
    %v4230 = vpop.f32.mrf.mxu0
    %v4231 = vadd.f32 %v4086, %v4230
    %v4232 = vpop.f32.mrf.mxu0
    %v4233 = vadd.f32 %v4088, %v4232
    %4234 = vmatprep.mubr.f32.mxu0 0.0
    %v4235 = vand.u32 %v383, 4294901760
    %4236 = vmatmul.mubr.f32.gmra.mxu0 %v4235
    %v4237 = vpop.f32.mrf.mxu0
    %v4238 = vadd.f32 %v4095, %v4237
    %v4239 = vpop.f32.mrf.mxu0
    %v4240 = vadd.f32 %v4097, %v4239
    %4241 = vmatprep.mubr.f32.mxu0 0.0
    %v4242 = vand.u32 %v386, 4294901760
    %4243 = vmatmul.mubr.f32.gmra.mxu0 %v4242
    %v4244 = vpop.f32.mrf.mxu0
    %v4245 = vadd.f32 %v4104, %v4244
    %v4246 = vpop.f32.mrf.mxu0
    %v4247 = vadd.f32 %v4106, %v4246
    %4248 = vdwg.mxu0
    %4249 = vmatprep.subr.mxu0 0.0
    %4250 = vmatpush1.msra.mxu0 0.0
    %4251 = vmatprep.subr.mxu0 0.0
    %4252 = vmatpush1.msra.mxu0 0.0
    %4253 = vmatprep.subr.mxu0 0.0
    %4254 = vmatpush1.msra.mxu0 0.0
    %4255 = vmatprep.subr.mxu0 0.0
    %4256 = vmatpush1.msra.mxu0 0.0
    %4257 = vmatprep.subr.mxu0 0.0
    %4258 = vmatpush1.msra.mxu0 0.0
    %4259 = vmatprep.subr.mxu0 0.0
    %4260 = vmatpush1.msra.mxu0 0.0
    %4261 = vmatprep.subr.mxu0 0.0
    %4262 = vmatpush1.msra.mxu0 0.0
    %4263 = vmatprep.subr.mxu0 0.0
    %4264 = vmatpush1.msra.mxu0 0.0
    %v4265 = vand.u32 %v234, 4294901760
    %4266 = vmatprep.subr.mxu0 %v4265
    %v4267 = vand.u32 %v233, 4294901760
    %4268 = vmatpush1.msra.mxu0 %v4267
    %v4269 = vand.u32 %v210, 4294901760
    %4270 = vmatprep.subr.mxu0 %v4269
    %v4271 = vand.u32 %v209, 4294901760
    %4272 = vmatpush1.msra.mxu0 %v4271
    %v4273 = vand.u32 %v186, 4294901760
    %4274 = vmatprep.subr.mxu0 %v4273
    %v4275 = vand.u32 %v185, 4294901760
    %4276 = vmatpush1.msra.mxu0 %v4275
    %v4277 = vand.u32 %v162, 4294901760
    %4278 = vmatprep.subr.mxu0 %v4277
    %v4279 = vand.u32 %v161, 4294901760
    %4280 = vmatpush1.msra.mxu0 %v4279
    %v4281 = vand.u32 %v138, 4294901760
    %4282 = vmatprep.subr.mxu0 %v4281
    %v4283 = vand.u32 %v137, 4294901760
    %4284 = vmatpush1.msra.mxu0 %v4283
    %v4285 = vand.u32 %v114, 4294901760
    %4286 = vmatprep.subr.mxu0 %v4285
    %v4287 = vand.u32 %v113, 4294901760
    %4288 = vmatpush1.msra.mxu0 %v4287
    %v4289 = vand.u32 %v90, 4294901760
    %4290 = vmatprep.subr.mxu0 %v4289
    %v4291 = vand.u32 %v89, 4294901760
    %4292 = vmatpush1.msra.mxu0 %v4291
    %v4293 = vand.u32 %v66, 4294901760
    %4294 = vmatprep.subr.mxu0 %v4293
    %v4295 = vand.u32 %v65, 4294901760
    %4296 = vmatpush1.msra.mxu0 %v4295
    %4297 = vmatprep.subr.mxu0 0.0
    %4298 = vmatpush2.msra.mxu0 0.0
    %4299 = vmatprep.subr.mxu0 0.0
    %4300 = vmatpush2.msra.mxu0 0.0
    %4301 = vmatprep.subr.mxu0 0.0
    %4302 = vmatpush2.msra.mxu0 0.0
    %4303 = vmatprep.subr.mxu0 0.0
    %4304 = vmatpush2.msra.mxu0 0.0
    %4305 = vmatprep.subr.mxu0 0.0
    %4306 = vmatpush2.msra.mxu0 0.0
    %4307 = vmatprep.subr.mxu0 0.0
    %4308 = vmatpush2.msra.mxu0 0.0
    %4309 = vmatprep.subr.mxu0 0.0
    %4310 = vmatpush2.msra.mxu0 0.0
    %4311 = vmatprep.subr.mxu0 0.0
    %4312 = vmatpush2.msra.mxu0 0.0
    %4313 = vmatprep.subr.mxu0 0.0
    %4314 = vmatpush2.msra.mxu0 0.0
    %4315 = vmatprep.subr.mxu0 0.0
    %4316 = vmatpush2.msra.mxu0 0.0
    %4317 = vmatprep.subr.mxu0 0.0
    %4318 = vmatpush2.msra.mxu0 0.0
    %4319 = vmatprep.subr.mxu0 0.0
    %4320 = vmatpush2.msra.mxu0 0.0
    %4321 = vmatprep.subr.mxu0 0.0
    %4322 = vmatpush2.msra.mxu0 0.0
    %4323 = vmatprep.subr.mxu0 0.0
    %4324 = vmatpush2.msra.mxu0 0.0
    %4325 = vmatprep.subr.mxu0 0.0
    %4326 = vmatpush2.msra.mxu0 0.0
    %4327 = vmatprep.subr.mxu0 0.0
    %4328 = vmatpush2.msra.mxu0 0.0
    %4329 = vmatprep.mubr.f32.mxu0 0.0
    %v4330 = vand.u32 %v377, 4294901760
    %4331 = vmatmul.mubr.f32.gmra.mxu0 %v4330
    %v4332 = vpop.f32.mrf.mxu0
    %v4333 = vadd.f32 %v4224, %v4332
    %v4334 = vpop.f32.mrf.mxu0
    %v4335 = vadd.f32 %v4226, %v4334
    %4336 = vmatprep.mubr.f32.mxu0 0.0
    %v4337 = vand.u32 %v380, 4294901760
    %4338 = vmatmul.mubr.f32.gmra.mxu0 %v4337
    %v4339 = vpop.f32.mrf.mxu0
    %v4340 = vadd.f32 %v4231, %v4339
    %v4341 = vpop.f32.mrf.mxu0
    %v4342 = vadd.f32 %v4233, %v4341
    %4343 = vmatprep.mubr.f32.mxu0 0.0
    %v4344 = vand.u32 %v383, 4294901760
    %4345 = vmatmul.mubr.f32.gmra.mxu0 %v4344
    %v4346 = vpop.f32.mrf.mxu0
    %v4347 = vadd.f32 %v4238, %v4346
    %v4348 = vpop.f32.mrf.mxu0
    %v4349 = vadd.f32 %v4240, %v4348
    %4350 = vmatprep.mubr.f32.mxu0 0.0
    %v4351 = vand.u32 %v386, 4294901760
    %4352 = vmatmul.mubr.f32.gmra.mxu0 %v4351
    %v4353 = vpop.f32.mrf.mxu0
    %v4354 = vadd.f32 %v4245, %v4353
    %v4355 = vpop.f32.mrf.mxu0
    %v4356 = vadd.f32 %v4247, %v4355
    %4357 = vdwg.mxu0
    %4358 = vmatprep.subr.mxu0 0.0
    %4359 = vmatpush1.msra.mxu0 0.0
    %4360 = vmatprep.subr.mxu0 0.0
    %4361 = vmatpush1.msra.mxu0 0.0
    %4362 = vmatprep.subr.mxu0 0.0
    %4363 = vmatpush1.msra.mxu0 0.0
    %4364 = vmatprep.subr.mxu0 0.0
    %4365 = vmatpush1.msra.mxu0 0.0
    %4366 = vmatprep.subr.mxu0 0.0
    %4367 = vmatpush1.msra.mxu0 0.0
    %4368 = vmatprep.subr.mxu0 0.0
    %4369 = vmatpush1.msra.mxu0 0.0
    %4370 = vmatprep.subr.mxu0 0.0
    %4371 = vmatpush1.msra.mxu0 0.0
    %4372 = vmatprep.subr.mxu0 0.0
    %4373 = vmatpush1.msra.mxu0 0.0
    %v4374 = vand.u32 %v236, 4294901760
    %4375 = vmatprep.subr.mxu0 %v4374
    %v4376 = vand.u32 %v235, 4294901760
    %4377 = vmatpush1.msra.mxu0 %v4376
    %v4378 = vand.u32 %v212, 4294901760
    %4379 = vmatprep.subr.mxu0 %v4378
    %v4380 = vand.u32 %v211, 4294901760
    %4381 = vmatpush1.msra.mxu0 %v4380
    %v4382 = vand.u32 %v188, 4294901760
    %4383 = vmatprep.subr.mxu0 %v4382
    %v4384 = vand.u32 %v187, 4294901760
    %4385 = vmatpush1.msra.mxu0 %v4384
    %v4386 = vand.u32 %v164, 4294901760
    %4387 = vmatprep.subr.mxu0 %v4386
    %v4388 = vand.u32 %v163, 4294901760
    %4389 = vmatpush1.msra.mxu0 %v4388
    %v4390 = vand.u32 %v140, 4294901760
    %4391 = vmatprep.subr.mxu0 %v4390
    %v4392 = vand.u32 %v139, 4294901760
    %4393 = vmatpush1.msra.mxu0 %v4392
    %v4394 = vand.u32 %v116, 4294901760
    %4395 = vmatprep.subr.mxu0 %v4394
    %v4396 = vand.u32 %v115, 4294901760
    %4397 = vmatpush1.msra.mxu0 %v4396
    %v4398 = vand.u32 %v92, 4294901760
    %4399 = vmatprep.subr.mxu0 %v4398
    %v4400 = vand.u32 %v91, 4294901760
    %4401 = vmatpush1.msra.mxu0 %v4400
    %v4402 = vand.u32 %v68, 4294901760
    %4403 = vmatprep.subr.mxu0 %v4402
    %v4404 = vand.u32 %v67, 4294901760
    %4405 = vmatpush1.msra.mxu0 %v4404
    %4406 = vmatprep.subr.mxu0 0.0
    %4407 = vmatpush2.msra.mxu0 0.0
    %4408 = vmatprep.subr.mxu0 0.0
    %4409 = vmatpush2.msra.mxu0 0.0
    %4410 = vmatprep.subr.mxu0 0.0
    %4411 = vmatpush2.msra.mxu0 0.0
    %4412 = vmatprep.subr.mxu0 0.0
    %4413 = vmatpush2.msra.mxu0 0.0
    %4414 = vmatprep.subr.mxu0 0.0
    %4415 = vmatpush2.msra.mxu0 0.0
    %4416 = vmatprep.subr.mxu0 0.0
    %4417 = vmatpush2.msra.mxu0 0.0
    %4418 = vmatprep.subr.mxu0 0.0
    %4419 = vmatpush2.msra.mxu0 0.0
    %4420 = vmatprep.subr.mxu0 0.0
    %4421 = vmatpush2.msra.mxu0 0.0
    %4422 = vmatprep.subr.mxu0 0.0
    %4423 = vmatpush2.msra.mxu0 0.0
    %4424 = vmatprep.subr.mxu0 0.0
    %4425 = vmatpush2.msra.mxu0 0.0
    %4426 = vmatprep.subr.mxu0 0.0
    %4427 = vmatpush2.msra.mxu0 0.0
    %4428 = vmatprep.subr.mxu0 0.0
    %4429 = vmatpush2.msra.mxu0 0.0
    %4430 = vmatprep.subr.mxu0 0.0
    %4431 = vmatpush2.msra.mxu0 0.0
    %4432 = vmatprep.subr.mxu0 0.0
    %4433 = vmatpush2.msra.mxu0 0.0
    %4434 = vmatprep.subr.mxu0 0.0
    %4435 = vmatpush2.msra.mxu0 0.0
    %4436 = vmatprep.subr.mxu0 0.0
    %4437 = vmatpush2.msra.mxu0 0.0
    %4438 = vmatprep.mubr.f32.mxu0 0.0
    %v4439 = vand.u32 %v377, 4294901760
    %v4440 = vsub.f32 %v377, %v4439
    %v4441 = vand.u32 %v4440, 4294901760
    %v4442 = vsub.f32 %v4440, %v4441
    %v4443 = vand.u32 %v4442, 4294901760
    %4444 = vmatmul.mubr.f32.gmra.mxu0 %v4443
    %v4445 = vpop.f32.mrf.mxu0
    %v4446 = vadd.f32 %v298, %v4445
    %v4447 = vpop.f32.mrf.mxu0
    %v4448 = vadd.f32 %v302, %v4447
    %4449 = vmatprep.mubr.f32.mxu0 0.0
    %v4450 = vand.u32 %v380, 4294901760
    %v4451 = vsub.f32 %v380, %v4450
    %v4452 = vand.u32 %v4451, 4294901760
    %v4453 = vsub.f32 %v4451, %v4452
    %v4454 = vand.u32 %v4453, 4294901760
    %4455 = vmatmul.mubr.f32.gmra.mxu0 %v4454
    %v4456 = vpop.f32.mrf.mxu0
    %v4457 = vadd.f32 %v298, %v4456
    %v4458 = vpop.f32.mrf.mxu0
    %v4459 = vadd.f32 %v302, %v4458
    %4460 = vmatprep.mubr.f32.mxu0 0.0
    %v4461 = vand.u32 %v383, 4294901760
    %v4462 = vsub.f32 %v383, %v4461
    %v4463 = vand.u32 %v4462, 4294901760
    %v4464 = vsub.f32 %v4462, %v4463
    %v4465 = vand.u32 %v4464, 4294901760
    %4466 = vmatmul.mubr.f32.gmra.mxu0 %v4465
    %v4467 = vpop.f32.mrf.mxu0
    %v4468 = vadd.f32 %v298, %v4467
    %v4469 = vpop.f32.mrf.mxu0
    %v4470 = vadd.f32 %v302, %v4469
    %4471 = vmatprep.mubr.f32.mxu0 0.0
    %v4472 = vand.u32 %v386, 4294901760
    %v4473 = vsub.f32 %v386, %v4472
    %v4474 = vand.u32 %v4473, 4294901760
    %v4475 = vsub.f32 %v4473, %v4474
    %v4476 = vand.u32 %v4475, 4294901760
    %4477 = vmatmul.mubr.f32.gmra.mxu0 %v4476
    %v4478 = vpop.f32.mrf.mxu0
    %v4479 = vadd.f32 %v298, %v4478
    %v4480 = vpop.f32.mrf.mxu0
    %v4481 = vadd.f32 %v302, %v4480
    %4482 = vdwg.mxu0
    %4483 = vmatprep.subr.mxu0 0.0
    %4484 = vmatpush1.msra.mxu0 0.0
    %4485 = vmatprep.subr.mxu0 0.0
    %4486 = vmatpush1.msra.mxu0 0.0
    %4487 = vmatprep.subr.mxu0 0.0
    %4488 = vmatpush1.msra.mxu0 0.0
    %4489 = vmatprep.subr.mxu0 0.0
    %4490 = vmatpush1.msra.mxu0 0.0
    %4491 = vmatprep.subr.mxu0 0.0
    %4492 = vmatpush1.msra.mxu0 0.0
    %4493 = vmatprep.subr.mxu0 0.0
    %4494 = vmatpush1.msra.mxu0 0.0
    %4495 = vmatprep.subr.mxu0 0.0
    %4496 = vmatpush1.msra.mxu0 0.0
    %4497 = vmatprep.subr.mxu0 0.0
    %4498 = vmatpush1.msra.mxu0 0.0
    %v4499 = vand.u32 %v236, 4294901760
    %v4500 = vsub.f32 %v236, %v4499
    %v4501 = vand.u32 %v4500, 4294901760
    %v4502 = vsub.f32 %v4500, %v4501
    %v4503 = vand.u32 %v4502, 4294901760
    %4504 = vmatprep.subr.mxu0 %v4503
    %v4505 = vand.u32 %v235, 4294901760
    %v4506 = vsub.f32 %v235, %v4505
    %v4507 = vand.u32 %v4506, 4294901760
    %v4508 = vsub.f32 %v4506, %v4507
    %v4509 = vand.u32 %v4508, 4294901760
    %4510 = vmatpush1.msra.mxu0 %v4509
    %v4511 = vand.u32 %v212, 4294901760
    %v4512 = vsub.f32 %v212, %v4511
    %v4513 = vand.u32 %v4512, 4294901760
    %v4514 = vsub.f32 %v4512, %v4513
    %v4515 = vand.u32 %v4514, 4294901760
    %4516 = vmatprep.subr.mxu0 %v4515
    %v4517 = vand.u32 %v211, 4294901760
    %v4518 = vsub.f32 %v211, %v4517
    %v4519 = vand.u32 %v4518, 4294901760
    %v4520 = vsub.f32 %v4518, %v4519
    %v4521 = vand.u32 %v4520, 4294901760
    %4522 = vmatpush1.msra.mxu0 %v4521
    %v4523 = vand.u32 %v188, 4294901760
    %v4524 = vsub.f32 %v188, %v4523
    %v4525 = vand.u32 %v4524, 4294901760
    %v4526 = vsub.f32 %v4524, %v4525
    %v4527 = vand.u32 %v4526, 4294901760
    %4528 = vmatprep.subr.mxu0 %v4527
    %v4529 = vand.u32 %v187, 4294901760
    %v4530 = vsub.f32 %v187, %v4529
    %v4531 = vand.u32 %v4530, 4294901760
    %v4532 = vsub.f32 %v4530, %v4531
    %v4533 = vand.u32 %v4532, 4294901760
    %4534 = vmatpush1.msra.mxu0 %v4533
    %v4535 = vand.u32 %v164, 4294901760
    %v4536 = vsub.f32 %v164, %v4535
    %v4537 = vand.u32 %v4536, 4294901760
    %v4538 = vsub.f32 %v4536, %v4537
    %v4539 = vand.u32 %v4538, 4294901760
    %4540 = vmatprep.subr.mxu0 %v4539
    %v4541 = vand.u32 %v163, 4294901760
    %v4542 = vsub.f32 %v163, %v4541
    %v4543 = vand.u32 %v4542, 4294901760
    %v4544 = vsub.f32 %v4542, %v4543
    %v4545 = vand.u32 %v4544, 4294901760
    %4546 = vmatpush1.msra.mxu0 %v4545
    %v4547 = vand.u32 %v140, 4294901760
    %v4548 = vsub.f32 %v140, %v4547
    %v4549 = vand.u32 %v4548, 4294901760
    %v4550 = vsub.f32 %v4548, %v4549
    %v4551 = vand.u32 %v4550, 4294901760
    %4552 = vmatprep.subr.mxu0 %v4551
    %v4553 = vand.u32 %v139, 4294901760
    %v4554 = vsub.f32 %v139, %v4553
    %v4555 = vand.u32 %v4554, 4294901760
    %v4556 = vsub.f32 %v4554, %v4555
    %v4557 = vand.u32 %v4556, 4294901760
    %4558 = vmatpush1.msra.mxu0 %v4557
    %v4559 = vand.u32 %v116, 4294901760
    %v4560 = vsub.f32 %v116, %v4559
    %v4561 = vand.u32 %v4560, 4294901760
    %v4562 = vsub.f32 %v4560, %v4561
    %v4563 = vand.u32 %v4562, 4294901760
    %4564 = vmatprep.subr.mxu0 %v4563
    %v4565 = vand.u32 %v115, 4294901760
    %v4566 = vsub.f32 %v115, %v4565
    %v4567 = vand.u32 %v4566, 4294901760
    %v4568 = vsub.f32 %v4566, %v4567
    %v4569 = vand.u32 %v4568, 4294901760
    %4570 = vmatpush1.msra.mxu0 %v4569
    %v4571 = vand.u32 %v92, 4294901760
    %v4572 = vsub.f32 %v92, %v4571
    %v4573 = vand.u32 %v4572, 4294901760
    %v4574 = vsub.f32 %v4572, %v4573
    %v4575 = vand.u32 %v4574, 4294901760
    %4576 = vmatprep.subr.mxu0 %v4575
    %v4577 = vand.u32 %v91, 4294901760
    %v4578 = vsub.f32 %v91, %v4577
    %v4579 = vand.u32 %v4578, 4294901760
    %v4580 = vsub.f32 %v4578, %v4579
    %v4581 = vand.u32 %v4580, 4294901760
    %4582 = vmatpush1.msra.mxu0 %v4581
    %v4583 = vand.u32 %v68, 4294901760
    %v4584 = vsub.f32 %v68, %v4583
    %v4585 = vand.u32 %v4584, 4294901760
    %v4586 = vsub.f32 %v4584, %v4585
    %v4587 = vand.u32 %v4586, 4294901760
    %4588 = vmatprep.subr.mxu0 %v4587
    %v4589 = vand.u32 %v67, 4294901760
    %v4590 = vsub.f32 %v67, %v4589
    %v4591 = vand.u32 %v4590, 4294901760
    %v4592 = vsub.f32 %v4590, %v4591
    %v4593 = vand.u32 %v4592, 4294901760
    %4594 = vmatpush1.msra.mxu0 %v4593
    %4595 = vmatprep.subr.mxu0 0.0
    %4596 = vmatpush2.msra.mxu0 0.0
    %4597 = vmatprep.subr.mxu0 0.0
    %4598 = vmatpush2.msra.mxu0 0.0
    %4599 = vmatprep.subr.mxu0 0.0
    %4600 = vmatpush2.msra.mxu0 0.0
    %4601 = vmatprep.subr.mxu0 0.0
    %4602 = vmatpush2.msra.mxu0 0.0
    %4603 = vmatprep.subr.mxu0 0.0
    %4604 = vmatpush2.msra.mxu0 0.0
    %4605 = vmatprep.subr.mxu0 0.0
    %4606 = vmatpush2.msra.mxu0 0.0
    %4607 = vmatprep.subr.mxu0 0.0
    %4608 = vmatpush2.msra.mxu0 0.0
    %4609 = vmatprep.subr.mxu0 0.0
    %4610 = vmatpush2.msra.mxu0 0.0
    %4611 = vmatprep.subr.mxu0 0.0
    %4612 = vmatpush2.msra.mxu0 0.0
    %4613 = vmatprep.subr.mxu0 0.0
    %4614 = vmatpush2.msra.mxu0 0.0
    %4615 = vmatprep.subr.mxu0 0.0
    %4616 = vmatpush2.msra.mxu0 0.0
    %4617 = vmatprep.subr.mxu0 0.0
    %4618 = vmatpush2.msra.mxu0 0.0
    %4619 = vmatprep.subr.mxu0 0.0
    %4620 = vmatpush2.msra.mxu0 0.0
    %4621 = vmatprep.subr.mxu0 0.0
    %4622 = vmatpush2.msra.mxu0 0.0
    %4623 = vmatprep.subr.mxu0 0.0
    %4624 = vmatpush2.msra.mxu0 0.0
    %4625 = vmatprep.subr.mxu0 0.0
    %4626 = vmatpush2.msra.mxu0 0.0
    %4627 = vmatprep.mubr.f32.mxu0 0.0
    %v4628 = vand.u32 %v377, 4294901760
    %4629 = vmatmul.mubr.f32.gmra.mxu0 %v4628
    %v4630 = vpop.f32.mrf.mxu0
    %v4631 = vadd.f32 %v4446, %v4630
    %v4632 = vpop.f32.mrf.mxu0
    %v4633 = vadd.f32 %v4448, %v4632
    %4634 = vmatprep.mubr.f32.mxu0 0.0
    %v4635 = vand.u32 %v380, 4294901760
    %4636 = vmatmul.mubr.f32.gmra.mxu0 %v4635
    %v4637 = vpop.f32.mrf.mxu0
    %v4638 = vadd.f32 %v4457, %v4637
    %v4639 = vpop.f32.mrf.mxu0
    %v4640 = vadd.f32 %v4459, %v4639
    %4641 = vmatprep.mubr.f32.mxu0 0.0
    %v4642 = vand.u32 %v383, 4294901760
    %4643 = vmatmul.mubr.f32.gmra.mxu0 %v4642
    %v4644 = vpop.f32.mrf.mxu0
    %v4645 = vadd.f32 %v4468, %v4644
    %v4646 = vpop.f32.mrf.mxu0
    %v4647 = vadd.f32 %v4470, %v4646
    %4648 = vmatprep.mubr.f32.mxu0 0.0
    %v4649 = vand.u32 %v386, 4294901760
    %4650 = vmatmul.mubr.f32.gmra.mxu0 %v4649
    %v4651 = vpop.f32.mrf.mxu0
    %v4652 = vadd.f32 %v4479, %v4651
    %v4653 = vpop.f32.mrf.mxu0
    %v4654 = vadd.f32 %v4481, %v4653
    %4655 = vdwg.mxu0
    %4656 = vmatprep.subr.mxu0 0.0
    %4657 = vmatpush1.msra.mxu0 0.0
    %4658 = vmatprep.subr.mxu0 0.0
    %4659 = vmatpush1.msra.mxu0 0.0
    %4660 = vmatprep.subr.mxu0 0.0
    %4661 = vmatpush1.msra.mxu0 0.0
    %4662 = vmatprep.subr.mxu0 0.0
    %4663 = vmatpush1.msra.mxu0 0.0
    %4664 = vmatprep.subr.mxu0 0.0
    %4665 = vmatpush1.msra.mxu0 0.0
    %4666 = vmatprep.subr.mxu0 0.0
    %4667 = vmatpush1.msra.mxu0 0.0
    %4668 = vmatprep.subr.mxu0 0.0
    %4669 = vmatpush1.msra.mxu0 0.0
    %4670 = vmatprep.subr.mxu0 0.0
    %4671 = vmatpush1.msra.mxu0 0.0
    %v4672 = vand.u32 %v236, 4294901760
    %v4673 = vsub.f32 %v236, %v4672
    %4674 = vmatprep.subr.mxu0 %v4673
    %v4675 = vand.u32 %v235, 4294901760
    %v4676 = vsub.f32 %v235, %v4675
    %4677 = vmatpush1.msra.mxu0 %v4676
    %v4678 = vand.u32 %v212, 4294901760
    %v4679 = vsub.f32 %v212, %v4678
    %4680 = vmatprep.subr.mxu0 %v4679
    %v4681 = vand.u32 %v211, 4294901760
    %v4682 = vsub.f32 %v211, %v4681
    %4683 = vmatpush1.msra.mxu0 %v4682
    %v4684 = vand.u32 %v188, 4294901760
    %v4685 = vsub.f32 %v188, %v4684
    %4686 = vmatprep.subr.mxu0 %v4685
    %v4687 = vand.u32 %v187, 4294901760
    %v4688 = vsub.f32 %v187, %v4687
    %4689 = vmatpush1.msra.mxu0 %v4688
    %v4690 = vand.u32 %v164, 4294901760
    %v4691 = vsub.f32 %v164, %v4690
    %4692 = vmatprep.subr.mxu0 %v4691
    %v4693 = vand.u32 %v163, 4294901760
    %v4694 = vsub.f32 %v163, %v4693
    %4695 = vmatpush1.msra.mxu0 %v4694
    %v4696 = vand.u32 %v140, 4294901760
    %v4697 = vsub.f32 %v140, %v4696
    %4698 = vmatprep.subr.mxu0 %v4697
    %v4699 = vand.u32 %v139, 4294901760
    %v4700 = vsub.f32 %v139, %v4699
    %4701 = vmatpush1.msra.mxu0 %v4700
    %v4702 = vand.u32 %v116, 4294901760
    %v4703 = vsub.f32 %v116, %v4702
    %4704 = vmatprep.subr.mxu0 %v4703
    %v4705 = vand.u32 %v115, 4294901760
    %v4706 = vsub.f32 %v115, %v4705
    %4707 = vmatpush1.msra.mxu0 %v4706
    %v4708 = vand.u32 %v92, 4294901760
    %v4709 = vsub.f32 %v92, %v4708
    %4710 = vmatprep.subr.mxu0 %v4709
    %v4711 = vand.u32 %v91, 4294901760
    %v4712 = vsub.f32 %v91, %v4711
    %4713 = vmatpush1.msra.mxu0 %v4712
    %v4714 = vand.u32 %v68, 4294901760
    %v4715 = vsub.f32 %v68, %v4714
    %4716 = vmatprep.subr.mxu0 %v4715
    %v4717 = vand.u32 %v67, 4294901760
    %v4718 = vsub.f32 %v67, %v4717
    %4719 = vmatpush1.msra.mxu0 %v4718
    %4720 = vmatprep.subr.mxu0 0.0
    %4721 = vmatpush2.msra.mxu0 0.0
    %4722 = vmatprep.subr.mxu0 0.0
    %4723 = vmatpush2.msra.mxu0 0.0
    %4724 = vmatprep.subr.mxu0 0.0
    %4725 = vmatpush2.msra.mxu0 0.0
    %4726 = vmatprep.subr.mxu0 0.0
    %4727 = vmatpush2.msra.mxu0 0.0
    %4728 = vmatprep.subr.mxu0 0.0
    %4729 = vmatpush2.msra.mxu0 0.0
    %4730 = vmatprep.subr.mxu0 0.0
    %4731 = vmatpush2.msra.mxu0 0.0
    %4732 = vmatprep.subr.mxu0 0.0
    %4733 = vmatpush2.msra.mxu0 0.0
    %4734 = vmatprep.subr.mxu0 0.0
    %4735 = vmatpush2.msra.mxu0 0.0
    %4736 = vmatprep.subr.mxu0 0.0
    %4737 = vmatpush2.msra.mxu0 0.0
    %4738 = vmatprep.subr.mxu0 0.0
    %4739 = vmatpush2.msra.mxu0 0.0
    %4740 = vmatprep.subr.mxu0 0.0
    %4741 = vmatpush2.msra.mxu0 0.0
    %4742 = vmatprep.subr.mxu0 0.0
    %4743 = vmatpush2.msra.mxu0 0.0
    %4744 = vmatprep.subr.mxu0 0.0
    %4745 = vmatpush2.msra.mxu0 0.0
    %4746 = vmatprep.subr.mxu0 0.0
    %4747 = vmatpush2.msra.mxu0 0.0
    %4748 = vmatprep.subr.mxu0 0.0
    %4749 = vmatpush2.msra.mxu0 0.0
    %4750 = vmatprep.subr.mxu0 0.0
    %4751 = vmatpush2.msra.mxu0 0.0
    %4752 = vmatprep.mubr.f32.mxu0 0.0
    %v4753 = vand.u32 %v377, 4294901760
    %v4754 = vsub.f32 %v377, %v4753
    %4755 = vmatmul.mubr.f32.gmra.mxu0 %v4754
    %v4756 = vpop.f32.mrf.mxu0
    %v4757 = vadd.f32 %v4631, %v4756
    %v4758 = vpop.f32.mrf.mxu0
    %v4759 = vadd.f32 %v4633, %v4758
    %4760 = vmatprep.mubr.f32.mxu0 0.0
    %v4761 = vand.u32 %v380, 4294901760
    %v4762 = vsub.f32 %v380, %v4761
    %4763 = vmatmul.mubr.f32.gmra.mxu0 %v4762
    %v4764 = vpop.f32.mrf.mxu0
    %v4765 = vadd.f32 %v4638, %v4764
    %v4766 = vpop.f32.mrf.mxu0
    %v4767 = vadd.f32 %v4640, %v4766
    %4768 = vmatprep.mubr.f32.mxu0 0.0
    %v4769 = vand.u32 %v383, 4294901760
    %v4770 = vsub.f32 %v383, %v4769
    %4771 = vmatmul.mubr.f32.gmra.mxu0 %v4770
    %v4772 = vpop.f32.mrf.mxu0
    %v4773 = vadd.f32 %v4645, %v4772
    %v4774 = vpop.f32.mrf.mxu0
    %v4775 = vadd.f32 %v4647, %v4774
    %4776 = vmatprep.mubr.f32.mxu0 0.0
    %v4777 = vand.u32 %v386, 4294901760
    %v4778 = vsub.f32 %v386, %v4777
    %4779 = vmatmul.mubr.f32.gmra.mxu0 %v4778
    %v4780 = vpop.f32.mrf.mxu0
    %v4781 = vadd.f32 %v4652, %v4780
    %v4782 = vpop.f32.mrf.mxu0
    %v4783 = vadd.f32 %v4654, %v4782
    %4784 = vdwg.mxu0
    %4785 = vmatprep.subr.mxu0 0.0
    %4786 = vmatpush1.msra.mxu0 0.0
    %4787 = vmatprep.subr.mxu0 0.0
    %4788 = vmatpush1.msra.mxu0 0.0
    %4789 = vmatprep.subr.mxu0 0.0
    %4790 = vmatpush1.msra.mxu0 0.0
    %4791 = vmatprep.subr.mxu0 0.0
    %4792 = vmatpush1.msra.mxu0 0.0
    %4793 = vmatprep.subr.mxu0 0.0
    %4794 = vmatpush1.msra.mxu0 0.0
    %4795 = vmatprep.subr.mxu0 0.0
    %4796 = vmatpush1.msra.mxu0 0.0
    %4797 = vmatprep.subr.mxu0 0.0
    %4798 = vmatpush1.msra.mxu0 0.0
    %4799 = vmatprep.subr.mxu0 0.0
    %4800 = vmatpush1.msra.mxu0 0.0
    %v4801 = vand.u32 %v236, 4294901760
    %4802 = vmatprep.subr.mxu0 %v4801
    %v4803 = vand.u32 %v235, 4294901760
    %4804 = vmatpush1.msra.mxu0 %v4803
    %v4805 = vand.u32 %v212, 4294901760
    %4806 = vmatprep.subr.mxu0 %v4805
    %v4807 = vand.u32 %v211, 4294901760
    %4808 = vmatpush1.msra.mxu0 %v4807
    %v4809 = vand.u32 %v188, 4294901760
    %4810 = vmatprep.subr.mxu0 %v4809
    %v4811 = vand.u32 %v187, 4294901760
    %4812 = vmatpush1.msra.mxu0 %v4811
    %v4813 = vand.u32 %v164, 4294901760
    %4814 = vmatprep.subr.mxu0 %v4813
    %v4815 = vand.u32 %v163, 4294901760
    %4816 = vmatpush1.msra.mxu0 %v4815
    %v4817 = vand.u32 %v140, 4294901760
    %4818 = vmatprep.subr.mxu0 %v4817
    %v4819 = vand.u32 %v139, 4294901760
    %4820 = vmatpush1.msra.mxu0 %v4819
    %v4821 = vand.u32 %v116, 4294901760
    %4822 = vmatprep.subr.mxu0 %v4821
    %v4823 = vand.u32 %v115, 4294901760
    %4824 = vmatpush1.msra.mxu0 %v4823
    %v4825 = vand.u32 %v92, 4294901760
    %4826 = vmatprep.subr.mxu0 %v4825
    %v4827 = vand.u32 %v91, 4294901760
    %4828 = vmatpush1.msra.mxu0 %v4827
    %v4829 = vand.u32 %v68, 4294901760
    %4830 = vmatprep.subr.mxu0 %v4829
    %v4831 = vand.u32 %v67, 4294901760
    %4832 = vmatpush1.msra.mxu0 %v4831
    %4833 = vmatprep.subr.mxu0 0.0
    %4834 = vmatpush2.msra.mxu0 0.0
    %4835 = vmatprep.subr.mxu0 0.0
    %4836 = vmatpush2.msra.mxu0 0.0
    %4837 = vmatprep.subr.mxu0 0.0
    %4838 = vmatpush2.msra.mxu0 0.0
    %4839 = vmatprep.subr.mxu0 0.0
    %4840 = vmatpush2.msra.mxu0 0.0
    %4841 = vmatprep.subr.mxu0 0.0
    %4842 = vmatpush2.msra.mxu0 0.0
    %4843 = vmatprep.subr.mxu0 0.0
    %4844 = vmatpush2.msra.mxu0 0.0
    %4845 = vmatprep.subr.mxu0 0.0
    %4846 = vmatpush2.msra.mxu0 0.0
    %4847 = vmatprep.subr.mxu0 0.0
    %4848 = vmatpush2.msra.mxu0 0.0
    %4849 = vmatprep.subr.mxu0 0.0
    %4850 = vmatpush2.msra.mxu0 0.0
    %4851 = vmatprep.subr.mxu0 0.0
    %4852 = vmatpush2.msra.mxu0 0.0
    %4853 = vmatprep.subr.mxu0 0.0
    %4854 = vmatpush2.msra.mxu0 0.0
    %4855 = vmatprep.subr.mxu0 0.0
    %4856 = vmatpush2.msra.mxu0 0.0
    %4857 = vmatprep.subr.mxu0 0.0
    %4858 = vmatpush2.msra.mxu0 0.0
    %4859 = vmatprep.subr.mxu0 0.0
    %4860 = vmatpush2.msra.mxu0 0.0
    %4861 = vmatprep.subr.mxu0 0.0
    %4862 = vmatpush2.msra.mxu0 0.0
    %4863 = vmatprep.subr.mxu0 0.0
    %4864 = vmatpush2.msra.mxu0 0.0
    %4865 = vmatprep.mubr.f32.mxu0 0.0
    %v4866 = vand.u32 %v377, 4294901760
    %v4867 = vsub.f32 %v377, %v4866
    %v4868 = vand.u32 %v4867, 4294901760
    %4869 = vmatmul.mubr.f32.gmra.mxu0 %v4868
    %v4870 = vpop.f32.mrf.mxu0
    %v4871 = vadd.f32 %v4757, %v4870
    %v4872 = vpop.f32.mrf.mxu0
    %v4873 = vadd.f32 %v4759, %v4872
    %4874 = vmatprep.mubr.f32.mxu0 0.0
    %v4875 = vand.u32 %v380, 4294901760
    %v4876 = vsub.f32 %v380, %v4875
    %v4877 = vand.u32 %v4876, 4294901760
    %4878 = vmatmul.mubr.f32.gmra.mxu0 %v4877
    %v4879 = vpop.f32.mrf.mxu0
    %v4880 = vadd.f32 %v4765, %v4879
    %v4881 = vpop.f32.mrf.mxu0
    %v4882 = vadd.f32 %v4767, %v4881
    %4883 = vmatprep.mubr.f32.mxu0 0.0
    %v4884 = vand.u32 %v383, 4294901760
    %v4885 = vsub.f32 %v383, %v4884
    %v4886 = vand.u32 %v4885, 4294901760
    %4887 = vmatmul.mubr.f32.gmra.mxu0 %v4886
    %v4888 = vpop.f32.mrf.mxu0
    %v4889 = vadd.f32 %v4773, %v4888
    %v4890 = vpop.f32.mrf.mxu0
    %v4891 = vadd.f32 %v4775, %v4890
    %4892 = vmatprep.mubr.f32.mxu0 0.0
    %v4893 = vand.u32 %v386, 4294901760
    %v4894 = vsub.f32 %v386, %v4893
    %v4895 = vand.u32 %v4894, 4294901760
    %4896 = vmatmul.mubr.f32.gmra.mxu0 %v4895
    %v4897 = vpop.f32.mrf.mxu0
    %v4898 = vadd.f32 %v4781, %v4897
    %v4899 = vpop.f32.mrf.mxu0
    %v4900 = vadd.f32 %v4783, %v4899
    %4901 = vdwg.mxu0
    %4902 = vmatprep.subr.mxu0 0.0
    %4903 = vmatpush1.msra.mxu0 0.0
    %4904 = vmatprep.subr.mxu0 0.0
    %4905 = vmatpush1.msra.mxu0 0.0
    %4906 = vmatprep.subr.mxu0 0.0
    %4907 = vmatpush1.msra.mxu0 0.0
    %4908 = vmatprep.subr.mxu0 0.0
    %4909 = vmatpush1.msra.mxu0 0.0
    %4910 = vmatprep.subr.mxu0 0.0
    %4911 = vmatpush1.msra.mxu0 0.0
    %4912 = vmatprep.subr.mxu0 0.0
    %4913 = vmatpush1.msra.mxu0 0.0
    %4914 = vmatprep.subr.mxu0 0.0
    %4915 = vmatpush1.msra.mxu0 0.0
    %4916 = vmatprep.subr.mxu0 0.0
    %4917 = vmatpush1.msra.mxu0 0.0
    %v4918 = vand.u32 %v236, 4294901760
    %v4919 = vsub.f32 %v236, %v4918
    %v4920 = vand.u32 %v4919, 4294901760
    %4921 = vmatprep.subr.mxu0 %v4920
    %v4922 = vand.u32 %v235, 4294901760
    %v4923 = vsub.f32 %v235, %v4922
    %v4924 = vand.u32 %v4923, 4294901760
    %4925 = vmatpush1.msra.mxu0 %v4924
    %v4926 = vand.u32 %v212, 4294901760
    %v4927 = vsub.f32 %v212, %v4926
    %v4928 = vand.u32 %v4927, 4294901760
    %4929 = vmatprep.subr.mxu0 %v4928
    %v4930 = vand.u32 %v211, 4294901760
    %v4931 = vsub.f32 %v211, %v4930
    %v4932 = vand.u32 %v4931, 4294901760
    %4933 = vmatpush1.msra.mxu0 %v4932
    %v4934 = vand.u32 %v188, 4294901760
    %v4935 = vsub.f32 %v188, %v4934
    %v4936 = vand.u32 %v4935, 4294901760
    %4937 = vmatprep.subr.mxu0 %v4936
    %v4938 = vand.u32 %v187, 4294901760
    %v4939 = vsub.f32 %v187, %v4938
    %v4940 = vand.u32 %v4939, 4294901760
    %4941 = vmatpush1.msra.mxu0 %v4940
    %v4942 = vand.u32 %v164, 4294901760
    %v4943 = vsub.f32 %v164, %v4942
    %v4944 = vand.u32 %v4943, 4294901760
    %4945 = vmatprep.subr.mxu0 %v4944
    %v4946 = vand.u32 %v163, 4294901760
    %v4947 = vsub.f32 %v163, %v4946
    %v4948 = vand.u32 %v4947, 4294901760
    %4949 = vmatpush1.msra.mxu0 %v4948
    %v4950 = vand.u32 %v140, 4294901760
    %v4951 = vsub.f32 %v140, %v4950
    %v4952 = vand.u32 %v4951, 4294901760
    %4953 = vmatprep.subr.mxu0 %v4952
    %v4954 = vand.u32 %v139, 4294901760
    %v4955 = vsub.f32 %v139, %v4954
    %v4956 = vand.u32 %v4955, 4294901760
    %4957 = vmatpush1.msra.mxu0 %v4956
    %v4958 = vand.u32 %v116, 4294901760
    %v4959 = vsub.f32 %v116, %v4958
    %v4960 = vand.u32 %v4959, 4294901760
    %4961 = vmatprep.subr.mxu0 %v4960
    %v4962 = vand.u32 %v115, 4294901760
    %v4963 = vsub.f32 %v115, %v4962
    %v4964 = vand.u32 %v4963, 4294901760
    %4965 = vmatpush1.msra.mxu0 %v4964
    %v4966 = vand.u32 %v92, 4294901760
    %v4967 = vsub.f32 %v92, %v4966
    %v4968 = vand.u32 %v4967, 4294901760
    %4969 = vmatprep.subr.mxu0 %v4968
    %v4970 = vand.u32 %v91, 4294901760
    %v4971 = vsub.f32 %v91, %v4970
    %v4972 = vand.u32 %v4971, 4294901760
    %4973 = vmatpush1.msra.mxu0 %v4972
    %v4974 = vand.u32 %v68, 4294901760
    %v4975 = vsub.f32 %v68, %v4974
    %v4976 = vand.u32 %v4975, 4294901760
    %4977 = vmatprep.subr.mxu0 %v4976
    %v4978 = vand.u32 %v67, 4294901760
    %v4979 = vsub.f32 %v67, %v4978
    %v4980 = vand.u32 %v4979, 4294901760
    %4981 = vmatpush1.msra.mxu0 %v4980
    %4982 = vmatprep.subr.mxu0 0.0
    %4983 = vmatpush2.msra.mxu0 0.0
    %4984 = vmatprep.subr.mxu0 0.0
    %4985 = vmatpush2.msra.mxu0 0.0
    %4986 = vmatprep.subr.mxu0 0.0
    %4987 = vmatpush2.msra.mxu0 0.0
    %4988 = vmatprep.subr.mxu0 0.0
    %4989 = vmatpush2.msra.mxu0 0.0
    %4990 = vmatprep.subr.mxu0 0.0
    %4991 = vmatpush2.msra.mxu0 0.0
    %4992 = vmatprep.subr.mxu0 0.0
    %4993 = vmatpush2.msra.mxu0 0.0
    %4994 = vmatprep.subr.mxu0 0.0
    %4995 = vmatpush2.msra.mxu0 0.0
    %4996 = vmatprep.subr.mxu0 0.0
    %4997 = vmatpush2.msra.mxu0 0.0
    %4998 = vmatprep.subr.mxu0 0.0
    %4999 = vmatpush2.msra.mxu0 0.0
    %5000 = vmatprep.subr.mxu0 0.0
    %5001 = vmatpush2.msra.mxu0 0.0
    %5002 = vmatprep.subr.mxu0 0.0
    %5003 = vmatpush2.msra.mxu0 0.0
    %5004 = vmatprep.subr.mxu0 0.0
    %5005 = vmatpush2.msra.mxu0 0.0
    %5006 = vmatprep.subr.mxu0 0.0
    %5007 = vmatpush2.msra.mxu0 0.0
    %5008 = vmatprep.subr.mxu0 0.0
    %5009 = vmatpush2.msra.mxu0 0.0
    %5010 = vmatprep.subr.mxu0 0.0
    %5011 = vmatpush2.msra.mxu0 0.0
    %5012 = vmatprep.subr.mxu0 0.0
    %5013 = vmatpush2.msra.mxu0 0.0
    %5014 = vmatprep.mubr.f32.mxu0 0.0
    %v5015 = vand.u32 %v377, 4294901760
    %5016 = vmatmul.mubr.f32.gmra.mxu0 %v5015
    %v5017 = vpop.f32.mrf.mxu0
    %v5018 = vadd.f32 %v4871, %v5017
    %v5019 = vpop.f32.mrf.mxu0
    %v5020 = vadd.f32 %v4873, %v5019
    %5021 = vmatprep.mubr.f32.mxu0 0.0
    %v5022 = vand.u32 %v380, 4294901760
    %5023 = vmatmul.mubr.f32.gmra.mxu0 %v5022
    %v5024 = vpop.f32.mrf.mxu0
    %v5025 = vadd.f32 %v4880, %v5024
    %v5026 = vpop.f32.mrf.mxu0
    %v5027 = vadd.f32 %v4882, %v5026
    %5028 = vmatprep.mubr.f32.mxu0 0.0
    %v5029 = vand.u32 %v383, 4294901760
    %5030 = vmatmul.mubr.f32.gmra.mxu0 %v5029
    %v5031 = vpop.f32.mrf.mxu0
    %v5032 = vadd.f32 %v4889, %v5031
    %v5033 = vpop.f32.mrf.mxu0
    %v5034 = vadd.f32 %v4891, %v5033
    %5035 = vmatprep.mubr.f32.mxu0 0.0
    %v5036 = vand.u32 %v386, 4294901760
    %5037 = vmatmul.mubr.f32.gmra.mxu0 %v5036
    %v5038 = vpop.f32.mrf.mxu0
    %v5039 = vadd.f32 %v4898, %v5038
    %v5040 = vpop.f32.mrf.mxu0
    %v5041 = vadd.f32 %v4900, %v5040
    %5042 = vdwg.mxu0
    %5043 = vmatprep.subr.mxu0 0.0
    %5044 = vmatpush1.msra.mxu0 0.0
    %5045 = vmatprep.subr.mxu0 0.0
    %5046 = vmatpush1.msra.mxu0 0.0
    %5047 = vmatprep.subr.mxu0 0.0
    %5048 = vmatpush1.msra.mxu0 0.0
    %5049 = vmatprep.subr.mxu0 0.0
    %5050 = vmatpush1.msra.mxu0 0.0
    %5051 = vmatprep.subr.mxu0 0.0
    %5052 = vmatpush1.msra.mxu0 0.0
    %5053 = vmatprep.subr.mxu0 0.0
    %5054 = vmatpush1.msra.mxu0 0.0
    %5055 = vmatprep.subr.mxu0 0.0
    %5056 = vmatpush1.msra.mxu0 0.0
    %5057 = vmatprep.subr.mxu0 0.0
    %5058 = vmatpush1.msra.mxu0 0.0
    %v5059 = vand.u32 %v236, 4294901760
    %5060 = vmatprep.subr.mxu0 %v5059
    %v5061 = vand.u32 %v235, 4294901760
    %5062 = vmatpush1.msra.mxu0 %v5061
    %v5063 = vand.u32 %v212, 4294901760
    %5064 = vmatprep.subr.mxu0 %v5063
    %v5065 = vand.u32 %v211, 4294901760
    %5066 = vmatpush1.msra.mxu0 %v5065
    %v5067 = vand.u32 %v188, 4294901760
    %5068 = vmatprep.subr.mxu0 %v5067
    %v5069 = vand.u32 %v187, 4294901760
    %5070 = vmatpush1.msra.mxu0 %v5069
    %v5071 = vand.u32 %v164, 4294901760
    %5072 = vmatprep.subr.mxu0 %v5071
    %v5073 = vand.u32 %v163, 4294901760
    %5074 = vmatpush1.msra.mxu0 %v5073
    %v5075 = vand.u32 %v140, 4294901760
    %5076 = vmatprep.subr.mxu0 %v5075
    %v5077 = vand.u32 %v139, 4294901760
    %5078 = vmatpush1.msra.mxu0 %v5077
    %v5079 = vand.u32 %v116, 4294901760
    %5080 = vmatprep.subr.mxu0 %v5079
    %v5081 = vand.u32 %v115, 4294901760
    %5082 = vmatpush1.msra.mxu0 %v5081
    %v5083 = vand.u32 %v92, 4294901760
    %5084 = vmatprep.subr.mxu0 %v5083
    %v5085 = vand.u32 %v91, 4294901760
    %5086 = vmatpush1.msra.mxu0 %v5085
    %v5087 = vand.u32 %v68, 4294901760
    %5088 = vmatprep.subr.mxu0 %v5087
    %v5089 = vand.u32 %v67, 4294901760
    %5090 = vmatpush1.msra.mxu0 %v5089
    %5091 = vmatprep.subr.mxu0 0.0
    %5092 = vmatpush2.msra.mxu0 0.0
    %5093 = vmatprep.subr.mxu0 0.0
    %5094 = vmatpush2.msra.mxu0 0.0
    %5095 = vmatprep.subr.mxu0 0.0
    %5096 = vmatpush2.msra.mxu0 0.0
    %5097 = vmatprep.subr.mxu0 0.0
    %5098 = vmatpush2.msra.mxu0 0.0
    %5099 = vmatprep.subr.mxu0 0.0
    %5100 = vmatpush2.msra.mxu0 0.0
    %5101 = vmatprep.subr.mxu0 0.0
    %5102 = vmatpush2.msra.mxu0 0.0
    %5103 = vmatprep.subr.mxu0 0.0
    %5104 = vmatpush2.msra.mxu0 0.0
    %5105 = vmatprep.subr.mxu0 0.0
    %5106 = vmatpush2.msra.mxu0 0.0
    %5107 = vmatprep.subr.mxu0 0.0
    %5108 = vmatpush2.msra.mxu0 0.0
    %5109 = vmatprep.subr.mxu0 0.0
    %5110 = vmatpush2.msra.mxu0 0.0
    %5111 = vmatprep.subr.mxu0 0.0
    %5112 = vmatpush2.msra.mxu0 0.0
    %5113 = vmatprep.subr.mxu0 0.0
    %5114 = vmatpush2.msra.mxu0 0.0
    %5115 = vmatprep.subr.mxu0 0.0
    %5116 = vmatpush2.msra.mxu0 0.0
    %5117 = vmatprep.subr.mxu0 0.0
    %5118 = vmatpush2.msra.mxu0 0.0
    %5119 = vmatprep.subr.mxu0 0.0
    %5120 = vmatpush2.msra.mxu0 0.0
    %5121 = vmatprep.subr.mxu0 0.0
    %5122 = vmatpush2.msra.mxu0 0.0
    %5123 = vmatprep.mubr.f32.mxu0 0.0
    %v5124 = vand.u32 %v377, 4294901760
    %5125 = vmatmul.mubr.f32.gmra.mxu0 %v5124
    %v5126 = vpop.f32.mrf.mxu0
    %v5127 = vadd.f32 %v5018, %v5126
    %v5128 = vpop.f32.mrf.mxu0
    %v5129 = vadd.f32 %v5020, %v5128
    %5130 = vmatprep.mubr.f32.mxu0 0.0
    %v5131 = vand.u32 %v380, 4294901760
    %5132 = vmatmul.mubr.f32.gmra.mxu0 %v5131
    %v5133 = vpop.f32.mrf.mxu0
    %v5134 = vadd.f32 %v5025, %v5133
    %v5135 = vpop.f32.mrf.mxu0
    %v5136 = vadd.f32 %v5027, %v5135
    %5137 = vmatprep.mubr.f32.mxu0 0.0
    %v5138 = vand.u32 %v383, 4294901760
    %5139 = vmatmul.mubr.f32.gmra.mxu0 %v5138
    %v5140 = vpop.f32.mrf.mxu0
    %v5141 = vadd.f32 %v5032, %v5140
    %v5142 = vpop.f32.mrf.mxu0
    %v5143 = vadd.f32 %v5034, %v5142
    %5144 = vmatprep.mubr.f32.mxu0 0.0
    %v5145 = vand.u32 %v386, 4294901760
    %5146 = vmatmul.mubr.f32.gmra.mxu0 %v5145
    %v5147 = vpop.f32.mrf.mxu0
    %v5148 = vadd.f32 %v5039, %v5147
    %v5149 = vpop.f32.mrf.mxu0
    %v5150 = vadd.f32 %v5041, %v5149
    %5151 = vdwg.mxu0
    %5152 = vmatprep.subr.mxu0 0.0
    %5153 = vmatpush1.msra.mxu0 0.0
    %5154 = vmatprep.subr.mxu0 0.0
    %5155 = vmatpush1.msra.mxu0 0.0
    %5156 = vmatprep.subr.mxu0 0.0
    %5157 = vmatpush1.msra.mxu0 0.0
    %5158 = vmatprep.subr.mxu0 0.0
    %5159 = vmatpush1.msra.mxu0 0.0
    %5160 = vmatprep.subr.mxu0 0.0
    %5161 = vmatpush1.msra.mxu0 0.0
    %5162 = vmatprep.subr.mxu0 0.0
    %5163 = vmatpush1.msra.mxu0 0.0
    %5164 = vmatprep.subr.mxu0 0.0
    %5165 = vmatpush1.msra.mxu0 0.0
    %5166 = vmatprep.subr.mxu0 0.0
    %5167 = vmatpush1.msra.mxu0 0.0
    %v5168 = vand.u32 %v238, 4294901760
    %5169 = vmatprep.subr.mxu0 %v5168
    %v5170 = vand.u32 %v237, 4294901760
    %5171 = vmatpush1.msra.mxu0 %v5170
    %v5172 = vand.u32 %v214, 4294901760
    %5173 = vmatprep.subr.mxu0 %v5172
    %v5174 = vand.u32 %v213, 4294901760
    %5175 = vmatpush1.msra.mxu0 %v5174
    %v5176 = vand.u32 %v190, 4294901760
    %5177 = vmatprep.subr.mxu0 %v5176
    %v5178 = vand.u32 %v189, 4294901760
    %5179 = vmatpush1.msra.mxu0 %v5178
    %v5180 = vand.u32 %v166, 4294901760
    %5181 = vmatprep.subr.mxu0 %v5180
    %v5182 = vand.u32 %v165, 4294901760
    %5183 = vmatpush1.msra.mxu0 %v5182
    %v5184 = vand.u32 %v142, 4294901760
    %5185 = vmatprep.subr.mxu0 %v5184
    %v5186 = vand.u32 %v141, 4294901760
    %5187 = vmatpush1.msra.mxu0 %v5186
    %v5188 = vand.u32 %v118, 4294901760
    %5189 = vmatprep.subr.mxu0 %v5188
    %v5190 = vand.u32 %v117, 4294901760
    %5191 = vmatpush1.msra.mxu0 %v5190
    %v5192 = vand.u32 %v94, 4294901760
    %5193 = vmatprep.subr.mxu0 %v5192
    %v5194 = vand.u32 %v93, 4294901760
    %5195 = vmatpush1.msra.mxu0 %v5194
    %v5196 = vand.u32 %v70, 4294901760
    %5197 = vmatprep.subr.mxu0 %v5196
    %v5198 = vand.u32 %v69, 4294901760
    %5199 = vmatpush1.msra.mxu0 %v5198
    %5200 = vmatprep.subr.mxu0 0.0
    %5201 = vmatpush2.msra.mxu0 0.0
    %5202 = vmatprep.subr.mxu0 0.0
    %5203 = vmatpush2.msra.mxu0 0.0
    %5204 = vmatprep.subr.mxu0 0.0
    %5205 = vmatpush2.msra.mxu0 0.0
    %5206 = vmatprep.subr.mxu0 0.0
    %5207 = vmatpush2.msra.mxu0 0.0
    %5208 = vmatprep.subr.mxu0 0.0
    %5209 = vmatpush2.msra.mxu0 0.0
    %5210 = vmatprep.subr.mxu0 0.0
    %5211 = vmatpush2.msra.mxu0 0.0
    %5212 = vmatprep.subr.mxu0 0.0
    %5213 = vmatpush2.msra.mxu0 0.0
    %5214 = vmatprep.subr.mxu0 0.0
    %5215 = vmatpush2.msra.mxu0 0.0
    %5216 = vmatprep.subr.mxu0 0.0
    %5217 = vmatpush2.msra.mxu0 0.0
    %5218 = vmatprep.subr.mxu0 0.0
    %5219 = vmatpush2.msra.mxu0 0.0
    %5220 = vmatprep.subr.mxu0 0.0
    %5221 = vmatpush2.msra.mxu0 0.0
    %5222 = vmatprep.subr.mxu0 0.0
    %5223 = vmatpush2.msra.mxu0 0.0
    %5224 = vmatprep.subr.mxu0 0.0
    %5225 = vmatpush2.msra.mxu0 0.0
    %5226 = vmatprep.subr.mxu0 0.0
    %5227 = vmatpush2.msra.mxu0 0.0
    %5228 = vmatprep.subr.mxu0 0.0
    %5229 = vmatpush2.msra.mxu0 0.0
    %5230 = vmatprep.subr.mxu0 0.0
    %5231 = vmatpush2.msra.mxu0 0.0
    %5232 = vmatprep.mubr.f32.mxu0 0.0
    %v5233 = vand.u32 %v377, 4294901760
    %v5234 = vsub.f32 %v377, %v5233
    %v5235 = vand.u32 %v5234, 4294901760
    %v5236 = vsub.f32 %v5234, %v5235
    %v5237 = vand.u32 %v5236, 4294901760
    %5238 = vmatmul.mubr.f32.gmra.mxu0 %v5237
    %v5239 = vpop.f32.mrf.mxu0
    %v5240 = vadd.f32 %v306, %v5239
    %v5241 = vpop.f32.mrf.mxu0
    %v5242 = vadd.f32 %v310, %v5241
    %5243 = vmatprep.mubr.f32.mxu0 0.0
    %v5244 = vand.u32 %v380, 4294901760
    %v5245 = vsub.f32 %v380, %v5244
    %v5246 = vand.u32 %v5245, 4294901760
    %v5247 = vsub.f32 %v5245, %v5246
    %v5248 = vand.u32 %v5247, 4294901760
    %5249 = vmatmul.mubr.f32.gmra.mxu0 %v5248
    %v5250 = vpop.f32.mrf.mxu0
    %v5251 = vadd.f32 %v306, %v5250
    %v5252 = vpop.f32.mrf.mxu0
    %v5253 = vadd.f32 %v310, %v5252
    %5254 = vmatprep.mubr.f32.mxu0 0.0
    %v5255 = vand.u32 %v383, 4294901760
    %v5256 = vsub.f32 %v383, %v5255
    %v5257 = vand.u32 %v5256, 4294901760
    %v5258 = vsub.f32 %v5256, %v5257
    %v5259 = vand.u32 %v5258, 4294901760
    %5260 = vmatmul.mubr.f32.gmra.mxu0 %v5259
    %v5261 = vpop.f32.mrf.mxu0
    %v5262 = vadd.f32 %v306, %v5261
    %v5263 = vpop.f32.mrf.mxu0
    %v5264 = vadd.f32 %v310, %v5263
    %5265 = vmatprep.mubr.f32.mxu0 0.0
    %v5266 = vand.u32 %v386, 4294901760
    %v5267 = vsub.f32 %v386, %v5266
    %v5268 = vand.u32 %v5267, 4294901760
    %v5269 = vsub.f32 %v5267, %v5268
    %v5270 = vand.u32 %v5269, 4294901760
    %5271 = vmatmul.mubr.f32.gmra.mxu0 %v5270
    %v5272 = vpop.f32.mrf.mxu0
    %v5273 = vadd.f32 %v306, %v5272
    %v5274 = vpop.f32.mrf.mxu0
    %v5275 = vadd.f32 %v310, %v5274
    %5276 = vdwg.mxu0
    %5277 = vmatprep.subr.mxu0 0.0
    %5278 = vmatpush1.msra.mxu0 0.0
    %5279 = vmatprep.subr.mxu0 0.0
    %5280 = vmatpush1.msra.mxu0 0.0
    %5281 = vmatprep.subr.mxu0 0.0
    %5282 = vmatpush1.msra.mxu0 0.0
    %5283 = vmatprep.subr.mxu0 0.0
    %5284 = vmatpush1.msra.mxu0 0.0
    %5285 = vmatprep.subr.mxu0 0.0
    %5286 = vmatpush1.msra.mxu0 0.0
    %5287 = vmatprep.subr.mxu0 0.0
    %5288 = vmatpush1.msra.mxu0 0.0
    %5289 = vmatprep.subr.mxu0 0.0
    %5290 = vmatpush1.msra.mxu0 0.0
    %5291 = vmatprep.subr.mxu0 0.0
    %5292 = vmatpush1.msra.mxu0 0.0
    %v5293 = vand.u32 %v238, 4294901760
    %v5294 = vsub.f32 %v238, %v5293
    %v5295 = vand.u32 %v5294, 4294901760
    %v5296 = vsub.f32 %v5294, %v5295
    %v5297 = vand.u32 %v5296, 4294901760
    %5298 = vmatprep.subr.mxu0 %v5297
    %v5299 = vand.u32 %v237, 4294901760
    %v5300 = vsub.f32 %v237, %v5299
    %v5301 = vand.u32 %v5300, 4294901760
    %v5302 = vsub.f32 %v5300, %v5301
    %v5303 = vand.u32 %v5302, 4294901760
    %5304 = vmatpush1.msra.mxu0 %v5303
    %v5305 = vand.u32 %v214, 4294901760
    %v5306 = vsub.f32 %v214, %v5305
    %v5307 = vand.u32 %v5306, 4294901760
    %v5308 = vsub.f32 %v5306, %v5307
    %v5309 = vand.u32 %v5308, 4294901760
    %5310 = vmatprep.subr.mxu0 %v5309
    %v5311 = vand.u32 %v213, 4294901760
    %v5312 = vsub.f32 %v213, %v5311
    %v5313 = vand.u32 %v5312, 4294901760
    %v5314 = vsub.f32 %v5312, %v5313
    %v5315 = vand.u32 %v5314, 4294901760
    %5316 = vmatpush1.msra.mxu0 %v5315
    %v5317 = vand.u32 %v190, 4294901760
    %v5318 = vsub.f32 %v190, %v5317
    %v5319 = vand.u32 %v5318, 4294901760
    %v5320 = vsub.f32 %v5318, %v5319
    %v5321 = vand.u32 %v5320, 4294901760
    %5322 = vmatprep.subr.mxu0 %v5321
    %v5323 = vand.u32 %v189, 4294901760
    %v5324 = vsub.f32 %v189, %v5323
    %v5325 = vand.u32 %v5324, 4294901760
    %v5326 = vsub.f32 %v5324, %v5325
    %v5327 = vand.u32 %v5326, 4294901760
    %5328 = vmatpush1.msra.mxu0 %v5327
    %v5329 = vand.u32 %v166, 4294901760
    %v5330 = vsub.f32 %v166, %v5329
    %v5331 = vand.u32 %v5330, 4294901760
    %v5332 = vsub.f32 %v5330, %v5331
    %v5333 = vand.u32 %v5332, 4294901760
    %5334 = vmatprep.subr.mxu0 %v5333
    %v5335 = vand.u32 %v165, 4294901760
    %v5336 = vsub.f32 %v165, %v5335
    %v5337 = vand.u32 %v5336, 4294901760
    %v5338 = vsub.f32 %v5336, %v5337
    %v5339 = vand.u32 %v5338, 4294901760
    %5340 = vmatpush1.msra.mxu0 %v5339
    %v5341 = vand.u32 %v142, 4294901760
    %v5342 = vsub.f32 %v142, %v5341
    %v5343 = vand.u32 %v5342, 4294901760
    %v5344 = vsub.f32 %v5342, %v5343
    %v5345 = vand.u32 %v5344, 4294901760
    %5346 = vmatprep.subr.mxu0 %v5345
    %v5347 = vand.u32 %v141, 4294901760
    %v5348 = vsub.f32 %v141, %v5347
    %v5349 = vand.u32 %v5348, 4294901760
    %v5350 = vsub.f32 %v5348, %v5349
    %v5351 = vand.u32 %v5350, 4294901760
    %5352 = vmatpush1.msra.mxu0 %v5351
    %v5353 = vand.u32 %v118, 4294901760
    %v5354 = vsub.f32 %v118, %v5353
    %v5355 = vand.u32 %v5354, 4294901760
    %v5356 = vsub.f32 %v5354, %v5355
    %v5357 = vand.u32 %v5356, 4294901760
    %5358 = vmatprep.subr.mxu0 %v5357
    %v5359 = vand.u32 %v117, 4294901760
    %v5360 = vsub.f32 %v117, %v5359
    %v5361 = vand.u32 %v5360, 4294901760
    %v5362 = vsub.f32 %v5360, %v5361
    %v5363 = vand.u32 %v5362, 4294901760
    %5364 = vmatpush1.msra.mxu0 %v5363
    %v5365 = vand.u32 %v94, 4294901760
    %v5366 = vsub.f32 %v94, %v5365
    %v5367 = vand.u32 %v5366, 4294901760
    %v5368 = vsub.f32 %v5366, %v5367
    %v5369 = vand.u32 %v5368, 4294901760
    %5370 = vmatprep.subr.mxu0 %v5369
    %v5371 = vand.u32 %v93, 4294901760
    %v5372 = vsub.f32 %v93, %v5371
    %v5373 = vand.u32 %v5372, 4294901760
    %v5374 = vsub.f32 %v5372, %v5373
    %v5375 = vand.u32 %v5374, 4294901760
    %5376 = vmatpush1.msra.mxu0 %v5375
    %v5377 = vand.u32 %v70, 4294901760
    %v5378 = vsub.f32 %v70, %v5377
    %v5379 = vand.u32 %v5378, 4294901760
    %v5380 = vsub.f32 %v5378, %v5379
    %v5381 = vand.u32 %v5380, 4294901760
    %5382 = vmatprep.subr.mxu0 %v5381
    %v5383 = vand.u32 %v69, 4294901760
    %v5384 = vsub.f32 %v69, %v5383
    %v5385 = vand.u32 %v5384, 4294901760
    %v5386 = vsub.f32 %v5384, %v5385
    %v5387 = vand.u32 %v5386, 4294901760
    %5388 = vmatpush1.msra.mxu0 %v5387
    %5389 = vmatprep.subr.mxu0 0.0
    %5390 = vmatpush2.msra.mxu0 0.0
    %5391 = vmatprep.subr.mxu0 0.0
    %5392 = vmatpush2.msra.mxu0 0.0
    %5393 = vmatprep.subr.mxu0 0.0
    %5394 = vmatpush2.msra.mxu0 0.0
    %5395 = vmatprep.subr.mxu0 0.0
    %5396 = vmatpush2.msra.mxu0 0.0
    %5397 = vmatprep.subr.mxu0 0.0
    %5398 = vmatpush2.msra.mxu0 0.0
    %5399 = vmatprep.subr.mxu0 0.0
    %5400 = vmatpush2.msra.mxu0 0.0
    %5401 = vmatprep.subr.mxu0 0.0
    %5402 = vmatpush2.msra.mxu0 0.0
    %5403 = vmatprep.subr.mxu0 0.0
    %5404 = vmatpush2.msra.mxu0 0.0
    %5405 = vmatprep.subr.mxu0 0.0
    %5406 = vmatpush2.msra.mxu0 0.0
    %5407 = vmatprep.subr.mxu0 0.0
    %5408 = vmatpush2.msra.mxu0 0.0
    %5409 = vmatprep.subr.mxu0 0.0
    %5410 = vmatpush2.msra.mxu0 0.0
    %5411 = vmatprep.subr.mxu0 0.0
    %5412 = vmatpush2.msra.mxu0 0.0
    %5413 = vmatprep.subr.mxu0 0.0
    %5414 = vmatpush2.msra.mxu0 0.0
    %5415 = vmatprep.subr.mxu0 0.0
    %5416 = vmatpush2.msra.mxu0 0.0
    %5417 = vmatprep.subr.mxu0 0.0
    %5418 = vmatpush2.msra.mxu0 0.0
    %5419 = vmatprep.subr.mxu0 0.0
    %5420 = vmatpush2.msra.mxu0 0.0
    %5421 = vmatprep.mubr.f32.mxu0 0.0
    %v5422 = vand.u32 %v377, 4294901760
    %5423 = vmatmul.mubr.f32.gmra.mxu0 %v5422
    %v5424 = vpop.f32.mrf.mxu0
    %v5425 = vadd.f32 %v5240, %v5424
    %v5426 = vpop.f32.mrf.mxu0
    %v5427 = vadd.f32 %v5242, %v5426
    %5428 = vmatprep.mubr.f32.mxu0 0.0
    %v5429 = vand.u32 %v380, 4294901760
    %5430 = vmatmul.mubr.f32.gmra.mxu0 %v5429
    %v5431 = vpop.f32.mrf.mxu0
    %v5432 = vadd.f32 %v5251, %v5431
    %v5433 = vpop.f32.mrf.mxu0
    %v5434 = vadd.f32 %v5253, %v5433
    %5435 = vmatprep.mubr.f32.mxu0 0.0
    %v5436 = vand.u32 %v383, 4294901760
    %5437 = vmatmul.mubr.f32.gmra.mxu0 %v5436
    %v5438 = vpop.f32.mrf.mxu0
    %v5439 = vadd.f32 %v5262, %v5438
    %v5440 = vpop.f32.mrf.mxu0
    %v5441 = vadd.f32 %v5264, %v5440
    %5442 = vmatprep.mubr.f32.mxu0 0.0
    %v5443 = vand.u32 %v386, 4294901760
    %5444 = vmatmul.mubr.f32.gmra.mxu0 %v5443
    %v5445 = vpop.f32.mrf.mxu0
    %v5446 = vadd.f32 %v5273, %v5445
    %v5447 = vpop.f32.mrf.mxu0
    %v5448 = vadd.f32 %v5275, %v5447
    %5449 = vdwg.mxu0
    %5450 = vmatprep.subr.mxu0 0.0
    %5451 = vmatpush1.msra.mxu0 0.0
    %5452 = vmatprep.subr.mxu0 0.0
    %5453 = vmatpush1.msra.mxu0 0.0
    %5454 = vmatprep.subr.mxu0 0.0
    %5455 = vmatpush1.msra.mxu0 0.0
    %5456 = vmatprep.subr.mxu0 0.0
    %5457 = vmatpush1.msra.mxu0 0.0
    %5458 = vmatprep.subr.mxu0 0.0
    %5459 = vmatpush1.msra.mxu0 0.0
    %5460 = vmatprep.subr.mxu0 0.0
    %5461 = vmatpush1.msra.mxu0 0.0
    %5462 = vmatprep.subr.mxu0 0.0
    %5463 = vmatpush1.msra.mxu0 0.0
    %5464 = vmatprep.subr.mxu0 0.0
    %5465 = vmatpush1.msra.mxu0 0.0
    %v5466 = vand.u32 %v238, 4294901760
    %v5467 = vsub.f32 %v238, %v5466
    %5468 = vmatprep.subr.mxu0 %v5467
    %v5469 = vand.u32 %v237, 4294901760
    %v5470 = vsub.f32 %v237, %v5469
    %5471 = vmatpush1.msra.mxu0 %v5470
    %v5472 = vand.u32 %v214, 4294901760
    %v5473 = vsub.f32 %v214, %v5472
    %5474 = vmatprep.subr.mxu0 %v5473
    %v5475 = vand.u32 %v213, 4294901760
    %v5476 = vsub.f32 %v213, %v5475
    %5477 = vmatpush1.msra.mxu0 %v5476
    %v5478 = vand.u32 %v190, 4294901760
    %v5479 = vsub.f32 %v190, %v5478
    %5480 = vmatprep.subr.mxu0 %v5479
    %v5481 = vand.u32 %v189, 4294901760
    %v5482 = vsub.f32 %v189, %v5481
    %5483 = vmatpush1.msra.mxu0 %v5482
    %v5484 = vand.u32 %v166, 4294901760
    %v5485 = vsub.f32 %v166, %v5484
    %5486 = vmatprep.subr.mxu0 %v5485
    %v5487 = vand.u32 %v165, 4294901760
    %v5488 = vsub.f32 %v165, %v5487
    %5489 = vmatpush1.msra.mxu0 %v5488
    %v5490 = vand.u32 %v142, 4294901760
    %v5491 = vsub.f32 %v142, %v5490
    %5492 = vmatprep.subr.mxu0 %v5491
    %v5493 = vand.u32 %v141, 4294901760
    %v5494 = vsub.f32 %v141, %v5493
    %5495 = vmatpush1.msra.mxu0 %v5494
    %v5496 = vand.u32 %v118, 4294901760
    %v5497 = vsub.f32 %v118, %v5496
    %5498 = vmatprep.subr.mxu0 %v5497
    %v5499 = vand.u32 %v117, 4294901760
    %v5500 = vsub.f32 %v117, %v5499
    %5501 = vmatpush1.msra.mxu0 %v5500
    %v5502 = vand.u32 %v94, 4294901760
    %v5503 = vsub.f32 %v94, %v5502
    %5504 = vmatprep.subr.mxu0 %v5503
    %v5505 = vand.u32 %v93, 4294901760
    %v5506 = vsub.f32 %v93, %v5505
    %5507 = vmatpush1.msra.mxu0 %v5506
    %v5508 = vand.u32 %v70, 4294901760
    %v5509 = vsub.f32 %v70, %v5508
    %5510 = vmatprep.subr.mxu0 %v5509
    %v5511 = vand.u32 %v69, 4294901760
    %v5512 = vsub.f32 %v69, %v5511
    %5513 = vmatpush1.msra.mxu0 %v5512
    %5514 = vmatprep.subr.mxu0 0.0
    %5515 = vmatpush2.msra.mxu0 0.0
    %5516 = vmatprep.subr.mxu0 0.0
    %5517 = vmatpush2.msra.mxu0 0.0
    %5518 = vmatprep.subr.mxu0 0.0
    %5519 = vmatpush2.msra.mxu0 0.0
    %5520 = vmatprep.subr.mxu0 0.0
    %5521 = vmatpush2.msra.mxu0 0.0
    %5522 = vmatprep.subr.mxu0 0.0
    %5523 = vmatpush2.msra.mxu0 0.0
    %5524 = vmatprep.subr.mxu0 0.0
    %5525 = vmatpush2.msra.mxu0 0.0
    %5526 = vmatprep.subr.mxu0 0.0
    %5527 = vmatpush2.msra.mxu0 0.0
    %5528 = vmatprep.subr.mxu0 0.0
    %5529 = vmatpush2.msra.mxu0 0.0
    %5530 = vmatprep.subr.mxu0 0.0
    %5531 = vmatpush2.msra.mxu0 0.0
    %5532 = vmatprep.subr.mxu0 0.0
    %5533 = vmatpush2.msra.mxu0 0.0
    %5534 = vmatprep.subr.mxu0 0.0
    %5535 = vmatpush2.msra.mxu0 0.0
    %5536 = vmatprep.subr.mxu0 0.0
    %5537 = vmatpush2.msra.mxu0 0.0
    %5538 = vmatprep.subr.mxu0 0.0
    %5539 = vmatpush2.msra.mxu0 0.0
    %5540 = vmatprep.subr.mxu0 0.0
    %5541 = vmatpush2.msra.mxu0 0.0
    %5542 = vmatprep.subr.mxu0 0.0
    %5543 = vmatpush2.msra.mxu0 0.0
    %5544 = vmatprep.subr.mxu0 0.0
    %5545 = vmatpush2.msra.mxu0 0.0
    %5546 = vmatprep.mubr.f32.mxu0 0.0
    %v5547 = vand.u32 %v377, 4294901760
    %v5548 = vsub.f32 %v377, %v5547
    %5549 = vmatmul.mubr.f32.gmra.mxu0 %v5548
    %v5550 = vpop.f32.mrf.mxu0
    %v5551 = vadd.f32 %v5425, %v5550
    %v5552 = vpop.f32.mrf.mxu0
    %v5553 = vadd.f32 %v5427, %v5552
    %5554 = vmatprep.mubr.f32.mxu0 0.0
    %v5555 = vand.u32 %v380, 4294901760
    %v5556 = vsub.f32 %v380, %v5555
    %5557 = vmatmul.mubr.f32.gmra.mxu0 %v5556
    %v5558 = vpop.f32.mrf.mxu0
    %v5559 = vadd.f32 %v5432, %v5558
    %v5560 = vpop.f32.mrf.mxu0
    %v5561 = vadd.f32 %v5434, %v5560
    %5562 = vmatprep.mubr.f32.mxu0 0.0
    %v5563 = vand.u32 %v383, 4294901760
    %v5564 = vsub.f32 %v383, %v5563
    %5565 = vmatmul.mubr.f32.gmra.mxu0 %v5564
    %v5566 = vpop.f32.mrf.mxu0
    %v5567 = vadd.f32 %v5439, %v5566
    %v5568 = vpop.f32.mrf.mxu0
    %v5569 = vadd.f32 %v5441, %v5568
    %5570 = vmatprep.mubr.f32.mxu0 0.0
    %v5571 = vand.u32 %v386, 4294901760
    %v5572 = vsub.f32 %v386, %v5571
    %5573 = vmatmul.mubr.f32.gmra.mxu0 %v5572
    %v5574 = vpop.f32.mrf.mxu0
    %v5575 = vadd.f32 %v5446, %v5574
    %v5576 = vpop.f32.mrf.mxu0
    %v5577 = vadd.f32 %v5448, %v5576
    %5578 = vdwg.mxu0
    %5579 = vmatprep.subr.mxu0 0.0
    %5580 = vmatpush1.msra.mxu0 0.0
    %5581 = vmatprep.subr.mxu0 0.0
    %5582 = vmatpush1.msra.mxu0 0.0
    %5583 = vmatprep.subr.mxu0 0.0
    %5584 = vmatpush1.msra.mxu0 0.0
    %5585 = vmatprep.subr.mxu0 0.0
    %5586 = vmatpush1.msra.mxu0 0.0
    %5587 = vmatprep.subr.mxu0 0.0
    %5588 = vmatpush1.msra.mxu0 0.0
    %5589 = vmatprep.subr.mxu0 0.0
    %5590 = vmatpush1.msra.mxu0 0.0
    %5591 = vmatprep.subr.mxu0 0.0
    %5592 = vmatpush1.msra.mxu0 0.0
    %5593 = vmatprep.subr.mxu0 0.0
    %5594 = vmatpush1.msra.mxu0 0.0
    %v5595 = vand.u32 %v238, 4294901760
    %5596 = vmatprep.subr.mxu0 %v5595
    %v5597 = vand.u32 %v237, 4294901760
    %5598 = vmatpush1.msra.mxu0 %v5597
    %v5599 = vand.u32 %v214, 4294901760
    %5600 = vmatprep.subr.mxu0 %v5599
    %v5601 = vand.u32 %v213, 4294901760
    %5602 = vmatpush1.msra.mxu0 %v5601
    %v5603 = vand.u32 %v190, 4294901760
    %5604 = vmatprep.subr.mxu0 %v5603
    %v5605 = vand.u32 %v189, 4294901760
    %5606 = vmatpush1.msra.mxu0 %v5605
    %v5607 = vand.u32 %v166, 4294901760
    %5608 = vmatprep.subr.mxu0 %v5607
    %v5609 = vand.u32 %v165, 4294901760
    %5610 = vmatpush1.msra.mxu0 %v5609
    %v5611 = vand.u32 %v142, 4294901760
    %5612 = vmatprep.subr.mxu0 %v5611
    %v5613 = vand.u32 %v141, 4294901760
    %5614 = vmatpush1.msra.mxu0 %v5613
    %v5615 = vand.u32 %v118, 4294901760
    %5616 = vmatprep.subr.mxu0 %v5615
    %v5617 = vand.u32 %v117, 4294901760
    %5618 = vmatpush1.msra.mxu0 %v5617
    %v5619 = vand.u32 %v94, 4294901760
    %5620 = vmatprep.subr.mxu0 %v5619
    %v5621 = vand.u32 %v93, 4294901760
    %5622 = vmatpush1.msra.mxu0 %v5621
    %v5623 = vand.u32 %v70, 4294901760
    %5624 = vmatprep.subr.mxu0 %v5623
    %v5625 = vand.u32 %v69, 4294901760
    %5626 = vmatpush1.msra.mxu0 %v5625
    %5627 = vmatprep.subr.mxu0 0.0
    %5628 = vmatpush2.msra.mxu0 0.0
    %5629 = vmatprep.subr.mxu0 0.0
    %5630 = vmatpush2.msra.mxu0 0.0
    %5631 = vmatprep.subr.mxu0 0.0
    %5632 = vmatpush2.msra.mxu0 0.0
    %5633 = vmatprep.subr.mxu0 0.0
    %5634 = vmatpush2.msra.mxu0 0.0
    %5635 = vmatprep.subr.mxu0 0.0
    %5636 = vmatpush2.msra.mxu0 0.0
    %5637 = vmatprep.subr.mxu0 0.0
    %5638 = vmatpush2.msra.mxu0 0.0
    %5639 = vmatprep.subr.mxu0 0.0
    %5640 = vmatpush2.msra.mxu0 0.0
    %5641 = vmatprep.subr.mxu0 0.0
    %5642 = vmatpush2.msra.mxu0 0.0
    %5643 = vmatprep.subr.mxu0 0.0
    %5644 = vmatpush2.msra.mxu0 0.0
    %5645 = vmatprep.subr.mxu0 0.0
    %5646 = vmatpush2.msra.mxu0 0.0
    %5647 = vmatprep.subr.mxu0 0.0
    %5648 = vmatpush2.msra.mxu0 0.0
    %5649 = vmatprep.subr.mxu0 0.0
    %5650 = vmatpush2.msra.mxu0 0.0
    %5651 = vmatprep.subr.mxu0 0.0
    %5652 = vmatpush2.msra.mxu0 0.0
    %5653 = vmatprep.subr.mxu0 0.0
    %5654 = vmatpush2.msra.mxu0 0.0
    %5655 = vmatprep.subr.mxu0 0.0
    %5656 = vmatpush2.msra.mxu0 0.0
    %5657 = vmatprep.subr.mxu0 0.0
    %5658 = vmatpush2.msra.mxu0 0.0
    %5659 = vmatprep.mubr.f32.mxu0 0.0
    %v5660 = vand.u32 %v377, 4294901760
    %v5661 = vsub.f32 %v377, %v5660
    %v5662 = vand.u32 %v5661, 4294901760
    %5663 = vmatmul.mubr.f32.gmra.mxu0 %v5662
    %v5664 = vpop.f32.mrf.mxu0
    %v5665 = vadd.f32 %v5551, %v5664
    %v5666 = vpop.f32.mrf.mxu0
    %v5667 = vadd.f32 %v5553, %v5666
    %5668 = vmatprep.mubr.f32.mxu0 0.0
    %v5669 = vand.u32 %v380, 4294901760
    %v5670 = vsub.f32 %v380, %v5669
    %v5671 = vand.u32 %v5670, 4294901760
    %5672 = vmatmul.mubr.f32.gmra.mxu0 %v5671
    %v5673 = vpop.f32.mrf.mxu0
    %v5674 = vadd.f32 %v5559, %v5673
    %v5675 = vpop.f32.mrf.mxu0
    %v5676 = vadd.f32 %v5561, %v5675
    %5677 = vmatprep.mubr.f32.mxu0 0.0
    %v5678 = vand.u32 %v383, 4294901760
    %v5679 = vsub.f32 %v383, %v5678
    %v5680 = vand.u32 %v5679, 4294901760
    %5681 = vmatmul.mubr.f32.gmra.mxu0 %v5680
    %v5682 = vpop.f32.mrf.mxu0
    %v5683 = vadd.f32 %v5567, %v5682
    %v5684 = vpop.f32.mrf.mxu0
    %v5685 = vadd.f32 %v5569, %v5684
    %5686 = vmatprep.mubr.f32.mxu0 0.0
    %v5687 = vand.u32 %v386, 4294901760
    %v5688 = vsub.f32 %v386, %v5687
    %v5689 = vand.u32 %v5688, 4294901760
    %5690 = vmatmul.mubr.f32.gmra.mxu0 %v5689
    %v5691 = vpop.f32.mrf.mxu0
    %v5692 = vadd.f32 %v5575, %v5691
    %v5693 = vpop.f32.mrf.mxu0
    %v5694 = vadd.f32 %v5577, %v5693
    %5695 = vdwg.mxu0
    %5696 = vmatprep.subr.mxu0 0.0
    %5697 = vmatpush1.msra.mxu0 0.0
    %5698 = vmatprep.subr.mxu0 0.0
    %5699 = vmatpush1.msra.mxu0 0.0
    %5700 = vmatprep.subr.mxu0 0.0
    %5701 = vmatpush1.msra.mxu0 0.0
    %5702 = vmatprep.subr.mxu0 0.0
    %5703 = vmatpush1.msra.mxu0 0.0
    %5704 = vmatprep.subr.mxu0 0.0
    %5705 = vmatpush1.msra.mxu0 0.0
    %5706 = vmatprep.subr.mxu0 0.0
    %5707 = vmatpush1.msra.mxu0 0.0
    %5708 = vmatprep.subr.mxu0 0.0
    %5709 = vmatpush1.msra.mxu0 0.0
    %5710 = vmatprep.subr.mxu0 0.0
    %5711 = vmatpush1.msra.mxu0 0.0
    %v5712 = vand.u32 %v238, 4294901760
    %v5713 = vsub.f32 %v238, %v5712
    %v5714 = vand.u32 %v5713, 4294901760
    %5715 = vmatprep.subr.mxu0 %v5714
    %v5716 = vand.u32 %v237, 4294901760
    %v5717 = vsub.f32 %v237, %v5716
    %v5718 = vand.u32 %v5717, 4294901760
    %5719 = vmatpush1.msra.mxu0 %v5718
    %v5720 = vand.u32 %v214, 4294901760
    %v5721 = vsub.f32 %v214, %v5720
    %v5722 = vand.u32 %v5721, 4294901760
    %5723 = vmatprep.subr.mxu0 %v5722
    %v5724 = vand.u32 %v213, 4294901760
    %v5725 = vsub.f32 %v213, %v5724
    %v5726 = vand.u32 %v5725, 4294901760
    %5727 = vmatpush1.msra.mxu0 %v5726
    %v5728 = vand.u32 %v190, 4294901760
    %v5729 = vsub.f32 %v190, %v5728
    %v5730 = vand.u32 %v5729, 4294901760
    %5731 = vmatprep.subr.mxu0 %v5730
    %v5732 = vand.u32 %v189, 4294901760
    %v5733 = vsub.f32 %v189, %v5732
    %v5734 = vand.u32 %v5733, 4294901760
    %5735 = vmatpush1.msra.mxu0 %v5734
    %v5736 = vand.u32 %v166, 4294901760
    %v5737 = vsub.f32 %v166, %v5736
    %v5738 = vand.u32 %v5737, 4294901760
    %5739 = vmatprep.subr.mxu0 %v5738
    %v5740 = vand.u32 %v165, 4294901760
    %v5741 = vsub.f32 %v165, %v5740
    %v5742 = vand.u32 %v5741, 4294901760
    %5743 = vmatpush1.msra.mxu0 %v5742
    %v5744 = vand.u32 %v142, 4294901760
    %v5745 = vsub.f32 %v142, %v5744
    %v5746 = vand.u32 %v5745, 4294901760
    %5747 = vmatprep.subr.mxu0 %v5746
    %v5748 = vand.u32 %v141, 4294901760
    %v5749 = vsub.f32 %v141, %v5748
    %v5750 = vand.u32 %v5749, 4294901760
    %5751 = vmatpush1.msra.mxu0 %v5750
    %v5752 = vand.u32 %v118, 4294901760
    %v5753 = vsub.f32 %v118, %v5752
    %v5754 = vand.u32 %v5753, 4294901760
    %5755 = vmatprep.subr.mxu0 %v5754
    %v5756 = vand.u32 %v117, 4294901760
    %v5757 = vsub.f32 %v117, %v5756
    %v5758 = vand.u32 %v5757, 4294901760
    %5759 = vmatpush1.msra.mxu0 %v5758
    %v5760 = vand.u32 %v94, 4294901760
    %v5761 = vsub.f32 %v94, %v5760
    %v5762 = vand.u32 %v5761, 4294901760
    %5763 = vmatprep.subr.mxu0 %v5762
    %v5764 = vand.u32 %v93, 4294901760
    %v5765 = vsub.f32 %v93, %v5764
    %v5766 = vand.u32 %v5765, 4294901760
    %5767 = vmatpush1.msra.mxu0 %v5766
    %v5768 = vand.u32 %v70, 4294901760
    %v5769 = vsub.f32 %v70, %v5768
    %v5770 = vand.u32 %v5769, 4294901760
    %5771 = vmatprep.subr.mxu0 %v5770
    %v5772 = vand.u32 %v69, 4294901760
    %v5773 = vsub.f32 %v69, %v5772
    %v5774 = vand.u32 %v5773, 4294901760
    %5775 = vmatpush1.msra.mxu0 %v5774
    %5776 = vmatprep.subr.mxu0 0.0
    %5777 = vmatpush2.msra.mxu0 0.0
    %5778 = vmatprep.subr.mxu0 0.0
    %5779 = vmatpush2.msra.mxu0 0.0
    %5780 = vmatprep.subr.mxu0 0.0
    %5781 = vmatpush2.msra.mxu0 0.0
    %5782 = vmatprep.subr.mxu0 0.0
    %5783 = vmatpush2.msra.mxu0 0.0
    %5784 = vmatprep.subr.mxu0 0.0
    %5785 = vmatpush2.msra.mxu0 0.0
    %5786 = vmatprep.subr.mxu0 0.0
    %5787 = vmatpush2.msra.mxu0 0.0
    %5788 = vmatprep.subr.mxu0 0.0
    %5789 = vmatpush2.msra.mxu0 0.0
    %5790 = vmatprep.subr.mxu0 0.0
    %5791 = vmatpush2.msra.mxu0 0.0
    %5792 = vmatprep.subr.mxu0 0.0
    %5793 = vmatpush2.msra.mxu0 0.0
    %5794 = vmatprep.subr.mxu0 0.0
    %5795 = vmatpush2.msra.mxu0 0.0
    %5796 = vmatprep.subr.mxu0 0.0
    %5797 = vmatpush2.msra.mxu0 0.0
    %5798 = vmatprep.subr.mxu0 0.0
    %5799 = vmatpush2.msra.mxu0 0.0
    %5800 = vmatprep.subr.mxu0 0.0
    %5801 = vmatpush2.msra.mxu0 0.0
    %5802 = vmatprep.subr.mxu0 0.0
    %5803 = vmatpush2.msra.mxu0 0.0
    %5804 = vmatprep.subr.mxu0 0.0
    %5805 = vmatpush2.msra.mxu0 0.0
    %5806 = vmatprep.subr.mxu0 0.0
    %5807 = vmatpush2.msra.mxu0 0.0
    %5808 = vmatprep.mubr.f32.mxu0 0.0
    %v5809 = vand.u32 %v377, 4294901760
    %5810 = vmatmul.mubr.f32.gmra.mxu0 %v5809
    %v5811 = vpop.f32.mrf.mxu0
    %v5812 = vadd.f32 %v5665, %v5811
    %v5813 = vpop.f32.mrf.mxu0
    %v5814 = vadd.f32 %v5667, %v5813
    %5815 = vmatprep.mubr.f32.mxu0 0.0
    %v5816 = vand.u32 %v380, 4294901760
    %5817 = vmatmul.mubr.f32.gmra.mxu0 %v5816
    %v5818 = vpop.f32.mrf.mxu0
    %v5819 = vadd.f32 %v5674, %v5818
    %v5820 = vpop.f32.mrf.mxu0
    %v5821 = vadd.f32 %v5676, %v5820
    %5822 = vmatprep.mubr.f32.mxu0 0.0
    %v5823 = vand.u32 %v383, 4294901760
    %5824 = vmatmul.mubr.f32.gmra.mxu0 %v5823
    %v5825 = vpop.f32.mrf.mxu0
    %v5826 = vadd.f32 %v5683, %v5825
    %v5827 = vpop.f32.mrf.mxu0
    %v5828 = vadd.f32 %v5685, %v5827
    %5829 = vmatprep.mubr.f32.mxu0 0.0
    %v5830 = vand.u32 %v386, 4294901760
    %5831 = vmatmul.mubr.f32.gmra.mxu0 %v5830
    %v5832 = vpop.f32.mrf.mxu0
    %v5833 = vadd.f32 %v5692, %v5832
    %v5834 = vpop.f32.mrf.mxu0
    %v5835 = vadd.f32 %v5694, %v5834
    %5836 = vdwg.mxu0
    %5837 = vmatprep.subr.mxu0 0.0
    %5838 = vmatpush1.msra.mxu0 0.0
    %5839 = vmatprep.subr.mxu0 0.0
    %5840 = vmatpush1.msra.mxu0 0.0
    %5841 = vmatprep.subr.mxu0 0.0
    %5842 = vmatpush1.msra.mxu0 0.0
    %5843 = vmatprep.subr.mxu0 0.0
    %5844 = vmatpush1.msra.mxu0 0.0
    %5845 = vmatprep.subr.mxu0 0.0
    %5846 = vmatpush1.msra.mxu0 0.0
    %5847 = vmatprep.subr.mxu0 0.0
    %5848 = vmatpush1.msra.mxu0 0.0
    %5849 = vmatprep.subr.mxu0 0.0
    %5850 = vmatpush1.msra.mxu0 0.0
    %5851 = vmatprep.subr.mxu0 0.0
    %5852 = vmatpush1.msra.mxu0 0.0
    %v5853 = vand.u32 %v238, 4294901760
    %5854 = vmatprep.subr.mxu0 %v5853
    %v5855 = vand.u32 %v237, 4294901760
    %5856 = vmatpush1.msra.mxu0 %v5855
    %v5857 = vand.u32 %v214, 4294901760
    %5858 = vmatprep.subr.mxu0 %v5857
    %v5859 = vand.u32 %v213, 4294901760
    %5860 = vmatpush1.msra.mxu0 %v5859
    %v5861 = vand.u32 %v190, 4294901760
    %5862 = vmatprep.subr.mxu0 %v5861
    %v5863 = vand.u32 %v189, 4294901760
    %5864 = vmatpush1.msra.mxu0 %v5863
    %v5865 = vand.u32 %v166, 4294901760
    %5866 = vmatprep.subr.mxu0 %v5865
    %v5867 = vand.u32 %v165, 4294901760
    %5868 = vmatpush1.msra.mxu0 %v5867
    %v5869 = vand.u32 %v142, 4294901760
    %5870 = vmatprep.subr.mxu0 %v5869
    %v5871 = vand.u32 %v141, 4294901760
    %5872 = vmatpush1.msra.mxu0 %v5871
    %v5873 = vand.u32 %v118, 4294901760
    %5874 = vmatprep.subr.mxu0 %v5873
    %v5875 = vand.u32 %v117, 4294901760
    %5876 = vmatpush1.msra.mxu0 %v5875
    %v5877 = vand.u32 %v94, 4294901760
    %5878 = vmatprep.subr.mxu0 %v5877
    %v5879 = vand.u32 %v93, 4294901760
    %5880 = vmatpush1.msra.mxu0 %v5879
    %v5881 = vand.u32 %v70, 4294901760
    %5882 = vmatprep.subr.mxu0 %v5881
    %v5883 = vand.u32 %v69, 4294901760
    %5884 = vmatpush1.msra.mxu0 %v5883
    %5885 = vmatprep.subr.mxu0 0.0
    %5886 = vmatpush2.msra.mxu0 0.0
    %5887 = vmatprep.subr.mxu0 0.0
    %5888 = vmatpush2.msra.mxu0 0.0
    %5889 = vmatprep.subr.mxu0 0.0
    %5890 = vmatpush2.msra.mxu0 0.0
    %5891 = vmatprep.subr.mxu0 0.0
    %5892 = vmatpush2.msra.mxu0 0.0
    %5893 = vmatprep.subr.mxu0 0.0
    %5894 = vmatpush2.msra.mxu0 0.0
    %5895 = vmatprep.subr.mxu0 0.0
    %5896 = vmatpush2.msra.mxu0 0.0
    %5897 = vmatprep.subr.mxu0 0.0
    %5898 = vmatpush2.msra.mxu0 0.0
    %5899 = vmatprep.subr.mxu0 0.0
    %5900 = vmatpush2.msra.mxu0 0.0
    %5901 = vmatprep.subr.mxu0 0.0
    %5902 = vmatpush2.msra.mxu0 0.0
    %5903 = vmatprep.subr.mxu0 0.0
    %5904 = vmatpush2.msra.mxu0 0.0
    %5905 = vmatprep.subr.mxu0 0.0
    %5906 = vmatpush2.msra.mxu0 0.0
    %5907 = vmatprep.subr.mxu0 0.0
    %5908 = vmatpush2.msra.mxu0 0.0
    %5909 = vmatprep.subr.mxu0 0.0
    %5910 = vmatpush2.msra.mxu0 0.0
    %5911 = vmatprep.subr.mxu0 0.0
    %5912 = vmatpush2.msra.mxu0 0.0
    %5913 = vmatprep.subr.mxu0 0.0
    %5914 = vmatpush2.msra.mxu0 0.0
    %5915 = vmatprep.subr.mxu0 0.0
    %5916 = vmatpush2.msra.mxu0 0.0
    %5917 = vmatprep.mubr.f32.mxu0 0.0
    %v5918 = vand.u32 %v377, 4294901760
    %5919 = vmatmul.mubr.f32.gmra.mxu0 %v5918
    %v5920 = vpop.f32.mrf.mxu0
    %v5921 = vadd.f32 %v5812, %v5920
    %v5922 = vpop.f32.mrf.mxu0
    %v5923 = vadd.f32 %v5814, %v5922
    %5924 = vmatprep.mubr.f32.mxu0 0.0
    %v5925 = vand.u32 %v380, 4294901760
    %5926 = vmatmul.mubr.f32.gmra.mxu0 %v5925
    %v5927 = vpop.f32.mrf.mxu0
    %v5928 = vadd.f32 %v5819, %v5927
    %v5929 = vpop.f32.mrf.mxu0
    %v5930 = vadd.f32 %v5821, %v5929
    %5931 = vmatprep.mubr.f32.mxu0 0.0
    %v5932 = vand.u32 %v383, 4294901760
    %5933 = vmatmul.mubr.f32.gmra.mxu0 %v5932
    %v5934 = vpop.f32.mrf.mxu0
    %v5935 = vadd.f32 %v5826, %v5934
    %v5936 = vpop.f32.mrf.mxu0
    %v5937 = vadd.f32 %v5828, %v5936
    %5938 = vmatprep.mubr.f32.mxu0 0.0
    %v5939 = vand.u32 %v386, 4294901760
    %5940 = vmatmul.mubr.f32.gmra.mxu0 %v5939
    %v5941 = vpop.f32.mrf.mxu0
    %v5942 = vadd.f32 %v5833, %v5941
    %v5943 = vpop.f32.mrf.mxu0
    %v5944 = vadd.f32 %v5835, %v5943
    %5945 = vdwg.mxu0
    %5946 = vmatprep.subr.mxu0 0.0
    %5947 = vmatpush1.msra.mxu0 0.0
    %5948 = vmatprep.subr.mxu0 0.0
    %5949 = vmatpush1.msra.mxu0 0.0
    %5950 = vmatprep.subr.mxu0 0.0
    %5951 = vmatpush1.msra.mxu0 0.0
    %5952 = vmatprep.subr.mxu0 0.0
    %5953 = vmatpush1.msra.mxu0 0.0
    %5954 = vmatprep.subr.mxu0 0.0
    %5955 = vmatpush1.msra.mxu0 0.0
    %5956 = vmatprep.subr.mxu0 0.0
    %5957 = vmatpush1.msra.mxu0 0.0
    %5958 = vmatprep.subr.mxu0 0.0
    %5959 = vmatpush1.msra.mxu0 0.0
    %5960 = vmatprep.subr.mxu0 0.0
    %5961 = vmatpush1.msra.mxu0 0.0
    %v5962 = vand.u32 %v240, 4294901760
    %5963 = vmatprep.subr.mxu0 %v5962
    %v5964 = vand.u32 %v239, 4294901760
    %5965 = vmatpush1.msra.mxu0 %v5964
    %v5966 = vand.u32 %v216, 4294901760
    %5967 = vmatprep.subr.mxu0 %v5966
    %v5968 = vand.u32 %v215, 4294901760
    %5969 = vmatpush1.msra.mxu0 %v5968
    %v5970 = vand.u32 %v192, 4294901760
    %5971 = vmatprep.subr.mxu0 %v5970
    %v5972 = vand.u32 %v191, 4294901760
    %5973 = vmatpush1.msra.mxu0 %v5972
    %v5974 = vand.u32 %v168, 4294901760
    %5975 = vmatprep.subr.mxu0 %v5974
    %v5976 = vand.u32 %v167, 4294901760
    %5977 = vmatpush1.msra.mxu0 %v5976
    %v5978 = vand.u32 %v144, 4294901760
    %5979 = vmatprep.subr.mxu0 %v5978
    %v5980 = vand.u32 %v143, 4294901760
    %5981 = vmatpush1.msra.mxu0 %v5980
    %v5982 = vand.u32 %v120, 4294901760
    %5983 = vmatprep.subr.mxu0 %v5982
    %v5984 = vand.u32 %v119, 4294901760
    %5985 = vmatpush1.msra.mxu0 %v5984
    %v5986 = vand.u32 %v96, 4294901760
    %5987 = vmatprep.subr.mxu0 %v5986
    %v5988 = vand.u32 %v95, 4294901760
    %5989 = vmatpush1.msra.mxu0 %v5988
    %v5990 = vand.u32 %v72, 4294901760
    %5991 = vmatprep.subr.mxu0 %v5990
    %v5992 = vand.u32 %v71, 4294901760
    %5993 = vmatpush1.msra.mxu0 %v5992
    %5994 = vmatprep.subr.mxu0 0.0
    %5995 = vmatpush2.msra.mxu0 0.0
    %5996 = vmatprep.subr.mxu0 0.0
    %5997 = vmatpush2.msra.mxu0 0.0
    %5998 = vmatprep.subr.mxu0 0.0
    %5999 = vmatpush2.msra.mxu0 0.0
    %6000 = vmatprep.subr.mxu0 0.0
    %6001 = vmatpush2.msra.mxu0 0.0
    %6002 = vmatprep.subr.mxu0 0.0
    %6003 = vmatpush2.msra.mxu0 0.0
    %6004 = vmatprep.subr.mxu0 0.0
    %6005 = vmatpush2.msra.mxu0 0.0
    %6006 = vmatprep.subr.mxu0 0.0
    %6007 = vmatpush2.msra.mxu0 0.0
    %6008 = vmatprep.subr.mxu0 0.0
    %6009 = vmatpush2.msra.mxu0 0.0
    %6010 = vmatprep.subr.mxu0 0.0
    %6011 = vmatpush2.msra.mxu0 0.0
    %6012 = vmatprep.subr.mxu0 0.0
    %6013 = vmatpush2.msra.mxu0 0.0
    %6014 = vmatprep.subr.mxu0 0.0
    %6015 = vmatpush2.msra.mxu0 0.0
    %6016 = vmatprep.subr.mxu0 0.0
    %6017 = vmatpush2.msra.mxu0 0.0
    %6018 = vmatprep.subr.mxu0 0.0
    %6019 = vmatpush2.msra.mxu0 0.0
    %6020 = vmatprep.subr.mxu0 0.0
    %6021 = vmatpush2.msra.mxu0 0.0
    %6022 = vmatprep.subr.mxu0 0.0
    %6023 = vmatpush2.msra.mxu0 0.0
    %6024 = vmatprep.subr.mxu0 0.0
    %6025 = vmatpush2.msra.mxu0 0.0
    %6026 = vmatprep.mubr.f32.mxu0 0.0
    %v6027 = vand.u32 %v377, 4294901760
    %v6028 = vsub.f32 %v377, %v6027
    %v6029 = vand.u32 %v6028, 4294901760
    %v6030 = vsub.f32 %v6028, %v6029
    %v6031 = vand.u32 %v6030, 4294901760
    %6032 = vmatmul.mubr.f32.gmra.mxu0 %v6031
    %v6033 = vpop.f32.mrf.mxu0
    %v6034 = vadd.f32 %v314, %v6033
    %v6035 = vpop.f32.mrf.mxu0
    %v6036 = vadd.f32 %v318, %v6035
    %6037 = vmatprep.mubr.f32.mxu0 0.0
    %v6038 = vand.u32 %v380, 4294901760
    %v6039 = vsub.f32 %v380, %v6038
    %v6040 = vand.u32 %v6039, 4294901760
    %v6041 = vsub.f32 %v6039, %v6040
    %v6042 = vand.u32 %v6041, 4294901760
    %6043 = vmatmul.mubr.f32.gmra.mxu0 %v6042
    %v6044 = vpop.f32.mrf.mxu0
    %v6045 = vadd.f32 %v314, %v6044
    %v6046 = vpop.f32.mrf.mxu0
    %v6047 = vadd.f32 %v318, %v6046
    %6048 = vmatprep.mubr.f32.mxu0 0.0
    %v6049 = vand.u32 %v383, 4294901760
    %v6050 = vsub.f32 %v383, %v6049
    %v6051 = vand.u32 %v6050, 4294901760
    %v6052 = vsub.f32 %v6050, %v6051
    %v6053 = vand.u32 %v6052, 4294901760
    %6054 = vmatmul.mubr.f32.gmra.mxu0 %v6053
    %v6055 = vpop.f32.mrf.mxu0
    %v6056 = vadd.f32 %v314, %v6055
    %v6057 = vpop.f32.mrf.mxu0
    %v6058 = vadd.f32 %v318, %v6057
    %6059 = vmatprep.mubr.f32.mxu0 0.0
    %v6060 = vand.u32 %v386, 4294901760
    %v6061 = vsub.f32 %v386, %v6060
    %v6062 = vand.u32 %v6061, 4294901760
    %v6063 = vsub.f32 %v6061, %v6062
    %v6064 = vand.u32 %v6063, 4294901760
    %6065 = vmatmul.mubr.f32.gmra.mxu0 %v6064
    %v6066 = vpop.f32.mrf.mxu0
    %v6067 = vadd.f32 %v314, %v6066
    %v6068 = vpop.f32.mrf.mxu0
    %v6069 = vadd.f32 %v318, %v6068
    %6070 = vdwg.mxu0
    %6071 = vmatprep.subr.mxu0 0.0
    %6072 = vmatpush1.msra.mxu0 0.0
    %6073 = vmatprep.subr.mxu0 0.0
    %6074 = vmatpush1.msra.mxu0 0.0
    %6075 = vmatprep.subr.mxu0 0.0
    %6076 = vmatpush1.msra.mxu0 0.0
    %6077 = vmatprep.subr.mxu0 0.0
    %6078 = vmatpush1.msra.mxu0 0.0
    %6079 = vmatprep.subr.mxu0 0.0
    %6080 = vmatpush1.msra.mxu0 0.0
    %6081 = vmatprep.subr.mxu0 0.0
    %6082 = vmatpush1.msra.mxu0 0.0
    %6083 = vmatprep.subr.mxu0 0.0
    %6084 = vmatpush1.msra.mxu0 0.0
    %6085 = vmatprep.subr.mxu0 0.0
    %6086 = vmatpush1.msra.mxu0 0.0
    %v6087 = vand.u32 %v240, 4294901760
    %v6088 = vsub.f32 %v240, %v6087
    %v6089 = vand.u32 %v6088, 4294901760
    %v6090 = vsub.f32 %v6088, %v6089
    %v6091 = vand.u32 %v6090, 4294901760
    %6092 = vmatprep.subr.mxu0 %v6091
    %v6093 = vand.u32 %v239, 4294901760
    %v6094 = vsub.f32 %v239, %v6093
    %v6095 = vand.u32 %v6094, 4294901760
    %v6096 = vsub.f32 %v6094, %v6095
    %v6097 = vand.u32 %v6096, 4294901760
    %6098 = vmatpush1.msra.mxu0 %v6097
    %v6099 = vand.u32 %v216, 4294901760
    %v6100 = vsub.f32 %v216, %v6099
    %v6101 = vand.u32 %v6100, 4294901760
    %v6102 = vsub.f32 %v6100, %v6101
    %v6103 = vand.u32 %v6102, 4294901760
    %6104 = vmatprep.subr.mxu0 %v6103
    %v6105 = vand.u32 %v215, 4294901760
    %v6106 = vsub.f32 %v215, %v6105
    %v6107 = vand.u32 %v6106, 4294901760
    %v6108 = vsub.f32 %v6106, %v6107
    %v6109 = vand.u32 %v6108, 4294901760
    %6110 = vmatpush1.msra.mxu0 %v6109
    %v6111 = vand.u32 %v192, 4294901760
    %v6112 = vsub.f32 %v192, %v6111
    %v6113 = vand.u32 %v6112, 4294901760
    %v6114 = vsub.f32 %v6112, %v6113
    %v6115 = vand.u32 %v6114, 4294901760
    %6116 = vmatprep.subr.mxu0 %v6115
    %v6117 = vand.u32 %v191, 4294901760
    %v6118 = vsub.f32 %v191, %v6117
    %v6119 = vand.u32 %v6118, 4294901760
    %v6120 = vsub.f32 %v6118, %v6119
    %v6121 = vand.u32 %v6120, 4294901760
    %6122 = vmatpush1.msra.mxu0 %v6121
    %v6123 = vand.u32 %v168, 4294901760
    %v6124 = vsub.f32 %v168, %v6123
    %v6125 = vand.u32 %v6124, 4294901760
    %v6126 = vsub.f32 %v6124, %v6125
    %v6127 = vand.u32 %v6126, 4294901760
    %6128 = vmatprep.subr.mxu0 %v6127
    %v6129 = vand.u32 %v167, 4294901760
    %v6130 = vsub.f32 %v167, %v6129
    %v6131 = vand.u32 %v6130, 4294901760
    %v6132 = vsub.f32 %v6130, %v6131
    %v6133 = vand.u32 %v6132, 4294901760
    %6134 = vmatpush1.msra.mxu0 %v6133
    %v6135 = vand.u32 %v144, 4294901760
    %v6136 = vsub.f32 %v144, %v6135
    %v6137 = vand.u32 %v6136, 4294901760
    %v6138 = vsub.f32 %v6136, %v6137
    %v6139 = vand.u32 %v6138, 4294901760
    %6140 = vmatprep.subr.mxu0 %v6139
    %v6141 = vand.u32 %v143, 4294901760
    %v6142 = vsub.f32 %v143, %v6141
    %v6143 = vand.u32 %v6142, 4294901760
    %v6144 = vsub.f32 %v6142, %v6143
    %v6145 = vand.u32 %v6144, 4294901760
    %6146 = vmatpush1.msra.mxu0 %v6145
    %v6147 = vand.u32 %v120, 4294901760
    %v6148 = vsub.f32 %v120, %v6147
    %v6149 = vand.u32 %v6148, 4294901760
    %v6150 = vsub.f32 %v6148, %v6149
    %v6151 = vand.u32 %v6150, 4294901760
    %6152 = vmatprep.subr.mxu0 %v6151
    %v6153 = vand.u32 %v119, 4294901760
    %v6154 = vsub.f32 %v119, %v6153
    %v6155 = vand.u32 %v6154, 4294901760
    %v6156 = vsub.f32 %v6154, %v6155
    %v6157 = vand.u32 %v6156, 4294901760
    %6158 = vmatpush1.msra.mxu0 %v6157
    %v6159 = vand.u32 %v96, 4294901760
    %v6160 = vsub.f32 %v96, %v6159
    %v6161 = vand.u32 %v6160, 4294901760
    %v6162 = vsub.f32 %v6160, %v6161
    %v6163 = vand.u32 %v6162, 4294901760
    %6164 = vmatprep.subr.mxu0 %v6163
    %v6165 = vand.u32 %v95, 4294901760
    %v6166 = vsub.f32 %v95, %v6165
    %v6167 = vand.u32 %v6166, 4294901760
    %v6168 = vsub.f32 %v6166, %v6167
    %v6169 = vand.u32 %v6168, 4294901760
    %6170 = vmatpush1.msra.mxu0 %v6169
    %v6171 = vand.u32 %v72, 4294901760
    %v6172 = vsub.f32 %v72, %v6171
    %v6173 = vand.u32 %v6172, 4294901760
    %v6174 = vsub.f32 %v6172, %v6173
    %v6175 = vand.u32 %v6174, 4294901760
    %6176 = vmatprep.subr.mxu0 %v6175
    %v6177 = vand.u32 %v71, 4294901760
    %v6178 = vsub.f32 %v71, %v6177
    %v6179 = vand.u32 %v6178, 4294901760
    %v6180 = vsub.f32 %v6178, %v6179
    %v6181 = vand.u32 %v6180, 4294901760
    %6182 = vmatpush1.msra.mxu0 %v6181
    %6183 = vmatprep.subr.mxu0 0.0
    %6184 = vmatpush2.msra.mxu0 0.0
    %6185 = vmatprep.subr.mxu0 0.0
    %6186 = vmatpush2.msra.mxu0 0.0
    %6187 = vmatprep.subr.mxu0 0.0
    %6188 = vmatpush2.msra.mxu0 0.0
    %6189 = vmatprep.subr.mxu0 0.0
    %6190 = vmatpush2.msra.mxu0 0.0
    %6191 = vmatprep.subr.mxu0 0.0
    %6192 = vmatpush2.msra.mxu0 0.0
    %6193 = vmatprep.subr.mxu0 0.0
    %6194 = vmatpush2.msra.mxu0 0.0
    %6195 = vmatprep.subr.mxu0 0.0
    %6196 = vmatpush2.msra.mxu0 0.0
    %6197 = vmatprep.subr.mxu0 0.0
    %6198 = vmatpush2.msra.mxu0 0.0
    %6199 = vmatprep.subr.mxu0 0.0
    %6200 = vmatpush2.msra.mxu0 0.0
    %6201 = vmatprep.subr.mxu0 0.0
    %6202 = vmatpush2.msra.mxu0 0.0
    %6203 = vmatprep.subr.mxu0 0.0
    %6204 = vmatpush2.msra.mxu0 0.0
    %6205 = vmatprep.subr.mxu0 0.0
    %6206 = vmatpush2.msra.mxu0 0.0
    %6207 = vmatprep.subr.mxu0 0.0
    %6208 = vmatpush2.msra.mxu0 0.0
    %6209 = vmatprep.subr.mxu0 0.0
    %6210 = vmatpush2.msra.mxu0 0.0
    %6211 = vmatprep.subr.mxu0 0.0
    %6212 = vmatpush2.msra.mxu0 0.0
    %6213 = vmatprep.subr.mxu0 0.0
    %6214 = vmatpush2.msra.mxu0 0.0
    %6215 = vmatprep.mubr.f32.mxu0 0.0
    %v6216 = vand.u32 %v377, 4294901760
    %6217 = vmatmul.mubr.f32.gmra.mxu0 %v6216
    %v6218 = vpop.f32.mrf.mxu0
    %v6219 = vadd.f32 %v6034, %v6218
    %v6220 = vpop.f32.mrf.mxu0
    %v6221 = vadd.f32 %v6036, %v6220
    %6222 = vmatprep.mubr.f32.mxu0 0.0
    %v6223 = vand.u32 %v380, 4294901760
    %6224 = vmatmul.mubr.f32.gmra.mxu0 %v6223
    %v6225 = vpop.f32.mrf.mxu0
    %v6226 = vadd.f32 %v6045, %v6225
    %v6227 = vpop.f32.mrf.mxu0
    %v6228 = vadd.f32 %v6047, %v6227
    %6229 = vmatprep.mubr.f32.mxu0 0.0
    %v6230 = vand.u32 %v383, 4294901760
    %6231 = vmatmul.mubr.f32.gmra.mxu0 %v6230
    %v6232 = vpop.f32.mrf.mxu0
    %v6233 = vadd.f32 %v6056, %v6232
    %v6234 = vpop.f32.mrf.mxu0
    %v6235 = vadd.f32 %v6058, %v6234
    %6236 = vmatprep.mubr.f32.mxu0 0.0
    %v6237 = vand.u32 %v386, 4294901760
    %6238 = vmatmul.mubr.f32.gmra.mxu0 %v6237
    %v6239 = vpop.f32.mrf.mxu0
    %v6240 = vadd.f32 %v6067, %v6239
    %v6241 = vpop.f32.mrf.mxu0
    %v6242 = vadd.f32 %v6069, %v6241
    %6243 = vdwg.mxu0
    %6244 = vmatprep.subr.mxu0 0.0
    %6245 = vmatpush1.msra.mxu0 0.0
    %6246 = vmatprep.subr.mxu0 0.0
    %6247 = vmatpush1.msra.mxu0 0.0
    %6248 = vmatprep.subr.mxu0 0.0
    %6249 = vmatpush1.msra.mxu0 0.0
    %6250 = vmatprep.subr.mxu0 0.0
    %6251 = vmatpush1.msra.mxu0 0.0
    %6252 = vmatprep.subr.mxu0 0.0
    %6253 = vmatpush1.msra.mxu0 0.0
    %6254 = vmatprep.subr.mxu0 0.0
    %6255 = vmatpush1.msra.mxu0 0.0
    %6256 = vmatprep.subr.mxu0 0.0
    %6257 = vmatpush1.msra.mxu0 0.0
    %6258 = vmatprep.subr.mxu0 0.0
    %6259 = vmatpush1.msra.mxu0 0.0
    %v6260 = vand.u32 %v240, 4294901760
    %v6261 = vsub.f32 %v240, %v6260
    %6262 = vmatprep.subr.mxu0 %v6261
    %v6263 = vand.u32 %v239, 4294901760
    %v6264 = vsub.f32 %v239, %v6263
    %6265 = vmatpush1.msra.mxu0 %v6264
    %v6266 = vand.u32 %v216, 4294901760
    %v6267 = vsub.f32 %v216, %v6266
    %6268 = vmatprep.subr.mxu0 %v6267
    %v6269 = vand.u32 %v215, 4294901760
    %v6270 = vsub.f32 %v215, %v6269
    %6271 = vmatpush1.msra.mxu0 %v6270
    %v6272 = vand.u32 %v192, 4294901760
    %v6273 = vsub.f32 %v192, %v6272
    %6274 = vmatprep.subr.mxu0 %v6273
    %v6275 = vand.u32 %v191, 4294901760
    %v6276 = vsub.f32 %v191, %v6275
    %6277 = vmatpush1.msra.mxu0 %v6276
    %v6278 = vand.u32 %v168, 4294901760
    %v6279 = vsub.f32 %v168, %v6278
    %6280 = vmatprep.subr.mxu0 %v6279
    %v6281 = vand.u32 %v167, 4294901760
    %v6282 = vsub.f32 %v167, %v6281
    %6283 = vmatpush1.msra.mxu0 %v6282
    %v6284 = vand.u32 %v144, 4294901760
    %v6285 = vsub.f32 %v144, %v6284
    %6286 = vmatprep.subr.mxu0 %v6285
    %v6287 = vand.u32 %v143, 4294901760
    %v6288 = vsub.f32 %v143, %v6287
    %6289 = vmatpush1.msra.mxu0 %v6288
    %v6290 = vand.u32 %v120, 4294901760
    %v6291 = vsub.f32 %v120, %v6290
    %6292 = vmatprep.subr.mxu0 %v6291
    %v6293 = vand.u32 %v119, 4294901760
    %v6294 = vsub.f32 %v119, %v6293
    %6295 = vmatpush1.msra.mxu0 %v6294
    %v6296 = vand.u32 %v96, 4294901760
    %v6297 = vsub.f32 %v96, %v6296
    %6298 = vmatprep.subr.mxu0 %v6297
    %v6299 = vand.u32 %v95, 4294901760
    %v6300 = vsub.f32 %v95, %v6299
    %6301 = vmatpush1.msra.mxu0 %v6300
    %v6302 = vand.u32 %v72, 4294901760
    %v6303 = vsub.f32 %v72, %v6302
    %6304 = vmatprep.subr.mxu0 %v6303
    %v6305 = vand.u32 %v71, 4294901760
    %v6306 = vsub.f32 %v71, %v6305
    %6307 = vmatpush1.msra.mxu0 %v6306
    %6308 = vmatprep.subr.mxu0 0.0
    %6309 = vmatpush2.msra.mxu0 0.0
    %6310 = vmatprep.subr.mxu0 0.0
    %6311 = vmatpush2.msra.mxu0 0.0
    %6312 = vmatprep.subr.mxu0 0.0
    %6313 = vmatpush2.msra.mxu0 0.0
    %6314 = vmatprep.subr.mxu0 0.0
    %6315 = vmatpush2.msra.mxu0 0.0
    %6316 = vmatprep.subr.mxu0 0.0
    %6317 = vmatpush2.msra.mxu0 0.0
    %6318 = vmatprep.subr.mxu0 0.0
    %6319 = vmatpush2.msra.mxu0 0.0
    %6320 = vmatprep.subr.mxu0 0.0
    %6321 = vmatpush2.msra.mxu0 0.0
    %6322 = vmatprep.subr.mxu0 0.0
    %6323 = vmatpush2.msra.mxu0 0.0
    %6324 = vmatprep.subr.mxu0 0.0
    %6325 = vmatpush2.msra.mxu0 0.0
    %6326 = vmatprep.subr.mxu0 0.0
    %6327 = vmatpush2.msra.mxu0 0.0
    %6328 = vmatprep.subr.mxu0 0.0
    %6329 = vmatpush2.msra.mxu0 0.0
    %6330 = vmatprep.subr.mxu0 0.0
    %6331 = vmatpush2.msra.mxu0 0.0
    %6332 = vmatprep.subr.mxu0 0.0
    %6333 = vmatpush2.msra.mxu0 0.0
    %6334 = vmatprep.subr.mxu0 0.0
    %6335 = vmatpush2.msra.mxu0 0.0
    %6336 = vmatprep.subr.mxu0 0.0
    %6337 = vmatpush2.msra.mxu0 0.0
    %6338 = vmatprep.subr.mxu0 0.0
    %6339 = vmatpush2.msra.mxu0 0.0
    %6340 = vmatprep.mubr.f32.mxu0 0.0
    %v6341 = vand.u32 %v377, 4294901760
    %v6342 = vsub.f32 %v377, %v6341
    %6343 = vmatmul.mubr.f32.gmra.mxu0 %v6342
    %v6344 = vpop.f32.mrf.mxu0
    %v6345 = vadd.f32 %v6219, %v6344
    %v6346 = vpop.f32.mrf.mxu0
    %v6347 = vadd.f32 %v6221, %v6346
    %6348 = vmatprep.mubr.f32.mxu0 0.0
    %v6349 = vand.u32 %v380, 4294901760
    %v6350 = vsub.f32 %v380, %v6349
    %6351 = vmatmul.mubr.f32.gmra.mxu0 %v6350
    %v6352 = vpop.f32.mrf.mxu0
    %v6353 = vadd.f32 %v6226, %v6352
    %v6354 = vpop.f32.mrf.mxu0
    %v6355 = vadd.f32 %v6228, %v6354
    %6356 = vmatprep.mubr.f32.mxu0 0.0
    %v6357 = vand.u32 %v383, 4294901760
    %v6358 = vsub.f32 %v383, %v6357
    %6359 = vmatmul.mubr.f32.gmra.mxu0 %v6358
    %v6360 = vpop.f32.mrf.mxu0
    %v6361 = vadd.f32 %v6233, %v6360
    %v6362 = vpop.f32.mrf.mxu0
    %v6363 = vadd.f32 %v6235, %v6362
    %6364 = vmatprep.mubr.f32.mxu0 0.0
    %v6365 = vand.u32 %v386, 4294901760
    %v6366 = vsub.f32 %v386, %v6365
    %6367 = vmatmul.mubr.f32.gmra.mxu0 %v6366
    %v6368 = vpop.f32.mrf.mxu0
    %v6369 = vadd.f32 %v6240, %v6368
    %v6370 = vpop.f32.mrf.mxu0
    %v6371 = vadd.f32 %v6242, %v6370
    %6372 = vdwg.mxu0
    %6373 = vmatprep.subr.mxu0 0.0
    %6374 = vmatpush1.msra.mxu0 0.0
    %6375 = vmatprep.subr.mxu0 0.0
    %6376 = vmatpush1.msra.mxu0 0.0
    %6377 = vmatprep.subr.mxu0 0.0
    %6378 = vmatpush1.msra.mxu0 0.0
    %6379 = vmatprep.subr.mxu0 0.0
    %6380 = vmatpush1.msra.mxu0 0.0
    %6381 = vmatprep.subr.mxu0 0.0
    %6382 = vmatpush1.msra.mxu0 0.0
    %6383 = vmatprep.subr.mxu0 0.0
    %6384 = vmatpush1.msra.mxu0 0.0
    %6385 = vmatprep.subr.mxu0 0.0
    %6386 = vmatpush1.msra.mxu0 0.0
    %6387 = vmatprep.subr.mxu0 0.0
    %6388 = vmatpush1.msra.mxu0 0.0
    %v6389 = vand.u32 %v240, 4294901760
    %6390 = vmatprep.subr.mxu0 %v6389
    %v6391 = vand.u32 %v239, 4294901760
    %6392 = vmatpush1.msra.mxu0 %v6391
    %v6393 = vand.u32 %v216, 4294901760
    %6394 = vmatprep.subr.mxu0 %v6393
    %v6395 = vand.u32 %v215, 4294901760
    %6396 = vmatpush1.msra.mxu0 %v6395
    %v6397 = vand.u32 %v192, 4294901760
    %6398 = vmatprep.subr.mxu0 %v6397
    %v6399 = vand.u32 %v191, 4294901760
    %6400 = vmatpush1.msra.mxu0 %v6399
    %v6401 = vand.u32 %v168, 4294901760
    %6402 = vmatprep.subr.mxu0 %v6401
    %v6403 = vand.u32 %v167, 4294901760
    %6404 = vmatpush1.msra.mxu0 %v6403
    %v6405 = vand.u32 %v144, 4294901760
    %6406 = vmatprep.subr.mxu0 %v6405
    %v6407 = vand.u32 %v143, 4294901760
    %6408 = vmatpush1.msra.mxu0 %v6407
    %v6409 = vand.u32 %v120, 4294901760
    %6410 = vmatprep.subr.mxu0 %v6409
    %v6411 = vand.u32 %v119, 4294901760
    %6412 = vmatpush1.msra.mxu0 %v6411
    %v6413 = vand.u32 %v96, 4294901760
    %6414 = vmatprep.subr.mxu0 %v6413
    %v6415 = vand.u32 %v95, 4294901760
    %6416 = vmatpush1.msra.mxu0 %v6415
    %v6417 = vand.u32 %v72, 4294901760
    %6418 = vmatprep.subr.mxu0 %v6417
    %v6419 = vand.u32 %v71, 4294901760
    %6420 = vmatpush1.msra.mxu0 %v6419
    %6421 = vmatprep.subr.mxu0 0.0
    %6422 = vmatpush2.msra.mxu0 0.0
    %6423 = vmatprep.subr.mxu0 0.0
    %6424 = vmatpush2.msra.mxu0 0.0
    %6425 = vmatprep.subr.mxu0 0.0
    %6426 = vmatpush2.msra.mxu0 0.0
    %6427 = vmatprep.subr.mxu0 0.0
    %6428 = vmatpush2.msra.mxu0 0.0
    %6429 = vmatprep.subr.mxu0 0.0
    %6430 = vmatpush2.msra.mxu0 0.0
    %6431 = vmatprep.subr.mxu0 0.0
    %6432 = vmatpush2.msra.mxu0 0.0
    %6433 = vmatprep.subr.mxu0 0.0
    %6434 = vmatpush2.msra.mxu0 0.0
    %6435 = vmatprep.subr.mxu0 0.0
    %6436 = vmatpush2.msra.mxu0 0.0
    %6437 = vmatprep.subr.mxu0 0.0
    %6438 = vmatpush2.msra.mxu0 0.0
    %6439 = vmatprep.subr.mxu0 0.0
    %6440 = vmatpush2.msra.mxu0 0.0
    %6441 = vmatprep.subr.mxu0 0.0
    %6442 = vmatpush2.msra.mxu0 0.0
    %6443 = vmatprep.subr.mxu0 0.0
    %6444 = vmatpush2.msra.mxu0 0.0
    %6445 = vmatprep.subr.mxu0 0.0
    %6446 = vmatpush2.msra.mxu0 0.0
    %6447 = vmatprep.subr.mxu0 0.0
    %6448 = vmatpush2.msra.mxu0 0.0
    %6449 = vmatprep.subr.mxu0 0.0
    %6450 = vmatpush2.msra.mxu0 0.0
    %6451 = vmatprep.subr.mxu0 0.0
    %6452 = vmatpush2.msra.mxu0 0.0
    %6453 = vmatprep.mubr.f32.mxu0 0.0
    %v6454 = vand.u32 %v377, 4294901760
    %v6455 = vsub.f32 %v377, %v6454
    %v6456 = vand.u32 %v6455, 4294901760
    %6457 = vmatmul.mubr.f32.gmra.mxu0 %v6456
    %v6458 = vpop.f32.mrf.mxu0
    %v6459 = vadd.f32 %v6345, %v6458
    %v6460 = vpop.f32.mrf.mxu0
    %v6461 = vadd.f32 %v6347, %v6460
    %6462 = vmatprep.mubr.f32.mxu0 0.0
    %v6463 = vand.u32 %v380, 4294901760
    %v6464 = vsub.f32 %v380, %v6463
    %v6465 = vand.u32 %v6464, 4294901760
    %6466 = vmatmul.mubr.f32.gmra.mxu0 %v6465
    %v6467 = vpop.f32.mrf.mxu0
    %v6468 = vadd.f32 %v6353, %v6467
    %v6469 = vpop.f32.mrf.mxu0
    %v6470 = vadd.f32 %v6355, %v6469
    %6471 = vmatprep.mubr.f32.mxu0 0.0
    %v6472 = vand.u32 %v383, 4294901760
    %v6473 = vsub.f32 %v383, %v6472
    %v6474 = vand.u32 %v6473, 4294901760
    %6475 = vmatmul.mubr.f32.gmra.mxu0 %v6474
    %v6476 = vpop.f32.mrf.mxu0
    %v6477 = vadd.f32 %v6361, %v6476
    %v6478 = vpop.f32.mrf.mxu0
    %v6479 = vadd.f32 %v6363, %v6478
    %6480 = vmatprep.mubr.f32.mxu0 0.0
    %v6481 = vand.u32 %v386, 4294901760
    %v6482 = vsub.f32 %v386, %v6481
    %v6483 = vand.u32 %v6482, 4294901760
    %6484 = vmatmul.mubr.f32.gmra.mxu0 %v6483
    %v6485 = vpop.f32.mrf.mxu0
    %v6486 = vadd.f32 %v6369, %v6485
    %v6487 = vpop.f32.mrf.mxu0
    %v6488 = vadd.f32 %v6371, %v6487
    %6489 = vdwg.mxu0
    %6490 = vmatprep.subr.mxu0 0.0
    %6491 = vmatpush1.msra.mxu0 0.0
    %6492 = vmatprep.subr.mxu0 0.0
    %6493 = vmatpush1.msra.mxu0 0.0
    %6494 = vmatprep.subr.mxu0 0.0
    %6495 = vmatpush1.msra.mxu0 0.0
    %6496 = vmatprep.subr.mxu0 0.0
    %6497 = vmatpush1.msra.mxu0 0.0
    %6498 = vmatprep.subr.mxu0 0.0
    %6499 = vmatpush1.msra.mxu0 0.0
    %6500 = vmatprep.subr.mxu0 0.0
    %6501 = vmatpush1.msra.mxu0 0.0
    %6502 = vmatprep.subr.mxu0 0.0
    %6503 = vmatpush1.msra.mxu0 0.0
    %6504 = vmatprep.subr.mxu0 0.0
    %6505 = vmatpush1.msra.mxu0 0.0
    %v6506 = vand.u32 %v240, 4294901760
    %v6507 = vsub.f32 %v240, %v6506
    %v6508 = vand.u32 %v6507, 4294901760
    %6509 = vmatprep.subr.mxu0 %v6508
    %v6510 = vand.u32 %v239, 4294901760
    %v6511 = vsub.f32 %v239, %v6510
    %v6512 = vand.u32 %v6511, 4294901760
    %6513 = vmatpush1.msra.mxu0 %v6512
    %v6514 = vand.u32 %v216, 4294901760
    %v6515 = vsub.f32 %v216, %v6514
    %v6516 = vand.u32 %v6515, 4294901760
    %6517 = vmatprep.subr.mxu0 %v6516
    %v6518 = vand.u32 %v215, 4294901760
    %v6519 = vsub.f32 %v215, %v6518
    %v6520 = vand.u32 %v6519, 4294901760
    %6521 = vmatpush1.msra.mxu0 %v6520
    %v6522 = vand.u32 %v192, 4294901760
    %v6523 = vsub.f32 %v192, %v6522
    %v6524 = vand.u32 %v6523, 4294901760
    %6525 = vmatprep.subr.mxu0 %v6524
    %v6526 = vand.u32 %v191, 4294901760
    %v6527 = vsub.f32 %v191, %v6526
    %v6528 = vand.u32 %v6527, 4294901760
    %6529 = vmatpush1.msra.mxu0 %v6528
    %v6530 = vand.u32 %v168, 4294901760
    %v6531 = vsub.f32 %v168, %v6530
    %v6532 = vand.u32 %v6531, 4294901760
    %6533 = vmatprep.subr.mxu0 %v6532
    %v6534 = vand.u32 %v167, 4294901760
    %v6535 = vsub.f32 %v167, %v6534
    %v6536 = vand.u32 %v6535, 4294901760
    %6537 = vmatpush1.msra.mxu0 %v6536
    %v6538 = vand.u32 %v144, 4294901760
    %v6539 = vsub.f32 %v144, %v6538
    %v6540 = vand.u32 %v6539, 4294901760
    %6541 = vmatprep.subr.mxu0 %v6540
    %v6542 = vand.u32 %v143, 4294901760
    %v6543 = vsub.f32 %v143, %v6542
    %v6544 = vand.u32 %v6543, 4294901760
    %6545 = vmatpush1.msra.mxu0 %v6544
    %v6546 = vand.u32 %v120, 4294901760
    %v6547 = vsub.f32 %v120, %v6546
    %v6548 = vand.u32 %v6547, 4294901760
    %6549 = vmatprep.subr.mxu0 %v6548
    %v6550 = vand.u32 %v119, 4294901760
    %v6551 = vsub.f32 %v119, %v6550
    %v6552 = vand.u32 %v6551, 4294901760
    %6553 = vmatpush1.msra.mxu0 %v6552
    %v6554 = vand.u32 %v96, 4294901760
    %v6555 = vsub.f32 %v96, %v6554
    %v6556 = vand.u32 %v6555, 4294901760
    %6557 = vmatprep.subr.mxu0 %v6556
    %v6558 = vand.u32 %v95, 4294901760
    %v6559 = vsub.f32 %v95, %v6558
    %v6560 = vand.u32 %v6559, 4294901760
    %6561 = vmatpush1.msra.mxu0 %v6560
    %v6562 = vand.u32 %v72, 4294901760
    %v6563 = vsub.f32 %v72, %v6562
    %v6564 = vand.u32 %v6563, 4294901760
    %6565 = vmatprep.subr.mxu0 %v6564
    %v6566 = vand.u32 %v71, 4294901760
    %v6567 = vsub.f32 %v71, %v6566
    %v6568 = vand.u32 %v6567, 4294901760
    %6569 = vmatpush1.msra.mxu0 %v6568
    %6570 = vmatprep.subr.mxu0 0.0
    %6571 = vmatpush2.msra.mxu0 0.0
    %6572 = vmatprep.subr.mxu0 0.0
    %6573 = vmatpush2.msra.mxu0 0.0
    %6574 = vmatprep.subr.mxu0 0.0
    %6575 = vmatpush2.msra.mxu0 0.0
    %6576 = vmatprep.subr.mxu0 0.0
    %6577 = vmatpush2.msra.mxu0 0.0
    %6578 = vmatprep.subr.mxu0 0.0
    %6579 = vmatpush2.msra.mxu0 0.0
    %6580 = vmatprep.subr.mxu0 0.0
    %6581 = vmatpush2.msra.mxu0 0.0
    %6582 = vmatprep.subr.mxu0 0.0
    %6583 = vmatpush2.msra.mxu0 0.0
    %6584 = vmatprep.subr.mxu0 0.0
    %6585 = vmatpush2.msra.mxu0 0.0
    %6586 = vmatprep.subr.mxu0 0.0
    %6587 = vmatpush2.msra.mxu0 0.0
    %6588 = vmatprep.subr.mxu0 0.0
    %6589 = vmatpush2.msra.mxu0 0.0
    %6590 = vmatprep.subr.mxu0 0.0
    %6591 = vmatpush2.msra.mxu0 0.0
    %6592 = vmatprep.subr.mxu0 0.0
    %6593 = vmatpush2.msra.mxu0 0.0
    %6594 = vmatprep.subr.mxu0 0.0
    %6595 = vmatpush2.msra.mxu0 0.0
    %6596 = vmatprep.subr.mxu0 0.0
    %6597 = vmatpush2.msra.mxu0 0.0
    %6598 = vmatprep.subr.mxu0 0.0
    %6599 = vmatpush2.msra.mxu0 0.0
    %6600 = vmatprep.subr.mxu0 0.0
    %6601 = vmatpush2.msra.mxu0 0.0
    %6602 = vmatprep.mubr.f32.mxu0 0.0
    %v6603 = vand.u32 %v377, 4294901760
    %6604 = vmatmul.mubr.f32.gmra.mxu0 %v6603
    %v6605 = vpop.f32.mrf.mxu0
    %v6606 = vadd.f32 %v6459, %v6605
    %v6607 = vpop.f32.mrf.mxu0
    %v6608 = vadd.f32 %v6461, %v6607
    %6609 = vmatprep.mubr.f32.mxu0 0.0
    %v6610 = vand.u32 %v380, 4294901760
    %6611 = vmatmul.mubr.f32.gmra.mxu0 %v6610
    %v6612 = vpop.f32.mrf.mxu0
    %v6613 = vadd.f32 %v6468, %v6612
    %v6614 = vpop.f32.mrf.mxu0
    %v6615 = vadd.f32 %v6470, %v6614
    %6616 = vmatprep.mubr.f32.mxu0 0.0
    %v6617 = vand.u32 %v383, 4294901760
    %6618 = vmatmul.mubr.f32.gmra.mxu0 %v6617
    %v6619 = vpop.f32.mrf.mxu0
    %v6620 = vadd.f32 %v6477, %v6619
    %v6621 = vpop.f32.mrf.mxu0
    %v6622 = vadd.f32 %v6479, %v6621
    %6623 = vmatprep.mubr.f32.mxu0 0.0
    %v6624 = vand.u32 %v386, 4294901760
    %6625 = vmatmul.mubr.f32.gmra.mxu0 %v6624
    %v6626 = vpop.f32.mrf.mxu0
    %v6627 = vadd.f32 %v6486, %v6626
    %v6628 = vpop.f32.mrf.mxu0
    %v6629 = vadd.f32 %v6488, %v6628
    %6630 = vdwg.mxu0
    %6631 = vmatprep.subr.mxu0 0.0
    %6632 = vmatpush1.msra.mxu0 0.0
    %6633 = vmatprep.subr.mxu0 0.0
    %6634 = vmatpush1.msra.mxu0 0.0
    %6635 = vmatprep.subr.mxu0 0.0
    %6636 = vmatpush1.msra.mxu0 0.0
    %6637 = vmatprep.subr.mxu0 0.0
    %6638 = vmatpush1.msra.mxu0 0.0
    %6639 = vmatprep.subr.mxu0 0.0
    %6640 = vmatpush1.msra.mxu0 0.0
    %6641 = vmatprep.subr.mxu0 0.0
    %6642 = vmatpush1.msra.mxu0 0.0
    %6643 = vmatprep.subr.mxu0 0.0
    %6644 = vmatpush1.msra.mxu0 0.0
    %6645 = vmatprep.subr.mxu0 0.0
    %6646 = vmatpush1.msra.mxu0 0.0
    %v6647 = vand.u32 %v240, 4294901760
    %6648 = vmatprep.subr.mxu0 %v6647
    %v6649 = vand.u32 %v239, 4294901760
    %6650 = vmatpush1.msra.mxu0 %v6649
    %v6651 = vand.u32 %v216, 4294901760
    %6652 = vmatprep.subr.mxu0 %v6651
    %v6653 = vand.u32 %v215, 4294901760
    %6654 = vmatpush1.msra.mxu0 %v6653
    %v6655 = vand.u32 %v192, 4294901760
    %6656 = vmatprep.subr.mxu0 %v6655
    %v6657 = vand.u32 %v191, 4294901760
    %6658 = vmatpush1.msra.mxu0 %v6657
    %v6659 = vand.u32 %v168, 4294901760
    %6660 = vmatprep.subr.mxu0 %v6659
    %v6661 = vand.u32 %v167, 4294901760
    %6662 = vmatpush1.msra.mxu0 %v6661
    %v6663 = vand.u32 %v144, 4294901760
    %6664 = vmatprep.subr.mxu0 %v6663
    %v6665 = vand.u32 %v143, 4294901760
    %6666 = vmatpush1.msra.mxu0 %v6665
    %v6667 = vand.u32 %v120, 4294901760
    %6668 = vmatprep.subr.mxu0 %v6667
    %v6669 = vand.u32 %v119, 4294901760
    %6670 = vmatpush1.msra.mxu0 %v6669
    %v6671 = vand.u32 %v96, 4294901760
    %6672 = vmatprep.subr.mxu0 %v6671
    %v6673 = vand.u32 %v95, 4294901760
    %6674 = vmatpush1.msra.mxu0 %v6673
    %v6675 = vand.u32 %v72, 4294901760
    %6676 = vmatprep.subr.mxu0 %v6675
    %v6677 = vand.u32 %v71, 4294901760
    %6678 = vmatpush1.msra.mxu0 %v6677
    %6679 = vmatprep.subr.mxu0 0.0
    %6680 = vmatpush2.msra.mxu0 0.0
    %6681 = vmatprep.subr.mxu0 0.0
    %6682 = vmatpush2.msra.mxu0 0.0
    %6683 = vmatprep.subr.mxu0 0.0
    %6684 = vmatpush2.msra.mxu0 0.0
    %6685 = vmatprep.subr.mxu0 0.0
    %6686 = vmatpush2.msra.mxu0 0.0
    %6687 = vmatprep.subr.mxu0 0.0
    %6688 = vmatpush2.msra.mxu0 0.0
    %6689 = vmatprep.subr.mxu0 0.0
    %6690 = vmatpush2.msra.mxu0 0.0
    %6691 = vmatprep.subr.mxu0 0.0
    %6692 = vmatpush2.msra.mxu0 0.0
    %6693 = vmatprep.subr.mxu0 0.0
    %6694 = vmatpush2.msra.mxu0 0.0
    %6695 = vmatprep.subr.mxu0 0.0
    %6696 = vmatpush2.msra.mxu0 0.0
    %6697 = vmatprep.subr.mxu0 0.0
    %6698 = vmatpush2.msra.mxu0 0.0
    %6699 = vmatprep.subr.mxu0 0.0
    %6700 = vmatpush2.msra.mxu0 0.0
    %6701 = vmatprep.subr.mxu0 0.0
    %6702 = vmatpush2.msra.mxu0 0.0
    %6703 = vmatprep.subr.mxu0 0.0
    %6704 = vmatpush2.msra.mxu0 0.0
    %6705 = vmatprep.subr.mxu0 0.0
    %6706 = vmatpush2.msra.mxu0 0.0
    %6707 = vmatprep.subr.mxu0 0.0
    %6708 = vmatpush2.msra.mxu0 0.0
    %6709 = vmatprep.subr.mxu0 0.0
    %6710 = vmatpush2.msra.mxu0 0.0
    %6711 = vmatprep.mubr.f32.mxu0 0.0
    %v6712 = vand.u32 %v377, 4294901760
    %6713 = vmatmul.mubr.f32.gmra.mxu0 %v6712
    %v6714 = vpop.f32.mrf.mxu0
    %v6715 = vadd.f32 %v6606, %v6714
    %v6716 = vpop.f32.mrf.mxu0
    %v6717 = vadd.f32 %v6608, %v6716
    %6718 = vmatprep.mubr.f32.mxu0 0.0
    %v6719 = vand.u32 %v380, 4294901760
    %6720 = vmatmul.mubr.f32.gmra.mxu0 %v6719
    %v6721 = vpop.f32.mrf.mxu0
    %v6722 = vadd.f32 %v6613, %v6721
    %v6723 = vpop.f32.mrf.mxu0
    %v6724 = vadd.f32 %v6615, %v6723
    %6725 = vmatprep.mubr.f32.mxu0 0.0
    %v6726 = vand.u32 %v383, 4294901760
    %6727 = vmatmul.mubr.f32.gmra.mxu0 %v6726
    %v6728 = vpop.f32.mrf.mxu0
    %v6729 = vadd.f32 %v6620, %v6728
    %v6730 = vpop.f32.mrf.mxu0
    %v6731 = vadd.f32 %v6622, %v6730
    %6732 = vmatprep.mubr.f32.mxu0 0.0
    %v6733 = vand.u32 %v386, 4294901760
    %6734 = vmatmul.mubr.f32.gmra.mxu0 %v6733
    %v6735 = vpop.f32.mrf.mxu0
    %v6736 = vadd.f32 %v6627, %v6735
    %v6737 = vpop.f32.mrf.mxu0
    %v6738 = vadd.f32 %v6629, %v6737
    %6739 = vdwg.mxu0
    %6740 = vmatprep.subr.mxu0 0.0
    %6741 = vmatpush1.msra.mxu0 0.0
    %6742 = vmatprep.subr.mxu0 0.0
    %6743 = vmatpush1.msra.mxu0 0.0
    %6744 = vmatprep.subr.mxu0 0.0
    %6745 = vmatpush1.msra.mxu0 0.0
    %6746 = vmatprep.subr.mxu0 0.0
    %6747 = vmatpush1.msra.mxu0 0.0
    %6748 = vmatprep.subr.mxu0 0.0
    %6749 = vmatpush1.msra.mxu0 0.0
    %6750 = vmatprep.subr.mxu0 0.0
    %6751 = vmatpush1.msra.mxu0 0.0
    %6752 = vmatprep.subr.mxu0 0.0
    %6753 = vmatpush1.msra.mxu0 0.0
    %6754 = vmatprep.subr.mxu0 0.0
    %6755 = vmatpush1.msra.mxu0 0.0
    %v6756 = vand.u32 %v242, 4294901760
    %6757 = vmatprep.subr.mxu0 %v6756
    %v6758 = vand.u32 %v241, 4294901760
    %6759 = vmatpush1.msra.mxu0 %v6758
    %v6760 = vand.u32 %v218, 4294901760
    %6761 = vmatprep.subr.mxu0 %v6760
    %v6762 = vand.u32 %v217, 4294901760
    %6763 = vmatpush1.msra.mxu0 %v6762
    %v6764 = vand.u32 %v194, 4294901760
    %6765 = vmatprep.subr.mxu0 %v6764
    %v6766 = vand.u32 %v193, 4294901760
    %6767 = vmatpush1.msra.mxu0 %v6766
    %v6768 = vand.u32 %v170, 4294901760
    %6769 = vmatprep.subr.mxu0 %v6768
    %v6770 = vand.u32 %v169, 4294901760
    %6771 = vmatpush1.msra.mxu0 %v6770
    %v6772 = vand.u32 %v146, 4294901760
    %6773 = vmatprep.subr.mxu0 %v6772
    %v6774 = vand.u32 %v145, 4294901760
    %6775 = vmatpush1.msra.mxu0 %v6774
    %v6776 = vand.u32 %v122, 4294901760
    %6777 = vmatprep.subr.mxu0 %v6776
    %v6778 = vand.u32 %v121, 4294901760
    %6779 = vmatpush1.msra.mxu0 %v6778
    %v6780 = vand.u32 %v98, 4294901760
    %6781 = vmatprep.subr.mxu0 %v6780
    %v6782 = vand.u32 %v97, 4294901760
    %6783 = vmatpush1.msra.mxu0 %v6782
    %v6784 = vand.u32 %v74, 4294901760
    %6785 = vmatprep.subr.mxu0 %v6784
    %v6786 = vand.u32 %v73, 4294901760
    %6787 = vmatpush1.msra.mxu0 %v6786
    %6788 = vmatprep.subr.mxu0 0.0
    %6789 = vmatpush2.msra.mxu0 0.0
    %6790 = vmatprep.subr.mxu0 0.0
    %6791 = vmatpush2.msra.mxu0 0.0
    %6792 = vmatprep.subr.mxu0 0.0
    %6793 = vmatpush2.msra.mxu0 0.0
    %6794 = vmatprep.subr.mxu0 0.0
    %6795 = vmatpush2.msra.mxu0 0.0
    %6796 = vmatprep.subr.mxu0 0.0
    %6797 = vmatpush2.msra.mxu0 0.0
    %6798 = vmatprep.subr.mxu0 0.0
    %6799 = vmatpush2.msra.mxu0 0.0
    %6800 = vmatprep.subr.mxu0 0.0
    %6801 = vmatpush2.msra.mxu0 0.0
    %6802 = vmatprep.subr.mxu0 0.0
    %6803 = vmatpush2.msra.mxu0 0.0
    %6804 = vmatprep.subr.mxu0 0.0
    %6805 = vmatpush2.msra.mxu0 0.0
    %6806 = vmatprep.subr.mxu0 0.0
    %6807 = vmatpush2.msra.mxu0 0.0
    %6808 = vmatprep.subr.mxu0 0.0
    %6809 = vmatpush2.msra.mxu0 0.0
    %6810 = vmatprep.subr.mxu0 0.0
    %6811 = vmatpush2.msra.mxu0 0.0
    %6812 = vmatprep.subr.mxu0 0.0
    %6813 = vmatpush2.msra.mxu0 0.0
    %6814 = vmatprep.subr.mxu0 0.0
    %6815 = vmatpush2.msra.mxu0 0.0
    %6816 = vmatprep.subr.mxu0 0.0
    %6817 = vmatpush2.msra.mxu0 0.0
    %6818 = vmatprep.subr.mxu0 0.0
    %6819 = vmatpush2.msra.mxu0 0.0
    %6820 = vmatprep.mubr.f32.mxu0 0.0
    %v6821 = vand.u32 %v377, 4294901760
    %v6822 = vsub.f32 %v377, %v6821
    %v6823 = vand.u32 %v6822, 4294901760
    %v6824 = vsub.f32 %v6822, %v6823
    %v6825 = vand.u32 %v6824, 4294901760
    %6826 = vmatmul.mubr.f32.gmra.mxu0 %v6825
    %v6827 = vpop.f32.mrf.mxu0
    %v6828 = vadd.f32 %v322, %v6827
    %v6829 = vpop.f32.mrf.mxu0
    %v6830 = vadd.f32 %v326, %v6829
    %6831 = vmatprep.mubr.f32.mxu0 0.0
    %v6832 = vand.u32 %v380, 4294901760
    %v6833 = vsub.f32 %v380, %v6832
    %v6834 = vand.u32 %v6833, 4294901760
    %v6835 = vsub.f32 %v6833, %v6834
    %v6836 = vand.u32 %v6835, 4294901760
    %6837 = vmatmul.mubr.f32.gmra.mxu0 %v6836
    %v6838 = vpop.f32.mrf.mxu0
    %v6839 = vadd.f32 %v322, %v6838
    %v6840 = vpop.f32.mrf.mxu0
    %v6841 = vadd.f32 %v326, %v6840
    %6842 = vmatprep.mubr.f32.mxu0 0.0
    %v6843 = vand.u32 %v383, 4294901760
    %v6844 = vsub.f32 %v383, %v6843
    %v6845 = vand.u32 %v6844, 4294901760
    %v6846 = vsub.f32 %v6844, %v6845
    %v6847 = vand.u32 %v6846, 4294901760
    %6848 = vmatmul.mubr.f32.gmra.mxu0 %v6847
    %v6849 = vpop.f32.mrf.mxu0
    %v6850 = vadd.f32 %v322, %v6849
    %v6851 = vpop.f32.mrf.mxu0
    %v6852 = vadd.f32 %v326, %v6851
    %6853 = vmatprep.mubr.f32.mxu0 0.0
    %v6854 = vand.u32 %v386, 4294901760
    %v6855 = vsub.f32 %v386, %v6854
    %v6856 = vand.u32 %v6855, 4294901760
    %v6857 = vsub.f32 %v6855, %v6856
    %v6858 = vand.u32 %v6857, 4294901760
    %6859 = vmatmul.mubr.f32.gmra.mxu0 %v6858
    %v6860 = vpop.f32.mrf.mxu0
    %v6861 = vadd.f32 %v322, %v6860
    %v6862 = vpop.f32.mrf.mxu0
    %v6863 = vadd.f32 %v326, %v6862
    %6864 = vdwg.mxu0
    %6865 = vmatprep.subr.mxu0 0.0
    %6866 = vmatpush1.msra.mxu0 0.0
    %6867 = vmatprep.subr.mxu0 0.0
    %6868 = vmatpush1.msra.mxu0 0.0
    %6869 = vmatprep.subr.mxu0 0.0
    %6870 = vmatpush1.msra.mxu0 0.0
    %6871 = vmatprep.subr.mxu0 0.0
    %6872 = vmatpush1.msra.mxu0 0.0
    %6873 = vmatprep.subr.mxu0 0.0
    %6874 = vmatpush1.msra.mxu0 0.0
    %6875 = vmatprep.subr.mxu0 0.0
    %6876 = vmatpush1.msra.mxu0 0.0
    %6877 = vmatprep.subr.mxu0 0.0
    %6878 = vmatpush1.msra.mxu0 0.0
    %6879 = vmatprep.subr.mxu0 0.0
    %6880 = vmatpush1.msra.mxu0 0.0
    %v6881 = vand.u32 %v242, 4294901760
    %v6882 = vsub.f32 %v242, %v6881
    %v6883 = vand.u32 %v6882, 4294901760
    %v6884 = vsub.f32 %v6882, %v6883
    %v6885 = vand.u32 %v6884, 4294901760
    %6886 = vmatprep.subr.mxu0 %v6885
    %v6887 = vand.u32 %v241, 4294901760
    %v6888 = vsub.f32 %v241, %v6887
    %v6889 = vand.u32 %v6888, 4294901760
    %v6890 = vsub.f32 %v6888, %v6889
    %v6891 = vand.u32 %v6890, 4294901760
    %6892 = vmatpush1.msra.mxu0 %v6891
    %v6893 = vand.u32 %v218, 4294901760
    %v6894 = vsub.f32 %v218, %v6893
    %v6895 = vand.u32 %v6894, 4294901760
    %v6896 = vsub.f32 %v6894, %v6895
    %v6897 = vand.u32 %v6896, 4294901760
    %6898 = vmatprep.subr.mxu0 %v6897
    %v6899 = vand.u32 %v217, 4294901760
    %v6900 = vsub.f32 %v217, %v6899
    %v6901 = vand.u32 %v6900, 4294901760
    %v6902 = vsub.f32 %v6900, %v6901
    %v6903 = vand.u32 %v6902, 4294901760
    %6904 = vmatpush1.msra.mxu0 %v6903
    %v6905 = vand.u32 %v194, 4294901760
    %v6906 = vsub.f32 %v194, %v6905
    %v6907 = vand.u32 %v6906, 4294901760
    %v6908 = vsub.f32 %v6906, %v6907
    %v6909 = vand.u32 %v6908, 4294901760
    %6910 = vmatprep.subr.mxu0 %v6909
    %v6911 = vand.u32 %v193, 4294901760
    %v6912 = vsub.f32 %v193, %v6911
    %v6913 = vand.u32 %v6912, 4294901760
    %v6914 = vsub.f32 %v6912, %v6913
    %v6915 = vand.u32 %v6914, 4294901760
    %6916 = vmatpush1.msra.mxu0 %v6915
    %v6917 = vand.u32 %v170, 4294901760
    %v6918 = vsub.f32 %v170, %v6917
    %v6919 = vand.u32 %v6918, 4294901760
    %v6920 = vsub.f32 %v6918, %v6919
    %v6921 = vand.u32 %v6920, 4294901760
    %6922 = vmatprep.subr.mxu0 %v6921
    %v6923 = vand.u32 %v169, 4294901760
    %v6924 = vsub.f32 %v169, %v6923
    %v6925 = vand.u32 %v6924, 4294901760
    %v6926 = vsub.f32 %v6924, %v6925
    %v6927 = vand.u32 %v6926, 4294901760
    %6928 = vmatpush1.msra.mxu0 %v6927
    %v6929 = vand.u32 %v146, 4294901760
    %v6930 = vsub.f32 %v146, %v6929
    %v6931 = vand.u32 %v6930, 4294901760
    %v6932 = vsub.f32 %v6930, %v6931
    %v6933 = vand.u32 %v6932, 4294901760
    %6934 = vmatprep.subr.mxu0 %v6933
    %v6935 = vand.u32 %v145, 4294901760
    %v6936 = vsub.f32 %v145, %v6935
    %v6937 = vand.u32 %v6936, 4294901760
    %v6938 = vsub.f32 %v6936, %v6937
    %v6939 = vand.u32 %v6938, 4294901760
    %6940 = vmatpush1.msra.mxu0 %v6939
    %v6941 = vand.u32 %v122, 4294901760
    %v6942 = vsub.f32 %v122, %v6941
    %v6943 = vand.u32 %v6942, 4294901760
    %v6944 = vsub.f32 %v6942, %v6943
    %v6945 = vand.u32 %v6944, 4294901760
    %6946 = vmatprep.subr.mxu0 %v6945
    %v6947 = vand.u32 %v121, 4294901760
    %v6948 = vsub.f32 %v121, %v6947
    %v6949 = vand.u32 %v6948, 4294901760
    %v6950 = vsub.f32 %v6948, %v6949
    %v6951 = vand.u32 %v6950, 4294901760
    %6952 = vmatpush1.msra.mxu0 %v6951
    %v6953 = vand.u32 %v98, 4294901760
    %v6954 = vsub.f32 %v98, %v6953
    %v6955 = vand.u32 %v6954, 4294901760
    %v6956 = vsub.f32 %v6954, %v6955
    %v6957 = vand.u32 %v6956, 4294901760
    %6958 = vmatprep.subr.mxu0 %v6957
    %v6959 = vand.u32 %v97, 4294901760
    %v6960 = vsub.f32 %v97, %v6959
    %v6961 = vand.u32 %v6960, 4294901760
    %v6962 = vsub.f32 %v6960, %v6961
    %v6963 = vand.u32 %v6962, 4294901760
    %6964 = vmatpush1.msra.mxu0 %v6963
    %v6965 = vand.u32 %v74, 4294901760
    %v6966 = vsub.f32 %v74, %v6965
    %v6967 = vand.u32 %v6966, 4294901760
    %v6968 = vsub.f32 %v6966, %v6967
    %v6969 = vand.u32 %v6968, 4294901760
    %6970 = vmatprep.subr.mxu0 %v6969
    %v6971 = vand.u32 %v73, 4294901760
    %v6972 = vsub.f32 %v73, %v6971
    %v6973 = vand.u32 %v6972, 4294901760
    %v6974 = vsub.f32 %v6972, %v6973
    %v6975 = vand.u32 %v6974, 4294901760
    %6976 = vmatpush1.msra.mxu0 %v6975
    %6977 = vmatprep.subr.mxu0 0.0
    %6978 = vmatpush2.msra.mxu0 0.0
    %6979 = vmatprep.subr.mxu0 0.0
    %6980 = vmatpush2.msra.mxu0 0.0
    %6981 = vmatprep.subr.mxu0 0.0
    %6982 = vmatpush2.msra.mxu0 0.0
    %6983 = vmatprep.subr.mxu0 0.0
    %6984 = vmatpush2.msra.mxu0 0.0
    %6985 = vmatprep.subr.mxu0 0.0
    %6986 = vmatpush2.msra.mxu0 0.0
    %6987 = vmatprep.subr.mxu0 0.0
    %6988 = vmatpush2.msra.mxu0 0.0
    %6989 = vmatprep.subr.mxu0 0.0
    %6990 = vmatpush2.msra.mxu0 0.0
    %6991 = vmatprep.subr.mxu0 0.0
    %6992 = vmatpush2.msra.mxu0 0.0
    %6993 = vmatprep.subr.mxu0 0.0
    %6994 = vmatpush2.msra.mxu0 0.0
    %6995 = vmatprep.subr.mxu0 0.0
    %6996 = vmatpush2.msra.mxu0 0.0
    %6997 = vmatprep.subr.mxu0 0.0
    %6998 = vmatpush2.msra.mxu0 0.0
    %6999 = vmatprep.subr.mxu0 0.0
    %7000 = vmatpush2.msra.mxu0 0.0
    %7001 = vmatprep.subr.mxu0 0.0
    %7002 = vmatpush2.msra.mxu0 0.0
    %7003 = vmatprep.subr.mxu0 0.0
    %7004 = vmatpush2.msra.mxu0 0.0
    %7005 = vmatprep.subr.mxu0 0.0
    %7006 = vmatpush2.msra.mxu0 0.0
    %7007 = vmatprep.subr.mxu0 0.0
    %7008 = vmatpush2.msra.mxu0 0.0
    %7009 = vmatprep.mubr.f32.mxu0 0.0
    %v7010 = vand.u32 %v377, 4294901760
    %7011 = vmatmul.mubr.f32.gmra.mxu0 %v7010
    %v7012 = vpop.f32.mrf.mxu0
    %v7013 = vadd.f32 %v6828, %v7012
    %v7014 = vpop.f32.mrf.mxu0
    %v7015 = vadd.f32 %v6830, %v7014
    %7016 = vmatprep.mubr.f32.mxu0 0.0
    %v7017 = vand.u32 %v380, 4294901760
    %7018 = vmatmul.mubr.f32.gmra.mxu0 %v7017
    %v7019 = vpop.f32.mrf.mxu0
    %v7020 = vadd.f32 %v6839, %v7019
    %v7021 = vpop.f32.mrf.mxu0
    %v7022 = vadd.f32 %v6841, %v7021
    %7023 = vmatprep.mubr.f32.mxu0 0.0
    %v7024 = vand.u32 %v383, 4294901760
    %7025 = vmatmul.mubr.f32.gmra.mxu0 %v7024
    %v7026 = vpop.f32.mrf.mxu0
    %v7027 = vadd.f32 %v6850, %v7026
    %v7028 = vpop.f32.mrf.mxu0
    %v7029 = vadd.f32 %v6852, %v7028
    %7030 = vmatprep.mubr.f32.mxu0 0.0
    %v7031 = vand.u32 %v386, 4294901760
    %7032 = vmatmul.mubr.f32.gmra.mxu0 %v7031
    %v7033 = vpop.f32.mrf.mxu0
    %v7034 = vadd.f32 %v6861, %v7033
    %v7035 = vpop.f32.mrf.mxu0
    %v7036 = vadd.f32 %v6863, %v7035
    %7037 = vdwg.mxu0
    %7038 = vmatprep.subr.mxu0 0.0
    %7039 = vmatpush1.msra.mxu0 0.0
    %7040 = vmatprep.subr.mxu0 0.0
    %7041 = vmatpush1.msra.mxu0 0.0
    %7042 = vmatprep.subr.mxu0 0.0
    %7043 = vmatpush1.msra.mxu0 0.0
    %7044 = vmatprep.subr.mxu0 0.0
    %7045 = vmatpush1.msra.mxu0 0.0
    %7046 = vmatprep.subr.mxu0 0.0
    %7047 = vmatpush1.msra.mxu0 0.0
    %7048 = vmatprep.subr.mxu0 0.0
    %7049 = vmatpush1.msra.mxu0 0.0
    %7050 = vmatprep.subr.mxu0 0.0
    %7051 = vmatpush1.msra.mxu0 0.0
    %7052 = vmatprep.subr.mxu0 0.0
    %7053 = vmatpush1.msra.mxu0 0.0
    %v7054 = vand.u32 %v242, 4294901760
    %v7055 = vsub.f32 %v242, %v7054
    %7056 = vmatprep.subr.mxu0 %v7055
    %v7057 = vand.u32 %v241, 4294901760
    %v7058 = vsub.f32 %v241, %v7057
    %7059 = vmatpush1.msra.mxu0 %v7058
    %v7060 = vand.u32 %v218, 4294901760
    %v7061 = vsub.f32 %v218, %v7060
    %7062 = vmatprep.subr.mxu0 %v7061
    %v7063 = vand.u32 %v217, 4294901760
    %v7064 = vsub.f32 %v217, %v7063
    %7065 = vmatpush1.msra.mxu0 %v7064
    %v7066 = vand.u32 %v194, 4294901760
    %v7067 = vsub.f32 %v194, %v7066
    %7068 = vmatprep.subr.mxu0 %v7067
    %v7069 = vand.u32 %v193, 4294901760
    %v7070 = vsub.f32 %v193, %v7069
    %7071 = vmatpush1.msra.mxu0 %v7070
    %v7072 = vand.u32 %v170, 4294901760
    %v7073 = vsub.f32 %v170, %v7072
    %7074 = vmatprep.subr.mxu0 %v7073
    %v7075 = vand.u32 %v169, 4294901760
    %v7076 = vsub.f32 %v169, %v7075
    %7077 = vmatpush1.msra.mxu0 %v7076
    %v7078 = vand.u32 %v146, 4294901760
    %v7079 = vsub.f32 %v146, %v7078
    %7080 = vmatprep.subr.mxu0 %v7079
    %v7081 = vand.u32 %v145, 4294901760
    %v7082 = vsub.f32 %v145, %v7081
    %7083 = vmatpush1.msra.mxu0 %v7082
    %v7084 = vand.u32 %v122, 4294901760
    %v7085 = vsub.f32 %v122, %v7084
    %7086 = vmatprep.subr.mxu0 %v7085
    %v7087 = vand.u32 %v121, 4294901760
    %v7088 = vsub.f32 %v121, %v7087
    %7089 = vmatpush1.msra.mxu0 %v7088
    %v7090 = vand.u32 %v98, 4294901760
    %v7091 = vsub.f32 %v98, %v7090
    %7092 = vmatprep.subr.mxu0 %v7091
    %v7093 = vand.u32 %v97, 4294901760
    %v7094 = vsub.f32 %v97, %v7093
    %7095 = vmatpush1.msra.mxu0 %v7094
    %v7096 = vand.u32 %v74, 4294901760
    %v7097 = vsub.f32 %v74, %v7096
    %7098 = vmatprep.subr.mxu0 %v7097
    %v7099 = vand.u32 %v73, 4294901760
    %v7100 = vsub.f32 %v73, %v7099
    %7101 = vmatpush1.msra.mxu0 %v7100
    %7102 = vmatprep.subr.mxu0 0.0
    %7103 = vmatpush2.msra.mxu0 0.0
    %7104 = vmatprep.subr.mxu0 0.0
    %7105 = vmatpush2.msra.mxu0 0.0
    %7106 = vmatprep.subr.mxu0 0.0
    %7107 = vmatpush2.msra.mxu0 0.0
    %7108 = vmatprep.subr.mxu0 0.0
    %7109 = vmatpush2.msra.mxu0 0.0
    %7110 = vmatprep.subr.mxu0 0.0
    %7111 = vmatpush2.msra.mxu0 0.0
    %7112 = vmatprep.subr.mxu0 0.0
    %7113 = vmatpush2.msra.mxu0 0.0
    %7114 = vmatprep.subr.mxu0 0.0
    %7115 = vmatpush2.msra.mxu0 0.0
    %7116 = vmatprep.subr.mxu0 0.0
    %7117 = vmatpush2.msra.mxu0 0.0
    %7118 = vmatprep.subr.mxu0 0.0
    %7119 = vmatpush2.msra.mxu0 0.0
    %7120 = vmatprep.subr.mxu0 0.0
    %7121 = vmatpush2.msra.mxu0 0.0
    %7122 = vmatprep.subr.mxu0 0.0
    %7123 = vmatpush2.msra.mxu0 0.0
    %7124 = vmatprep.subr.mxu0 0.0
    %7125 = vmatpush2.msra.mxu0 0.0
    %7126 = vmatprep.subr.mxu0 0.0
    %7127 = vmatpush2.msra.mxu0 0.0
    %7128 = vmatprep.subr.mxu0 0.0
    %7129 = vmatpush2.msra.mxu0 0.0
    %7130 = vmatprep.subr.mxu0 0.0
    %7131 = vmatpush2.msra.mxu0 0.0
    %7132 = vmatprep.subr.mxu0 0.0
    %7133 = vmatpush2.msra.mxu0 0.0
    %7134 = vmatprep.mubr.f32.mxu0 0.0
    %v7135 = vand.u32 %v377, 4294901760
    %v7136 = vsub.f32 %v377, %v7135
    %7137 = vmatmul.mubr.f32.gmra.mxu0 %v7136
    %v7138 = vpop.f32.mrf.mxu0
    %v7139 = vadd.f32 %v7013, %v7138
    %v7140 = vpop.f32.mrf.mxu0
    %v7141 = vadd.f32 %v7015, %v7140
    %7142 = vmatprep.mubr.f32.mxu0 0.0
    %v7143 = vand.u32 %v380, 4294901760
    %v7144 = vsub.f32 %v380, %v7143
    %7145 = vmatmul.mubr.f32.gmra.mxu0 %v7144
    %v7146 = vpop.f32.mrf.mxu0
    %v7147 = vadd.f32 %v7020, %v7146
    %v7148 = vpop.f32.mrf.mxu0
    %v7149 = vadd.f32 %v7022, %v7148
    %7150 = vmatprep.mubr.f32.mxu0 0.0
    %v7151 = vand.u32 %v383, 4294901760
    %v7152 = vsub.f32 %v383, %v7151
    %7153 = vmatmul.mubr.f32.gmra.mxu0 %v7152
    %v7154 = vpop.f32.mrf.mxu0
    %v7155 = vadd.f32 %v7027, %v7154
    %v7156 = vpop.f32.mrf.mxu0
    %v7157 = vadd.f32 %v7029, %v7156
    %7158 = vmatprep.mubr.f32.mxu0 0.0
    %v7159 = vand.u32 %v386, 4294901760
    %v7160 = vsub.f32 %v386, %v7159
    %7161 = vmatmul.mubr.f32.gmra.mxu0 %v7160
    %v7162 = vpop.f32.mrf.mxu0
    %v7163 = vadd.f32 %v7034, %v7162
    %v7164 = vpop.f32.mrf.mxu0
    %v7165 = vadd.f32 %v7036, %v7164
    %7166 = vdwg.mxu0
    %7167 = vmatprep.subr.mxu0 0.0
    %7168 = vmatpush1.msra.mxu0 0.0
    %7169 = vmatprep.subr.mxu0 0.0
    %7170 = vmatpush1.msra.mxu0 0.0
    %7171 = vmatprep.subr.mxu0 0.0
    %7172 = vmatpush1.msra.mxu0 0.0
    %7173 = vmatprep.subr.mxu0 0.0
    %7174 = vmatpush1.msra.mxu0 0.0
    %7175 = vmatprep.subr.mxu0 0.0
    %7176 = vmatpush1.msra.mxu0 0.0
    %7177 = vmatprep.subr.mxu0 0.0
    %7178 = vmatpush1.msra.mxu0 0.0
    %7179 = vmatprep.subr.mxu0 0.0
    %7180 = vmatpush1.msra.mxu0 0.0
    %7181 = vmatprep.subr.mxu0 0.0
    %7182 = vmatpush1.msra.mxu0 0.0
    %v7183 = vand.u32 %v242, 4294901760
    %7184 = vmatprep.subr.mxu0 %v7183
    %v7185 = vand.u32 %v241, 4294901760
    %7186 = vmatpush1.msra.mxu0 %v7185
    %v7187 = vand.u32 %v218, 4294901760
    %7188 = vmatprep.subr.mxu0 %v7187
    %v7189 = vand.u32 %v217, 4294901760
    %7190 = vmatpush1.msra.mxu0 %v7189
    %v7191 = vand.u32 %v194, 4294901760
    %7192 = vmatprep.subr.mxu0 %v7191
    %v7193 = vand.u32 %v193, 4294901760
    %7194 = vmatpush1.msra.mxu0 %v7193
    %v7195 = vand.u32 %v170, 4294901760
    %7196 = vmatprep.subr.mxu0 %v7195
    %v7197 = vand.u32 %v169, 4294901760
    %7198 = vmatpush1.msra.mxu0 %v7197
    %v7199 = vand.u32 %v146, 4294901760
    %7200 = vmatprep.subr.mxu0 %v7199
    %v7201 = vand.u32 %v145, 4294901760
    %7202 = vmatpush1.msra.mxu0 %v7201
    %v7203 = vand.u32 %v122, 4294901760
    %7204 = vmatprep.subr.mxu0 %v7203
    %v7205 = vand.u32 %v121, 4294901760
    %7206 = vmatpush1.msra.mxu0 %v7205
    %v7207 = vand.u32 %v98, 4294901760
    %7208 = vmatprep.subr.mxu0 %v7207
    %v7209 = vand.u32 %v97, 4294901760
    %7210 = vmatpush1.msra.mxu0 %v7209
    %v7211 = vand.u32 %v74, 4294901760
    %7212 = vmatprep.subr.mxu0 %v7211
    %v7213 = vand.u32 %v73, 4294901760
    %7214 = vmatpush1.msra.mxu0 %v7213
    %7215 = vmatprep.subr.mxu0 0.0
    %7216 = vmatpush2.msra.mxu0 0.0
    %7217 = vmatprep.subr.mxu0 0.0
    %7218 = vmatpush2.msra.mxu0 0.0
    %7219 = vmatprep.subr.mxu0 0.0
    %7220 = vmatpush2.msra.mxu0 0.0
    %7221 = vmatprep.subr.mxu0 0.0
    %7222 = vmatpush2.msra.mxu0 0.0
    %7223 = vmatprep.subr.mxu0 0.0
    %7224 = vmatpush2.msra.mxu0 0.0
    %7225 = vmatprep.subr.mxu0 0.0
    %7226 = vmatpush2.msra.mxu0 0.0
    %7227 = vmatprep.subr.mxu0 0.0
    %7228 = vmatpush2.msra.mxu0 0.0
    %7229 = vmatprep.subr.mxu0 0.0
    %7230 = vmatpush2.msra.mxu0 0.0
    %7231 = vmatprep.subr.mxu0 0.0
    %7232 = vmatpush2.msra.mxu0 0.0
    %7233 = vmatprep.subr.mxu0 0.0
    %7234 = vmatpush2.msra.mxu0 0.0
    %7235 = vmatprep.subr.mxu0 0.0
    %7236 = vmatpush2.msra.mxu0 0.0
    %7237 = vmatprep.subr.mxu0 0.0
    %7238 = vmatpush2.msra.mxu0 0.0
    %7239 = vmatprep.subr.mxu0 0.0
    %7240 = vmatpush2.msra.mxu0 0.0
    %7241 = vmatprep.subr.mxu0 0.0
    %7242 = vmatpush2.msra.mxu0 0.0
    %7243 = vmatprep.subr.mxu0 0.0
    %7244 = vmatpush2.msra.mxu0 0.0
    %7245 = vmatprep.subr.mxu0 0.0
    %7246 = vmatpush2.msra.mxu0 0.0
    %7247 = vmatprep.mubr.f32.mxu0 0.0
    %v7248 = vand.u32 %v377, 4294901760
    %v7249 = vsub.f32 %v377, %v7248
    %v7250 = vand.u32 %v7249, 4294901760
    %7251 = vmatmul.mubr.f32.gmra.mxu0 %v7250
    %v7252 = vpop.f32.mrf.mxu0
    %v7253 = vadd.f32 %v7139, %v7252
    %v7254 = vpop.f32.mrf.mxu0
    %v7255 = vadd.f32 %v7141, %v7254
    %7256 = vmatprep.mubr.f32.mxu0 0.0
    %v7257 = vand.u32 %v380, 4294901760
    %v7258 = vsub.f32 %v380, %v7257
    %v7259 = vand.u32 %v7258, 4294901760
    %7260 = vmatmul.mubr.f32.gmra.mxu0 %v7259
    %v7261 = vpop.f32.mrf.mxu0
    %v7262 = vadd.f32 %v7147, %v7261
    %v7263 = vpop.f32.mrf.mxu0
    %v7264 = vadd.f32 %v7149, %v7263
    %7265 = vmatprep.mubr.f32.mxu0 0.0
    %v7266 = vand.u32 %v383, 4294901760
    %v7267 = vsub.f32 %v383, %v7266
    %v7268 = vand.u32 %v7267, 4294901760
    %7269 = vmatmul.mubr.f32.gmra.mxu0 %v7268
    %v7270 = vpop.f32.mrf.mxu0
    %v7271 = vadd.f32 %v7155, %v7270
    %v7272 = vpop.f32.mrf.mxu0
    %v7273 = vadd.f32 %v7157, %v7272
    %7274 = vmatprep.mubr.f32.mxu0 0.0
    %v7275 = vand.u32 %v386, 4294901760
    %v7276 = vsub.f32 %v386, %v7275
    %v7277 = vand.u32 %v7276, 4294901760
    %7278 = vmatmul.mubr.f32.gmra.mxu0 %v7277
    %v7279 = vpop.f32.mrf.mxu0
    %v7280 = vadd.f32 %v7163, %v7279
    %v7281 = vpop.f32.mrf.mxu0
    %v7282 = vadd.f32 %v7165, %v7281
    %7283 = vdwg.mxu0
    %7284 = vmatprep.subr.mxu0 0.0
    %7285 = vmatpush1.msra.mxu0 0.0
    %7286 = vmatprep.subr.mxu0 0.0
    %7287 = vmatpush1.msra.mxu0 0.0
    %7288 = vmatprep.subr.mxu0 0.0
    %7289 = vmatpush1.msra.mxu0 0.0
    %7290 = vmatprep.subr.mxu0 0.0
    %7291 = vmatpush1.msra.mxu0 0.0
    %7292 = vmatprep.subr.mxu0 0.0
    %7293 = vmatpush1.msra.mxu0 0.0
    %7294 = vmatprep.subr.mxu0 0.0
    %7295 = vmatpush1.msra.mxu0 0.0
    %7296 = vmatprep.subr.mxu0 0.0
    %7297 = vmatpush1.msra.mxu0 0.0
    %7298 = vmatprep.subr.mxu0 0.0
    %7299 = vmatpush1.msra.mxu0 0.0
    %v7300 = vand.u32 %v242, 4294901760
    %v7301 = vsub.f32 %v242, %v7300
    %v7302 = vand.u32 %v7301, 4294901760
    %7303 = vmatprep.subr.mxu0 %v7302
    %v7304 = vand.u32 %v241, 4294901760
    %v7305 = vsub.f32 %v241, %v7304
    %v7306 = vand.u32 %v7305, 4294901760
    %7307 = vmatpush1.msra.mxu0 %v7306
    %v7308 = vand.u32 %v218, 4294901760
    %v7309 = vsub.f32 %v218, %v7308
    %v7310 = vand.u32 %v7309, 4294901760
    %7311 = vmatprep.subr.mxu0 %v7310
    %v7312 = vand.u32 %v217, 4294901760
    %v7313 = vsub.f32 %v217, %v7312
    %v7314 = vand.u32 %v7313, 4294901760
    %7315 = vmatpush1.msra.mxu0 %v7314
    %v7316 = vand.u32 %v194, 4294901760
    %v7317 = vsub.f32 %v194, %v7316
    %v7318 = vand.u32 %v7317, 4294901760
    %7319 = vmatprep.subr.mxu0 %v7318
    %v7320 = vand.u32 %v193, 4294901760
    %v7321 = vsub.f32 %v193, %v7320
    %v7322 = vand.u32 %v7321, 4294901760
    %7323 = vmatpush1.msra.mxu0 %v7322
    %v7324 = vand.u32 %v170, 4294901760
    %v7325 = vsub.f32 %v170, %v7324
    %v7326 = vand.u32 %v7325, 4294901760
    %7327 = vmatprep.subr.mxu0 %v7326
    %v7328 = vand.u32 %v169, 4294901760
    %v7329 = vsub.f32 %v169, %v7328
    %v7330 = vand.u32 %v7329, 4294901760
    %7331 = vmatpush1.msra.mxu0 %v7330
    %v7332 = vand.u32 %v146, 4294901760
    %v7333 = vsub.f32 %v146, %v7332
    %v7334 = vand.u32 %v7333, 4294901760
    %7335 = vmatprep.subr.mxu0 %v7334
    %v7336 = vand.u32 %v145, 4294901760
    %v7337 = vsub.f32 %v145, %v7336
    %v7338 = vand.u32 %v7337, 4294901760
    %7339 = vmatpush1.msra.mxu0 %v7338
    %v7340 = vand.u32 %v122, 4294901760
    %v7341 = vsub.f32 %v122, %v7340
    %v7342 = vand.u32 %v7341, 4294901760
    %7343 = vmatprep.subr.mxu0 %v7342
    %v7344 = vand.u32 %v121, 4294901760
    %v7345 = vsub.f32 %v121, %v7344
    %v7346 = vand.u32 %v7345, 4294901760
    %7347 = vmatpush1.msra.mxu0 %v7346
    %v7348 = vand.u32 %v98, 4294901760
    %v7349 = vsub.f32 %v98, %v7348
    %v7350 = vand.u32 %v7349, 4294901760
    %7351 = vmatprep.subr.mxu0 %v7350
    %v7352 = vand.u32 %v97, 4294901760
    %v7353 = vsub.f32 %v97, %v7352
    %v7354 = vand.u32 %v7353, 4294901760
    %7355 = vmatpush1.msra.mxu0 %v7354
    %v7356 = vand.u32 %v74, 4294901760
    %v7357 = vsub.f32 %v74, %v7356
    %v7358 = vand.u32 %v7357, 4294901760
    %7359 = vmatprep.subr.mxu0 %v7358
    %v7360 = vand.u32 %v73, 4294901760
    %v7361 = vsub.f32 %v73, %v7360
    %v7362 = vand.u32 %v7361, 4294901760
    %7363 = vmatpush1.msra.mxu0 %v7362
    %7364 = vmatprep.subr.mxu0 0.0
    %7365 = vmatpush2.msra.mxu0 0.0
    %7366 = vmatprep.subr.mxu0 0.0
    %7367 = vmatpush2.msra.mxu0 0.0
    %7368 = vmatprep.subr.mxu0 0.0
    %7369 = vmatpush2.msra.mxu0 0.0
    %7370 = vmatprep.subr.mxu0 0.0
    %7371 = vmatpush2.msra.mxu0 0.0
    %7372 = vmatprep.subr.mxu0 0.0
    %7373 = vmatpush2.msra.mxu0 0.0
    %7374 = vmatprep.subr.mxu0 0.0
    %7375 = vmatpush2.msra.mxu0 0.0
    %7376 = vmatprep.subr.mxu0 0.0
    %7377 = vmatpush2.msra.mxu0 0.0
    %7378 = vmatprep.subr.mxu0 0.0
    %7379 = vmatpush2.msra.mxu0 0.0
    %7380 = vmatprep.subr.mxu0 0.0
    %7381 = vmatpush2.msra.mxu0 0.0
    %7382 = vmatprep.subr.mxu0 0.0
    %7383 = vmatpush2.msra.mxu0 0.0
    %7384 = vmatprep.subr.mxu0 0.0
    %7385 = vmatpush2.msra.mxu0 0.0
    %7386 = vmatprep.subr.mxu0 0.0
    %7387 = vmatpush2.msra.mxu0 0.0
    %7388 = vmatprep.subr.mxu0 0.0
    %7389 = vmatpush2.msra.mxu0 0.0
    %7390 = vmatprep.subr.mxu0 0.0
    %7391 = vmatpush2.msra.mxu0 0.0
    %7392 = vmatprep.subr.mxu0 0.0
    %7393 = vmatpush2.msra.mxu0 0.0
    %7394 = vmatprep.subr.mxu0 0.0
    %7395 = vmatpush2.msra.mxu0 0.0
    %7396 = vmatprep.mubr.f32.mxu0 0.0
    %v7397 = vand.u32 %v377, 4294901760
    %7398 = vmatmul.mubr.f32.gmra.mxu0 %v7397
    %v7399 = vpop.f32.mrf.mxu0
    %v7400 = vadd.f32 %v7253, %v7399
    %v7401 = vpop.f32.mrf.mxu0
    %v7402 = vadd.f32 %v7255, %v7401
    %7403 = vmatprep.mubr.f32.mxu0 0.0
    %v7404 = vand.u32 %v380, 4294901760
    %7405 = vmatmul.mubr.f32.gmra.mxu0 %v7404
    %v7406 = vpop.f32.mrf.mxu0
    %v7407 = vadd.f32 %v7262, %v7406
    %v7408 = vpop.f32.mrf.mxu0
    %v7409 = vadd.f32 %v7264, %v7408
    %7410 = vmatprep.mubr.f32.mxu0 0.0
    %v7411 = vand.u32 %v383, 4294901760
    %7412 = vmatmul.mubr.f32.gmra.mxu0 %v7411
    %v7413 = vpop.f32.mrf.mxu0
    %v7414 = vadd.f32 %v7271, %v7413
    %v7415 = vpop.f32.mrf.mxu0
    %v7416 = vadd.f32 %v7273, %v7415
    %7417 = vmatprep.mubr.f32.mxu0 0.0
    %v7418 = vand.u32 %v386, 4294901760
    %7419 = vmatmul.mubr.f32.gmra.mxu0 %v7418
    %v7420 = vpop.f32.mrf.mxu0
    %v7421 = vadd.f32 %v7280, %v7420
    %v7422 = vpop.f32.mrf.mxu0
    %v7423 = vadd.f32 %v7282, %v7422
    %7424 = vdwg.mxu0
    %7425 = vmatprep.subr.mxu0 0.0
    %7426 = vmatpush1.msra.mxu0 0.0
    %7427 = vmatprep.subr.mxu0 0.0
    %7428 = vmatpush1.msra.mxu0 0.0
    %7429 = vmatprep.subr.mxu0 0.0
    %7430 = vmatpush1.msra.mxu0 0.0
    %7431 = vmatprep.subr.mxu0 0.0
    %7432 = vmatpush1.msra.mxu0 0.0
    %7433 = vmatprep.subr.mxu0 0.0
    %7434 = vmatpush1.msra.mxu0 0.0
    %7435 = vmatprep.subr.mxu0 0.0
    %7436 = vmatpush1.msra.mxu0 0.0
    %7437 = vmatprep.subr.mxu0 0.0
    %7438 = vmatpush1.msra.mxu0 0.0
    %7439 = vmatprep.subr.mxu0 0.0
    %7440 = vmatpush1.msra.mxu0 0.0
    %v7441 = vand.u32 %v242, 4294901760
    %7442 = vmatprep.subr.mxu0 %v7441
    %v7443 = vand.u32 %v241, 4294901760
    %7444 = vmatpush1.msra.mxu0 %v7443
    %v7445 = vand.u32 %v218, 4294901760
    %7446 = vmatprep.subr.mxu0 %v7445
    %v7447 = vand.u32 %v217, 4294901760
    %7448 = vmatpush1.msra.mxu0 %v7447
    %v7449 = vand.u32 %v194, 4294901760
    %7450 = vmatprep.subr.mxu0 %v7449
    %v7451 = vand.u32 %v193, 4294901760
    %7452 = vmatpush1.msra.mxu0 %v7451
    %v7453 = vand.u32 %v170, 4294901760
    %7454 = vmatprep.subr.mxu0 %v7453
    %v7455 = vand.u32 %v169, 4294901760
    %7456 = vmatpush1.msra.mxu0 %v7455
    %v7457 = vand.u32 %v146, 4294901760
    %7458 = vmatprep.subr.mxu0 %v7457
    %v7459 = vand.u32 %v145, 4294901760
    %7460 = vmatpush1.msra.mxu0 %v7459
    %v7461 = vand.u32 %v122, 4294901760
    %7462 = vmatprep.subr.mxu0 %v7461
    %v7463 = vand.u32 %v121, 4294901760
    %7464 = vmatpush1.msra.mxu0 %v7463
    %v7465 = vand.u32 %v98, 4294901760
    %7466 = vmatprep.subr.mxu0 %v7465
    %v7467 = vand.u32 %v97, 4294901760
    %7468 = vmatpush1.msra.mxu0 %v7467
    %v7469 = vand.u32 %v74, 4294901760
    %7470 = vmatprep.subr.mxu0 %v7469
    %v7471 = vand.u32 %v73, 4294901760
    %7472 = vmatpush1.msra.mxu0 %v7471
    %7473 = vmatprep.subr.mxu0 0.0
    %7474 = vmatpush2.msra.mxu0 0.0
    %7475 = vmatprep.subr.mxu0 0.0
    %7476 = vmatpush2.msra.mxu0 0.0
    %7477 = vmatprep.subr.mxu0 0.0
    %7478 = vmatpush2.msra.mxu0 0.0
    %7479 = vmatprep.subr.mxu0 0.0
    %7480 = vmatpush2.msra.mxu0 0.0
    %7481 = vmatprep.subr.mxu0 0.0
    %7482 = vmatpush2.msra.mxu0 0.0
    %7483 = vmatprep.subr.mxu0 0.0
    %7484 = vmatpush2.msra.mxu0 0.0
    %7485 = vmatprep.subr.mxu0 0.0
    %7486 = vmatpush2.msra.mxu0 0.0
    %7487 = vmatprep.subr.mxu0 0.0
    %7488 = vmatpush2.msra.mxu0 0.0
    %7489 = vmatprep.subr.mxu0 0.0
    %7490 = vmatpush2.msra.mxu0 0.0
    %7491 = vmatprep.subr.mxu0 0.0
    %7492 = vmatpush2.msra.mxu0 0.0
    %7493 = vmatprep.subr.mxu0 0.0
    %7494 = vmatpush2.msra.mxu0 0.0
    %7495 = vmatprep.subr.mxu0 0.0
    %7496 = vmatpush2.msra.mxu0 0.0
    %7497 = vmatprep.subr.mxu0 0.0
    %7498 = vmatpush2.msra.mxu0 0.0
    %7499 = vmatprep.subr.mxu0 0.0
    %7500 = vmatpush2.msra.mxu0 0.0
    %7501 = vmatprep.subr.mxu0 0.0
    %7502 = vmatpush2.msra.mxu0 0.0
    %7503 = vmatprep.subr.mxu0 0.0
    %7504 = vmatpush2.msra.mxu0 0.0
    %7505 = vmatprep.mubr.f32.mxu0 0.0
    %v7506 = vand.u32 %v377, 4294901760
    %7507 = vmatmul.mubr.f32.gmra.mxu0 %v7506
    %v7508 = vpop.f32.mrf.mxu0
    %v7509 = vadd.f32 %v7400, %v7508
    %v7510 = vpop.f32.mrf.mxu0
    %v7511 = vadd.f32 %v7402, %v7510
    %7512 = vmatprep.mubr.f32.mxu0 0.0
    %v7513 = vand.u32 %v380, 4294901760
    %7514 = vmatmul.mubr.f32.gmra.mxu0 %v7513
    %v7515 = vpop.f32.mrf.mxu0
    %v7516 = vadd.f32 %v7407, %v7515
    %v7517 = vpop.f32.mrf.mxu0
    %v7518 = vadd.f32 %v7409, %v7517
    %7519 = vmatprep.mubr.f32.mxu0 0.0
    %v7520 = vand.u32 %v383, 4294901760
    %7521 = vmatmul.mubr.f32.gmra.mxu0 %v7520
    %v7522 = vpop.f32.mrf.mxu0
    %v7523 = vadd.f32 %v7414, %v7522
    %v7524 = vpop.f32.mrf.mxu0
    %v7525 = vadd.f32 %v7416, %v7524
    %7526 = vmatprep.mubr.f32.mxu0 0.0
    %v7527 = vand.u32 %v386, 4294901760
    %7528 = vmatmul.mubr.f32.gmra.mxu0 %v7527
    %v7529 = vpop.f32.mrf.mxu0
    %v7530 = vadd.f32 %v7421, %v7529
    %v7531 = vpop.f32.mrf.mxu0
    %v7532 = vadd.f32 %v7423, %v7531
    %7533 = vdwg.mxu0
    %7534 = vmatprep.subr.mxu0 0.0
    %7535 = vmatpush1.msra.mxu0 0.0
    %7536 = vmatprep.subr.mxu0 0.0
    %7537 = vmatpush1.msra.mxu0 0.0
    %7538 = vmatprep.subr.mxu0 0.0
    %7539 = vmatpush1.msra.mxu0 0.0
    %7540 = vmatprep.subr.mxu0 0.0
    %7541 = vmatpush1.msra.mxu0 0.0
    %7542 = vmatprep.subr.mxu0 0.0
    %7543 = vmatpush1.msra.mxu0 0.0
    %7544 = vmatprep.subr.mxu0 0.0
    %7545 = vmatpush1.msra.mxu0 0.0
    %7546 = vmatprep.subr.mxu0 0.0
    %7547 = vmatpush1.msra.mxu0 0.0
    %7548 = vmatprep.subr.mxu0 0.0
    %7549 = vmatpush1.msra.mxu0 0.0
    %v7550 = vand.u32 %v244, 4294901760
    %7551 = vmatprep.subr.mxu0 %v7550
    %v7552 = vand.u32 %v243, 4294901760
    %7553 = vmatpush1.msra.mxu0 %v7552
    %v7554 = vand.u32 %v220, 4294901760
    %7555 = vmatprep.subr.mxu0 %v7554
    %v7556 = vand.u32 %v219, 4294901760
    %7557 = vmatpush1.msra.mxu0 %v7556
    %v7558 = vand.u32 %v196, 4294901760
    %7559 = vmatprep.subr.mxu0 %v7558
    %v7560 = vand.u32 %v195, 4294901760
    %7561 = vmatpush1.msra.mxu0 %v7560
    %v7562 = vand.u32 %v172, 4294901760
    %7563 = vmatprep.subr.mxu0 %v7562
    %v7564 = vand.u32 %v171, 4294901760
    %7565 = vmatpush1.msra.mxu0 %v7564
    %v7566 = vand.u32 %v148, 4294901760
    %7567 = vmatprep.subr.mxu0 %v7566
    %v7568 = vand.u32 %v147, 4294901760
    %7569 = vmatpush1.msra.mxu0 %v7568
    %v7570 = vand.u32 %v124, 4294901760
    %7571 = vmatprep.subr.mxu0 %v7570
    %v7572 = vand.u32 %v123, 4294901760
    %7573 = vmatpush1.msra.mxu0 %v7572
    %v7574 = vand.u32 %v100, 4294901760
    %7575 = vmatprep.subr.mxu0 %v7574
    %v7576 = vand.u32 %v99, 4294901760
    %7577 = vmatpush1.msra.mxu0 %v7576
    %v7578 = vand.u32 %v76, 4294901760
    %7579 = vmatprep.subr.mxu0 %v7578
    %v7580 = vand.u32 %v75, 4294901760
    %7581 = vmatpush1.msra.mxu0 %v7580
    %7582 = vmatprep.subr.mxu0 0.0
    %7583 = vmatpush2.msra.mxu0 0.0
    %7584 = vmatprep.subr.mxu0 0.0
    %7585 = vmatpush2.msra.mxu0 0.0
    %7586 = vmatprep.subr.mxu0 0.0
    %7587 = vmatpush2.msra.mxu0 0.0
    %7588 = vmatprep.subr.mxu0 0.0
    %7589 = vmatpush2.msra.mxu0 0.0
    %7590 = vmatprep.subr.mxu0 0.0
    %7591 = vmatpush2.msra.mxu0 0.0
    %7592 = vmatprep.subr.mxu0 0.0
    %7593 = vmatpush2.msra.mxu0 0.0
    %7594 = vmatprep.subr.mxu0 0.0
    %7595 = vmatpush2.msra.mxu0 0.0
    %7596 = vmatprep.subr.mxu0 0.0
    %7597 = vmatpush2.msra.mxu0 0.0
    %7598 = vmatprep.subr.mxu0 0.0
    %7599 = vmatpush2.msra.mxu0 0.0
    %7600 = vmatprep.subr.mxu0 0.0
    %7601 = vmatpush2.msra.mxu0 0.0
    %7602 = vmatprep.subr.mxu0 0.0
    %7603 = vmatpush2.msra.mxu0 0.0
    %7604 = vmatprep.subr.mxu0 0.0
    %7605 = vmatpush2.msra.mxu0 0.0
    %7606 = vmatprep.subr.mxu0 0.0
    %7607 = vmatpush2.msra.mxu0 0.0
    %7608 = vmatprep.subr.mxu0 0.0
    %7609 = vmatpush2.msra.mxu0 0.0
    %7610 = vmatprep.subr.mxu0 0.0
    %7611 = vmatpush2.msra.mxu0 0.0
    %7612 = vmatprep.subr.mxu0 0.0
    %7613 = vmatpush2.msra.mxu0 0.0
    %7614 = vmatprep.mubr.f32.mxu0 0.0
    %v7615 = vand.u32 %v377, 4294901760
    %v7616 = vsub.f32 %v377, %v7615
    %v7617 = vand.u32 %v7616, 4294901760
    %v7618 = vsub.f32 %v7616, %v7617
    %v7619 = vand.u32 %v7618, 4294901760
    %7620 = vmatmul.mubr.f32.gmra.mxu0 %v7619
    %v7621 = vpop.f32.mrf.mxu0
    %v7622 = vadd.f32 %v330, %v7621
    %v7623 = vpop.f32.mrf.mxu0
    %v7624 = vadd.f32 %v334, %v7623
    %7625 = vmatprep.mubr.f32.mxu0 0.0
    %v7626 = vand.u32 %v380, 4294901760
    %v7627 = vsub.f32 %v380, %v7626
    %v7628 = vand.u32 %v7627, 4294901760
    %v7629 = vsub.f32 %v7627, %v7628
    %v7630 = vand.u32 %v7629, 4294901760
    %7631 = vmatmul.mubr.f32.gmra.mxu0 %v7630
    %v7632 = vpop.f32.mrf.mxu0
    %v7633 = vadd.f32 %v330, %v7632
    %v7634 = vpop.f32.mrf.mxu0
    %v7635 = vadd.f32 %v334, %v7634
    %7636 = vmatprep.mubr.f32.mxu0 0.0
    %v7637 = vand.u32 %v383, 4294901760
    %v7638 = vsub.f32 %v383, %v7637
    %v7639 = vand.u32 %v7638, 4294901760
    %v7640 = vsub.f32 %v7638, %v7639
    %v7641 = vand.u32 %v7640, 4294901760
    %7642 = vmatmul.mubr.f32.gmra.mxu0 %v7641
    %v7643 = vpop.f32.mrf.mxu0
    %v7644 = vadd.f32 %v330, %v7643
    %v7645 = vpop.f32.mrf.mxu0
    %v7646 = vadd.f32 %v334, %v7645
    %7647 = vmatprep.mubr.f32.mxu0 0.0
    %v7648 = vand.u32 %v386, 4294901760
    %v7649 = vsub.f32 %v386, %v7648
    %v7650 = vand.u32 %v7649, 4294901760
    %v7651 = vsub.f32 %v7649, %v7650
    %v7652 = vand.u32 %v7651, 4294901760
    %7653 = vmatmul.mubr.f32.gmra.mxu0 %v7652
    %v7654 = vpop.f32.mrf.mxu0
    %v7655 = vadd.f32 %v330, %v7654
    %v7656 = vpop.f32.mrf.mxu0
    %v7657 = vadd.f32 %v334, %v7656
    %7658 = vdwg.mxu0
    %7659 = vmatprep.subr.mxu0 0.0
    %7660 = vmatpush1.msra.mxu0 0.0
    %7661 = vmatprep.subr.mxu0 0.0
    %7662 = vmatpush1.msra.mxu0 0.0
    %7663 = vmatprep.subr.mxu0 0.0
    %7664 = vmatpush1.msra.mxu0 0.0
    %7665 = vmatprep.subr.mxu0 0.0
    %7666 = vmatpush1.msra.mxu0 0.0
    %7667 = vmatprep.subr.mxu0 0.0
    %7668 = vmatpush1.msra.mxu0 0.0
    %7669 = vmatprep.subr.mxu0 0.0
    %7670 = vmatpush1.msra.mxu0 0.0
    %7671 = vmatprep.subr.mxu0 0.0
    %7672 = vmatpush1.msra.mxu0 0.0
    %7673 = vmatprep.subr.mxu0 0.0
    %7674 = vmatpush1.msra.mxu0 0.0
    %v7675 = vand.u32 %v244, 4294901760
    %v7676 = vsub.f32 %v244, %v7675
    %v7677 = vand.u32 %v7676, 4294901760
    %v7678 = vsub.f32 %v7676, %v7677
    %v7679 = vand.u32 %v7678, 4294901760
    %7680 = vmatprep.subr.mxu0 %v7679
    %v7681 = vand.u32 %v243, 4294901760
    %v7682 = vsub.f32 %v243, %v7681
    %v7683 = vand.u32 %v7682, 4294901760
    %v7684 = vsub.f32 %v7682, %v7683
    %v7685 = vand.u32 %v7684, 4294901760
    %7686 = vmatpush1.msra.mxu0 %v7685
    %v7687 = vand.u32 %v220, 4294901760
    %v7688 = vsub.f32 %v220, %v7687
    %v7689 = vand.u32 %v7688, 4294901760
    %v7690 = vsub.f32 %v7688, %v7689
    %v7691 = vand.u32 %v7690, 4294901760
    %7692 = vmatprep.subr.mxu0 %v7691
    %v7693 = vand.u32 %v219, 4294901760
    %v7694 = vsub.f32 %v219, %v7693
    %v7695 = vand.u32 %v7694, 4294901760
    %v7696 = vsub.f32 %v7694, %v7695
    %v7697 = vand.u32 %v7696, 4294901760
    %7698 = vmatpush1.msra.mxu0 %v7697
    %v7699 = vand.u32 %v196, 4294901760
    %v7700 = vsub.f32 %v196, %v7699
    %v7701 = vand.u32 %v7700, 4294901760
    %v7702 = vsub.f32 %v7700, %v7701
    %v7703 = vand.u32 %v7702, 4294901760
    %7704 = vmatprep.subr.mxu0 %v7703
    %v7705 = vand.u32 %v195, 4294901760
    %v7706 = vsub.f32 %v195, %v7705
    %v7707 = vand.u32 %v7706, 4294901760
    %v7708 = vsub.f32 %v7706, %v7707
    %v7709 = vand.u32 %v7708, 4294901760
    %7710 = vmatpush1.msra.mxu0 %v7709
    %v7711 = vand.u32 %v172, 4294901760
    %v7712 = vsub.f32 %v172, %v7711
    %v7713 = vand.u32 %v7712, 4294901760
    %v7714 = vsub.f32 %v7712, %v7713
    %v7715 = vand.u32 %v7714, 4294901760
    %7716 = vmatprep.subr.mxu0 %v7715
    %v7717 = vand.u32 %v171, 4294901760
    %v7718 = vsub.f32 %v171, %v7717
    %v7719 = vand.u32 %v7718, 4294901760
    %v7720 = vsub.f32 %v7718, %v7719
    %v7721 = vand.u32 %v7720, 4294901760
    %7722 = vmatpush1.msra.mxu0 %v7721
    %v7723 = vand.u32 %v148, 4294901760
    %v7724 = vsub.f32 %v148, %v7723
    %v7725 = vand.u32 %v7724, 4294901760
    %v7726 = vsub.f32 %v7724, %v7725
    %v7727 = vand.u32 %v7726, 4294901760
    %7728 = vmatprep.subr.mxu0 %v7727
    %v7729 = vand.u32 %v147, 4294901760
    %v7730 = vsub.f32 %v147, %v7729
    %v7731 = vand.u32 %v7730, 4294901760
    %v7732 = vsub.f32 %v7730, %v7731
    %v7733 = vand.u32 %v7732, 4294901760
    %7734 = vmatpush1.msra.mxu0 %v7733
    %v7735 = vand.u32 %v124, 4294901760
    %v7736 = vsub.f32 %v124, %v7735
    %v7737 = vand.u32 %v7736, 4294901760
    %v7738 = vsub.f32 %v7736, %v7737
    %v7739 = vand.u32 %v7738, 4294901760
    %7740 = vmatprep.subr.mxu0 %v7739
    %v7741 = vand.u32 %v123, 4294901760
    %v7742 = vsub.f32 %v123, %v7741
    %v7743 = vand.u32 %v7742, 4294901760
    %v7744 = vsub.f32 %v7742, %v7743
    %v7745 = vand.u32 %v7744, 4294901760
    %7746 = vmatpush1.msra.mxu0 %v7745
    %v7747 = vand.u32 %v100, 4294901760
    %v7748 = vsub.f32 %v100, %v7747
    %v7749 = vand.u32 %v7748, 4294901760
    %v7750 = vsub.f32 %v7748, %v7749
    %v7751 = vand.u32 %v7750, 4294901760
    %7752 = vmatprep.subr.mxu0 %v7751
    %v7753 = vand.u32 %v99, 4294901760
    %v7754 = vsub.f32 %v99, %v7753
    %v7755 = vand.u32 %v7754, 4294901760
    %v7756 = vsub.f32 %v7754, %v7755
    %v7757 = vand.u32 %v7756, 4294901760
    %7758 = vmatpush1.msra.mxu0 %v7757
    %v7759 = vand.u32 %v76, 4294901760
    %v7760 = vsub.f32 %v76, %v7759
    %v7761 = vand.u32 %v7760, 4294901760
    %v7762 = vsub.f32 %v7760, %v7761
    %v7763 = vand.u32 %v7762, 4294901760
    %7764 = vmatprep.subr.mxu0 %v7763
    %v7765 = vand.u32 %v75, 4294901760
    %v7766 = vsub.f32 %v75, %v7765
    %v7767 = vand.u32 %v7766, 4294901760
    %v7768 = vsub.f32 %v7766, %v7767
    %v7769 = vand.u32 %v7768, 4294901760
    %7770 = vmatpush1.msra.mxu0 %v7769
    %7771 = vmatprep.subr.mxu0 0.0
    %7772 = vmatpush2.msra.mxu0 0.0
    %7773 = vmatprep.subr.mxu0 0.0
    %7774 = vmatpush2.msra.mxu0 0.0
    %7775 = vmatprep.subr.mxu0 0.0
    %7776 = vmatpush2.msra.mxu0 0.0
    %7777 = vmatprep.subr.mxu0 0.0
    %7778 = vmatpush2.msra.mxu0 0.0
    %7779 = vmatprep.subr.mxu0 0.0
    %7780 = vmatpush2.msra.mxu0 0.0
    %7781 = vmatprep.subr.mxu0 0.0
    %7782 = vmatpush2.msra.mxu0 0.0
    %7783 = vmatprep.subr.mxu0 0.0
    %7784 = vmatpush2.msra.mxu0 0.0
    %7785 = vmatprep.subr.mxu0 0.0
    %7786 = vmatpush2.msra.mxu0 0.0
    %7787 = vmatprep.subr.mxu0 0.0
    %7788 = vmatpush2.msra.mxu0 0.0
    %7789 = vmatprep.subr.mxu0 0.0
    %7790 = vmatpush2.msra.mxu0 0.0
    %7791 = vmatprep.subr.mxu0 0.0
    %7792 = vmatpush2.msra.mxu0 0.0
    %7793 = vmatprep.subr.mxu0 0.0
    %7794 = vmatpush2.msra.mxu0 0.0
    %7795 = vmatprep.subr.mxu0 0.0
    %7796 = vmatpush2.msra.mxu0 0.0
    %7797 = vmatprep.subr.mxu0 0.0
    %7798 = vmatpush2.msra.mxu0 0.0
    %7799 = vmatprep.subr.mxu0 0.0
    %7800 = vmatpush2.msra.mxu0 0.0
    %7801 = vmatprep.subr.mxu0 0.0
    %7802 = vmatpush2.msra.mxu0 0.0
    %7803 = vmatprep.mubr.f32.mxu0 0.0
    %v7804 = vand.u32 %v377, 4294901760
    %7805 = vmatmul.mubr.f32.gmra.mxu0 %v7804
    %v7806 = vpop.f32.mrf.mxu0
    %v7807 = vadd.f32 %v7622, %v7806
    %v7808 = vpop.f32.mrf.mxu0
    %v7809 = vadd.f32 %v7624, %v7808
    %7810 = vmatprep.mubr.f32.mxu0 0.0
    %v7811 = vand.u32 %v380, 4294901760
    %7812 = vmatmul.mubr.f32.gmra.mxu0 %v7811
    %v7813 = vpop.f32.mrf.mxu0
    %v7814 = vadd.f32 %v7633, %v7813
    %v7815 = vpop.f32.mrf.mxu0
    %v7816 = vadd.f32 %v7635, %v7815
    %7817 = vmatprep.mubr.f32.mxu0 0.0
    %v7818 = vand.u32 %v383, 4294901760
    %7819 = vmatmul.mubr.f32.gmra.mxu0 %v7818
    %v7820 = vpop.f32.mrf.mxu0
    %v7821 = vadd.f32 %v7644, %v7820
    %v7822 = vpop.f32.mrf.mxu0
    %v7823 = vadd.f32 %v7646, %v7822
    %7824 = vmatprep.mubr.f32.mxu0 0.0
    %v7825 = vand.u32 %v386, 4294901760
    %7826 = vmatmul.mubr.f32.gmra.mxu0 %v7825
    %v7827 = vpop.f32.mrf.mxu0
    %v7828 = vadd.f32 %v7655, %v7827
    %v7829 = vpop.f32.mrf.mxu0
    %v7830 = vadd.f32 %v7657, %v7829
    %7831 = vdwg.mxu0
    %7832 = vmatprep.subr.mxu0 0.0
    %7833 = vmatpush1.msra.mxu0 0.0
    %7834 = vmatprep.subr.mxu0 0.0
    %7835 = vmatpush1.msra.mxu0 0.0
    %7836 = vmatprep.subr.mxu0 0.0
    %7837 = vmatpush1.msra.mxu0 0.0
    %7838 = vmatprep.subr.mxu0 0.0
    %7839 = vmatpush1.msra.mxu0 0.0
    %7840 = vmatprep.subr.mxu0 0.0
    %7841 = vmatpush1.msra.mxu0 0.0
    %7842 = vmatprep.subr.mxu0 0.0
    %7843 = vmatpush1.msra.mxu0 0.0
    %7844 = vmatprep.subr.mxu0 0.0
    %7845 = vmatpush1.msra.mxu0 0.0
    %7846 = vmatprep.subr.mxu0 0.0
    %7847 = vmatpush1.msra.mxu0 0.0
    %v7848 = vand.u32 %v244, 4294901760
    %v7849 = vsub.f32 %v244, %v7848
    %7850 = vmatprep.subr.mxu0 %v7849
    %v7851 = vand.u32 %v243, 4294901760
    %v7852 = vsub.f32 %v243, %v7851
    %7853 = vmatpush1.msra.mxu0 %v7852
    %v7854 = vand.u32 %v220, 4294901760
    %v7855 = vsub.f32 %v220, %v7854
    %7856 = vmatprep.subr.mxu0 %v7855
    %v7857 = vand.u32 %v219, 4294901760
    %v7858 = vsub.f32 %v219, %v7857
    %7859 = vmatpush1.msra.mxu0 %v7858
    %v7860 = vand.u32 %v196, 4294901760
    %v7861 = vsub.f32 %v196, %v7860
    %7862 = vmatprep.subr.mxu0 %v7861
    %v7863 = vand.u32 %v195, 4294901760
    %v7864 = vsub.f32 %v195, %v7863
    %7865 = vmatpush1.msra.mxu0 %v7864
    %v7866 = vand.u32 %v172, 4294901760
    %v7867 = vsub.f32 %v172, %v7866
    %7868 = vmatprep.subr.mxu0 %v7867
    %v7869 = vand.u32 %v171, 4294901760
    %v7870 = vsub.f32 %v171, %v7869
    %7871 = vmatpush1.msra.mxu0 %v7870
    %v7872 = vand.u32 %v148, 4294901760
    %v7873 = vsub.f32 %v148, %v7872
    %7874 = vmatprep.subr.mxu0 %v7873
    %v7875 = vand.u32 %v147, 4294901760
    %v7876 = vsub.f32 %v147, %v7875
    %7877 = vmatpush1.msra.mxu0 %v7876
    %v7878 = vand.u32 %v124, 4294901760
    %v7879 = vsub.f32 %v124, %v7878
    %7880 = vmatprep.subr.mxu0 %v7879
    %v7881 = vand.u32 %v123, 4294901760
    %v7882 = vsub.f32 %v123, %v7881
    %7883 = vmatpush1.msra.mxu0 %v7882
    %v7884 = vand.u32 %v100, 4294901760
    %v7885 = vsub.f32 %v100, %v7884
    %7886 = vmatprep.subr.mxu0 %v7885
    %v7887 = vand.u32 %v99, 4294901760
    %v7888 = vsub.f32 %v99, %v7887
    %7889 = vmatpush1.msra.mxu0 %v7888
    %v7890 = vand.u32 %v76, 4294901760
    %v7891 = vsub.f32 %v76, %v7890
    %7892 = vmatprep.subr.mxu0 %v7891
    %v7893 = vand.u32 %v75, 4294901760
    %v7894 = vsub.f32 %v75, %v7893
    %7895 = vmatpush1.msra.mxu0 %v7894
    %7896 = vmatprep.subr.mxu0 0.0
    %7897 = vmatpush2.msra.mxu0 0.0
    %7898 = vmatprep.subr.mxu0 0.0
    %7899 = vmatpush2.msra.mxu0 0.0
    %7900 = vmatprep.subr.mxu0 0.0
    %7901 = vmatpush2.msra.mxu0 0.0
    %7902 = vmatprep.subr.mxu0 0.0
    %7903 = vmatpush2.msra.mxu0 0.0
    %7904 = vmatprep.subr.mxu0 0.0
    %7905 = vmatpush2.msra.mxu0 0.0
    %7906 = vmatprep.subr.mxu0 0.0
    %7907 = vmatpush2.msra.mxu0 0.0
    %7908 = vmatprep.subr.mxu0 0.0
    %7909 = vmatpush2.msra.mxu0 0.0
    %7910 = vmatprep.subr.mxu0 0.0
    %7911 = vmatpush2.msra.mxu0 0.0
    %7912 = vmatprep.subr.mxu0 0.0
    %7913 = vmatpush2.msra.mxu0 0.0
    %7914 = vmatprep.subr.mxu0 0.0
    %7915 = vmatpush2.msra.mxu0 0.0
    %7916 = vmatprep.subr.mxu0 0.0
    %7917 = vmatpush2.msra.mxu0 0.0
    %7918 = vmatprep.subr.mxu0 0.0
    %7919 = vmatpush2.msra.mxu0 0.0
    %7920 = vmatprep.subr.mxu0 0.0
    %7921 = vmatpush2.msra.mxu0 0.0
    %7922 = vmatprep.subr.mxu0 0.0
    %7923 = vmatpush2.msra.mxu0 0.0
    %7924 = vmatprep.subr.mxu0 0.0
    %7925 = vmatpush2.msra.mxu0 0.0
    %7926 = vmatprep.subr.mxu0 0.0
    %7927 = vmatpush2.msra.mxu0 0.0
    %7928 = vmatprep.mubr.f32.mxu0 0.0
    %v7929 = vand.u32 %v377, 4294901760
    %v7930 = vsub.f32 %v377, %v7929
    %7931 = vmatmul.mubr.f32.gmra.mxu0 %v7930
    %v7932 = vpop.f32.mrf.mxu0
    %v7933 = vadd.f32 %v7807, %v7932
    %v7934 = vpop.f32.mrf.mxu0
    %v7935 = vadd.f32 %v7809, %v7934
    %7936 = vmatprep.mubr.f32.mxu0 0.0
    %v7937 = vand.u32 %v380, 4294901760
    %v7938 = vsub.f32 %v380, %v7937
    %7939 = vmatmul.mubr.f32.gmra.mxu0 %v7938
    %v7940 = vpop.f32.mrf.mxu0
    %v7941 = vadd.f32 %v7814, %v7940
    %v7942 = vpop.f32.mrf.mxu0
    %v7943 = vadd.f32 %v7816, %v7942
    %7944 = vmatprep.mubr.f32.mxu0 0.0
    %v7945 = vand.u32 %v383, 4294901760
    %v7946 = vsub.f32 %v383, %v7945
    %7947 = vmatmul.mubr.f32.gmra.mxu0 %v7946
    %v7948 = vpop.f32.mrf.mxu0
    %v7949 = vadd.f32 %v7821, %v7948
    %v7950 = vpop.f32.mrf.mxu0
    %v7951 = vadd.f32 %v7823, %v7950
    %7952 = vmatprep.mubr.f32.mxu0 0.0
    %v7953 = vand.u32 %v386, 4294901760
    %v7954 = vsub.f32 %v386, %v7953
    %7955 = vmatmul.mubr.f32.gmra.mxu0 %v7954
    %v7956 = vpop.f32.mrf.mxu0
    %v7957 = vadd.f32 %v7828, %v7956
    %v7958 = vpop.f32.mrf.mxu0
    %v7959 = vadd.f32 %v7830, %v7958
    %7960 = vdwg.mxu0
    %7961 = vmatprep.subr.mxu0 0.0
    %7962 = vmatpush1.msra.mxu0 0.0
    %7963 = vmatprep.subr.mxu0 0.0
    %7964 = vmatpush1.msra.mxu0 0.0
    %7965 = vmatprep.subr.mxu0 0.0
    %7966 = vmatpush1.msra.mxu0 0.0
    %7967 = vmatprep.subr.mxu0 0.0
    %7968 = vmatpush1.msra.mxu0 0.0
    %7969 = vmatprep.subr.mxu0 0.0
    %7970 = vmatpush1.msra.mxu0 0.0
    %7971 = vmatprep.subr.mxu0 0.0
    %7972 = vmatpush1.msra.mxu0 0.0
    %7973 = vmatprep.subr.mxu0 0.0
    %7974 = vmatpush1.msra.mxu0 0.0
    %7975 = vmatprep.subr.mxu0 0.0
    %7976 = vmatpush1.msra.mxu0 0.0
    %v7977 = vand.u32 %v244, 4294901760
    %7978 = vmatprep.subr.mxu0 %v7977
    %v7979 = vand.u32 %v243, 4294901760
    %7980 = vmatpush1.msra.mxu0 %v7979
    %v7981 = vand.u32 %v220, 4294901760
    %7982 = vmatprep.subr.mxu0 %v7981
    %v7983 = vand.u32 %v219, 4294901760
    %7984 = vmatpush1.msra.mxu0 %v7983
    %v7985 = vand.u32 %v196, 4294901760
    %7986 = vmatprep.subr.mxu0 %v7985
    %v7987 = vand.u32 %v195, 4294901760
    %7988 = vmatpush1.msra.mxu0 %v7987
    %v7989 = vand.u32 %v172, 4294901760
    %7990 = vmatprep.subr.mxu0 %v7989
    %v7991 = vand.u32 %v171, 4294901760
    %7992 = vmatpush1.msra.mxu0 %v7991
    %v7993 = vand.u32 %v148, 4294901760
    %7994 = vmatprep.subr.mxu0 %v7993
    %v7995 = vand.u32 %v147, 4294901760
    %7996 = vmatpush1.msra.mxu0 %v7995
    %v7997 = vand.u32 %v124, 4294901760
    %7998 = vmatprep.subr.mxu0 %v7997
    %v7999 = vand.u32 %v123, 4294901760
    %8000 = vmatpush1.msra.mxu0 %v7999
    %v8001 = vand.u32 %v100, 4294901760
    %8002 = vmatprep.subr.mxu0 %v8001
    %v8003 = vand.u32 %v99, 4294901760
    %8004 = vmatpush1.msra.mxu0 %v8003
    %v8005 = vand.u32 %v76, 4294901760
    %8006 = vmatprep.subr.mxu0 %v8005
    %v8007 = vand.u32 %v75, 4294901760
    %8008 = vmatpush1.msra.mxu0 %v8007
    %8009 = vmatprep.subr.mxu0 0.0
    %8010 = vmatpush2.msra.mxu0 0.0
    %8011 = vmatprep.subr.mxu0 0.0
    %8012 = vmatpush2.msra.mxu0 0.0
    %8013 = vmatprep.subr.mxu0 0.0
    %8014 = vmatpush2.msra.mxu0 0.0
    %8015 = vmatprep.subr.mxu0 0.0
    %8016 = vmatpush2.msra.mxu0 0.0
    %8017 = vmatprep.subr.mxu0 0.0
    %8018 = vmatpush2.msra.mxu0 0.0
    %8019 = vmatprep.subr.mxu0 0.0
    %8020 = vmatpush2.msra.mxu0 0.0
    %8021 = vmatprep.subr.mxu0 0.0
    %8022 = vmatpush2.msra.mxu0 0.0
    %8023 = vmatprep.subr.mxu0 0.0
    %8024 = vmatpush2.msra.mxu0 0.0
    %8025 = vmatprep.subr.mxu0 0.0
    %8026 = vmatpush2.msra.mxu0 0.0
    %8027 = vmatprep.subr.mxu0 0.0
    %8028 = vmatpush2.msra.mxu0 0.0
    %8029 = vmatprep.subr.mxu0 0.0
    %8030 = vmatpush2.msra.mxu0 0.0
    %8031 = vmatprep.subr.mxu0 0.0
    %8032 = vmatpush2.msra.mxu0 0.0
    %8033 = vmatprep.subr.mxu0 0.0
    %8034 = vmatpush2.msra.mxu0 0.0
    %8035 = vmatprep.subr.mxu0 0.0
    %8036 = vmatpush2.msra.mxu0 0.0
    %8037 = vmatprep.subr.mxu0 0.0
    %8038 = vmatpush2.msra.mxu0 0.0
    %8039 = vmatprep.subr.mxu0 0.0
    %8040 = vmatpush2.msra.mxu0 0.0
    %8041 = vmatprep.mubr.f32.mxu0 0.0
    %v8042 = vand.u32 %v377, 4294901760
    %v8043 = vsub.f32 %v377, %v8042
    %v8044 = vand.u32 %v8043, 4294901760
    %8045 = vmatmul.mubr.f32.gmra.mxu0 %v8044
    %v8046 = vpop.f32.mrf.mxu0
    %v8047 = vadd.f32 %v7933, %v8046
    %v8048 = vpop.f32.mrf.mxu0
    %v8049 = vadd.f32 %v7935, %v8048
    %8050 = vmatprep.mubr.f32.mxu0 0.0
    %v8051 = vand.u32 %v380, 4294901760
    %v8052 = vsub.f32 %v380, %v8051
    %v8053 = vand.u32 %v8052, 4294901760
    %8054 = vmatmul.mubr.f32.gmra.mxu0 %v8053
    %v8055 = vpop.f32.mrf.mxu0
    %v8056 = vadd.f32 %v7941, %v8055
    %v8057 = vpop.f32.mrf.mxu0
    %v8058 = vadd.f32 %v7943, %v8057
    %8059 = vmatprep.mubr.f32.mxu0 0.0
    %v8060 = vand.u32 %v383, 4294901760
    %v8061 = vsub.f32 %v383, %v8060
    %v8062 = vand.u32 %v8061, 4294901760
    %8063 = vmatmul.mubr.f32.gmra.mxu0 %v8062
    %v8064 = vpop.f32.mrf.mxu0
    %v8065 = vadd.f32 %v7949, %v8064
    %v8066 = vpop.f32.mrf.mxu0
    %v8067 = vadd.f32 %v7951, %v8066
    %8068 = vmatprep.mubr.f32.mxu0 0.0
    %v8069 = vand.u32 %v386, 4294901760
    %v8070 = vsub.f32 %v386, %v8069
    %v8071 = vand.u32 %v8070, 4294901760
    %8072 = vmatmul.mubr.f32.gmra.mxu0 %v8071
    %v8073 = vpop.f32.mrf.mxu0
    %v8074 = vadd.f32 %v7957, %v8073
    %v8075 = vpop.f32.mrf.mxu0
    %v8076 = vadd.f32 %v7959, %v8075
    %8077 = vdwg.mxu0
    %8078 = vmatprep.subr.mxu0 0.0
    %8079 = vmatpush1.msra.mxu0 0.0
    %8080 = vmatprep.subr.mxu0 0.0
    %8081 = vmatpush1.msra.mxu0 0.0
    %8082 = vmatprep.subr.mxu0 0.0
    %8083 = vmatpush1.msra.mxu0 0.0
    %8084 = vmatprep.subr.mxu0 0.0
    %8085 = vmatpush1.msra.mxu0 0.0
    %8086 = vmatprep.subr.mxu0 0.0
    %8087 = vmatpush1.msra.mxu0 0.0
    %8088 = vmatprep.subr.mxu0 0.0
    %8089 = vmatpush1.msra.mxu0 0.0
    %8090 = vmatprep.subr.mxu0 0.0
    %8091 = vmatpush1.msra.mxu0 0.0
    %8092 = vmatprep.subr.mxu0 0.0
    %8093 = vmatpush1.msra.mxu0 0.0
    %v8094 = vand.u32 %v244, 4294901760
    %v8095 = vsub.f32 %v244, %v8094
    %v8096 = vand.u32 %v8095, 4294901760
    %8097 = vmatprep.subr.mxu0 %v8096
    %v8098 = vand.u32 %v243, 4294901760
    %v8099 = vsub.f32 %v243, %v8098
    %v8100 = vand.u32 %v8099, 4294901760
    %8101 = vmatpush1.msra.mxu0 %v8100
    %v8102 = vand.u32 %v220, 4294901760
    %v8103 = vsub.f32 %v220, %v8102
    %v8104 = vand.u32 %v8103, 4294901760
    %8105 = vmatprep.subr.mxu0 %v8104
    %v8106 = vand.u32 %v219, 4294901760
    %v8107 = vsub.f32 %v219, %v8106
    %v8108 = vand.u32 %v8107, 4294901760
    %8109 = vmatpush1.msra.mxu0 %v8108
    %v8110 = vand.u32 %v196, 4294901760
    %v8111 = vsub.f32 %v196, %v8110
    %v8112 = vand.u32 %v8111, 4294901760
    %8113 = vmatprep.subr.mxu0 %v8112
    %v8114 = vand.u32 %v195, 4294901760
    %v8115 = vsub.f32 %v195, %v8114
    %v8116 = vand.u32 %v8115, 4294901760
    %8117 = vmatpush1.msra.mxu0 %v8116
    %v8118 = vand.u32 %v172, 4294901760
    %v8119 = vsub.f32 %v172, %v8118
    %v8120 = vand.u32 %v8119, 4294901760
    %8121 = vmatprep.subr.mxu0 %v8120
    %v8122 = vand.u32 %v171, 4294901760
    %v8123 = vsub.f32 %v171, %v8122
    %v8124 = vand.u32 %v8123, 4294901760
    %8125 = vmatpush1.msra.mxu0 %v8124
    %v8126 = vand.u32 %v148, 4294901760
    %v8127 = vsub.f32 %v148, %v8126
    %v8128 = vand.u32 %v8127, 4294901760
    %8129 = vmatprep.subr.mxu0 %v8128
    %v8130 = vand.u32 %v147, 4294901760
    %v8131 = vsub.f32 %v147, %v8130
    %v8132 = vand.u32 %v8131, 4294901760
    %8133 = vmatpush1.msra.mxu0 %v8132
    %v8134 = vand.u32 %v124, 4294901760
    %v8135 = vsub.f32 %v124, %v8134
    %v8136 = vand.u32 %v8135, 4294901760
    %8137 = vmatprep.subr.mxu0 %v8136
    %v8138 = vand.u32 %v123, 4294901760
    %v8139 = vsub.f32 %v123, %v8138
    %v8140 = vand.u32 %v8139, 4294901760
    %8141 = vmatpush1.msra.mxu0 %v8140
    %v8142 = vand.u32 %v100, 4294901760
    %v8143 = vsub.f32 %v100, %v8142
    %v8144 = vand.u32 %v8143, 4294901760
    %8145 = vmatprep.subr.mxu0 %v8144
    %v8146 = vand.u32 %v99, 4294901760
    %v8147 = vsub.f32 %v99, %v8146
    %v8148 = vand.u32 %v8147, 4294901760
    %8149 = vmatpush1.msra.mxu0 %v8148
    %v8150 = vand.u32 %v76, 4294901760
    %v8151 = vsub.f32 %v76, %v8150
    %v8152 = vand.u32 %v8151, 4294901760
    %8153 = vmatprep.subr.mxu0 %v8152
    %v8154 = vand.u32 %v75, 4294901760
    %v8155 = vsub.f32 %v75, %v8154
    %v8156 = vand.u32 %v8155, 4294901760
    %8157 = vmatpush1.msra.mxu0 %v8156
    %8158 = vmatprep.subr.mxu0 0.0
    %8159 = vmatpush2.msra.mxu0 0.0
    %8160 = vmatprep.subr.mxu0 0.0
    %8161 = vmatpush2.msra.mxu0 0.0
    %8162 = vmatprep.subr.mxu0 0.0
    %8163 = vmatpush2.msra.mxu0 0.0
    %8164 = vmatprep.subr.mxu0 0.0
    %8165 = vmatpush2.msra.mxu0 0.0
    %8166 = vmatprep.subr.mxu0 0.0
    %8167 = vmatpush2.msra.mxu0 0.0
    %8168 = vmatprep.subr.mxu0 0.0
    %8169 = vmatpush2.msra.mxu0 0.0
    %8170 = vmatprep.subr.mxu0 0.0
    %8171 = vmatpush2.msra.mxu0 0.0
    %8172 = vmatprep.subr.mxu0 0.0
    %8173 = vmatpush2.msra.mxu0 0.0
    %8174 = vmatprep.subr.mxu0 0.0
    %8175 = vmatpush2.msra.mxu0 0.0
    %8176 = vmatprep.subr.mxu0 0.0
    %8177 = vmatpush2.msra.mxu0 0.0
    %8178 = vmatprep.subr.mxu0 0.0
    %8179 = vmatpush2.msra.mxu0 0.0
    %8180 = vmatprep.subr.mxu0 0.0
    %8181 = vmatpush2.msra.mxu0 0.0
    %8182 = vmatprep.subr.mxu0 0.0
    %8183 = vmatpush2.msra.mxu0 0.0
    %8184 = vmatprep.subr.mxu0 0.0
    %8185 = vmatpush2.msra.mxu0 0.0
    %8186 = vmatprep.subr.mxu0 0.0
    %8187 = vmatpush2.msra.mxu0 0.0
    %8188 = vmatprep.subr.mxu0 0.0
    %8189 = vmatpush2.msra.mxu0 0.0
    %8190 = vmatprep.mubr.f32.mxu0 0.0
    %v8191 = vand.u32 %v377, 4294901760
    %8192 = vmatmul.mubr.f32.gmra.mxu0 %v8191
    %v8193 = vpop.f32.mrf.mxu0
    %v8194 = vadd.f32 %v8047, %v8193
    %v8195 = vpop.f32.mrf.mxu0
    %v8196 = vadd.f32 %v8049, %v8195
    %8197 = vmatprep.mubr.f32.mxu0 0.0
    %v8198 = vand.u32 %v380, 4294901760
    %8199 = vmatmul.mubr.f32.gmra.mxu0 %v8198
    %v8200 = vpop.f32.mrf.mxu0
    %v8201 = vadd.f32 %v8056, %v8200
    %v8202 = vpop.f32.mrf.mxu0
    %v8203 = vadd.f32 %v8058, %v8202
    %8204 = vmatprep.mubr.f32.mxu0 0.0
    %v8205 = vand.u32 %v383, 4294901760
    %8206 = vmatmul.mubr.f32.gmra.mxu0 %v8205
    %v8207 = vpop.f32.mrf.mxu0
    %v8208 = vadd.f32 %v8065, %v8207
    %v8209 = vpop.f32.mrf.mxu0
    %v8210 = vadd.f32 %v8067, %v8209
    %8211 = vmatprep.mubr.f32.mxu0 0.0
    %v8212 = vand.u32 %v386, 4294901760
    %8213 = vmatmul.mubr.f32.gmra.mxu0 %v8212
    %v8214 = vpop.f32.mrf.mxu0
    %v8215 = vadd.f32 %v8074, %v8214
    %v8216 = vpop.f32.mrf.mxu0
    %v8217 = vadd.f32 %v8076, %v8216
    %8218 = vdwg.mxu0
    %8219 = vmatprep.subr.mxu0 0.0
    %8220 = vmatpush1.msra.mxu0 0.0
    %8221 = vmatprep.subr.mxu0 0.0
    %8222 = vmatpush1.msra.mxu0 0.0
    %8223 = vmatprep.subr.mxu0 0.0
    %8224 = vmatpush1.msra.mxu0 0.0
    %8225 = vmatprep.subr.mxu0 0.0
    %8226 = vmatpush1.msra.mxu0 0.0
    %8227 = vmatprep.subr.mxu0 0.0
    %8228 = vmatpush1.msra.mxu0 0.0
    %8229 = vmatprep.subr.mxu0 0.0
    %8230 = vmatpush1.msra.mxu0 0.0
    %8231 = vmatprep.subr.mxu0 0.0
    %8232 = vmatpush1.msra.mxu0 0.0
    %8233 = vmatprep.subr.mxu0 0.0
    %8234 = vmatpush1.msra.mxu0 0.0
    %v8235 = vand.u32 %v244, 4294901760
    %8236 = vmatprep.subr.mxu0 %v8235
    %v8237 = vand.u32 %v243, 4294901760
    %8238 = vmatpush1.msra.mxu0 %v8237
    %v8239 = vand.u32 %v220, 4294901760
    %8240 = vmatprep.subr.mxu0 %v8239
    %v8241 = vand.u32 %v219, 4294901760
    %8242 = vmatpush1.msra.mxu0 %v8241
    %v8243 = vand.u32 %v196, 4294901760
    %8244 = vmatprep.subr.mxu0 %v8243
    %v8245 = vand.u32 %v195, 4294901760
    %8246 = vmatpush1.msra.mxu0 %v8245
    %v8247 = vand.u32 %v172, 4294901760
    %8248 = vmatprep.subr.mxu0 %v8247
    %v8249 = vand.u32 %v171, 4294901760
    %8250 = vmatpush1.msra.mxu0 %v8249
    %v8251 = vand.u32 %v148, 4294901760
    %8252 = vmatprep.subr.mxu0 %v8251
    %v8253 = vand.u32 %v147, 4294901760
    %8254 = vmatpush1.msra.mxu0 %v8253
    %v8255 = vand.u32 %v124, 4294901760
    %8256 = vmatprep.subr.mxu0 %v8255
    %v8257 = vand.u32 %v123, 4294901760
    %8258 = vmatpush1.msra.mxu0 %v8257
    %v8259 = vand.u32 %v100, 4294901760
    %8260 = vmatprep.subr.mxu0 %v8259
    %v8261 = vand.u32 %v99, 4294901760
    %8262 = vmatpush1.msra.mxu0 %v8261
    %v8263 = vand.u32 %v76, 4294901760
    %8264 = vmatprep.subr.mxu0 %v8263
    %v8265 = vand.u32 %v75, 4294901760
    %8266 = vmatpush1.msra.mxu0 %v8265
    %8267 = vmatprep.subr.mxu0 0.0
    %8268 = vmatpush2.msra.mxu0 0.0
    %8269 = vmatprep.subr.mxu0 0.0
    %8270 = vmatpush2.msra.mxu0 0.0
    %8271 = vmatprep.subr.mxu0 0.0
    %8272 = vmatpush2.msra.mxu0 0.0
    %8273 = vmatprep.subr.mxu0 0.0
    %8274 = vmatpush2.msra.mxu0 0.0
    %8275 = vmatprep.subr.mxu0 0.0
    %8276 = vmatpush2.msra.mxu0 0.0
    %8277 = vmatprep.subr.mxu0 0.0
    %8278 = vmatpush2.msra.mxu0 0.0
    %8279 = vmatprep.subr.mxu0 0.0
    %8280 = vmatpush2.msra.mxu0 0.0
    %8281 = vmatprep.subr.mxu0 0.0
    %8282 = vmatpush2.msra.mxu0 0.0
    %8283 = vmatprep.subr.mxu0 0.0
    %8284 = vmatpush2.msra.mxu0 0.0
    %8285 = vmatprep.subr.mxu0 0.0
    %8286 = vmatpush2.msra.mxu0 0.0
    %8287 = vmatprep.subr.mxu0 0.0
    %8288 = vmatpush2.msra.mxu0 0.0
    %8289 = vmatprep.subr.mxu0 0.0
    %8290 = vmatpush2.msra.mxu0 0.0
    %8291 = vmatprep.subr.mxu0 0.0
    %8292 = vmatpush2.msra.mxu0 0.0
    %8293 = vmatprep.subr.mxu0 0.0
    %8294 = vmatpush2.msra.mxu0 0.0
    %8295 = vmatprep.subr.mxu0 0.0
    %8296 = vmatpush2.msra.mxu0 0.0
    %8297 = vmatprep.subr.mxu0 0.0
    %8298 = vmatpush2.msra.mxu0 0.0
    %8299 = vmatprep.mubr.f32.mxu0 0.0
    %v8300 = vand.u32 %v377, 4294901760
    %8301 = vmatmul.mubr.f32.gmra.mxu0 %v8300
    %v8302 = vpop.f32.mrf.mxu0
    %v8303 = vadd.f32 %v8194, %v8302
    %v8304 = vpop.f32.mrf.mxu0
    %v8305 = vadd.f32 %v8196, %v8304
    %8306 = vmatprep.mubr.f32.mxu0 0.0
    %v8307 = vand.u32 %v380, 4294901760
    %8308 = vmatmul.mubr.f32.gmra.mxu0 %v8307
    %v8309 = vpop.f32.mrf.mxu0
    %v8310 = vadd.f32 %v8201, %v8309
    %v8311 = vpop.f32.mrf.mxu0
    %v8312 = vadd.f32 %v8203, %v8311
    %8313 = vmatprep.mubr.f32.mxu0 0.0
    %v8314 = vand.u32 %v383, 4294901760
    %8315 = vmatmul.mubr.f32.gmra.mxu0 %v8314
    %v8316 = vpop.f32.mrf.mxu0
    %v8317 = vadd.f32 %v8208, %v8316
    %v8318 = vpop.f32.mrf.mxu0
    %v8319 = vadd.f32 %v8210, %v8318
    %8320 = vmatprep.mubr.f32.mxu0 0.0
    %v8321 = vand.u32 %v386, 4294901760
    %8322 = vmatmul.mubr.f32.gmra.mxu0 %v8321
    %v8323 = vpop.f32.mrf.mxu0
    %v8324 = vadd.f32 %v8215, %v8323
    %v8325 = vpop.f32.mrf.mxu0
    %v8326 = vadd.f32 %v8217, %v8325
    %8327 = vdwg.mxu0
    %8328 = vmatprep.subr.mxu0 0.0
    %8329 = vmatpush1.msra.mxu0 0.0
    %8330 = vmatprep.subr.mxu0 0.0
    %8331 = vmatpush1.msra.mxu0 0.0
    %8332 = vmatprep.subr.mxu0 0.0
    %8333 = vmatpush1.msra.mxu0 0.0
    %8334 = vmatprep.subr.mxu0 0.0
    %8335 = vmatpush1.msra.mxu0 0.0
    %8336 = vmatprep.subr.mxu0 0.0
    %8337 = vmatpush1.msra.mxu0 0.0
    %8338 = vmatprep.subr.mxu0 0.0
    %8339 = vmatpush1.msra.mxu0 0.0
    %8340 = vmatprep.subr.mxu0 0.0
    %8341 = vmatpush1.msra.mxu0 0.0
    %8342 = vmatprep.subr.mxu0 0.0
    %8343 = vmatpush1.msra.mxu0 0.0
    %v8344 = vand.u32 %v246, 4294901760
    %8345 = vmatprep.subr.mxu0 %v8344
    %v8346 = vand.u32 %v245, 4294901760
    %8347 = vmatpush1.msra.mxu0 %v8346
    %v8348 = vand.u32 %v222, 4294901760
    %8349 = vmatprep.subr.mxu0 %v8348
    %v8350 = vand.u32 %v221, 4294901760
    %8351 = vmatpush1.msra.mxu0 %v8350
    %v8352 = vand.u32 %v198, 4294901760
    %8353 = vmatprep.subr.mxu0 %v8352
    %v8354 = vand.u32 %v197, 4294901760
    %8355 = vmatpush1.msra.mxu0 %v8354
    %v8356 = vand.u32 %v174, 4294901760
    %8357 = vmatprep.subr.mxu0 %v8356
    %v8358 = vand.u32 %v173, 4294901760
    %8359 = vmatpush1.msra.mxu0 %v8358
    %v8360 = vand.u32 %v150, 4294901760
    %8361 = vmatprep.subr.mxu0 %v8360
    %v8362 = vand.u32 %v149, 4294901760
    %8363 = vmatpush1.msra.mxu0 %v8362
    %v8364 = vand.u32 %v126, 4294901760
    %8365 = vmatprep.subr.mxu0 %v8364
    %v8366 = vand.u32 %v125, 4294901760
    %8367 = vmatpush1.msra.mxu0 %v8366
    %v8368 = vand.u32 %v102, 4294901760
    %8369 = vmatprep.subr.mxu0 %v8368
    %v8370 = vand.u32 %v101, 4294901760
    %8371 = vmatpush1.msra.mxu0 %v8370
    %v8372 = vand.u32 %v78, 4294901760
    %8373 = vmatprep.subr.mxu0 %v8372
    %v8374 = vand.u32 %v77, 4294901760
    %8375 = vmatpush1.msra.mxu0 %v8374
    %8376 = vmatprep.subr.mxu0 0.0
    %8377 = vmatpush2.msra.mxu0 0.0
    %8378 = vmatprep.subr.mxu0 0.0
    %8379 = vmatpush2.msra.mxu0 0.0
    %8380 = vmatprep.subr.mxu0 0.0
    %8381 = vmatpush2.msra.mxu0 0.0
    %8382 = vmatprep.subr.mxu0 0.0
    %8383 = vmatpush2.msra.mxu0 0.0
    %8384 = vmatprep.subr.mxu0 0.0
    %8385 = vmatpush2.msra.mxu0 0.0
    %8386 = vmatprep.subr.mxu0 0.0
    %8387 = vmatpush2.msra.mxu0 0.0
    %8388 = vmatprep.subr.mxu0 0.0
    %8389 = vmatpush2.msra.mxu0 0.0
    %8390 = vmatprep.subr.mxu0 0.0
    %8391 = vmatpush2.msra.mxu0 0.0
    %8392 = vmatprep.subr.mxu0 0.0
    %8393 = vmatpush2.msra.mxu0 0.0
    %8394 = vmatprep.subr.mxu0 0.0
    %8395 = vmatpush2.msra.mxu0 0.0
    %8396 = vmatprep.subr.mxu0 0.0
    %8397 = vmatpush2.msra.mxu0 0.0
    %8398 = vmatprep.subr.mxu0 0.0
    %8399 = vmatpush2.msra.mxu0 0.0
    %8400 = vmatprep.subr.mxu0 0.0
    %8401 = vmatpush2.msra.mxu0 0.0
    %8402 = vmatprep.subr.mxu0 0.0
    %8403 = vmatpush2.msra.mxu0 0.0
    %8404 = vmatprep.subr.mxu0 0.0
    %8405 = vmatpush2.msra.mxu0 0.0
    %8406 = vmatprep.subr.mxu0 0.0
    %8407 = vmatpush2.msra.mxu0 0.0
    %8408 = vmatprep.mubr.f32.mxu0 0.0
    %v8409 = vand.u32 %v377, 4294901760
    %v8410 = vsub.f32 %v377, %v8409
    %v8411 = vand.u32 %v8410, 4294901760
    %v8412 = vsub.f32 %v8410, %v8411
    %v8413 = vand.u32 %v8412, 4294901760
    %8414 = vmatmul.mubr.f32.gmra.mxu0 %v8413
    %v8415 = vpop.f32.mrf.mxu0
    %v8416 = vadd.f32 %v338, %v8415
    %v8417 = vpop.f32.mrf.mxu0
    %v8418 = vadd.f32 %v342, %v8417
    %8419 = vmatprep.mubr.f32.mxu0 0.0
    %v8420 = vand.u32 %v380, 4294901760
    %v8421 = vsub.f32 %v380, %v8420
    %v8422 = vand.u32 %v8421, 4294901760
    %v8423 = vsub.f32 %v8421, %v8422
    %v8424 = vand.u32 %v8423, 4294901760
    %8425 = vmatmul.mubr.f32.gmra.mxu0 %v8424
    %v8426 = vpop.f32.mrf.mxu0
    %v8427 = vadd.f32 %v338, %v8426
    %v8428 = vpop.f32.mrf.mxu0
    %v8429 = vadd.f32 %v342, %v8428
    %8430 = vmatprep.mubr.f32.mxu0 0.0
    %v8431 = vand.u32 %v383, 4294901760
    %v8432 = vsub.f32 %v383, %v8431
    %v8433 = vand.u32 %v8432, 4294901760
    %v8434 = vsub.f32 %v8432, %v8433
    %v8435 = vand.u32 %v8434, 4294901760
    %8436 = vmatmul.mubr.f32.gmra.mxu0 %v8435
    %v8437 = vpop.f32.mrf.mxu0
    %v8438 = vadd.f32 %v338, %v8437
    %v8439 = vpop.f32.mrf.mxu0
    %v8440 = vadd.f32 %v342, %v8439
    %8441 = vmatprep.mubr.f32.mxu0 0.0
    %v8442 = vand.u32 %v386, 4294901760
    %v8443 = vsub.f32 %v386, %v8442
    %v8444 = vand.u32 %v8443, 4294901760
    %v8445 = vsub.f32 %v8443, %v8444
    %v8446 = vand.u32 %v8445, 4294901760
    %8447 = vmatmul.mubr.f32.gmra.mxu0 %v8446
    %v8448 = vpop.f32.mrf.mxu0
    %v8449 = vadd.f32 %v338, %v8448
    %v8450 = vpop.f32.mrf.mxu0
    %v8451 = vadd.f32 %v342, %v8450
    %8452 = vdwg.mxu0
    %8453 = vmatprep.subr.mxu0 0.0
    %8454 = vmatpush1.msra.mxu0 0.0
    %8455 = vmatprep.subr.mxu0 0.0
    %8456 = vmatpush1.msra.mxu0 0.0
    %8457 = vmatprep.subr.mxu0 0.0
    %8458 = vmatpush1.msra.mxu0 0.0
    %8459 = vmatprep.subr.mxu0 0.0
    %8460 = vmatpush1.msra.mxu0 0.0
    %8461 = vmatprep.subr.mxu0 0.0
    %8462 = vmatpush1.msra.mxu0 0.0
    %8463 = vmatprep.subr.mxu0 0.0
    %8464 = vmatpush1.msra.mxu0 0.0
    %8465 = vmatprep.subr.mxu0 0.0
    %8466 = vmatpush1.msra.mxu0 0.0
    %8467 = vmatprep.subr.mxu0 0.0
    %8468 = vmatpush1.msra.mxu0 0.0
    %v8469 = vand.u32 %v246, 4294901760
    %v8470 = vsub.f32 %v246, %v8469
    %v8471 = vand.u32 %v8470, 4294901760
    %v8472 = vsub.f32 %v8470, %v8471
    %v8473 = vand.u32 %v8472, 4294901760
    %8474 = vmatprep.subr.mxu0 %v8473
    %v8475 = vand.u32 %v245, 4294901760
    %v8476 = vsub.f32 %v245, %v8475
    %v8477 = vand.u32 %v8476, 4294901760
    %v8478 = vsub.f32 %v8476, %v8477
    %v8479 = vand.u32 %v8478, 4294901760
    %8480 = vmatpush1.msra.mxu0 %v8479
    %v8481 = vand.u32 %v222, 4294901760
    %v8482 = vsub.f32 %v222, %v8481
    %v8483 = vand.u32 %v8482, 4294901760
    %v8484 = vsub.f32 %v8482, %v8483
    %v8485 = vand.u32 %v8484, 4294901760
    %8486 = vmatprep.subr.mxu0 %v8485
    %v8487 = vand.u32 %v221, 4294901760
    %v8488 = vsub.f32 %v221, %v8487
    %v8489 = vand.u32 %v8488, 4294901760
    %v8490 = vsub.f32 %v8488, %v8489
    %v8491 = vand.u32 %v8490, 4294901760
    %8492 = vmatpush1.msra.mxu0 %v8491
    %v8493 = vand.u32 %v198, 4294901760
    %v8494 = vsub.f32 %v198, %v8493
    %v8495 = vand.u32 %v8494, 4294901760
    %v8496 = vsub.f32 %v8494, %v8495
    %v8497 = vand.u32 %v8496, 4294901760
    %8498 = vmatprep.subr.mxu0 %v8497
    %v8499 = vand.u32 %v197, 4294901760
    %v8500 = vsub.f32 %v197, %v8499
    %v8501 = vand.u32 %v8500, 4294901760
    %v8502 = vsub.f32 %v8500, %v8501
    %v8503 = vand.u32 %v8502, 4294901760
    %8504 = vmatpush1.msra.mxu0 %v8503
    %v8505 = vand.u32 %v174, 4294901760
    %v8506 = vsub.f32 %v174, %v8505
    %v8507 = vand.u32 %v8506, 4294901760
    %v8508 = vsub.f32 %v8506, %v8507
    %v8509 = vand.u32 %v8508, 4294901760
    %8510 = vmatprep.subr.mxu0 %v8509
    %v8511 = vand.u32 %v173, 4294901760
    %v8512 = vsub.f32 %v173, %v8511
    %v8513 = vand.u32 %v8512, 4294901760
    %v8514 = vsub.f32 %v8512, %v8513
    %v8515 = vand.u32 %v8514, 4294901760
    %8516 = vmatpush1.msra.mxu0 %v8515
    %v8517 = vand.u32 %v150, 4294901760
    %v8518 = vsub.f32 %v150, %v8517
    %v8519 = vand.u32 %v8518, 4294901760
    %v8520 = vsub.f32 %v8518, %v8519
    %v8521 = vand.u32 %v8520, 4294901760
    %8522 = vmatprep.subr.mxu0 %v8521
    %v8523 = vand.u32 %v149, 4294901760
    %v8524 = vsub.f32 %v149, %v8523
    %v8525 = vand.u32 %v8524, 4294901760
    %v8526 = vsub.f32 %v8524, %v8525
    %v8527 = vand.u32 %v8526, 4294901760
    %8528 = vmatpush1.msra.mxu0 %v8527
    %v8529 = vand.u32 %v126, 4294901760
    %v8530 = vsub.f32 %v126, %v8529
    %v8531 = vand.u32 %v8530, 4294901760
    %v8532 = vsub.f32 %v8530, %v8531
    %v8533 = vand.u32 %v8532, 4294901760
    %8534 = vmatprep.subr.mxu0 %v8533
    %v8535 = vand.u32 %v125, 4294901760
    %v8536 = vsub.f32 %v125, %v8535
    %v8537 = vand.u32 %v8536, 4294901760
    %v8538 = vsub.f32 %v8536, %v8537
    %v8539 = vand.u32 %v8538, 4294901760
    %8540 = vmatpush1.msra.mxu0 %v8539
    %v8541 = vand.u32 %v102, 4294901760
    %v8542 = vsub.f32 %v102, %v8541
    %v8543 = vand.u32 %v8542, 4294901760
    %v8544 = vsub.f32 %v8542, %v8543
    %v8545 = vand.u32 %v8544, 4294901760
    %8546 = vmatprep.subr.mxu0 %v8545
    %v8547 = vand.u32 %v101, 4294901760
    %v8548 = vsub.f32 %v101, %v8547
    %v8549 = vand.u32 %v8548, 4294901760
    %v8550 = vsub.f32 %v8548, %v8549
    %v8551 = vand.u32 %v8550, 4294901760
    %8552 = vmatpush1.msra.mxu0 %v8551
    %v8553 = vand.u32 %v78, 4294901760
    %v8554 = vsub.f32 %v78, %v8553
    %v8555 = vand.u32 %v8554, 4294901760
    %v8556 = vsub.f32 %v8554, %v8555
    %v8557 = vand.u32 %v8556, 4294901760
    %8558 = vmatprep.subr.mxu0 %v8557
    %v8559 = vand.u32 %v77, 4294901760
    %v8560 = vsub.f32 %v77, %v8559
    %v8561 = vand.u32 %v8560, 4294901760
    %v8562 = vsub.f32 %v8560, %v8561
    %v8563 = vand.u32 %v8562, 4294901760
    %8564 = vmatpush1.msra.mxu0 %v8563
    %8565 = vmatprep.subr.mxu0 0.0
    %8566 = vmatpush2.msra.mxu0 0.0
    %8567 = vmatprep.subr.mxu0 0.0
    %8568 = vmatpush2.msra.mxu0 0.0
    %8569 = vmatprep.subr.mxu0 0.0
    %8570 = vmatpush2.msra.mxu0 0.0
    %8571 = vmatprep.subr.mxu0 0.0
    %8572 = vmatpush2.msra.mxu0 0.0
    %8573 = vmatprep.subr.mxu0 0.0
    %8574 = vmatpush2.msra.mxu0 0.0
    %8575 = vmatprep.subr.mxu0 0.0
    %8576 = vmatpush2.msra.mxu0 0.0
    %8577 = vmatprep.subr.mxu0 0.0
    %8578 = vmatpush2.msra.mxu0 0.0
    %8579 = vmatprep.subr.mxu0 0.0
    %8580 = vmatpush2.msra.mxu0 0.0
    %8581 = vmatprep.subr.mxu0 0.0
    %8582 = vmatpush2.msra.mxu0 0.0
    %8583 = vmatprep.subr.mxu0 0.0
    %8584 = vmatpush2.msra.mxu0 0.0
    %8585 = vmatprep.subr.mxu0 0.0
    %8586 = vmatpush2.msra.mxu0 0.0
    %8587 = vmatprep.subr.mxu0 0.0
    %8588 = vmatpush2.msra.mxu0 0.0
    %8589 = vmatprep.subr.mxu0 0.0
    %8590 = vmatpush2.msra.mxu0 0.0
    %8591 = vmatprep.subr.mxu0 0.0
    %8592 = vmatpush2.msra.mxu0 0.0
    %8593 = vmatprep.subr.mxu0 0.0
    %8594 = vmatpush2.msra.mxu0 0.0
    %8595 = vmatprep.subr.mxu0 0.0
    %8596 = vmatpush2.msra.mxu0 0.0
    %8597 = vmatprep.mubr.f32.mxu0 0.0
    %v8598 = vand.u32 %v377, 4294901760
    %8599 = vmatmul.mubr.f32.gmra.mxu0 %v8598
    %v8600 = vpop.f32.mrf.mxu0
    %v8601 = vadd.f32 %v8416, %v8600
    %v8602 = vpop.f32.mrf.mxu0
    %v8603 = vadd.f32 %v8418, %v8602
    %8604 = vmatprep.mubr.f32.mxu0 0.0
    %v8605 = vand.u32 %v380, 4294901760
    %8606 = vmatmul.mubr.f32.gmra.mxu0 %v8605
    %v8607 = vpop.f32.mrf.mxu0
    %v8608 = vadd.f32 %v8427, %v8607
    %v8609 = vpop.f32.mrf.mxu0
    %v8610 = vadd.f32 %v8429, %v8609
    %8611 = vmatprep.mubr.f32.mxu0 0.0
    %v8612 = vand.u32 %v383, 4294901760
    %8613 = vmatmul.mubr.f32.gmra.mxu0 %v8612
    %v8614 = vpop.f32.mrf.mxu0
    %v8615 = vadd.f32 %v8438, %v8614
    %v8616 = vpop.f32.mrf.mxu0
    %v8617 = vadd.f32 %v8440, %v8616
    %8618 = vmatprep.mubr.f32.mxu0 0.0
    %v8619 = vand.u32 %v386, 4294901760
    %8620 = vmatmul.mubr.f32.gmra.mxu0 %v8619
    %v8621 = vpop.f32.mrf.mxu0
    %v8622 = vadd.f32 %v8449, %v8621
    %v8623 = vpop.f32.mrf.mxu0
    %v8624 = vadd.f32 %v8451, %v8623
    %8625 = vdwg.mxu0
    %8626 = vmatprep.subr.mxu0 0.0
    %8627 = vmatpush1.msra.mxu0 0.0
    %8628 = vmatprep.subr.mxu0 0.0
    %8629 = vmatpush1.msra.mxu0 0.0
    %8630 = vmatprep.subr.mxu0 0.0
    %8631 = vmatpush1.msra.mxu0 0.0
    %8632 = vmatprep.subr.mxu0 0.0
    %8633 = vmatpush1.msra.mxu0 0.0
    %8634 = vmatprep.subr.mxu0 0.0
    %8635 = vmatpush1.msra.mxu0 0.0
    %8636 = vmatprep.subr.mxu0 0.0
    %8637 = vmatpush1.msra.mxu0 0.0
    %8638 = vmatprep.subr.mxu0 0.0
    %8639 = vmatpush1.msra.mxu0 0.0
    %8640 = vmatprep.subr.mxu0 0.0
    %8641 = vmatpush1.msra.mxu0 0.0
    %v8642 = vand.u32 %v246, 4294901760
    %v8643 = vsub.f32 %v246, %v8642
    %8644 = vmatprep.subr.mxu0 %v8643
    %v8645 = vand.u32 %v245, 4294901760
    %v8646 = vsub.f32 %v245, %v8645
    %8647 = vmatpush1.msra.mxu0 %v8646
    %v8648 = vand.u32 %v222, 4294901760
    %v8649 = vsub.f32 %v222, %v8648
    %8650 = vmatprep.subr.mxu0 %v8649
    %v8651 = vand.u32 %v221, 4294901760
    %v8652 = vsub.f32 %v221, %v8651
    %8653 = vmatpush1.msra.mxu0 %v8652
    %v8654 = vand.u32 %v198, 4294901760
    %v8655 = vsub.f32 %v198, %v8654
    %8656 = vmatprep.subr.mxu0 %v8655
    %v8657 = vand.u32 %v197, 4294901760
    %v8658 = vsub.f32 %v197, %v8657
    %8659 = vmatpush1.msra.mxu0 %v8658
    %v8660 = vand.u32 %v174, 4294901760
    %v8661 = vsub.f32 %v174, %v8660
    %8662 = vmatprep.subr.mxu0 %v8661
    %v8663 = vand.u32 %v173, 4294901760
    %v8664 = vsub.f32 %v173, %v8663
    %8665 = vmatpush1.msra.mxu0 %v8664
    %v8666 = vand.u32 %v150, 4294901760
    %v8667 = vsub.f32 %v150, %v8666
    %8668 = vmatprep.subr.mxu0 %v8667
    %v8669 = vand.u32 %v149, 4294901760
    %v8670 = vsub.f32 %v149, %v8669
    %8671 = vmatpush1.msra.mxu0 %v8670
    %v8672 = vand.u32 %v126, 4294901760
    %v8673 = vsub.f32 %v126, %v8672
    %8674 = vmatprep.subr.mxu0 %v8673
    %v8675 = vand.u32 %v125, 4294901760
    %v8676 = vsub.f32 %v125, %v8675
    %8677 = vmatpush1.msra.mxu0 %v8676
    %v8678 = vand.u32 %v102, 4294901760
    %v8679 = vsub.f32 %v102, %v8678
    %8680 = vmatprep.subr.mxu0 %v8679
    %v8681 = vand.u32 %v101, 4294901760
    %v8682 = vsub.f32 %v101, %v8681
    %8683 = vmatpush1.msra.mxu0 %v8682
    %v8684 = vand.u32 %v78, 4294901760
    %v8685 = vsub.f32 %v78, %v8684
    %8686 = vmatprep.subr.mxu0 %v8685
    %v8687 = vand.u32 %v77, 4294901760
    %v8688 = vsub.f32 %v77, %v8687
    %8689 = vmatpush1.msra.mxu0 %v8688
    %8690 = vmatprep.subr.mxu0 0.0
    %8691 = vmatpush2.msra.mxu0 0.0
    %8692 = vmatprep.subr.mxu0 0.0
    %8693 = vmatpush2.msra.mxu0 0.0
    %8694 = vmatprep.subr.mxu0 0.0
    %8695 = vmatpush2.msra.mxu0 0.0
    %8696 = vmatprep.subr.mxu0 0.0
    %8697 = vmatpush2.msra.mxu0 0.0
    %8698 = vmatprep.subr.mxu0 0.0
    %8699 = vmatpush2.msra.mxu0 0.0
    %8700 = vmatprep.subr.mxu0 0.0
    %8701 = vmatpush2.msra.mxu0 0.0
    %8702 = vmatprep.subr.mxu0 0.0
    %8703 = vmatpush2.msra.mxu0 0.0
    %8704 = vmatprep.subr.mxu0 0.0
    %8705 = vmatpush2.msra.mxu0 0.0
    %8706 = vmatprep.subr.mxu0 0.0
    %8707 = vmatpush2.msra.mxu0 0.0
    %8708 = vmatprep.subr.mxu0 0.0
    %8709 = vmatpush2.msra.mxu0 0.0
    %8710 = vmatprep.subr.mxu0 0.0
    %8711 = vmatpush2.msra.mxu0 0.0
    %8712 = vmatprep.subr.mxu0 0.0
    %8713 = vmatpush2.msra.mxu0 0.0
    %8714 = vmatprep.subr.mxu0 0.0
    %8715 = vmatpush2.msra.mxu0 0.0
    %8716 = vmatprep.subr.mxu0 0.0
    %8717 = vmatpush2.msra.mxu0 0.0
    %8718 = vmatprep.subr.mxu0 0.0
    %8719 = vmatpush2.msra.mxu0 0.0
    %8720 = vmatprep.subr.mxu0 0.0
    %8721 = vmatpush2.msra.mxu0 0.0
    %8722 = vmatprep.mubr.f32.mxu0 0.0
    %v8723 = vand.u32 %v377, 4294901760
    %v8724 = vsub.f32 %v377, %v8723
    %8725 = vmatmul.mubr.f32.gmra.mxu0 %v8724
    %v8726 = vpop.f32.mrf.mxu0
    %v8727 = vadd.f32 %v8601, %v8726
    %v8728 = vpop.f32.mrf.mxu0
    %v8729 = vadd.f32 %v8603, %v8728
    %8730 = vmatprep.mubr.f32.mxu0 0.0
    %v8731 = vand.u32 %v380, 4294901760
    %v8732 = vsub.f32 %v380, %v8731
    %8733 = vmatmul.mubr.f32.gmra.mxu0 %v8732
    %v8734 = vpop.f32.mrf.mxu0
    %v8735 = vadd.f32 %v8608, %v8734
    %v8736 = vpop.f32.mrf.mxu0
    %v8737 = vadd.f32 %v8610, %v8736
    %8738 = vmatprep.mubr.f32.mxu0 0.0
    %v8739 = vand.u32 %v383, 4294901760
    %v8740 = vsub.f32 %v383, %v8739
    %8741 = vmatmul.mubr.f32.gmra.mxu0 %v8740
    %v8742 = vpop.f32.mrf.mxu0
    %v8743 = vadd.f32 %v8615, %v8742
    %v8744 = vpop.f32.mrf.mxu0
    %v8745 = vadd.f32 %v8617, %v8744
    %8746 = vmatprep.mubr.f32.mxu0 0.0
    %v8747 = vand.u32 %v386, 4294901760
    %v8748 = vsub.f32 %v386, %v8747
    %8749 = vmatmul.mubr.f32.gmra.mxu0 %v8748
    %v8750 = vpop.f32.mrf.mxu0
    %v8751 = vadd.f32 %v8622, %v8750
    %v8752 = vpop.f32.mrf.mxu0
    %v8753 = vadd.f32 %v8624, %v8752
    %8754 = vdwg.mxu0
    %8755 = vmatprep.subr.mxu0 0.0
    %8756 = vmatpush1.msra.mxu0 0.0
    %8757 = vmatprep.subr.mxu0 0.0
    %8758 = vmatpush1.msra.mxu0 0.0
    %8759 = vmatprep.subr.mxu0 0.0
    %8760 = vmatpush1.msra.mxu0 0.0
    %8761 = vmatprep.subr.mxu0 0.0
    %8762 = vmatpush1.msra.mxu0 0.0
    %8763 = vmatprep.subr.mxu0 0.0
    %8764 = vmatpush1.msra.mxu0 0.0
    %8765 = vmatprep.subr.mxu0 0.0
    %8766 = vmatpush1.msra.mxu0 0.0
    %8767 = vmatprep.subr.mxu0 0.0
    %8768 = vmatpush1.msra.mxu0 0.0
    %8769 = vmatprep.subr.mxu0 0.0
    %8770 = vmatpush1.msra.mxu0 0.0
    %v8771 = vand.u32 %v246, 4294901760
    %8772 = vmatprep.subr.mxu0 %v8771
    %v8773 = vand.u32 %v245, 4294901760
    %8774 = vmatpush1.msra.mxu0 %v8773
    %v8775 = vand.u32 %v222, 4294901760
    %8776 = vmatprep.subr.mxu0 %v8775
    %v8777 = vand.u32 %v221, 4294901760
    %8778 = vmatpush1.msra.mxu0 %v8777
    %v8779 = vand.u32 %v198, 4294901760
    %8780 = vmatprep.subr.mxu0 %v8779
    %v8781 = vand.u32 %v197, 4294901760
    %8782 = vmatpush1.msra.mxu0 %v8781
    %v8783 = vand.u32 %v174, 4294901760
    %8784 = vmatprep.subr.mxu0 %v8783
    %v8785 = vand.u32 %v173, 4294901760
    %8786 = vmatpush1.msra.mxu0 %v8785
    %v8787 = vand.u32 %v150, 4294901760
    %8788 = vmatprep.subr.mxu0 %v8787
    %v8789 = vand.u32 %v149, 4294901760
    %8790 = vmatpush1.msra.mxu0 %v8789
    %v8791 = vand.u32 %v126, 4294901760
    %8792 = vmatprep.subr.mxu0 %v8791
    %v8793 = vand.u32 %v125, 4294901760
    %8794 = vmatpush1.msra.mxu0 %v8793
    %v8795 = vand.u32 %v102, 4294901760
    %8796 = vmatprep.subr.mxu0 %v8795
    %v8797 = vand.u32 %v101, 4294901760
    %8798 = vmatpush1.msra.mxu0 %v8797
    %v8799 = vand.u32 %v78, 4294901760
    %8800 = vmatprep.subr.mxu0 %v8799
    %v8801 = vand.u32 %v77, 4294901760
    %8802 = vmatpush1.msra.mxu0 %v8801
    %8803 = vmatprep.subr.mxu0 0.0
    %8804 = vmatpush2.msra.mxu0 0.0
    %8805 = vmatprep.subr.mxu0 0.0
    %8806 = vmatpush2.msra.mxu0 0.0
    %8807 = vmatprep.subr.mxu0 0.0
    %8808 = vmatpush2.msra.mxu0 0.0
    %8809 = vmatprep.subr.mxu0 0.0
    %8810 = vmatpush2.msra.mxu0 0.0
    %8811 = vmatprep.subr.mxu0 0.0
    %8812 = vmatpush2.msra.mxu0 0.0
    %8813 = vmatprep.subr.mxu0 0.0
    %8814 = vmatpush2.msra.mxu0 0.0
    %8815 = vmatprep.subr.mxu0 0.0
    %8816 = vmatpush2.msra.mxu0 0.0
    %8817 = vmatprep.subr.mxu0 0.0
    %8818 = vmatpush2.msra.mxu0 0.0
    %8819 = vmatprep.subr.mxu0 0.0
    %8820 = vmatpush2.msra.mxu0 0.0
    %8821 = vmatprep.subr.mxu0 0.0
    %8822 = vmatpush2.msra.mxu0 0.0
    %8823 = vmatprep.subr.mxu0 0.0
    %8824 = vmatpush2.msra.mxu0 0.0
    %8825 = vmatprep.subr.mxu0 0.0
    %8826 = vmatpush2.msra.mxu0 0.0
    %8827 = vmatprep.subr.mxu0 0.0
    %8828 = vmatpush2.msra.mxu0 0.0
    %8829 = vmatprep.subr.mxu0 0.0
    %8830 = vmatpush2.msra.mxu0 0.0
    %8831 = vmatprep.subr.mxu0 0.0
    %8832 = vmatpush2.msra.mxu0 0.0
    %8833 = vmatprep.subr.mxu0 0.0
    %8834 = vmatpush2.msra.mxu0 0.0
    %8835 = vmatprep.mubr.f32.mxu0 0.0
    %v8836 = vand.u32 %v377, 4294901760
    %v8837 = vsub.f32 %v377, %v8836
    %v8838 = vand.u32 %v8837, 4294901760
    %8839 = vmatmul.mubr.f32.gmra.mxu0 %v8838
    %v8840 = vpop.f32.mrf.mxu0
    %v8841 = vadd.f32 %v8727, %v8840
    %v8842 = vpop.f32.mrf.mxu0
    %v8843 = vadd.f32 %v8729, %v8842
    %8844 = vmatprep.mubr.f32.mxu0 0.0
    %v8845 = vand.u32 %v380, 4294901760
    %v8846 = vsub.f32 %v380, %v8845
    %v8847 = vand.u32 %v8846, 4294901760
    %8848 = vmatmul.mubr.f32.gmra.mxu0 %v8847
    %v8849 = vpop.f32.mrf.mxu0
    %v8850 = vadd.f32 %v8735, %v8849
    %v8851 = vpop.f32.mrf.mxu0
    %v8852 = vadd.f32 %v8737, %v8851
    %8853 = vmatprep.mubr.f32.mxu0 0.0
    %v8854 = vand.u32 %v383, 4294901760
    %v8855 = vsub.f32 %v383, %v8854
    %v8856 = vand.u32 %v8855, 4294901760
    %8857 = vmatmul.mubr.f32.gmra.mxu0 %v8856
    %v8858 = vpop.f32.mrf.mxu0
    %v8859 = vadd.f32 %v8743, %v8858
    %v8860 = vpop.f32.mrf.mxu0
    %v8861 = vadd.f32 %v8745, %v8860
    %8862 = vmatprep.mubr.f32.mxu0 0.0
    %v8863 = vand.u32 %v386, 4294901760
    %v8864 = vsub.f32 %v386, %v8863
    %v8865 = vand.u32 %v8864, 4294901760
    %8866 = vmatmul.mubr.f32.gmra.mxu0 %v8865
    %v8867 = vpop.f32.mrf.mxu0
    %v8868 = vadd.f32 %v8751, %v8867
    %v8869 = vpop.f32.mrf.mxu0
    %v8870 = vadd.f32 %v8753, %v8869
    %8871 = vdwg.mxu0
    %8872 = vmatprep.subr.mxu0 0.0
    %8873 = vmatpush1.msra.mxu0 0.0
    %8874 = vmatprep.subr.mxu0 0.0
    %8875 = vmatpush1.msra.mxu0 0.0
    %8876 = vmatprep.subr.mxu0 0.0
    %8877 = vmatpush1.msra.mxu0 0.0
    %8878 = vmatprep.subr.mxu0 0.0
    %8879 = vmatpush1.msra.mxu0 0.0
    %8880 = vmatprep.subr.mxu0 0.0
    %8881 = vmatpush1.msra.mxu0 0.0
    %8882 = vmatprep.subr.mxu0 0.0
    %8883 = vmatpush1.msra.mxu0 0.0
    %8884 = vmatprep.subr.mxu0 0.0
    %8885 = vmatpush1.msra.mxu0 0.0
    %8886 = vmatprep.subr.mxu0 0.0
    %8887 = vmatpush1.msra.mxu0 0.0
    %v8888 = vand.u32 %v246, 4294901760
    %v8889 = vsub.f32 %v246, %v8888
    %v8890 = vand.u32 %v8889, 4294901760
    %8891 = vmatprep.subr.mxu0 %v8890
    %v8892 = vand.u32 %v245, 4294901760
    %v8893 = vsub.f32 %v245, %v8892
    %v8894 = vand.u32 %v8893, 4294901760
    %8895 = vmatpush1.msra.mxu0 %v8894
    %v8896 = vand.u32 %v222, 4294901760
    %v8897 = vsub.f32 %v222, %v8896
    %v8898 = vand.u32 %v8897, 4294901760
    %8899 = vmatprep.subr.mxu0 %v8898
    %v8900 = vand.u32 %v221, 4294901760
    %v8901 = vsub.f32 %v221, %v8900
    %v8902 = vand.u32 %v8901, 4294901760
    %8903 = vmatpush1.msra.mxu0 %v8902
    %v8904 = vand.u32 %v198, 4294901760
    %v8905 = vsub.f32 %v198, %v8904
    %v8906 = vand.u32 %v8905, 4294901760
    %8907 = vmatprep.subr.mxu0 %v8906
    %v8908 = vand.u32 %v197, 4294901760
    %v8909 = vsub.f32 %v197, %v8908
    %v8910 = vand.u32 %v8909, 4294901760
    %8911 = vmatpush1.msra.mxu0 %v8910
    %v8912 = vand.u32 %v174, 4294901760
    %v8913 = vsub.f32 %v174, %v8912
    %v8914 = vand.u32 %v8913, 4294901760
    %8915 = vmatprep.subr.mxu0 %v8914
    %v8916 = vand.u32 %v173, 4294901760
    %v8917 = vsub.f32 %v173, %v8916
    %v8918 = vand.u32 %v8917, 4294901760
    %8919 = vmatpush1.msra.mxu0 %v8918
    %v8920 = vand.u32 %v150, 4294901760
    %v8921 = vsub.f32 %v150, %v8920
    %v8922 = vand.u32 %v8921, 4294901760
    %8923 = vmatprep.subr.mxu0 %v8922
    %v8924 = vand.u32 %v149, 4294901760
    %v8925 = vsub.f32 %v149, %v8924
    %v8926 = vand.u32 %v8925, 4294901760
    %8927 = vmatpush1.msra.mxu0 %v8926
    %v8928 = vand.u32 %v126, 4294901760
    %v8929 = vsub.f32 %v126, %v8928
    %v8930 = vand.u32 %v8929, 4294901760
    %8931 = vmatprep.subr.mxu0 %v8930
    %v8932 = vand.u32 %v125, 4294901760
    %v8933 = vsub.f32 %v125, %v8932
    %v8934 = vand.u32 %v8933, 4294901760
    %8935 = vmatpush1.msra.mxu0 %v8934
    %v8936 = vand.u32 %v102, 4294901760
    %v8937 = vsub.f32 %v102, %v8936
    %v8938 = vand.u32 %v8937, 4294901760
    %8939 = vmatprep.subr.mxu0 %v8938
    %v8940 = vand.u32 %v101, 4294901760
    %v8941 = vsub.f32 %v101, %v8940
    %v8942 = vand.u32 %v8941, 4294901760
    %8943 = vmatpush1.msra.mxu0 %v8942
    %v8944 = vand.u32 %v78, 4294901760
    %v8945 = vsub.f32 %v78, %v8944
    %v8946 = vand.u32 %v8945, 4294901760
    %8947 = vmatprep.subr.mxu0 %v8946
    %v8948 = vand.u32 %v77, 4294901760
    %v8949 = vsub.f32 %v77, %v8948
    %v8950 = vand.u32 %v8949, 4294901760
    %8951 = vmatpush1.msra.mxu0 %v8950
    %8952 = vmatprep.subr.mxu0 0.0
    %8953 = vmatpush2.msra.mxu0 0.0
    %8954 = vmatprep.subr.mxu0 0.0
    %8955 = vmatpush2.msra.mxu0 0.0
    %8956 = vmatprep.subr.mxu0 0.0
    %8957 = vmatpush2.msra.mxu0 0.0
    %8958 = vmatprep.subr.mxu0 0.0
    %8959 = vmatpush2.msra.mxu0 0.0
    %8960 = vmatprep.subr.mxu0 0.0
    %8961 = vmatpush2.msra.mxu0 0.0
    %8962 = vmatprep.subr.mxu0 0.0
    %8963 = vmatpush2.msra.mxu0 0.0
    %8964 = vmatprep.subr.mxu0 0.0
    %8965 = vmatpush2.msra.mxu0 0.0
    %8966 = vmatprep.subr.mxu0 0.0
    %8967 = vmatpush2.msra.mxu0 0.0
    %8968 = vmatprep.subr.mxu0 0.0
    %8969 = vmatpush2.msra.mxu0 0.0
    %8970 = vmatprep.subr.mxu0 0.0
    %8971 = vmatpush2.msra.mxu0 0.0
    %8972 = vmatprep.subr.mxu0 0.0
    %8973 = vmatpush2.msra.mxu0 0.0
    %8974 = vmatprep.subr.mxu0 0.0
    %8975 = vmatpush2.msra.mxu0 0.0
    %8976 = vmatprep.subr.mxu0 0.0
    %8977 = vmatpush2.msra.mxu0 0.0
    %8978 = vmatprep.subr.mxu0 0.0
    %8979 = vmatpush2.msra.mxu0 0.0
    %8980 = vmatprep.subr.mxu0 0.0
    %8981 = vmatpush2.msra.mxu0 0.0
    %8982 = vmatprep.subr.mxu0 0.0
    %8983 = vmatpush2.msra.mxu0 0.0
    %8984 = vmatprep.mubr.f32.mxu0 0.0
    %v8985 = vand.u32 %v377, 4294901760
    %8986 = vmatmul.mubr.f32.gmra.mxu0 %v8985
    %v8987 = vpop.f32.mrf.mxu0
    %v8988 = vadd.f32 %v8841, %v8987
    %v8989 = vpop.f32.mrf.mxu0
    %v8990 = vadd.f32 %v8843, %v8989
    %8991 = vmatprep.mubr.f32.mxu0 0.0
    %v8992 = vand.u32 %v380, 4294901760
    %8993 = vmatmul.mubr.f32.gmra.mxu0 %v8992
    %v8994 = vpop.f32.mrf.mxu0
    %v8995 = vadd.f32 %v8850, %v8994
    %v8996 = vpop.f32.mrf.mxu0
    %v8997 = vadd.f32 %v8852, %v8996
    %8998 = vmatprep.mubr.f32.mxu0 0.0
    %v8999 = vand.u32 %v383, 4294901760
    %9000 = vmatmul.mubr.f32.gmra.mxu0 %v8999
    %v9001 = vpop.f32.mrf.mxu0
    %v9002 = vadd.f32 %v8859, %v9001
    %v9003 = vpop.f32.mrf.mxu0
    %v9004 = vadd.f32 %v8861, %v9003
    %9005 = vmatprep.mubr.f32.mxu0 0.0
    %v9006 = vand.u32 %v386, 4294901760
    %9007 = vmatmul.mubr.f32.gmra.mxu0 %v9006
    %v9008 = vpop.f32.mrf.mxu0
    %v9009 = vadd.f32 %v8868, %v9008
    %v9010 = vpop.f32.mrf.mxu0
    %v9011 = vadd.f32 %v8870, %v9010
    %9012 = vdwg.mxu0
    %9013 = vmatprep.subr.mxu0 0.0
    %9014 = vmatpush1.msra.mxu0 0.0
    %9015 = vmatprep.subr.mxu0 0.0
    %9016 = vmatpush1.msra.mxu0 0.0
    %9017 = vmatprep.subr.mxu0 0.0
    %9018 = vmatpush1.msra.mxu0 0.0
    %9019 = vmatprep.subr.mxu0 0.0
    %9020 = vmatpush1.msra.mxu0 0.0
    %9021 = vmatprep.subr.mxu0 0.0
    %9022 = vmatpush1.msra.mxu0 0.0
    %9023 = vmatprep.subr.mxu0 0.0
    %9024 = vmatpush1.msra.mxu0 0.0
    %9025 = vmatprep.subr.mxu0 0.0
    %9026 = vmatpush1.msra.mxu0 0.0
    %9027 = vmatprep.subr.mxu0 0.0
    %9028 = vmatpush1.msra.mxu0 0.0
    %v9029 = vand.u32 %v246, 4294901760
    %9030 = vmatprep.subr.mxu0 %v9029
    %v9031 = vand.u32 %v245, 4294901760
    %9032 = vmatpush1.msra.mxu0 %v9031
    %v9033 = vand.u32 %v222, 4294901760
    %9034 = vmatprep.subr.mxu0 %v9033
    %v9035 = vand.u32 %v221, 4294901760
    %9036 = vmatpush1.msra.mxu0 %v9035
    %v9037 = vand.u32 %v198, 4294901760
    %9038 = vmatprep.subr.mxu0 %v9037
    %v9039 = vand.u32 %v197, 4294901760
    %9040 = vmatpush1.msra.mxu0 %v9039
    %v9041 = vand.u32 %v174, 4294901760
    %9042 = vmatprep.subr.mxu0 %v9041
    %v9043 = vand.u32 %v173, 4294901760
    %9044 = vmatpush1.msra.mxu0 %v9043
    %v9045 = vand.u32 %v150, 4294901760
    %9046 = vmatprep.subr.mxu0 %v9045
    %v9047 = vand.u32 %v149, 4294901760
    %9048 = vmatpush1.msra.mxu0 %v9047
    %v9049 = vand.u32 %v126, 4294901760
    %9050 = vmatprep.subr.mxu0 %v9049
    %v9051 = vand.u32 %v125, 4294901760
    %9052 = vmatpush1.msra.mxu0 %v9051
    %v9053 = vand.u32 %v102, 4294901760
    %9054 = vmatprep.subr.mxu0 %v9053
    %v9055 = vand.u32 %v101, 4294901760
    %9056 = vmatpush1.msra.mxu0 %v9055
    %v9057 = vand.u32 %v78, 4294901760
    %9058 = vmatprep.subr.mxu0 %v9057
    %v9059 = vand.u32 %v77, 4294901760
    %9060 = vmatpush1.msra.mxu0 %v9059
    %9061 = vmatprep.subr.mxu0 0.0
    %9062 = vmatpush2.msra.mxu0 0.0
    %9063 = vmatprep.subr.mxu0 0.0
    %9064 = vmatpush2.msra.mxu0 0.0
    %9065 = vmatprep.subr.mxu0 0.0
    %9066 = vmatpush2.msra.mxu0 0.0
    %9067 = vmatprep.subr.mxu0 0.0
    %9068 = vmatpush2.msra.mxu0 0.0
    %9069 = vmatprep.subr.mxu0 0.0
    %9070 = vmatpush2.msra.mxu0 0.0
    %9071 = vmatprep.subr.mxu0 0.0
    %9072 = vmatpush2.msra.mxu0 0.0
    %9073 = vmatprep.subr.mxu0 0.0
    %9074 = vmatpush2.msra.mxu0 0.0
    %9075 = vmatprep.subr.mxu0 0.0
    %9076 = vmatpush2.msra.mxu0 0.0
    %9077 = vmatprep.subr.mxu0 0.0
    %9078 = vmatpush2.msra.mxu0 0.0
    %9079 = vmatprep.subr.mxu0 0.0
    %9080 = vmatpush2.msra.mxu0 0.0
    %9081 = vmatprep.subr.mxu0 0.0
    %9082 = vmatpush2.msra.mxu0 0.0
    %9083 = vmatprep.subr.mxu0 0.0
    %9084 = vmatpush2.msra.mxu0 0.0
    %9085 = vmatprep.subr.mxu0 0.0
    %9086 = vmatpush2.msra.mxu0 0.0
    %9087 = vmatprep.subr.mxu0 0.0
    %9088 = vmatpush2.msra.mxu0 0.0
    %9089 = vmatprep.subr.mxu0 0.0
    %9090 = vmatpush2.msra.mxu0 0.0
    %9091 = vmatprep.subr.mxu0 0.0
    %9092 = vmatpush2.msra.mxu0 0.0
    %9093 = vmatprep.mubr.f32.mxu0 0.0
    %v9094 = vand.u32 %v377, 4294901760
    %9095 = vmatmul.mubr.f32.gmra.mxu0 %v9094
    %v9096 = vpop.f32.mrf.mxu0
    %v9097 = vadd.f32 %v8988, %v9096
    %v9098 = vpop.f32.mrf.mxu0
    %v9099 = vadd.f32 %v8990, %v9098
    %9100 = vmatprep.mubr.f32.mxu0 0.0
    %v9101 = vand.u32 %v380, 4294901760
    %9102 = vmatmul.mubr.f32.gmra.mxu0 %v9101
    %v9103 = vpop.f32.mrf.mxu0
    %v9104 = vadd.f32 %v8995, %v9103
    %v9105 = vpop.f32.mrf.mxu0
    %v9106 = vadd.f32 %v8997, %v9105
    %9107 = vmatprep.mubr.f32.mxu0 0.0
    %v9108 = vand.u32 %v383, 4294901760
    %9109 = vmatmul.mubr.f32.gmra.mxu0 %v9108
    %v9110 = vpop.f32.mrf.mxu0
    %v9111 = vadd.f32 %v9002, %v9110
    %v9112 = vpop.f32.mrf.mxu0
    %v9113 = vadd.f32 %v9004, %v9112
    %9114 = vmatprep.mubr.f32.mxu0 0.0
    %v9115 = vand.u32 %v386, 4294901760
    %9116 = vmatmul.mubr.f32.gmra.mxu0 %v9115
    %v9117 = vpop.f32.mrf.mxu0
    %v9118 = vadd.f32 %v9009, %v9117
    %v9119 = vpop.f32.mrf.mxu0
    %v9120 = vadd.f32 %v9011, %v9119
    %9121 = vdwg.mxu0
    %9122 = vmatprep.subr.mxu0 0.0
    %9123 = vmatpush1.msra.mxu0 0.0
    %9124 = vmatprep.subr.mxu0 0.0
    %9125 = vmatpush1.msra.mxu0 0.0
    %9126 = vmatprep.subr.mxu0 0.0
    %9127 = vmatpush1.msra.mxu0 0.0
    %9128 = vmatprep.subr.mxu0 0.0
    %9129 = vmatpush1.msra.mxu0 0.0
    %9130 = vmatprep.subr.mxu0 0.0
    %9131 = vmatpush1.msra.mxu0 0.0
    %9132 = vmatprep.subr.mxu0 0.0
    %9133 = vmatpush1.msra.mxu0 0.0
    %9134 = vmatprep.subr.mxu0 0.0
    %9135 = vmatpush1.msra.mxu0 0.0
    %9136 = vmatprep.subr.mxu0 0.0
    %9137 = vmatpush1.msra.mxu0 0.0
    %v9138 = vand.u32 %v248, 4294901760
    %9139 = vmatprep.subr.mxu0 %v9138
    %v9140 = vand.u32 %v247, 4294901760
    %9141 = vmatpush1.msra.mxu0 %v9140
    %v9142 = vand.u32 %v224, 4294901760
    %9143 = vmatprep.subr.mxu0 %v9142
    %v9144 = vand.u32 %v223, 4294901760
    %9145 = vmatpush1.msra.mxu0 %v9144
    %v9146 = vand.u32 %v200, 4294901760
    %9147 = vmatprep.subr.mxu0 %v9146
    %v9148 = vand.u32 %v199, 4294901760
    %9149 = vmatpush1.msra.mxu0 %v9148
    %v9150 = vand.u32 %v176, 4294901760
    %9151 = vmatprep.subr.mxu0 %v9150
    %v9152 = vand.u32 %v175, 4294901760
    %9153 = vmatpush1.msra.mxu0 %v9152
    %v9154 = vand.u32 %v152, 4294901760
    %9155 = vmatprep.subr.mxu0 %v9154
    %v9156 = vand.u32 %v151, 4294901760
    %9157 = vmatpush1.msra.mxu0 %v9156
    %v9158 = vand.u32 %v128, 4294901760
    %9159 = vmatprep.subr.mxu0 %v9158
    %v9160 = vand.u32 %v127, 4294901760
    %9161 = vmatpush1.msra.mxu0 %v9160
    %v9162 = vand.u32 %v104, 4294901760
    %9163 = vmatprep.subr.mxu0 %v9162
    %v9164 = vand.u32 %v103, 4294901760
    %9165 = vmatpush1.msra.mxu0 %v9164
    %v9166 = vand.u32 %v80, 4294901760
    %9167 = vmatprep.subr.mxu0 %v9166
    %v9168 = vand.u32 %v79, 4294901760
    %9169 = vmatpush1.msra.mxu0 %v9168
    %9170 = vmatprep.subr.mxu0 0.0
    %9171 = vmatpush2.msra.mxu0 0.0
    %9172 = vmatprep.subr.mxu0 0.0
    %9173 = vmatpush2.msra.mxu0 0.0
    %9174 = vmatprep.subr.mxu0 0.0
    %9175 = vmatpush2.msra.mxu0 0.0
    %9176 = vmatprep.subr.mxu0 0.0
    %9177 = vmatpush2.msra.mxu0 0.0
    %9178 = vmatprep.subr.mxu0 0.0
    %9179 = vmatpush2.msra.mxu0 0.0
    %9180 = vmatprep.subr.mxu0 0.0
    %9181 = vmatpush2.msra.mxu0 0.0
    %9182 = vmatprep.subr.mxu0 0.0
    %9183 = vmatpush2.msra.mxu0 0.0
    %9184 = vmatprep.subr.mxu0 0.0
    %9185 = vmatpush2.msra.mxu0 0.0
    %9186 = vmatprep.subr.mxu0 0.0
    %9187 = vmatpush2.msra.mxu0 0.0
    %9188 = vmatprep.subr.mxu0 0.0
    %9189 = vmatpush2.msra.mxu0 0.0
    %9190 = vmatprep.subr.mxu0 0.0
    %9191 = vmatpush2.msra.mxu0 0.0
    %9192 = vmatprep.subr.mxu0 0.0
    %9193 = vmatpush2.msra.mxu0 0.0
    %9194 = vmatprep.subr.mxu0 0.0
    %9195 = vmatpush2.msra.mxu0 0.0
    %9196 = vmatprep.subr.mxu0 0.0
    %9197 = vmatpush2.msra.mxu0 0.0
    %9198 = vmatprep.subr.mxu0 0.0
    %9199 = vmatpush2.msra.mxu0 0.0
    %9200 = vmatprep.subr.mxu0 0.0
    %9201 = vmatpush2.msra.mxu0 0.0
    %9202 = vmatprep.mubr.f32.mxu0 0.0
    %v9203 = vand.u32 %v377, 4294901760
    %v9204 = vsub.f32 %v377, %v9203
    %v9205 = vand.u32 %v9204, 4294901760
    %v9206 = vsub.f32 %v9204, %v9205
    %v9207 = vand.u32 %v9206, 4294901760
    %9208 = vmatmul.mubr.f32.gmra.mxu0 %v9207
    %v9209 = vpop.f32.mrf.mxu0
    %v9210 = vadd.f32 %v346, %v9209
    %v9211 = vpop.f32.mrf.mxu0
    %v9212 = vadd.f32 %v350, %v9211
    %9213 = vmatprep.mubr.f32.mxu0 0.0
    %v9214 = vand.u32 %v380, 4294901760
    %v9215 = vsub.f32 %v380, %v9214
    %v9216 = vand.u32 %v9215, 4294901760
    %v9217 = vsub.f32 %v9215, %v9216
    %v9218 = vand.u32 %v9217, 4294901760
    %9219 = vmatmul.mubr.f32.gmra.mxu0 %v9218
    %v9220 = vpop.f32.mrf.mxu0
    %v9221 = vadd.f32 %v346, %v9220
    %v9222 = vpop.f32.mrf.mxu0
    %v9223 = vadd.f32 %v350, %v9222
    %9224 = vmatprep.mubr.f32.mxu0 0.0
    %v9225 = vand.u32 %v383, 4294901760
    %v9226 = vsub.f32 %v383, %v9225
    %v9227 = vand.u32 %v9226, 4294901760
    %v9228 = vsub.f32 %v9226, %v9227
    %v9229 = vand.u32 %v9228, 4294901760
    %9230 = vmatmul.mubr.f32.gmra.mxu0 %v9229
    %v9231 = vpop.f32.mrf.mxu0
    %v9232 = vadd.f32 %v346, %v9231
    %v9233 = vpop.f32.mrf.mxu0
    %v9234 = vadd.f32 %v350, %v9233
    %9235 = vmatprep.mubr.f32.mxu0 0.0
    %v9236 = vand.u32 %v386, 4294901760
    %v9237 = vsub.f32 %v386, %v9236
    %v9238 = vand.u32 %v9237, 4294901760
    %v9239 = vsub.f32 %v9237, %v9238
    %v9240 = vand.u32 %v9239, 4294901760
    %9241 = vmatmul.mubr.f32.gmra.mxu0 %v9240
    %v9242 = vpop.f32.mrf.mxu0
    %v9243 = vadd.f32 %v346, %v9242
    %v9244 = vpop.f32.mrf.mxu0
    %v9245 = vadd.f32 %v350, %v9244
    %9246 = vdwg.mxu0
    %9247 = vmatprep.subr.mxu0 0.0
    %9248 = vmatpush1.msra.mxu0 0.0
    %9249 = vmatprep.subr.mxu0 0.0
    %9250 = vmatpush1.msra.mxu0 0.0
    %9251 = vmatprep.subr.mxu0 0.0
    %9252 = vmatpush1.msra.mxu0 0.0
    %9253 = vmatprep.subr.mxu0 0.0
    %9254 = vmatpush1.msra.mxu0 0.0
    %9255 = vmatprep.subr.mxu0 0.0
    %9256 = vmatpush1.msra.mxu0 0.0
    %9257 = vmatprep.subr.mxu0 0.0
    %9258 = vmatpush1.msra.mxu0 0.0
    %9259 = vmatprep.subr.mxu0 0.0
    %9260 = vmatpush1.msra.mxu0 0.0
    %9261 = vmatprep.subr.mxu0 0.0
    %9262 = vmatpush1.msra.mxu0 0.0
    %v9263 = vand.u32 %v248, 4294901760
    %v9264 = vsub.f32 %v248, %v9263
    %v9265 = vand.u32 %v9264, 4294901760
    %v9266 = vsub.f32 %v9264, %v9265
    %v9267 = vand.u32 %v9266, 4294901760
    %9268 = vmatprep.subr.mxu0 %v9267
    %v9269 = vand.u32 %v247, 4294901760
    %v9270 = vsub.f32 %v247, %v9269
    %v9271 = vand.u32 %v9270, 4294901760
    %v9272 = vsub.f32 %v9270, %v9271
    %v9273 = vand.u32 %v9272, 4294901760
    %9274 = vmatpush1.msra.mxu0 %v9273
    %v9275 = vand.u32 %v224, 4294901760
    %v9276 = vsub.f32 %v224, %v9275
    %v9277 = vand.u32 %v9276, 4294901760
    %v9278 = vsub.f32 %v9276, %v9277
    %v9279 = vand.u32 %v9278, 4294901760
    %9280 = vmatprep.subr.mxu0 %v9279
    %v9281 = vand.u32 %v223, 4294901760
    %v9282 = vsub.f32 %v223, %v9281
    %v9283 = vand.u32 %v9282, 4294901760
    %v9284 = vsub.f32 %v9282, %v9283
    %v9285 = vand.u32 %v9284, 4294901760
    %9286 = vmatpush1.msra.mxu0 %v9285
    %v9287 = vand.u32 %v200, 4294901760
    %v9288 = vsub.f32 %v200, %v9287
    %v9289 = vand.u32 %v9288, 4294901760
    %v9290 = vsub.f32 %v9288, %v9289
    %v9291 = vand.u32 %v9290, 4294901760
    %9292 = vmatprep.subr.mxu0 %v9291
    %v9293 = vand.u32 %v199, 4294901760
    %v9294 = vsub.f32 %v199, %v9293
    %v9295 = vand.u32 %v9294, 4294901760
    %v9296 = vsub.f32 %v9294, %v9295
    %v9297 = vand.u32 %v9296, 4294901760
    %9298 = vmatpush1.msra.mxu0 %v9297
    %v9299 = vand.u32 %v176, 4294901760
    %v9300 = vsub.f32 %v176, %v9299
    %v9301 = vand.u32 %v9300, 4294901760
    %v9302 = vsub.f32 %v9300, %v9301
    %v9303 = vand.u32 %v9302, 4294901760
    %9304 = vmatprep.subr.mxu0 %v9303
    %v9305 = vand.u32 %v175, 4294901760
    %v9306 = vsub.f32 %v175, %v9305
    %v9307 = vand.u32 %v9306, 4294901760
    %v9308 = vsub.f32 %v9306, %v9307
    %v9309 = vand.u32 %v9308, 4294901760
    %9310 = vmatpush1.msra.mxu0 %v9309
    %v9311 = vand.u32 %v152, 4294901760
    %v9312 = vsub.f32 %v152, %v9311
    %v9313 = vand.u32 %v9312, 4294901760
    %v9314 = vsub.f32 %v9312, %v9313
    %v9315 = vand.u32 %v9314, 4294901760
    %9316 = vmatprep.subr.mxu0 %v9315
    %v9317 = vand.u32 %v151, 4294901760
    %v9318 = vsub.f32 %v151, %v9317
    %v9319 = vand.u32 %v9318, 4294901760
    %v9320 = vsub.f32 %v9318, %v9319
    %v9321 = vand.u32 %v9320, 4294901760
    %9322 = vmatpush1.msra.mxu0 %v9321
    %v9323 = vand.u32 %v128, 4294901760
    %v9324 = vsub.f32 %v128, %v9323
    %v9325 = vand.u32 %v9324, 4294901760
    %v9326 = vsub.f32 %v9324, %v9325
    %v9327 = vand.u32 %v9326, 4294901760
    %9328 = vmatprep.subr.mxu0 %v9327
    %v9329 = vand.u32 %v127, 4294901760
    %v9330 = vsub.f32 %v127, %v9329
    %v9331 = vand.u32 %v9330, 4294901760
    %v9332 = vsub.f32 %v9330, %v9331
    %v9333 = vand.u32 %v9332, 4294901760
    %9334 = vmatpush1.msra.mxu0 %v9333
    %v9335 = vand.u32 %v104, 4294901760
    %v9336 = vsub.f32 %v104, %v9335
    %v9337 = vand.u32 %v9336, 4294901760
    %v9338 = vsub.f32 %v9336, %v9337
    %v9339 = vand.u32 %v9338, 4294901760
    %9340 = vmatprep.subr.mxu0 %v9339
    %v9341 = vand.u32 %v103, 4294901760
    %v9342 = vsub.f32 %v103, %v9341
    %v9343 = vand.u32 %v9342, 4294901760
    %v9344 = vsub.f32 %v9342, %v9343
    %v9345 = vand.u32 %v9344, 4294901760
    %9346 = vmatpush1.msra.mxu0 %v9345
    %v9347 = vand.u32 %v80, 4294901760
    %v9348 = vsub.f32 %v80, %v9347
    %v9349 = vand.u32 %v9348, 4294901760
    %v9350 = vsub.f32 %v9348, %v9349
    %v9351 = vand.u32 %v9350, 4294901760
    %9352 = vmatprep.subr.mxu0 %v9351
    %v9353 = vand.u32 %v79, 4294901760
    %v9354 = vsub.f32 %v79, %v9353
    %v9355 = vand.u32 %v9354, 4294901760
    %v9356 = vsub.f32 %v9354, %v9355
    %v9357 = vand.u32 %v9356, 4294901760
    %9358 = vmatpush1.msra.mxu0 %v9357
    %9359 = vmatprep.subr.mxu0 0.0
    %9360 = vmatpush2.msra.mxu0 0.0
    %9361 = vmatprep.subr.mxu0 0.0
    %9362 = vmatpush2.msra.mxu0 0.0
    %9363 = vmatprep.subr.mxu0 0.0
    %9364 = vmatpush2.msra.mxu0 0.0
    %9365 = vmatprep.subr.mxu0 0.0
    %9366 = vmatpush2.msra.mxu0 0.0
    %9367 = vmatprep.subr.mxu0 0.0
    %9368 = vmatpush2.msra.mxu0 0.0
    %9369 = vmatprep.subr.mxu0 0.0
    %9370 = vmatpush2.msra.mxu0 0.0
    %9371 = vmatprep.subr.mxu0 0.0
    %9372 = vmatpush2.msra.mxu0 0.0
    %9373 = vmatprep.subr.mxu0 0.0
    %9374 = vmatpush2.msra.mxu0 0.0
    %9375 = vmatprep.subr.mxu0 0.0
    %9376 = vmatpush2.msra.mxu0 0.0
    %9377 = vmatprep.subr.mxu0 0.0
    %9378 = vmatpush2.msra.mxu0 0.0
    %9379 = vmatprep.subr.mxu0 0.0
    %9380 = vmatpush2.msra.mxu0 0.0
    %9381 = vmatprep.subr.mxu0 0.0
    %9382 = vmatpush2.msra.mxu0 0.0
    %9383 = vmatprep.subr.mxu0 0.0
    %9384 = vmatpush2.msra.mxu0 0.0
    %9385 = vmatprep.subr.mxu0 0.0
    %9386 = vmatpush2.msra.mxu0 0.0
    %9387 = vmatprep.subr.mxu0 0.0
    %9388 = vmatpush2.msra.mxu0 0.0
    %9389 = vmatprep.subr.mxu0 0.0
    %9390 = vmatpush2.msra.mxu0 0.0
    %9391 = vmatprep.mubr.f32.mxu0 0.0
    %v9392 = vand.u32 %v377, 4294901760
    %9393 = vmatmul.mubr.f32.gmra.mxu0 %v9392
    %v9394 = vpop.f32.mrf.mxu0
    %v9395 = vadd.f32 %v9210, %v9394
    %v9396 = vpop.f32.mrf.mxu0
    %v9397 = vadd.f32 %v9212, %v9396
    %9398 = vmatprep.mubr.f32.mxu0 0.0
    %v9399 = vand.u32 %v380, 4294901760
    %9400 = vmatmul.mubr.f32.gmra.mxu0 %v9399
    %v9401 = vpop.f32.mrf.mxu0
    %v9402 = vadd.f32 %v9221, %v9401
    %v9403 = vpop.f32.mrf.mxu0
    %v9404 = vadd.f32 %v9223, %v9403
    %9405 = vmatprep.mubr.f32.mxu0 0.0
    %v9406 = vand.u32 %v383, 4294901760
    %9407 = vmatmul.mubr.f32.gmra.mxu0 %v9406
    %v9408 = vpop.f32.mrf.mxu0
    %v9409 = vadd.f32 %v9232, %v9408
    %v9410 = vpop.f32.mrf.mxu0
    %v9411 = vadd.f32 %v9234, %v9410
    %9412 = vmatprep.mubr.f32.mxu0 0.0
    %v9413 = vand.u32 %v386, 4294901760
    %9414 = vmatmul.mubr.f32.gmra.mxu0 %v9413
    %v9415 = vpop.f32.mrf.mxu0
    %v9416 = vadd.f32 %v9243, %v9415
    %v9417 = vpop.f32.mrf.mxu0
    %v9418 = vadd.f32 %v9245, %v9417
    %9419 = vdwg.mxu0
    %9420 = vmatprep.subr.mxu0 0.0
    %9421 = vmatpush1.msra.mxu0 0.0
    %9422 = vmatprep.subr.mxu0 0.0
    %9423 = vmatpush1.msra.mxu0 0.0
    %9424 = vmatprep.subr.mxu0 0.0
    %9425 = vmatpush1.msra.mxu0 0.0
    %9426 = vmatprep.subr.mxu0 0.0
    %9427 = vmatpush1.msra.mxu0 0.0
    %9428 = vmatprep.subr.mxu0 0.0
    %9429 = vmatpush1.msra.mxu0 0.0
    %9430 = vmatprep.subr.mxu0 0.0
    %9431 = vmatpush1.msra.mxu0 0.0
    %9432 = vmatprep.subr.mxu0 0.0
    %9433 = vmatpush1.msra.mxu0 0.0
    %9434 = vmatprep.subr.mxu0 0.0
    %9435 = vmatpush1.msra.mxu0 0.0
    %v9436 = vand.u32 %v248, 4294901760
    %v9437 = vsub.f32 %v248, %v9436
    %9438 = vmatprep.subr.mxu0 %v9437
    %v9439 = vand.u32 %v247, 4294901760
    %v9440 = vsub.f32 %v247, %v9439
    %9441 = vmatpush1.msra.mxu0 %v9440
    %v9442 = vand.u32 %v224, 4294901760
    %v9443 = vsub.f32 %v224, %v9442
    %9444 = vmatprep.subr.mxu0 %v9443
    %v9445 = vand.u32 %v223, 4294901760
    %v9446 = vsub.f32 %v223, %v9445
    %9447 = vmatpush1.msra.mxu0 %v9446
    %v9448 = vand.u32 %v200, 4294901760
    %v9449 = vsub.f32 %v200, %v9448
    %9450 = vmatprep.subr.mxu0 %v9449
    %v9451 = vand.u32 %v199, 4294901760
    %v9452 = vsub.f32 %v199, %v9451
    %9453 = vmatpush1.msra.mxu0 %v9452
    %v9454 = vand.u32 %v176, 4294901760
    %v9455 = vsub.f32 %v176, %v9454
    %9456 = vmatprep.subr.mxu0 %v9455
    %v9457 = vand.u32 %v175, 4294901760
    %v9458 = vsub.f32 %v175, %v9457
    %9459 = vmatpush1.msra.mxu0 %v9458
    %v9460 = vand.u32 %v152, 4294901760
    %v9461 = vsub.f32 %v152, %v9460
    %9462 = vmatprep.subr.mxu0 %v9461
    %v9463 = vand.u32 %v151, 4294901760
    %v9464 = vsub.f32 %v151, %v9463
    %9465 = vmatpush1.msra.mxu0 %v9464
    %v9466 = vand.u32 %v128, 4294901760
    %v9467 = vsub.f32 %v128, %v9466
    %9468 = vmatprep.subr.mxu0 %v9467
    %v9469 = vand.u32 %v127, 4294901760
    %v9470 = vsub.f32 %v127, %v9469
    %9471 = vmatpush1.msra.mxu0 %v9470
    %v9472 = vand.u32 %v104, 4294901760
    %v9473 = vsub.f32 %v104, %v9472
    %9474 = vmatprep.subr.mxu0 %v9473
    %v9475 = vand.u32 %v103, 4294901760
    %v9476 = vsub.f32 %v103, %v9475
    %9477 = vmatpush1.msra.mxu0 %v9476
    %v9478 = vand.u32 %v80, 4294901760
    %v9479 = vsub.f32 %v80, %v9478
    %9480 = vmatprep.subr.mxu0 %v9479
    %v9481 = vand.u32 %v79, 4294901760
    %v9482 = vsub.f32 %v79, %v9481
    %9483 = vmatpush1.msra.mxu0 %v9482
    %9484 = vmatprep.subr.mxu0 0.0
    %9485 = vmatpush2.msra.mxu0 0.0
    %9486 = vmatprep.subr.mxu0 0.0
    %9487 = vmatpush2.msra.mxu0 0.0
    %9488 = vmatprep.subr.mxu0 0.0
    %9489 = vmatpush2.msra.mxu0 0.0
    %9490 = vmatprep.subr.mxu0 0.0
    %9491 = vmatpush2.msra.mxu0 0.0
    %9492 = vmatprep.subr.mxu0 0.0
    %9493 = vmatpush2.msra.mxu0 0.0
    %9494 = vmatprep.subr.mxu0 0.0
    %9495 = vmatpush2.msra.mxu0 0.0
    %9496 = vmatprep.subr.mxu0 0.0
    %9497 = vmatpush2.msra.mxu0 0.0
    %9498 = vmatprep.subr.mxu0 0.0
    %9499 = vmatpush2.msra.mxu0 0.0
    %9500 = vmatprep.subr.mxu0 0.0
    %9501 = vmatpush2.msra.mxu0 0.0
    %9502 = vmatprep.subr.mxu0 0.0
    %9503 = vmatpush2.msra.mxu0 0.0
    %9504 = vmatprep.subr.mxu0 0.0
    %9505 = vmatpush2.msra.mxu0 0.0
    %9506 = vmatprep.subr.mxu0 0.0
    %9507 = vmatpush2.msra.mxu0 0.0
    %9508 = vmatprep.subr.mxu0 0.0
    %9509 = vmatpush2.msra.mxu0 0.0
    %9510 = vmatprep.subr.mxu0 0.0
    %9511 = vmatpush2.msra.mxu0 0.0
    %9512 = vmatprep.subr.mxu0 0.0
    %9513 = vmatpush2.msra.mxu0 0.0
    %9514 = vmatprep.subr.mxu0 0.0
    %9515 = vmatpush2.msra.mxu0 0.0
    %9516 = vmatprep.mubr.f32.mxu0 0.0
    %v9517 = vand.u32 %v377, 4294901760
    %v9518 = vsub.f32 %v377, %v9517
    %9519 = vmatmul.mubr.f32.gmra.mxu0 %v9518
    %v9520 = vpop.f32.mrf.mxu0
    %v9521 = vadd.f32 %v9395, %v9520
    %v9522 = vpop.f32.mrf.mxu0
    %v9523 = vadd.f32 %v9397, %v9522
    %9524 = vmatprep.mubr.f32.mxu0 0.0
    %v9525 = vand.u32 %v380, 4294901760
    %v9526 = vsub.f32 %v380, %v9525
    %9527 = vmatmul.mubr.f32.gmra.mxu0 %v9526
    %v9528 = vpop.f32.mrf.mxu0
    %v9529 = vadd.f32 %v9402, %v9528
    %v9530 = vpop.f32.mrf.mxu0
    %v9531 = vadd.f32 %v9404, %v9530
    %9532 = vmatprep.mubr.f32.mxu0 0.0
    %v9533 = vand.u32 %v383, 4294901760
    %v9534 = vsub.f32 %v383, %v9533
    %9535 = vmatmul.mubr.f32.gmra.mxu0 %v9534
    %v9536 = vpop.f32.mrf.mxu0
    %v9537 = vadd.f32 %v9409, %v9536
    %v9538 = vpop.f32.mrf.mxu0
    %v9539 = vadd.f32 %v9411, %v9538
    %9540 = vmatprep.mubr.f32.mxu0 0.0
    %v9541 = vand.u32 %v386, 4294901760
    %v9542 = vsub.f32 %v386, %v9541
    %9543 = vmatmul.mubr.f32.gmra.mxu0 %v9542
    %v9544 = vpop.f32.mrf.mxu0
    %v9545 = vadd.f32 %v9416, %v9544
    %v9546 = vpop.f32.mrf.mxu0
    %v9547 = vadd.f32 %v9418, %v9546
    %9548 = vdwg.mxu0
    %9549 = vmatprep.subr.mxu0 0.0
    %9550 = vmatpush1.msra.mxu0 0.0
    %9551 = vmatprep.subr.mxu0 0.0
    %9552 = vmatpush1.msra.mxu0 0.0
    %9553 = vmatprep.subr.mxu0 0.0
    %9554 = vmatpush1.msra.mxu0 0.0
    %9555 = vmatprep.subr.mxu0 0.0
    %9556 = vmatpush1.msra.mxu0 0.0
    %9557 = vmatprep.subr.mxu0 0.0
    %9558 = vmatpush1.msra.mxu0 0.0
    %9559 = vmatprep.subr.mxu0 0.0
    %9560 = vmatpush1.msra.mxu0 0.0
    %9561 = vmatprep.subr.mxu0 0.0
    %9562 = vmatpush1.msra.mxu0 0.0
    %9563 = vmatprep.subr.mxu0 0.0
    %9564 = vmatpush1.msra.mxu0 0.0
    %v9565 = vand.u32 %v248, 4294901760
    %9566 = vmatprep.subr.mxu0 %v9565
    %v9567 = vand.u32 %v247, 4294901760
    %9568 = vmatpush1.msra.mxu0 %v9567
    %v9569 = vand.u32 %v224, 4294901760
    %9570 = vmatprep.subr.mxu0 %v9569
    %v9571 = vand.u32 %v223, 4294901760
    %9572 = vmatpush1.msra.mxu0 %v9571
    %v9573 = vand.u32 %v200, 4294901760
    %9574 = vmatprep.subr.mxu0 %v9573
    %v9575 = vand.u32 %v199, 4294901760
    %9576 = vmatpush1.msra.mxu0 %v9575
    %v9577 = vand.u32 %v176, 4294901760
    %9578 = vmatprep.subr.mxu0 %v9577
    %v9579 = vand.u32 %v175, 4294901760
    %9580 = vmatpush1.msra.mxu0 %v9579
    %v9581 = vand.u32 %v152, 4294901760
    %9582 = vmatprep.subr.mxu0 %v9581
    %v9583 = vand.u32 %v151, 4294901760
    %9584 = vmatpush1.msra.mxu0 %v9583
    %v9585 = vand.u32 %v128, 4294901760
    %9586 = vmatprep.subr.mxu0 %v9585
    %v9587 = vand.u32 %v127, 4294901760
    %9588 = vmatpush1.msra.mxu0 %v9587
    %v9589 = vand.u32 %v104, 4294901760
    %9590 = vmatprep.subr.mxu0 %v9589
    %v9591 = vand.u32 %v103, 4294901760
    %9592 = vmatpush1.msra.mxu0 %v9591
    %v9593 = vand.u32 %v80, 4294901760
    %9594 = vmatprep.subr.mxu0 %v9593
    %v9595 = vand.u32 %v79, 4294901760
    %9596 = vmatpush1.msra.mxu0 %v9595
    %9597 = vmatprep.subr.mxu0 0.0
    %9598 = vmatpush2.msra.mxu0 0.0
    %9599 = vmatprep.subr.mxu0 0.0
    %9600 = vmatpush2.msra.mxu0 0.0
    %9601 = vmatprep.subr.mxu0 0.0
    %9602 = vmatpush2.msra.mxu0 0.0
    %9603 = vmatprep.subr.mxu0 0.0
    %9604 = vmatpush2.msra.mxu0 0.0
    %9605 = vmatprep.subr.mxu0 0.0
    %9606 = vmatpush2.msra.mxu0 0.0
    %9607 = vmatprep.subr.mxu0 0.0
    %9608 = vmatpush2.msra.mxu0 0.0
    %9609 = vmatprep.subr.mxu0 0.0
    %9610 = vmatpush2.msra.mxu0 0.0
    %9611 = vmatprep.subr.mxu0 0.0
    %9612 = vmatpush2.msra.mxu0 0.0
    %9613 = vmatprep.subr.mxu0 0.0
    %9614 = vmatpush2.msra.mxu0 0.0
    %9615 = vmatprep.subr.mxu0 0.0
    %9616 = vmatpush2.msra.mxu0 0.0
    %9617 = vmatprep.subr.mxu0 0.0
    %9618 = vmatpush2.msra.mxu0 0.0
    %9619 = vmatprep.subr.mxu0 0.0
    %9620 = vmatpush2.msra.mxu0 0.0
    %9621 = vmatprep.subr.mxu0 0.0
    %9622 = vmatpush2.msra.mxu0 0.0
    %9623 = vmatprep.subr.mxu0 0.0
    %9624 = vmatpush2.msra.mxu0 0.0
    %9625 = vmatprep.subr.mxu0 0.0
    %9626 = vmatpush2.msra.mxu0 0.0
    %9627 = vmatprep.subr.mxu0 0.0
    %9628 = vmatpush2.msra.mxu0 0.0
    %9629 = vmatprep.mubr.f32.mxu0 0.0
    %v9630 = vand.u32 %v377, 4294901760
    %v9631 = vsub.f32 %v377, %v9630
    %v9632 = vand.u32 %v9631, 4294901760
    %9633 = vmatmul.mubr.f32.gmra.mxu0 %v9632
    %v9634 = vpop.f32.mrf.mxu0
    %v9635 = vadd.f32 %v9521, %v9634
    %v9636 = vpop.f32.mrf.mxu0
    %v9637 = vadd.f32 %v9523, %v9636
    %9638 = vmatprep.mubr.f32.mxu0 0.0
    %v9639 = vand.u32 %v380, 4294901760
    %v9640 = vsub.f32 %v380, %v9639
    %v9641 = vand.u32 %v9640, 4294901760
    %9642 = vmatmul.mubr.f32.gmra.mxu0 %v9641
    %v9643 = vpop.f32.mrf.mxu0
    %v9644 = vadd.f32 %v9529, %v9643
    %v9645 = vpop.f32.mrf.mxu0
    %v9646 = vadd.f32 %v9531, %v9645
    %9647 = vmatprep.mubr.f32.mxu0 0.0
    %v9648 = vand.u32 %v383, 4294901760
    %v9649 = vsub.f32 %v383, %v9648
    %v9650 = vand.u32 %v9649, 4294901760
    %9651 = vmatmul.mubr.f32.gmra.mxu0 %v9650
    %v9652 = vpop.f32.mrf.mxu0
    %v9653 = vadd.f32 %v9537, %v9652
    %v9654 = vpop.f32.mrf.mxu0
    %v9655 = vadd.f32 %v9539, %v9654
    %9656 = vmatprep.mubr.f32.mxu0 0.0
    %v9657 = vand.u32 %v386, 4294901760
    %v9658 = vsub.f32 %v386, %v9657
    %v9659 = vand.u32 %v9658, 4294901760
    %9660 = vmatmul.mubr.f32.gmra.mxu0 %v9659
    %v9661 = vpop.f32.mrf.mxu0
    %v9662 = vadd.f32 %v9545, %v9661
    %v9663 = vpop.f32.mrf.mxu0
    %v9664 = vadd.f32 %v9547, %v9663
    %9665 = vdwg.mxu0
    %9666 = vmatprep.subr.mxu0 0.0
    %9667 = vmatpush1.msra.mxu0 0.0
    %9668 = vmatprep.subr.mxu0 0.0
    %9669 = vmatpush1.msra.mxu0 0.0
    %9670 = vmatprep.subr.mxu0 0.0
    %9671 = vmatpush1.msra.mxu0 0.0
    %9672 = vmatprep.subr.mxu0 0.0
    %9673 = vmatpush1.msra.mxu0 0.0
    %9674 = vmatprep.subr.mxu0 0.0
    %9675 = vmatpush1.msra.mxu0 0.0
    %9676 = vmatprep.subr.mxu0 0.0
    %9677 = vmatpush1.msra.mxu0 0.0
    %9678 = vmatprep.subr.mxu0 0.0
    %9679 = vmatpush1.msra.mxu0 0.0
    %9680 = vmatprep.subr.mxu0 0.0
    %9681 = vmatpush1.msra.mxu0 0.0
    %v9682 = vand.u32 %v248, 4294901760
    %v9683 = vsub.f32 %v248, %v9682
    %v9684 = vand.u32 %v9683, 4294901760
    %9685 = vmatprep.subr.mxu0 %v9684
    %v9686 = vand.u32 %v247, 4294901760
    %v9687 = vsub.f32 %v247, %v9686
    %v9688 = vand.u32 %v9687, 4294901760
    %9689 = vmatpush1.msra.mxu0 %v9688
    %v9690 = vand.u32 %v224, 4294901760
    %v9691 = vsub.f32 %v224, %v9690
    %v9692 = vand.u32 %v9691, 4294901760
    %9693 = vmatprep.subr.mxu0 %v9692
    %v9694 = vand.u32 %v223, 4294901760
    %v9695 = vsub.f32 %v223, %v9694
    %v9696 = vand.u32 %v9695, 4294901760
    %9697 = vmatpush1.msra.mxu0 %v9696
    %v9698 = vand.u32 %v200, 4294901760
    %v9699 = vsub.f32 %v200, %v9698
    %v9700 = vand.u32 %v9699, 4294901760
    %9701 = vmatprep.subr.mxu0 %v9700
    %v9702 = vand.u32 %v199, 4294901760
    %v9703 = vsub.f32 %v199, %v9702
    %v9704 = vand.u32 %v9703, 4294901760
    %9705 = vmatpush1.msra.mxu0 %v9704
    %v9706 = vand.u32 %v176, 4294901760
    %v9707 = vsub.f32 %v176, %v9706
    %v9708 = vand.u32 %v9707, 4294901760
    %9709 = vmatprep.subr.mxu0 %v9708
    %v9710 = vand.u32 %v175, 4294901760
    %v9711 = vsub.f32 %v175, %v9710
    %v9712 = vand.u32 %v9711, 4294901760
    %9713 = vmatpush1.msra.mxu0 %v9712
    %v9714 = vand.u32 %v152, 4294901760
    %v9715 = vsub.f32 %v152, %v9714
    %v9716 = vand.u32 %v9715, 4294901760
    %9717 = vmatprep.subr.mxu0 %v9716
    %v9718 = vand.u32 %v151, 4294901760
    %v9719 = vsub.f32 %v151, %v9718
    %v9720 = vand.u32 %v9719, 4294901760
    %9721 = vmatpush1.msra.mxu0 %v9720
    %v9722 = vand.u32 %v128, 4294901760
    %v9723 = vsub.f32 %v128, %v9722
    %v9724 = vand.u32 %v9723, 4294901760
    %9725 = vmatprep.subr.mxu0 %v9724
    %v9726 = vand.u32 %v127, 4294901760
    %v9727 = vsub.f32 %v127, %v9726
    %v9728 = vand.u32 %v9727, 4294901760
    %9729 = vmatpush1.msra.mxu0 %v9728
    %v9730 = vand.u32 %v104, 4294901760
    %v9731 = vsub.f32 %v104, %v9730
    %v9732 = vand.u32 %v9731, 4294901760
    %9733 = vmatprep.subr.mxu0 %v9732
    %v9734 = vand.u32 %v103, 4294901760
    %v9735 = vsub.f32 %v103, %v9734
    %v9736 = vand.u32 %v9735, 4294901760
    %9737 = vmatpush1.msra.mxu0 %v9736
    %v9738 = vand.u32 %v80, 4294901760
    %v9739 = vsub.f32 %v80, %v9738
    %v9740 = vand.u32 %v9739, 4294901760
    %9741 = vmatprep.subr.mxu0 %v9740
    %v9742 = vand.u32 %v79, 4294901760
    %v9743 = vsub.f32 %v79, %v9742
    %v9744 = vand.u32 %v9743, 4294901760
    %9745 = vmatpush1.msra.mxu0 %v9744
    %9746 = vmatprep.subr.mxu0 0.0
    %9747 = vmatpush2.msra.mxu0 0.0
    %9748 = vmatprep.subr.mxu0 0.0
    %9749 = vmatpush2.msra.mxu0 0.0
    %9750 = vmatprep.subr.mxu0 0.0
    %9751 = vmatpush2.msra.mxu0 0.0
    %9752 = vmatprep.subr.mxu0 0.0
    %9753 = vmatpush2.msra.mxu0 0.0
    %9754 = vmatprep.subr.mxu0 0.0
    %9755 = vmatpush2.msra.mxu0 0.0
    %9756 = vmatprep.subr.mxu0 0.0
    %9757 = vmatpush2.msra.mxu0 0.0
    %9758 = vmatprep.subr.mxu0 0.0
    %9759 = vmatpush2.msra.mxu0 0.0
    %9760 = vmatprep.subr.mxu0 0.0
    %9761 = vmatpush2.msra.mxu0 0.0
    %9762 = vmatprep.subr.mxu0 0.0
    %9763 = vmatpush2.msra.mxu0 0.0
    %9764 = vmatprep.subr.mxu0 0.0
    %9765 = vmatpush2.msra.mxu0 0.0
    %9766 = vmatprep.subr.mxu0 0.0
    %9767 = vmatpush2.msra.mxu0 0.0
    %9768 = vmatprep.subr.mxu0 0.0
    %9769 = vmatpush2.msra.mxu0 0.0
    %9770 = vmatprep.subr.mxu0 0.0
    %9771 = vmatpush2.msra.mxu0 0.0
    %9772 = vmatprep.subr.mxu0 0.0
    %9773 = vmatpush2.msra.mxu0 0.0
    %9774 = vmatprep.subr.mxu0 0.0
    %9775 = vmatpush2.msra.mxu0 0.0
    %9776 = vmatprep.subr.mxu0 0.0
    %9777 = vmatpush2.msra.mxu0 0.0
    %9778 = vmatprep.mubr.f32.mxu0 0.0
    %v9779 = vand.u32 %v377, 4294901760
    %9780 = vmatmul.mubr.f32.gmra.mxu0 %v9779
    %v9781 = vpop.f32.mrf.mxu0
    %v9782 = vadd.f32 %v9635, %v9781
    %v9783 = vpop.f32.mrf.mxu0
    %v9784 = vadd.f32 %v9637, %v9783
    %9785 = vmatprep.mubr.f32.mxu0 0.0
    %v9786 = vand.u32 %v380, 4294901760
    %9787 = vmatmul.mubr.f32.gmra.mxu0 %v9786
    %v9788 = vpop.f32.mrf.mxu0
    %v9789 = vadd.f32 %v9644, %v9788
    %v9790 = vpop.f32.mrf.mxu0
    %v9791 = vadd.f32 %v9646, %v9790
    %9792 = vmatprep.mubr.f32.mxu0 0.0
    %v9793 = vand.u32 %v383, 4294901760
    %9794 = vmatmul.mubr.f32.gmra.mxu0 %v9793
    %v9795 = vpop.f32.mrf.mxu0
    %v9796 = vadd.f32 %v9653, %v9795
    %v9797 = vpop.f32.mrf.mxu0
    %v9798 = vadd.f32 %v9655, %v9797
    %9799 = vmatprep.mubr.f32.mxu0 0.0
    %v9800 = vand.u32 %v386, 4294901760
    %9801 = vmatmul.mubr.f32.gmra.mxu0 %v9800
    %v9802 = vpop.f32.mrf.mxu0
    %v9803 = vadd.f32 %v9662, %v9802
    %v9804 = vpop.f32.mrf.mxu0
    %v9805 = vadd.f32 %v9664, %v9804
    %9806 = vdwg.mxu0
    %9807 = vmatprep.subr.mxu0 0.0
    %9808 = vmatpush1.msra.mxu0 0.0
    %9809 = vmatprep.subr.mxu0 0.0
    %9810 = vmatpush1.msra.mxu0 0.0
    %9811 = vmatprep.subr.mxu0 0.0
    %9812 = vmatpush1.msra.mxu0 0.0
    %9813 = vmatprep.subr.mxu0 0.0
    %9814 = vmatpush1.msra.mxu0 0.0
    %9815 = vmatprep.subr.mxu0 0.0
    %9816 = vmatpush1.msra.mxu0 0.0
    %9817 = vmatprep.subr.mxu0 0.0
    %9818 = vmatpush1.msra.mxu0 0.0
    %9819 = vmatprep.subr.mxu0 0.0
    %9820 = vmatpush1.msra.mxu0 0.0
    %9821 = vmatprep.subr.mxu0 0.0
    %9822 = vmatpush1.msra.mxu0 0.0
    %v9823 = vand.u32 %v248, 4294901760
    %9824 = vmatprep.subr.mxu0 %v9823
    %v9825 = vand.u32 %v247, 4294901760
    %9826 = vmatpush1.msra.mxu0 %v9825
    %v9827 = vand.u32 %v224, 4294901760
    %9828 = vmatprep.subr.mxu0 %v9827
    %v9829 = vand.u32 %v223, 4294901760
    %9830 = vmatpush1.msra.mxu0 %v9829
    %v9831 = vand.u32 %v200, 4294901760
    %9832 = vmatprep.subr.mxu0 %v9831
    %v9833 = vand.u32 %v199, 4294901760
    %9834 = vmatpush1.msra.mxu0 %v9833
    %v9835 = vand.u32 %v176, 4294901760
    %9836 = vmatprep.subr.mxu0 %v9835
    %v9837 = vand.u32 %v175, 4294901760
    %9838 = vmatpush1.msra.mxu0 %v9837
    %v9839 = vand.u32 %v152, 4294901760
    %9840 = vmatprep.subr.mxu0 %v9839
    %v9841 = vand.u32 %v151, 4294901760
    %9842 = vmatpush1.msra.mxu0 %v9841
    %v9843 = vand.u32 %v128, 4294901760
    %9844 = vmatprep.subr.mxu0 %v9843
    %v9845 = vand.u32 %v127, 4294901760
    %9846 = vmatpush1.msra.mxu0 %v9845
    %v9847 = vand.u32 %v104, 4294901760
    %9848 = vmatprep.subr.mxu0 %v9847
    %v9849 = vand.u32 %v103, 4294901760
    %9850 = vmatpush1.msra.mxu0 %v9849
    %v9851 = vand.u32 %v80, 4294901760
    %9852 = vmatprep.subr.mxu0 %v9851
    %v9853 = vand.u32 %v79, 4294901760
    %9854 = vmatpush1.msra.mxu0 %v9853
    %9855 = vmatprep.subr.mxu0 0.0
    %9856 = vmatpush2.msra.mxu0 0.0
    %9857 = vmatprep.subr.mxu0 0.0
    %9858 = vmatpush2.msra.mxu0 0.0
    %9859 = vmatprep.subr.mxu0 0.0
    %9860 = vmatpush2.msra.mxu0 0.0
    %9861 = vmatprep.subr.mxu0 0.0
    %9862 = vmatpush2.msra.mxu0 0.0
    %9863 = vmatprep.subr.mxu0 0.0
    %9864 = vmatpush2.msra.mxu0 0.0
    %9865 = vmatprep.subr.mxu0 0.0
    %9866 = vmatpush2.msra.mxu0 0.0
    %9867 = vmatprep.subr.mxu0 0.0
    %9868 = vmatpush2.msra.mxu0 0.0
    %9869 = vmatprep.subr.mxu0 0.0
    %9870 = vmatpush2.msra.mxu0 0.0
    %9871 = vmatprep.subr.mxu0 0.0
    %9872 = vmatpush2.msra.mxu0 0.0
    %9873 = vmatprep.subr.mxu0 0.0
    %9874 = vmatpush2.msra.mxu0 0.0
    %9875 = vmatprep.subr.mxu0 0.0
    %9876 = vmatpush2.msra.mxu0 0.0
    %9877 = vmatprep.subr.mxu0 0.0
    %9878 = vmatpush2.msra.mxu0 0.0
    %9879 = vmatprep.subr.mxu0 0.0
    %9880 = vmatpush2.msra.mxu0 0.0
    %9881 = vmatprep.subr.mxu0 0.0
    %9882 = vmatpush2.msra.mxu0 0.0
    %9883 = vmatprep.subr.mxu0 0.0
    %9884 = vmatpush2.msra.mxu0 0.0
    %9885 = vmatprep.subr.mxu0 0.0
    %9886 = vmatpush2.msra.mxu0 0.0
    %9887 = vmatprep.mubr.f32.mxu0 0.0
    %v9888 = vand.u32 %v377, 4294901760
    %9889 = vmatmul.mubr.f32.gmra.mxu0 %v9888
    %v9890 = vpop.f32.mrf.mxu0
    %v9891 = vadd.f32 %v9782, %v9890
    %v9892 = vpop.f32.mrf.mxu0
    %v9893 = vadd.f32 %v9784, %v9892
    %9894 = vmatprep.mubr.f32.mxu0 0.0
    %v9895 = vand.u32 %v380, 4294901760
    %9896 = vmatmul.mubr.f32.gmra.mxu0 %v9895
    %v9897 = vpop.f32.mrf.mxu0
    %v9898 = vadd.f32 %v9789, %v9897
    %v9899 = vpop.f32.mrf.mxu0
    %v9900 = vadd.f32 %v9791, %v9899
    %9901 = vmatprep.mubr.f32.mxu0 0.0
    %v9902 = vand.u32 %v383, 4294901760
    %9903 = vmatmul.mubr.f32.gmra.mxu0 %v9902
    %v9904 = vpop.f32.mrf.mxu0
    %v9905 = vadd.f32 %v9796, %v9904
    %v9906 = vpop.f32.mrf.mxu0
    %v9907 = vadd.f32 %v9798, %v9906
    %9908 = vmatprep.mubr.f32.mxu0 0.0
    %v9909 = vand.u32 %v386, 4294901760
    %9910 = vmatmul.mubr.f32.gmra.mxu0 %v9909
    %v9911 = vpop.f32.mrf.mxu0
    %v9912 = vadd.f32 %v9803, %v9911
    %v9913 = vpop.f32.mrf.mxu0
    %v9914 = vadd.f32 %v9805, %v9913
    %9915 = vdwg.mxu0
    %9916 = vst [vmem:[%s3] sm:$0xff] %v1157
    %9917 = vst [vmem:[%s3 + $0x8] sm:$0xff] %v1159
    %9918 = vst [vmem:[%s3 + $0x10] sm:$0xff] %v1951
    %9919 = vst [vmem:[%s3 + $0x18] sm:$0xff] %v1953
    %9920 = vst [vmem:[%s3 + $0x20] sm:$0xff] %v2745
    %9921 = vst [vmem:[%s3 + $0x28] sm:$0xff] %v2747
    %9922 = vst [vmem:[%s3 + $0x30] sm:$0xff] %v3539
    %9923 = vst [vmem:[%s3 + $0x38] sm:$0xff] %v3541
    %9924 = vst [vmem:[%s3 + $0x40] sm:$0xff] %v4333
    %9925 = vst [vmem:[%s3 + $0x48] sm:$0xff] %v4335
    %9926 = vst [vmem:[%s3 + $0x50] sm:$0xff] %v5127
    %9927 = vst [vmem:[%s3 + $0x58] sm:$0xff] %v5129
    %9928 = vst [vmem:[%s3 + $0x60] sm:$0xff] %v5921
    %9929 = vst [vmem:[%s3 + $0x68] sm:$0xff] %v5923
    %9930 = vst [vmem:[%s3 + $0x70] sm:$0xff] %v6715
    %9931 = vst [vmem:[%s3 + $0x78] sm:$0xff] %v6717
    %9932 = vst [vmem:[%s3 + $0x80] sm:$0xff] %v7509
    %9933 = vst [vmem:[%s3 + $0x88] sm:$0xff] %v7511
    %9934 = vst [vmem:[%s3 + $0x90] sm:$0xff] %v8303
    %9935 = vst [vmem:[%s3 + $0x98] sm:$0xff] %v8305
    %9936 = vst [vmem:[%s3 + $0xa0] sm:$0xff] %v9097
    %9937 = vst [vmem:[%s3 + $0xa8] sm:$0xff] %v9099
    %9938 = vst [vmem:[%s3 + $0xb0] sm:$0xff] %v9891
    %9939 = vst [vmem:[%s3 + $0xb8] sm:$0xff] %v9893
    %9940 = vst [vmem:[%s3 + $0xc0] sm:$0xff] %v1164
    %9941 = vst [vmem:[%s3 + $0xc8] sm:$0xff] %v1166
    %9942 = vst [vmem:[%s3 + $0xd0] sm:$0xff] %v1958
    %9943 = vst [vmem:[%s3 + $0xd8] sm:$0xff] %v1960
    %9944 = vst [vmem:[%s3 + $0xe0] sm:$0xff] %v2752
    %9945 = vst [vmem:[%s3 + $0xe8] sm:$0xff] %v2754
    %9946 = vst [vmem:[%s3 + $0xf0] sm:$0xff] %v3546
    %9947 = vst [vmem:[%s3 + $0xf8] sm:$0xff] %v3548
    %9948 = vst [vmem:[%s3 + $0x100] sm:$0xff] %v4340
    %9949 = vst [vmem:[%s3 + $0x108] sm:$0xff] %v4342
    %9950 = vst [vmem:[%s3 + $0x110] sm:$0xff] %v5134
    %9951 = vst [vmem:[%s3 + $0x118] sm:$0xff] %v5136
    %9952 = vst [vmem:[%s3 + $0x120] sm:$0xff] %v5928
    %9953 = vst [vmem:[%s3 + $0x128] sm:$0xff] %v5930
    %9954 = vst [vmem:[%s3 + $0x130] sm:$0xff] %v6722
    %9955 = vst [vmem:[%s3 + $0x138] sm:$0xff] %v6724
    %9956 = vst [vmem:[%s3 + $0x140] sm:$0xff] %v7516
    %9957 = vst [vmem:[%s3 + $0x148] sm:$0xff] %v7518
    %9958 = vst [vmem:[%s3 + $0x150] sm:$0xff] %v8310
    %9959 = vst [vmem:[%s3 + $0x158] sm:$0xff] %v8312
    %9960 = vst [vmem:[%s3 + $0x160] sm:$0xff] %v9104
    %9961 = vst [vmem:[%s3 + $0x168] sm:$0xff] %v9106
    %9962 = vst [vmem:[%s3 + $0x170] sm:$0xff] %v9898
    %9963 = vst [vmem:[%s3 + $0x178] sm:$0xff] %v9900
    %9964 = vst [vmem:[%s3 + $0x180] sm:$0xff] %v1171
    %9965 = vst [vmem:[%s3 + $0x188] sm:$0xff] %v1173
    %9966 = vst [vmem:[%s3 + $0x190] sm:$0xff] %v1965
    %9967 = vst [vmem:[%s3 + $0x198] sm:$0xff] %v1967
    %9968 = vst [vmem:[%s3 + $0x1a0] sm:$0xff] %v2759
    %9969 = vst [vmem:[%s3 + $0x1a8] sm:$0xff] %v2761
    %9970 = vst [vmem:[%s3 + $0x1b0] sm:$0xff] %v3553
    %9971 = vst [vmem:[%s3 + $0x1b8] sm:$0xff] %v3555
    %9972 = vst [vmem:[%s3 + $0x1c0] sm:$0xff] %v4347
    %9973 = vst [vmem:[%s3 + $0x1c8] sm:$0xff] %v4349
    %9974 = vst [vmem:[%s3 + $0x1d0] sm:$0xff] %v5141
    %9975 = vst [vmem:[%s3 + $0x1d8] sm:$0xff] %v5143
    %9976 = vst [vmem:[%s3 + $0x1e0] sm:$0xff] %v5935
    %9977 = vst [vmem:[%s3 + $0x1e8] sm:$0xff] %v5937
    %9978 = vst [vmem:[%s3 + $0x1f0] sm:$0xff] %v6729
    %9979 = vst [vmem:[%s3 + $0x1f8] sm:$0xff] %v6731
    %9980 = vst [vmem:[%s3 + $0x200] sm:$0xff] %v7523
    %9981 = vst [vmem:[%s3 + $0x208] sm:$0xff] %v7525
    %9982 = vst [vmem:[%s3 + $0x210] sm:$0xff] %v8317
    %9983 = vst [vmem:[%s3 + $0x218] sm:$0xff] %v8319
    %9984 = vst [vmem:[%s3 + $0x220] sm:$0xff] %v9111
    %9985 = vst [vmem:[%s3 + $0x228] sm:$0xff] %v9113
    %9986 = vst [vmem:[%s3 + $0x230] sm:$0xff] %v9905
    %9987 = vst [vmem:[%s3 + $0x238] sm:$0xff] %v9907
    %9988 = vst [vmem:[%s3 + $0x240] sm:$0xff] %v1178
    %9989 = vst [vmem:[%s3 + $0x248] sm:$0xff] %v1180
    %9990 = vst [vmem:[%s3 + $0x250] sm:$0xff] %v1972
    %9991 = vst [vmem:[%s3 + $0x258] sm:$0xff] %v1974
    %9992 = vst [vmem:[%s3 + $0x260] sm:$0xff] %v2766
    %9993 = vst [vmem:[%s3 + $0x268] sm:$0xff] %v2768
    %9994 = vst [vmem:[%s3 + $0x270] sm:$0xff] %v3560
    %9995 = vst [vmem:[%s3 + $0x278] sm:$0xff] %v3562
    %9996 = vst [vmem:[%s3 + $0x280] sm:$0xff] %v4354
    %9997 = vst [vmem:[%s3 + $0x288] sm:$0xff] %v4356
    %9998 = vst [vmem:[%s3 + $0x290] sm:$0xff] %v5148
    %9999 = vst [vmem:[%s3 + $0x298] sm:$0xff] %v5150
    %10000 = vst [vmem:[%s3 + $0x2a0] sm:$0xff] %v5942
    %10001 = vst [vmem:[%s3 + $0x2a8] sm:$0xff] %v5944
    %10002 = vst [vmem:[%s3 + $0x2b0] sm:$0xff] %v6736
    %10003 = vst [vmem:[%s3 + $0x2b8] sm:$0xff] %v6738
    %10004 = vst [vmem:[%s3 + $0x2c0] sm:$0xff] %v7530
    %10005 = vst [vmem:[%s3 + $0x2c8] sm:$0xff] %v7532
    %10006 = vst [vmem:[%s3 + $0x2d0] sm:$0xff] %v8324
    %10007 = vst [vmem:[%s3 + $0x2d8] sm:$0xff] %v8326
    %10008 = vst [vmem:[%s3 + $0x2e0] sm:$0xff] %v9118
    %10009 = vst [vmem:[%s3 + $0x2e8] sm:$0xff] %v9120
    %10010 = vst [vmem:[%s3 + $0x2f0] sm:$0xff] %v9912
    %10011 = vst [vmem:[%s3 + $0x2f8] sm:$0xff] %v9914
    // Predicated region
    $region26: #{segmentation_block_forward.1} parent=1 // pred_check
      _
    $region27: #{segmentation_block_forward.1} parent=1 // pred_check_branch
      %10013 = sbr.rel (0) target = $region29
    $region28: #{segmentation_block_forward.1} parent=1 // pred_region
      _
    $region29: #{segmentation_block_forward.1} parent=1 // pred_fallthru
      _
    // Predicated region
    $region30: #{segmentation_block_forward.1} parent=1 // pred_check
      _
    $region31: #{segmentation_block_forward.1} parent=1 // pred_check_branch
      %10015 = sbr.rel (0) target = $region33
    $region32: #{segmentation_block_forward.1} parent=1 // pred_region
      _
    $region33: #{segmentation_block_forward.1} parent=1 // pred_fallthru
      _
    %10016 = vsyncpa [#allocation3], 1
    %10017 = vsyncpa [#allocation5], 1

</llo_original>
